<compile_context>
chip_gen: v7x
topology: tpu7x:2x2x1
jax: 0.10.0
libtpu: 0.0.40
codegen_flags: <defaults>
</compile_context>

<pallas_src>
import jax
import jax.numpy as jnp
from jax.experimental import pallas as pl
from jax.experimental.pallas import tpu as pltpu

D_K = 64
D_V = 64
D_MODEL = 768
N_HEADS = 8
LN_EPS = 1e-5


def mha_kernel(xq_ref, xk_ref, xv_ref, mask_ref,
               wq_ref, wk_ref, wv_ref, wfc_ref,
               gamma_ref, beta_ref,
               out_ref, attn_ref):
    # Per-(batch, query-tile) block; refs carry a leading size-1 batch dim.
    xq = xq_ref[0]                      # [TQ, D_MODEL] bf16 (also the residual)
    xk = xk_ref[0]                      # [S,  D_MODEL] bf16
    xv = xv_ref[0]                      # [S,  D_MODEL] bf16
    masked = mask_ref[0] != 0           # [TQ, S] bool (nonzero == masked)

    wq = wq_ref[...]                    # [D_MODEL, N_HEADS*D_K] bf16
    wk = wk_ref[...]                    # [D_MODEL, N_HEADS*D_K] bf16
    wv = wv_ref[...]                    # [D_MODEL, N_HEADS*D_V] bf16
    wfc = wfc_ref[...]                  # [N_HEADS*D_V, D_MODEL] bf16
    gamma = gamma_ref[...]              # [1, D_MODEL] f32
    beta = beta_ref[...]                # [1, D_MODEL] f32

    tq = xq.shape[0]
    scale = jnp.float32(1.0) / jnp.sqrt(jnp.float32(D_K))
    neg_big = jnp.float32(-1e9)

    # Fused full-width QKV projections (bf16 operands, f32 MXU accumulation).
    q_all = jnp.dot(xq, wq, preferred_element_type=jnp.float32)   # [TQ, 512]
    k_all = jnp.dot(xk, wk, preferred_element_type=jnp.float32)   # [S, 512]
    v_all = jnp.dot(xv, wv, preferred_element_type=jnp.float32)   # [S, 512]

    # bf16 copies feeding the attention matmuls (MXU is bf16-native).
    q16 = q_all.astype(jnp.bfloat16)
    k16 = k_all.astype(jnp.bfloat16)
    v16 = v_all.astype(jnp.bfloat16)

    out_acc = jnp.zeros((tq, D_MODEL), jnp.float32)

    for h in range(N_HEADS):            # static unroll over heads
        sl = slice(h * D_K, (h + 1) * D_K)

        # scores = Q K^T / sqrt(d_k); masked_fill_(-1e9); softmax(dim=-1)
        s = jnp.einsum('qd,kd->qk', q16[:, sl], k16[:, sl],
                       preferred_element_type=jnp.float32) * scale    # [TQ, S]
        s = jnp.where(masked, neg_big, s)
        m = jnp.max(s, axis=-1, keepdims=True)
        e = jnp.exp(s - m)
        denom = jnp.sum(e, axis=-1, keepdims=True)
        p = e * pl.reciprocal(denom, approx=True)                     # softmax
        attn_ref[0, h] = p.astype(attn_ref.dtype)

        # (p @ V_h) @ Wfc_h accumulated into the full-width output (lane-dense,
        # replaces concatenate + single ctx @ Wfc; same total FLOPs).
        ctx_h = jnp.dot(p.astype(jnp.bfloat16), v16[:, sl],
                        preferred_element_type=jnp.float32)           # [TQ, D_V]
        out_acc = out_acc + jnp.dot(ctx_h.astype(jnp.bfloat16), wfc[sl, :],
                                    preferred_element_type=jnp.float32)

    # output projection + residual, then LayerNorm (biased variance, eps=1e-5)
    out = out_acc + xq.astype(jnp.float32)
    mean = jnp.mean(out, axis=-1, keepdims=True)
    var = jnp.mean((out - mean) ** 2, axis=-1, keepdims=True)
    xhat = (out - mean) * jax.lax.rsqrt(var + jnp.float32(LN_EPS))
    out_ref[0] = (xhat * gamma + beta).astype(out_ref.dtype)


def _pick_query_tile(seq_len):
    # Large query tiles when the sequence allows it; otherwise whole-S blocks.
    for t in (256, 128):
        if seq_len % t == 0:
            return t
    return seq_len


def multi_head_attention(input_Q, input_K, input_V, attn_mask,
                         wq, wk, wv, wfc, gamma, beta,
                         attn_dtype=jnp.float32):
    B, S, _ = input_Q.shape
    tq = _pick_query_tile(S)
    n_q_tiles = S // tq

    # bf16 matmul operands cast in the wrapper -> HBM traffic also halved.
    xq16 = input_Q.astype(jnp.bfloat16)
    xk16 = input_K.astype(jnp.bfloat16)
    xv16 = input_V.astype(jnp.bfloat16)
    wq16 = wq.astype(jnp.bfloat16)
    wk16 = wk.astype(jnp.bfloat16)
    wv16 = wv.astype(jnp.bfloat16)
    wfc16 = wfc.astype(jnp.bfloat16)
    mask_i8 = (attn_mask != 0).astype(jnp.int8)
    gamma2 = gamma.reshape(1, D_MODEL).astype(jnp.float32)
    beta2 = beta.reshape(1, D_MODEL).astype(jnp.float32)

    xq_spec = pl.BlockSpec((1, tq, D_MODEL), lambda b, q: (b, q, 0))
    xkv_spec = pl.BlockSpec((1, S, D_MODEL), lambda b, q: (b, 0, 0))
    mask_spec = pl.BlockSpec((1, tq, S), lambda b, q: (b, q, 0))
    wqkv_spec = pl.BlockSpec((D_MODEL, N_HEADS * D_K), lambda b, q: (0, 0))
    wfc_spec = pl.BlockSpec((N_HEADS * D_V, D_MODEL), lambda b, q: (0, 0))
    ln_spec = pl.BlockSpec((1, D_MODEL), lambda b, q: (0, 0))

    out_shapes = (
        jax.ShapeDtypeStruct((B, S, D_MODEL), jnp.float32),
        jax.ShapeDtypeStruct((B, N_HEADS, S, S), attn_dtype),
    )
    out_specs = (
        pl.BlockSpec((1, tq, D_MODEL), lambda b, q: (b, q, 0)),
        pl.BlockSpec((1, N_HEADS, tq, S), lambda b, q: (b, 0, q, 0)),
    )

    fn = pl.pallas_call(
        mha_kernel,
        out_shape=out_shapes,
        grid_spec=pltpu.PrefetchScalarGridSpec(
            num_scalar_prefetch=0,
            grid=(B, n_q_tiles),
            in_specs=[xq_spec, xkv_spec, xkv_spec, mask_spec,
                      wqkv_spec, wqkv_spec, wqkv_spec, wfc_spec,
                      ln_spec, ln_spec],
            out_specs=out_specs,
        ),
        compiler_params=pltpu.CompilerParams(
            dimension_semantics=("parallel", "parallel")),
        # TODO(synk): at very large S with whole-S K/V blocks on v6e/v5e, raise
        # vmem_limit_bytes here and single-buffer the constant weight specs
        # (pipeline_mode=pl.Buffered(1)) to free more VMEM.
    )
    return fn(xq16, xk16, xv16, mask_i8,
              wq16, wk16, wv16, wfc16, gamma2, beta2)


def reference_mha(input_Q, input_K, input_V, attn_mask,
                  wq, wk, wv, wfc, gamma, beta):
    B, S, _ = input_Q.shape
    Q = (input_Q @ wq).reshape(B, S, N_HEADS, D_K).transpose(0, 2, 1, 3)
    K = (input_K @ wk).reshape(B, S, N_HEADS, D_K).transpose(0, 2, 1, 3)
    V = (input_V @ wv).reshape(B, S, N_HEADS, D_V).transpose(0, 2, 1, 3)
    scores = jnp.einsum('bhqd,bhkd->bhqk', Q, K) / jnp.sqrt(jnp.float32(D_K))
    scores = jnp.where(attn_mask[:, None, :, :].astype(bool), -1e9, scores)
    attn = jax.nn.softmax(scores, axis=-1)
    ctx = jnp.einsum('bhqk,bhkd->bhqd', attn, V)
    ctx = ctx.transpose(0, 2, 1, 3).reshape(B, S, N_HEADS * D_V)
    out = ctx @ wfc + input_Q
    mean = jnp.mean(out, axis=-1, keepdims=True)
    var = jnp.mean((out - mean) ** 2, axis=-1, keepdims=True)
    xhat = (out - mean) / jnp.sqrt(var + LN_EPS)
    return xhat * gamma + beta, attn


if __name__ == "__main__":
    key = jax.random.PRNGKey(0)
    kq, kk, kv, km, k1, k2, k3, k4 = jax.random.split(key, 8)

    B, S = 2, 8
    input_Q = jax.random.normal(kq, (B, S, D_MODEL), dtype=jnp.float32)
    input_K = jax.random.normal(kk, (B, S, D_MODEL), dtype=jnp.float32)
    input_V = jax.random.normal(kv, (B, S, D_MODEL), dtype=jnp.float32)
    attn_mask = (jax.random.uniform(km, (B, S, S)) < 0.2).astype(jnp.int32)

    # Deterministic "parameters" (nn.Linear without bias -> x @ W; LN affine).
    scale = 0.02
    wq = scale * jax.random.normal(k1, (D_MODEL, N_HEADS * D_K), dtype=jnp.float32)
    wk = scale * jax.random.normal(k2, (D_MODEL, N_HEADS * D_K), dtype=jnp.float32)
    wv = scale * jax.random.normal(k3, (D_MODEL, N_HEADS * D_V), dtype=jnp.float32)
    wfc = scale * jax.random.normal(k4, (N_HEADS * D_V, D_MODEL), dtype=jnp.float32)
    gamma = jnp.ones((D_MODEL,), dtype=jnp.float32)
    beta = jnp.zeros((D_MODEL,), dtype=jnp.float32)

    out, attn = multi_head_attention(input_Q, input_K, input_V, attn_mask,
                                     wq, wk, wv, wfc, gamma, beta)
    jax.block_until_ready((out, attn))

    ref_out, ref_attn = reference_mha(input_Q, input_K, input_V, attn_mask,
                                      wq, wk, wv, wfc, gamma, beta)
    assert out.shape == (B, S, D_MODEL) and attn.shape == (B, N_HEADS, S, S)
    # bf16 MXU operands -> tolerances loosened vs the f32 reference.
    assert jnp.allclose(attn, ref_attn, atol=1e-2, rtol=1e-2)
    assert jnp.allclose(out, ref_out, atol=3e-2, rtol=3e-2)

    print("KERNEL_OK")
</pallas_src>

<mosaic_0001>
module attributes {stable_mosaic.version = 11 : i64} {
  func.func @mha_kernel(%arg0: i32, %arg1: i32, %arg2: memref<1x8x768xbf16, #tpu.memory_space<vmem>>, %arg3: memref<1x8x768xbf16, #tpu.memory_space<vmem>>, %arg4: memref<1x8x768xbf16, #tpu.memory_space<vmem>>, %arg5: memref<1x8x8xi8, #tpu.memory_space<vmem>>, %arg6: memref<768x512xbf16, #tpu.memory_space<vmem>>, %arg7: memref<768x512xbf16, #tpu.memory_space<vmem>>, %arg8: memref<768x512xbf16, #tpu.memory_space<vmem>>, %arg9: memref<512x768xbf16, #tpu.memory_space<vmem>>, %arg10: memref<1x768xf32, #tpu.memory_space<vmem>>, %arg11: memref<1x768xf32, #tpu.memory_space<vmem>>, %arg12: memref<1x8x768xf32, #tpu.memory_space<vmem>>, %arg13: memref<1x8x8x8xf32, #tpu.memory_space<vmem>>) attributes {dimension_semantics = [#tpu.dimension_semantics<parallel>, #tpu.dimension_semantics<parallel>], iteration_bounds = array<i64: 2, 1>, scalar_prefetch = 0 : i64, scratch_operands = 0 : i64, tpu.core_type = #tpu.core_type<tc>, window_params = [{transform_indices = @transform_0, window_bounds = array<i64: 1, 8, 768>}, {transform_indices = @transform_1, window_bounds = array<i64: 1, 8, 768>}, {transform_indices = @transform_2, window_bounds = array<i64: 1, 8, 768>}, {transform_indices = @transform_3, window_bounds = array<i64: 1, 8, 8>}, {pipeline_mode = #tpu.pipeline_mode<synchronous>, transform_indices = @transform_4, window_bounds = array<i64: 768, 512>}, {pipeline_mode = #tpu.pipeline_mode<synchronous>, transform_indices = @transform_5, window_bounds = array<i64: 768, 512>}, {pipeline_mode = #tpu.pipeline_mode<synchronous>, transform_indices = @transform_6, window_bounds = array<i64: 768, 512>}, {pipeline_mode = #tpu.pipeline_mode<synchronous>, transform_indices = @transform_7, window_bounds = array<i64: 512, 768>}, {pipeline_mode = #tpu.pipeline_mode<synchronous>, transform_indices = @transform_8, window_bounds = array<i64: 1, 768>}, {pipeline_mode = #tpu.pipeline_mode<synchronous>, transform_indices = @transform_9, window_bounds = array<i64: 1, 768>}, {transform_indices = @transform_10, window_bounds = array<i64: 1, 8, 768>}, {transform_indices = @transform_11, window_bounds = array<i64: 1, 8, 8, 8>}]} {
    %c0 = arith.constant 0 : index
    %c0_0 = arith.constant 0 : index
    %c0_1 = arith.constant 0 : index
    %0 = vector.load %arg2[%c0, %c0_0, %c0_1] : memref<1x8x768xbf16, #tpu.memory_space<vmem>>, vector<1x8x768xbf16>
    %1 = vector.shape_cast %0 : vector<1x8x768xbf16> to vector<8x768xbf16>
    %c0_2 = arith.constant 0 : index
    %c0_3 = arith.constant 0 : index
    %c0_4 = arith.constant 0 : index
    %2 = vector.load %arg3[%c0_2, %c0_3, %c0_4] : memref<1x8x768xbf16, #tpu.memory_space<vmem>>, vector<1x8x768xbf16>
    %3 = vector.shape_cast %2 : vector<1x8x768xbf16> to vector<8x768xbf16>
    %c0_5 = arith.constant 0 : index
    %c0_6 = arith.constant 0 : index
    %c0_7 = arith.constant 0 : index
    %4 = vector.load %arg4[%c0_5, %c0_6, %c0_7] : memref<1x8x768xbf16, #tpu.memory_space<vmem>>, vector<1x8x768xbf16>
    %5 = vector.shape_cast %4 : vector<1x8x768xbf16> to vector<8x768xbf16>
    %c0_8 = arith.constant 0 : index
    %c0_9 = arith.constant 0 : index
    %c0_10 = arith.constant 0 : index
    %6 = vector.load %arg5[%c0_8, %c0_9, %c0_10] : memref<1x8x8xi8, #tpu.memory_space<vmem>>, vector<1x8x8xi8>
    %7 = vector.shape_cast %6 : vector<1x8x8xi8> to vector<8x8xi8>
    %c0_i8 = arith.constant 0 : i8
    %8 = vector.broadcast %c0_i8 : i8 to vector<8x8xi8>
    %9 = arith.cmpi ne, %7, %8 : vector<8x8xi8>
    %c0_11 = arith.constant 0 : index
    %c0_12 = arith.constant 0 : index
    %10 = vector.load %arg6[%c0_11, %c0_12] : memref<768x512xbf16, #tpu.memory_space<vmem>>, vector<768x512xbf16>
    %c0_13 = arith.constant 0 : index
    %c0_14 = arith.constant 0 : index
    %11 = vector.load %arg7[%c0_13, %c0_14] : memref<768x512xbf16, #tpu.memory_space<vmem>>, vector<768x512xbf16>
    %c0_15 = arith.constant 0 : index
    %c0_16 = arith.constant 0 : index
    %12 = vector.load %arg8[%c0_15, %c0_16] : memref<768x512xbf16, #tpu.memory_space<vmem>>, vector<768x512xbf16>
    %c0_17 = arith.constant 0 : index
    %c0_18 = arith.constant 0 : index
    %13 = vector.load %arg9[%c0_17, %c0_18] : memref<512x768xbf16, #tpu.memory_space<vmem>>, vector<512x768xbf16>
    %c0_19 = arith.constant 0 : index
    %c0_20 = arith.constant 0 : index
    %14 = vector.load %arg10[%c0_19, %c0_20] : memref<1x768xf32, #tpu.memory_space<vmem>>, vector<1x768xf32>
    %c0_21 = arith.constant 0 : index
    %c0_22 = arith.constant 0 : index
    %15 = vector.load %arg11[%c0_21, %c0_22] : memref<1x768xf32, #tpu.memory_space<vmem>>, vector<1x768xf32>
    %cst = arith.constant 6.400000e+01 : f32
    %16 = math.sqrt %cst : f32
    %cst_23 = arith.constant 1.000000e+00 : f32
    %17 = arith.divf %cst_23, %16 : f32
    %cst_24 = arith.constant dense<0.000000e+00> : vector<8x512xf32>
    %18 = tpu.matmul %1, %10, %cst_24 {dimension_numbers = #tpu.dot_dimension_numbers<[1], [0], [0], [1], [0, 0, 1, 1], [], []>} : vector<8x768xbf16>, vector<768x512xbf16>, vector<8x512xf32> -> vector<8x512xf32>
    %cst_25 = arith.constant dense<0.000000e+00> : vector<8x512xf32>
    %19 = tpu.matmul %3, %11, %cst_25 {dimension_numbers = #tpu.dot_dimension_numbers<[1], [0], [0], [1], [0, 0, 1, 1], [], []>} : vector<8x768xbf16>, vector<768x512xbf16>, vector<8x512xf32> -> vector<8x512xf32>
    %cst_26 = arith.constant dense<0.000000e+00> : vector<8x512xf32>
    %20 = tpu.matmul %5, %12, %cst_26 {dimension_numbers = #tpu.dot_dimension_numbers<[1], [0], [0], [1], [0, 0, 1, 1], [], []>} : vector<8x768xbf16>, vector<768x512xbf16>, vector<8x512xf32> -> vector<8x512xf32>
    %21 = arith.truncf %18 : vector<8x512xf32> to vector<8x512xbf16>
    %22 = arith.truncf %19 : vector<8x512xf32> to vector<8x512xbf16>
    %23 = arith.truncf %20 : vector<8x512xf32> to vector<8x512xbf16>
    %cst_27 = arith.constant 0.000000e+00 : f32
    %24 = vector.broadcast %cst_27 : f32 to vector<8x768xf32>
    %25 = vector.extract_strided_slice %21 {offsets = [0, 0], sizes = [8, 64], strides = [1, 1]} : vector<8x512xbf16> to vector<8x64xbf16>
    %26 = vector.extract_strided_slice %22 {offsets = [0, 0], sizes = [8, 64], strides = [1, 1]} : vector<8x512xbf16> to vector<8x64xbf16>
    "tpu.trace_start"() <{level = 10 : i32, message = "qd,kd->qk"}> : () -> ()
    %cst_28 = arith.constant dense<0.000000e+00> : vector<8x8xf32>
    %27 = tpu.matmul %25, %26, %cst_28 {dimension_numbers = #tpu.dot_dimension_numbers<[1], [1], [0], [0], [0, 0, 1, 0], [], []>} : vector<8x64xbf16>, vector<8x64xbf16>, vector<8x8xf32> -> vector<8x8xf32>
    "tpu.trace_stop"() : () -> ()
    %28 = vector.broadcast %17 : f32 to vector<8x8xf32>
    %29 = arith.mulf %27, %28 : vector<8x8xf32>
    %cst_29 = arith.constant -1.000000e+09 : f32
    %30 = vector.broadcast %cst_29 : f32 to vector<8x8xf32>
    %31 = arith.select %9, %30, %29 : vector<8x8xi1>, vector<8x8xf32>
    %cst_30 = arith.constant dense<0xFF800000> : vector<8xf32>
    %32 = vector.multi_reduction <maximumf>, %31, %cst_30 [1] : vector<8x8xf32> to vector<8xf32>
    %33 = vector.shape_cast %32 : vector<8xf32> to vector<8x1xf32>
    %34 = vector.broadcast %33 : vector<8x1xf32> to vector<8x8xf32>
    %35 = arith.subf %31, %34 : vector<8x8xf32>
    %36 = math.exp %35 : vector<8x8xf32>
    %cst_31 = arith.constant dense<0.000000e+00> : vector<8xf32>
    %37 = vector.multi_reduction <add>, %36, %cst_31 [1] : vector<8x8xf32> to vector<8xf32>
    %38 = vector.shape_cast %37 : vector<8xf32> to vector<8x1xf32>
    %39 = tpu.reciprocal %38 {approx = true} : vector<8x1xf32> -> vector<8x1xf32>
    %40 = vector.broadcast %39 : vector<8x1xf32> to vector<8x8xf32>
    %41 = arith.mulf %36, %40 : vector<8x8xf32>
    %c0_32 = arith.constant 0 : index
    %c0_33 = arith.constant 0 : index
    %c0_34 = arith.constant 0 : index
    %c0_35 = arith.constant 0 : index
    %42 = vector.load %arg13[%c0_32, %c0_33, %c0_34, %c0_35] : memref<1x8x8x8xf32, #tpu.memory_space<vmem>>, vector<1x1x8x8xf32>
    %43 = vector.shape_cast %42 : vector<1x1x8x8xf32> to vector<8x8xf32>
    %44 = vector.shape_cast %41 : vector<8x8xf32> to vector<1x1x8x8xf32>
    tpu.vector_store %arg13[%c0_32, %c0_33, %c0_34, %c0_35], %44 {strides = array<i32>} : memref<1x8x8x8xf32, #tpu.memory_space<vmem>>, vector<1x1x8x8xf32>,
    %45 = arith.truncf %41 : vector<8x8xf32> to vector<8x8xbf16>
    %46 = vector.extract_strided_slice %23 {offsets = [0, 0], sizes = [8, 64], strides = [1, 1]} : vector<8x512xbf16> to vector<8x64xbf16>
    %cst_36 = arith.constant dense<0.000000e+00> : vector<8x64xf32>
    %47 = tpu.matmul %45, %46, %cst_36 {dimension_numbers = #tpu.dot_dimension_numbers<[1], [0], [0], [1], [0, 0, 1, 1], [], []>} : vector<8x8xbf16>, vector<8x64xbf16>, vector<8x64xf32> -> vector<8x64xf32>
    %48 = arith.truncf %47 : vector<8x64xf32> to vector<8x64xbf16>
    %49 = vector.extract_strided_slice %13 {offsets = [0, 0], sizes = [64, 768], strides = [1, 1]} : vector<512x768xbf16> to vector<64x768xbf16>
    %cst_37 = arith.constant dense<0.000000e+00> : vector<8x768xf32>
    %50 = tpu.matmul %48, %49, %cst_37 {dimension_numbers = #tpu.dot_dimension_numbers<[1], [0], [0], [1], [0, 0, 1, 1], [], []>} : vector<8x64xbf16>, vector<64x768xbf16>, vector<8x768xf32> -> vector<8x768xf32>
    %51 = arith.addf %24, %50 : vector<8x768xf32>
    %52 = vector.extract_strided_slice %21 {offsets = [0, 64], sizes = [8, 64], strides = [1, 1]} : vector<8x512xbf16> to vector<8x64xbf16>
    %53 = vector.extract_strided_slice %22 {offsets = [0, 64], sizes = [8, 64], strides = [1, 1]} : vector<8x512xbf16> to vector<8x64xbf16>
    "tpu.trace_start"() <{level = 10 : i32, message = "qd,kd->qk"}> : () -> ()
    %cst_38 = arith.constant dense<0.000000e+00> : vector<8x8xf32>
    %54 = tpu.matmul %52, %53, %cst_38 {dimension_numbers = #tpu.dot_dimension_numbers<[1], [1], [0], [0], [0, 0, 1, 0], [], []>} : vector<8x64xbf16>, vector<8x64xbf16>, vector<8x8xf32> -> vector<8x8xf32>
    "tpu.trace_stop"() : () -> ()
    %55 = vector.broadcast %17 : f32 to vector<8x8xf32>
    %56 = arith.mulf %54, %55 : vector<8x8xf32>
    %cst_39 = arith.constant -1.000000e+09 : f32
    %57 = vector.broadcast %cst_39 : f32 to vector<8x8xf32>
    %58 = arith.select %9, %57, %56 : vector<8x8xi1>, vector<8x8xf32>
    %cst_40 = arith.constant dense<0xFF800000> : vector<8xf32>
    %59 = vector.multi_reduction <maximumf>, %58, %cst_40 [1] : vector<8x8xf32> to vector<8xf32>
    %60 = vector.shape_cast %59 : vector<8xf32> to vector<8x1xf32>
    %61 = vector.broadcast %60 : vector<8x1xf32> to vector<8x8xf32>
    %62 = arith.subf %58, %61 : vector<8x8xf32>
    %63 = math.exp %62 : vector<8x8xf32>
    %cst_41 = arith.constant dense<0.000000e+00> : vector<8xf32>
    %64 = vector.multi_reduction <add>, %63, %cst_41 [1] : vector<8x8xf32> to vector<8xf32>
    %65 = vector.shape_cast %64 : vector<8xf32> to vector<8x1xf32>
    %66 = tpu.reciprocal %65 {approx = true} : vector<8x1xf32> -> vector<8x1xf32>
    %67 = vector.broadcast %66 : vector<8x1xf32> to vector<8x8xf32>
    %68 = arith.mulf %63, %67 : vector<8x8xf32>
    %c0_42 = arith.constant 0 : index
    %c1 = arith.constant 1 : index
    %c0_43 = arith.constant 0 : index
    %c0_44 = arith.constant 0 : index
    %69 = vector.load %arg13[%c0_42, %c1, %c0_43, %c0_44] : memref<1x8x8x8xf32, #tpu.memory_space<vmem>>, vector<1x1x8x8xf32>
    %70 = vector.shape_cast %69 : vector<1x1x8x8xf32> to vector<8x8xf32>
    %71 = vector.shape_cast %68 : vector<8x8xf32> to vector<1x1x8x8xf32>
    tpu.vector_store %arg13[%c0_42, %c1, %c0_43, %c0_44], %71 {strides = array<i32>} : memref<1x8x8x8xf32, #tpu.memory_space<vmem>>, vector<1x1x8x8xf32>,
    %72 = arith.truncf %68 : vector<8x8xf32> to vector<8x8xbf16>
    %73 = vector.extract_strided_slice %23 {offsets = [0, 64], sizes = [8, 64], strides = [1, 1]} : vector<8x512xbf16> to vector<8x64xbf16>
    %cst_45 = arith.constant dense<0.000000e+00> : vector<8x64xf32>
    %74 = tpu.matmul %72, %73, %cst_45 {dimension_numbers = #tpu.dot_dimension_numbers<[1], [0], [0], [1], [0, 0, 1, 1], [], []>} : vector<8x8xbf16>, vector<8x64xbf16>, vector<8x64xf32> -> vector<8x64xf32>
    %75 = arith.truncf %74 : vector<8x64xf32> to vector<8x64xbf16>
    %76 = vector.extract_strided_slice %13 {offsets = [64, 0], sizes = [64, 768], strides = [1, 1]} : vector<512x768xbf16> to vector<64x768xbf16>
    %cst_46 = arith.constant dense<0.000000e+00> : vector<8x768xf32>
    %77 = tpu.matmul %75, %76, %cst_46 {dimension_numbers = #tpu.dot_dimension_numbers<[1], [0], [0], [1], [0, 0, 1, 1], [], []>} : vector<8x64xbf16>, vector<64x768xbf16>, vector<8x768xf32> -> vector<8x768xf32>
    %78 = arith.addf %51, %77 : vector<8x768xf32>
    %79 = vector.extract_strided_slice %21 {offsets = [0, 128], sizes = [8, 64], strides = [1, 1]} : vector<8x512xbf16> to vector<8x64xbf16>
    %80 = vector.extract_strided_slice %22 {offsets = [0, 128], sizes = [8, 64], strides = [1, 1]} : vector<8x512xbf16> to vector<8x64xbf16>
    "tpu.trace_start"() <{level = 10 : i32, message = "qd,kd->qk"}> : () -> ()
    %cst_47 = arith.constant dense<0.000000e+00> : vector<8x8xf32>
    %81 = tpu.matmul %79, %80, %cst_47 {dimension_numbers = #tpu.dot_dimension_numbers<[1], [1], [0], [0], [0, 0, 1, 0], [], []>} : vector<8x64xbf16>, vector<8x64xbf16>, vector<8x8xf32> -> vector<8x8xf32>
    "tpu.trace_stop"() : () -> ()
    %82 = vector.broadcast %17 : f32 to vector<8x8xf32>
    %83 = arith.mulf %81, %82 : vector<8x8xf32>
    %cst_48 = arith.constant -1.000000e+09 : f32
    %84 = vector.broadcast %cst_48 : f32 to vector<8x8xf32>
    %85 = arith.select %9, %84, %83 : vector<8x8xi1>, vector<8x8xf32>
    %cst_49 = arith.constant dense<0xFF800000> : vector<8xf32>
    %86 = vector.multi_reduction <maximumf>, %85, %cst_49 [1] : vector<8x8xf32> to vector<8xf32>
    %87 = vector.shape_cast %86 : vector<8xf32> to vector<8x1xf32>
    %88 = vector.broadcast %87 : vector<8x1xf32> to vector<8x8xf32>
    %89 = arith.subf %85, %88 : vector<8x8xf32>
    %90 = math.exp %89 : vector<8x8xf32>
    %cst_50 = arith.constant dense<0.000000e+00> : vector<8xf32>
    %91 = vector.multi_reduction <add>, %90, %cst_50 [1] : vector<8x8xf32> to vector<8xf32>
    %92 = vector.shape_cast %91 : vector<8xf32> to vector<8x1xf32>
    %93 = tpu.reciprocal %92 {approx = true} : vector<8x1xf32> -> vector<8x1xf32>
    %94 = vector.broadcast %93 : vector<8x1xf32> to vector<8x8xf32>
    %95 = arith.mulf %90, %94 : vector<8x8xf32>
    %c0_51 = arith.constant 0 : index
    %c2 = arith.constant 2 : index
    %c0_52 = arith.constant 0 : index
    %c0_53 = arith.constant 0 : index
    %96 = vector.load %arg13[%c0_51, %c2, %c0_52, %c0_53] : memref<1x8x8x8xf32, #tpu.memory_space<vmem>>, vector<1x1x8x8xf32>
    %97 = vector.shape_cast %96 : vector<1x1x8x8xf32> to vector<8x8xf32>
    %98 = vector.shape_cast %95 : vector<8x8xf32> to vector<1x1x8x8xf32>
    tpu.vector_store %arg13[%c0_51, %c2, %c0_52, %c0_53], %98 {strides = array<i32>} : memref<1x8x8x8xf32, #tpu.memory_space<vmem>>, vector<1x1x8x8xf32>,
    %99 = arith.truncf %95 : vector<8x8xf32> to vector<8x8xbf16>
    %100 = vector.extract_strided_slice %23 {offsets = [0, 128], sizes = [8, 64], strides = [1, 1]} : vector<8x512xbf16> to vector<8x64xbf16>
    %cst_54 = arith.constant dense<0.000000e+00> : vector<8x64xf32>
    %101 = tpu.matmul %99, %100, %cst_54 {dimension_numbers = #tpu.dot_dimension_numbers<[1], [0], [0], [1], [0, 0, 1, 1], [], []>} : vector<8x8xbf16>, vector<8x64xbf16>, vector<8x64xf32> -> vector<8x64xf32>
    %102 = arith.truncf %101 : vector<8x64xf32> to vector<8x64xbf16>
    %103 = vector.extract_strided_slice %13 {offsets = [128, 0], sizes = [64, 768], strides = [1, 1]} : vector<512x768xbf16> to vector<64x768xbf16>
    %cst_55 = arith.constant dense<0.000000e+00> : vector<8x768xf32>
    %104 = tpu.matmul %102, %103, %cst_55 {dimension_numbers = #tpu.dot_dimension_numbers<[1], [0], [0], [1], [0, 0, 1, 1], [], []>} : vector<8x64xbf16>, vector<64x768xbf16>, vector<8x768xf32> -> vector<8x768xf32>
    %105 = arith.addf %78, %104 : vector<8x768xf32>
    %106 = vector.extract_strided_slice %21 {offsets = [0, 192], sizes = [8, 64], strides = [1, 1]} : vector<8x512xbf16> to vector<8x64xbf16>
    %107 = vector.extract_strided_slice %22 {offsets = [0, 192], sizes = [8, 64], strides = [1, 1]} : vector<8x512xbf16> to vector<8x64xbf16>
    "tpu.trace_start"() <{level = 10 : i32, message = "qd,kd->qk"}> : () -> ()
    %cst_56 = arith.constant dense<0.000000e+00> : vector<8x8xf32>
    %108 = tpu.matmul %106, %107, %cst_56 {dimension_numbers = #tpu.dot_dimension_numbers<[1], [1], [0], [0], [0, 0, 1, 0], [], []>} : vector<8x64xbf16>, vector<8x64xbf16>, vector<8x8xf32> -> vector<8x8xf32>
    "tpu.trace_stop"() : () -> ()
    %109 = vector.broadcast %17 : f32 to vector<8x8xf32>
    %110 = arith.mulf %108, %109 : vector<8x8xf32>
    %cst_57 = arith.constant -1.000000e+09 : f32
    %111 = vector.broadcast %cst_57 : f32 to vector<8x8xf32>
    %112 = arith.select %9, %111, %110 : vector<8x8xi1>, vector<8x8xf32>
    %cst_58 = arith.constant dense<0xFF800000> : vector<8xf32>
    %113 = vector.multi_reduction <maximumf>, %112, %cst_58 [1] : vector<8x8xf32> to vector<8xf32>
    %114 = vector.shape_cast %113 : vector<8xf32> to vector<8x1xf32>
    %115 = vector.broadcast %114 : vector<8x1xf32> to vector<8x8xf32>
    %116 = arith.subf %112, %115 : vector<8x8xf32>
    %117 = math.exp %116 : vector<8x8xf32>
    %cst_59 = arith.constant dense<0.000000e+00> : vector<8xf32>
    %118 = vector.multi_reduction <add>, %117, %cst_59 [1] : vector<8x8xf32> to vector<8xf32>
    %119 = vector.shape_cast %118 : vector<8xf32> to vector<8x1xf32>
    %120 = tpu.reciprocal %119 {approx = true} : vector<8x1xf32> -> vector<8x1xf32>
    %121 = vector.broadcast %120 : vector<8x1xf32> to vector<8x8xf32>
    %122 = arith.mulf %117, %121 : vector<8x8xf32>
    %c0_60 = arith.constant 0 : index
    %c3 = arith.constant 3 : index
    %c0_61 = arith.constant 0 : index
    %c0_62 = arith.constant 0 : index
    %123 = vector.load %arg13[%c0_60, %c3, %c0_61, %c0_62] : memref<1x8x8x8xf32, #tpu.memory_space<vmem>>, vector<1x1x8x8xf32>
    %124 = vector.shape_cast %123 : vector<1x1x8x8xf32> to vector<8x8xf32>
    %125 = vector.shape_cast %122 : vector<8x8xf32> to vector<1x1x8x8xf32>
    tpu.vector_store %arg13[%c0_60, %c3, %c0_61, %c0_62], %125 {strides = array<i32>} : memref<1x8x8x8xf32, #tpu.memory_space<vmem>>, vector<1x1x8x8xf32>,
    %126 = arith.truncf %122 : vector<8x8xf32> to vector<8x8xbf16>
    %127 = vector.extract_strided_slice %23 {offsets = [0, 192], sizes = [8, 64], strides = [1, 1]} : vector<8x512xbf16> to vector<8x64xbf16>
    %cst_63 = arith.constant dense<0.000000e+00> : vector<8x64xf32>
    %128 = tpu.matmul %126, %127, %cst_63 {dimension_numbers = #tpu.dot_dimension_numbers<[1], [0], [0], [1], [0, 0, 1, 1], [], []>} : vector<8x8xbf16>, vector<8x64xbf16>, vector<8x64xf32> -> vector<8x64xf32>
    %129 = arith.truncf %128 : vector<8x64xf32> to vector<8x64xbf16>
    %130 = vector.extract_strided_slice %13 {offsets = [192, 0], sizes = [64, 768], strides = [1, 1]} : vector<512x768xbf16> to vector<64x768xbf16>
    %cst_64 = arith.constant dense<0.000000e+00> : vector<8x768xf32>
    %131 = tpu.matmul %129, %130, %cst_64 {dimension_numbers = #tpu.dot_dimension_numbers<[1], [0], [0], [1], [0, 0, 1, 1], [], []>} : vector<8x64xbf16>, vector<64x768xbf16>, vector<8x768xf32> -> vector<8x768xf32>
    %132 = arith.addf %105, %131 : vector<8x768xf32>
    %133 = vector.extract_strided_slice %21 {offsets = [0, 256], sizes = [8, 64], strides = [1, 1]} : vector<8x512xbf16> to vector<8x64xbf16>
    %134 = vector.extract_strided_slice %22 {offsets = [0, 256], sizes = [8, 64], strides = [1, 1]} : vector<8x512xbf16> to vector<8x64xbf16>
    "tpu.trace_start"() <{level = 10 : i32, message = "qd,kd->qk"}> : () -> ()
    %cst_65 = arith.constant dense<0.000000e+00> : vector<8x8xf32>
    %135 = tpu.matmul %133, %134, %cst_65 {dimension_numbers = #tpu.dot_dimension_numbers<[1], [1], [0], [0], [0, 0, 1, 0], [], []>} : vector<8x64xbf16>, vector<8x64xbf16>, vector<8x8xf32> -> vector<8x8xf32>
    "tpu.trace_stop"() : () -> ()
    %136 = vector.broadcast %17 : f32 to vector<8x8xf32>
    %137 = arith.mulf %135, %136 : vector<8x8xf32>
    %cst_66 = arith.constant -1.000000e+09 : f32
    %138 = vector.broadcast %cst_66 : f32 to vector<8x8xf32>
    %139 = arith.select %9, %138, %137 : vector<8x8xi1>, vector<8x8xf32>
    %cst_67 = arith.constant dense<0xFF800000> : vector<8xf32>
    %140 = vector.multi_reduction <maximumf>, %139, %cst_67 [1] : vector<8x8xf32> to vector<8xf32>
    %141 = vector.shape_cast %140 : vector<8xf32> to vector<8x1xf32>
    %142 = vector.broadcast %141 : vector<8x1xf32> to vector<8x8xf32>
    %143 = arith.subf %139, %142 : vector<8x8xf32>
    %144 = math.exp %143 : vector<8x8xf32>
    %cst_68 = arith.constant dense<0.000000e+00> : vector<8xf32>
    %145 = vector.multi_reduction <add>, %144, %cst_68 [1] : vector<8x8xf32> to vector<8xf32>
    %146 = vector.shape_cast %145 : vector<8xf32> to vector<8x1xf32>
    %147 = tpu.reciprocal %146 {approx = true} : vector<8x1xf32> -> vector<8x1xf32>
    %148 = vector.broadcast %147 : vector<8x1xf32> to vector<8x8xf32>
    %149 = arith.mulf %144, %148 : vector<8x8xf32>
    %c0_69 = arith.constant 0 : index
    %c4 = arith.constant 4 : index
    %c0_70 = arith.constant 0 : index
    %c0_71 = arith.constant 0 : index
    %150 = vector.load %arg13[%c0_69, %c4, %c0_70, %c0_71] : memref<1x8x8x8xf32, #tpu.memory_space<vmem>>, vector<1x1x8x8xf32>
    %151 = vector.shape_cast %150 : vector<1x1x8x8xf32> to vector<8x8xf32>
    %152 = vector.shape_cast %149 : vector<8x8xf32> to vector<1x1x8x8xf32>
    tpu.vector_store %arg13[%c0_69, %c4, %c0_70, %c0_71], %152 {strides = array<i32>} : memref<1x8x8x8xf32, #tpu.memory_space<vmem>>, vector<1x1x8x8xf32>,
    %153 = arith.truncf %149 : vector<8x8xf32> to vector<8x8xbf16>
    %154 = vector.extract_strided_slice %23 {offsets = [0, 256], sizes = [8, 64], strides = [1, 1]} : vector<8x512xbf16> to vector<8x64xbf16>
    %cst_72 = arith.constant dense<0.000000e+00> : vector<8x64xf32>
    %155 = tpu.matmul %153, %154, %cst_72 {dimension_numbers = #tpu.dot_dimension_numbers<[1], [0], [0], [1], [0, 0, 1, 1], [], []>} : vector<8x8xbf16>, vector<8x64xbf16>, vector<8x64xf32> -> vector<8x64xf32>
    %156 = arith.truncf %155 : vector<8x64xf32> to vector<8x64xbf16>
    %157 = vector.extract_strided_slice %13 {offsets = [256, 0], sizes = [64, 768], strides = [1, 1]} : vector<512x768xbf16> to vector<64x768xbf16>
    %cst_73 = arith.constant dense<0.000000e+00> : vector<8x768xf32>
    %158 = tpu.matmul %156, %157, %cst_73 {dimension_numbers = #tpu.dot_dimension_numbers<[1], [0], [0], [1], [0, 0, 1, 1], [], []>} : vector<8x64xbf16>, vector<64x768xbf16>, vector<8x768xf32> -> vector<8x768xf32>
    %159 = arith.addf %132, %158 : vector<8x768xf32>
    %160 = vector.extract_strided_slice %21 {offsets = [0, 320], sizes = [8, 64], strides = [1, 1]} : vector<8x512xbf16> to vector<8x64xbf16>
    %161 = vector.extract_strided_slice %22 {offsets = [0, 320], sizes = [8, 64], strides = [1, 1]} : vector<8x512xbf16> to vector<8x64xbf16>
    "tpu.trace_start"() <{level = 10 : i32, message = "qd,kd->qk"}> : () -> ()
    %cst_74 = arith.constant dense<0.000000e+00> : vector<8x8xf32>
    %162 = tpu.matmul %160, %161, %cst_74 {dimension_numbers = #tpu.dot_dimension_numbers<[1], [1], [0], [0], [0, 0, 1, 0], [], []>} : vector<8x64xbf16>, vector<8x64xbf16>, vector<8x8xf32> -> vector<8x8xf32>
    "tpu.trace_stop"() : () -> ()
    %163 = vector.broadcast %17 : f32 to vector<8x8xf32>
    %164 = arith.mulf %162, %163 : vector<8x8xf32>
    %cst_75 = arith.constant -1.000000e+09 : f32
    %165 = vector.broadcast %cst_75 : f32 to vector<8x8xf32>
    %166 = arith.select %9, %165, %164 : vector<8x8xi1>, vector<8x8xf32>
    %cst_76 = arith.constant dense<0xFF800000> : vector<8xf32>
    %167 = vector.multi_reduction <maximumf>, %166, %cst_76 [1] : vector<8x8xf32> to vector<8xf32>
    %168 = vector.shape_cast %167 : vector<8xf32> to vector<8x1xf32>
    %169 = vector.broadcast %168 : vector<8x1xf32> to vector<8x8xf32>
    %170 = arith.subf %166, %169 : vector<8x8xf32>
    %171 = math.exp %170 : vector<8x8xf32>
    %cst_77 = arith.constant dense<0.000000e+00> : vector<8xf32>
    %172 = vector.multi_reduction <add>, %171, %cst_77 [1] : vector<8x8xf32> to vector<8xf32>
    %173 = vector.shape_cast %172 : vector<8xf32> to vector<8x1xf32>
    %174 = tpu.reciprocal %173 {approx = true} : vector<8x1xf32> -> vector<8x1xf32>
    %175 = vector.broadcast %174 : vector<8x1xf32> to vector<8x8xf32>
    %176 = arith.mulf %171, %175 : vector<8x8xf32>
    %c0_78 = arith.constant 0 : index
    %c5 = arith.constant 5 : index
    %c0_79 = arith.constant 0 : index
    %c0_80 = arith.constant 0 : index
    %177 = vector.load %arg13[%c0_78, %c5, %c0_79, %c0_80] : memref<1x8x8x8xf32, #tpu.memory_space<vmem>>, vector<1x1x8x8xf32>
    %178 = vector.shape_cast %177 : vector<1x1x8x8xf32> to vector<8x8xf32>
    %179 = vector.shape_cast %176 : vector<8x8xf32> to vector<1x1x8x8xf32>
    tpu.vector_store %arg13[%c0_78, %c5, %c0_79, %c0_80], %179 {strides = array<i32>} : memref<1x8x8x8xf32, #tpu.memory_space<vmem>>, vector<1x1x8x8xf32>,
    %180 = arith.truncf %176 : vector<8x8xf32> to vector<8x8xbf16>
    %181 = vector.extract_strided_slice %23 {offsets = [0, 320], sizes = [8, 64], strides = [1, 1]} : vector<8x512xbf16> to vector<8x64xbf16>
    %cst_81 = arith.constant dense<0.000000e+00> : vector<8x64xf32>
    %182 = tpu.matmul %180, %181, %cst_81 {dimension_numbers = #tpu.dot_dimension_numbers<[1], [0], [0], [1], [0, 0, 1, 1], [], []>} : vector<8x8xbf16>, vector<8x64xbf16>, vector<8x64xf32> -> vector<8x64xf32>
    %183 = arith.truncf %182 : vector<8x64xf32> to vector<8x64xbf16>
    %184 = vector.extract_strided_slice %13 {offsets = [320, 0], sizes = [64, 768], strides = [1, 1]} : vector<512x768xbf16> to vector<64x768xbf16>
    %cst_82 = arith.constant dense<0.000000e+00> : vector<8x768xf32>
    %185 = tpu.matmul %183, %184, %cst_82 {dimension_numbers = #tpu.dot_dimension_numbers<[1], [0], [0], [1], [0, 0, 1, 1], [], []>} : vector<8x64xbf16>, vector<64x768xbf16>, vector<8x768xf32> -> vector<8x768xf32>
    %186 = arith.addf %159, %185 : vector<8x768xf32>
    %187 = vector.extract_strided_slice %21 {offsets = [0, 384], sizes = [8, 64], strides = [1, 1]} : vector<8x512xbf16> to vector<8x64xbf16>
    %188 = vector.extract_strided_slice %22 {offsets = [0, 384], sizes = [8, 64], strides = [1, 1]} : vector<8x512xbf16> to vector<8x64xbf16>
    "tpu.trace_start"() <{level = 10 : i32, message = "qd,kd->qk"}> : () -> ()
    %cst_83 = arith.constant dense<0.000000e+00> : vector<8x8xf32>
    %189 = tpu.matmul %187, %188, %cst_83 {dimension_numbers = #tpu.dot_dimension_numbers<[1], [1], [0], [0], [0, 0, 1, 0], [], []>} : vector<8x64xbf16>, vector<8x64xbf16>, vector<8x8xf32> -> vector<8x8xf32>
    "tpu.trace_stop"() : () -> ()
    %190 = vector.broadcast %17 : f32 to vector<8x8xf32>
    %191 = arith.mulf %189, %190 : vector<8x8xf32>
    %cst_84 = arith.constant -1.000000e+09 : f32
    %192 = vector.broadcast %cst_84 : f32 to vector<8x8xf32>
    %193 = arith.select %9, %192, %191 : vector<8x8xi1>, vector<8x8xf32>
    %cst_85 = arith.constant dense<0xFF800000> : vector<8xf32>
    %194 = vector.multi_reduction <maximumf>, %193, %cst_85 [1] : vector<8x8xf32> to vector<8xf32>
    %195 = vector.shape_cast %194 : vector<8xf32> to vector<8x1xf32>
    %196 = vector.broadcast %195 : vector<8x1xf32> to vector<8x8xf32>
    %197 = arith.subf %193, %196 : vector<8x8xf32>
    %198 = math.exp %197 : vector<8x8xf32>
    %cst_86 = arith.constant dense<0.000000e+00> : vector<8xf32>
    %199 = vector.multi_reduction <add>, %198, %cst_86 [1] : vector<8x8xf32> to vector<8xf32>
    %200 = vector.shape_cast %199 : vector<8xf32> to vector<8x1xf32>
    %201 = tpu.reciprocal %200 {approx = true} : vector<8x1xf32> -> vector<8x1xf32>
    %202 = vector.broadcast %201 : vector<8x1xf32> to vector<8x8xf32>
    %203 = arith.mulf %198, %202 : vector<8x8xf32>
    %c0_87 = arith.constant 0 : index
    %c6 = arith.constant 6 : index
    %c0_88 = arith.constant 0 : index
    %c0_89 = arith.constant 0 : index
    %204 = vector.load %arg13[%c0_87, %c6, %c0_88, %c0_89] : memref<1x8x8x8xf32, #tpu.memory_space<vmem>>, vector<1x1x8x8xf32>
    %205 = vector.shape_cast %204 : vector<1x1x8x8xf32> to vector<8x8xf32>
    %206 = vector.shape_cast %203 : vector<8x8xf32> to vector<1x1x8x8xf32>
    tpu.vector_store %arg13[%c0_87, %c6, %c0_88, %c0_89], %206 {strides = array<i32>} : memref<1x8x8x8xf32, #tpu.memory_space<vmem>>, vector<1x1x8x8xf32>,
    %207 = arith.truncf %203 : vector<8x8xf32> to vector<8x8xbf16>
    %208 = vector.extract_strided_slice %23 {offsets = [0, 384], sizes = [8, 64], strides = [1, 1]} : vector<8x512xbf16> to vector<8x64xbf16>
    %cst_90 = arith.constant dense<0.000000e+00> : vector<8x64xf32>
    %209 = tpu.matmul %207, %208, %cst_90 {dimension_numbers = #tpu.dot_dimension_numbers<[1], [0], [0], [1], [0, 0, 1, 1], [], []>} : vector<8x8xbf16>, vector<8x64xbf16>, vector<8x64xf32> -> vector<8x64xf32>
    %210 = arith.truncf %209 : vector<8x64xf32> to vector<8x64xbf16>
    %211 = vector.extract_strided_slice %13 {offsets = [384, 0], sizes = [64, 768], strides = [1, 1]} : vector<512x768xbf16> to vector<64x768xbf16>
    %cst_91 = arith.constant dense<0.000000e+00> : vector<8x768xf32>
    %212 = tpu.matmul %210, %211, %cst_91 {dimension_numbers = #tpu.dot_dimension_numbers<[1], [0], [0], [1], [0, 0, 1, 1], [], []>} : vector<8x64xbf16>, vector<64x768xbf16>, vector<8x768xf32> -> vector<8x768xf32>
    %213 = arith.addf %186, %212 : vector<8x768xf32>
    %214 = vector.extract_strided_slice %21 {offsets = [0, 448], sizes = [8, 64], strides = [1, 1]} : vector<8x512xbf16> to vector<8x64xbf16>
    %215 = vector.extract_strided_slice %22 {offsets = [0, 448], sizes = [8, 64], strides = [1, 1]} : vector<8x512xbf16> to vector<8x64xbf16>
    "tpu.trace_start"() <{level = 10 : i32, message = "qd,kd->qk"}> : () -> ()
    %cst_92 = arith.constant dense<0.000000e+00> : vector<8x8xf32>
    %216 = tpu.matmul %214, %215, %cst_92 {dimension_numbers = #tpu.dot_dimension_numbers<[1], [1], [0], [0], [0, 0, 1, 0], [], []>} : vector<8x64xbf16>, vector<8x64xbf16>, vector<8x8xf32> -> vector<8x8xf32>
    "tpu.trace_stop"() : () -> ()
    %217 = vector.broadcast %17 : f32 to vector<8x8xf32>
    %218 = arith.mulf %216, %217 : vector<8x8xf32>
    %cst_93 = arith.constant -1.000000e+09 : f32
    %219 = vector.broadcast %cst_93 : f32 to vector<8x8xf32>
    %220 = arith.select %9, %219, %218 : vector<8x8xi1>, vector<8x8xf32>
    %cst_94 = arith.constant dense<0xFF800000> : vector<8xf32>
    %221 = vector.multi_reduction <maximumf>, %220, %cst_94 [1] : vector<8x8xf32> to vector<8xf32>
    %222 = vector.shape_cast %221 : vector<8xf32> to vector<8x1xf32>
    %223 = vector.broadcast %222 : vector<8x1xf32> to vector<8x8xf32>
    %224 = arith.subf %220, %223 : vector<8x8xf32>
    %225 = math.exp %224 : vector<8x8xf32>
    %cst_95 = arith.constant dense<0.000000e+00> : vector<8xf32>
    %226 = vector.multi_reduction <add>, %225, %cst_95 [1] : vector<8x8xf32> to vector<8xf32>
    %227 = vector.shape_cast %226 : vector<8xf32> to vector<8x1xf32>
    %228 = tpu.reciprocal %227 {approx = true} : vector<8x1xf32> -> vector<8x1xf32>
    %229 = vector.broadcast %228 : vector<8x1xf32> to vector<8x8xf32>
    %230 = arith.mulf %225, %229 : vector<8x8xf32>
    %c0_96 = arith.constant 0 : index
    %c7 = arith.constant 7 : index
    %c0_97 = arith.constant 0 : index
    %c0_98 = arith.constant 0 : index
    %231 = vector.load %arg13[%c0_96, %c7, %c0_97, %c0_98] : memref<1x8x8x8xf32, #tpu.memory_space<vmem>>, vector<1x1x8x8xf32>
    %232 = vector.shape_cast %231 : vector<1x1x8x8xf32> to vector<8x8xf32>
    %233 = vector.shape_cast %230 : vector<8x8xf32> to vector<1x1x8x8xf32>
    tpu.vector_store %arg13[%c0_96, %c7, %c0_97, %c0_98], %233 {strides = array<i32>} : memref<1x8x8x8xf32, #tpu.memory_space<vmem>>, vector<1x1x8x8xf32>,
    %234 = arith.truncf %230 : vector<8x8xf32> to vector<8x8xbf16>
    %235 = vector.extract_strided_slice %23 {offsets = [0, 448], sizes = [8, 64], strides = [1, 1]} : vector<8x512xbf16> to vector<8x64xbf16>
    %cst_99 = arith.constant dense<0.000000e+00> : vector<8x64xf32>
    %236 = tpu.matmul %234, %235, %cst_99 {dimension_numbers = #tpu.dot_dimension_numbers<[1], [0], [0], [1], [0, 0, 1, 1], [], []>} : vector<8x8xbf16>, vector<8x64xbf16>, vector<8x64xf32> -> vector<8x64xf32>
    %237 = arith.truncf %236 : vector<8x64xf32> to vector<8x64xbf16>
    %238 = vector.extract_strided_slice %13 {offsets = [448, 0], sizes = [64, 768], strides = [1, 1]} : vector<512x768xbf16> to vector<64x768xbf16>
    %cst_100 = arith.constant dense<0.000000e+00> : vector<8x768xf32>
    %239 = tpu.matmul %237, %238, %cst_100 {dimension_numbers = #tpu.dot_dimension_numbers<[1], [0], [0], [1], [0, 0, 1, 1], [], []>} : vector<8x64xbf16>, vector<64x768xbf16>, vector<8x768xf32> -> vector<8x768xf32>
    %240 = arith.addf %213, %239 : vector<8x768xf32>
    %241 = arith.extf %1 : vector<8x768xbf16> to vector<8x768xf32>
    %242 = arith.addf %240, %241 : vector<8x768xf32>
    %cst_101 = arith.constant dense<0.000000e+00> : vector<8xf32>
    %243 = vector.multi_reduction <add>, %242, %cst_101 [1] : vector<8x768xf32> to vector<8xf32>
    %244 = vector.shape_cast %243 : vector<8xf32> to vector<8x1xf32>
    %cst_102 = arith.constant 7.680000e+02 : f32
    %245 = vector.broadcast %cst_102 : f32 to vector<8x1xf32>
    %246 = arith.divf %244, %245 : vector<8x1xf32>
    %247 = vector.broadcast %246 : vector<8x1xf32> to vector<8x768xf32>
    %248 = arith.subf %242, %247 : vector<8x768xf32>
    %249 = arith.mulf %248, %248 : vector<8x768xf32>
    %cst_103 = arith.constant dense<0.000000e+00> : vector<8xf32>
    %250 = vector.multi_reduction <add>, %249, %cst_103 [1] : vector<8x768xf32> to vector<8xf32>
    %251 = vector.shape_cast %250 : vector<8xf32> to vector<8x1xf32>
    %cst_104 = arith.constant 7.680000e+02 : f32
    %252 = vector.broadcast %cst_104 : f32 to vector<8x1xf32>
    %253 = arith.divf %251, %252 : vector<8x1xf32>
    %254 = vector.broadcast %246 : vector<8x1xf32> to vector<8x768xf32>
    %255 = arith.subf %242, %254 : vector<8x768xf32>
    %cst_105 = arith.constant 9.99999974E-6 : f32
    %256 = vector.broadcast %cst_105 : f32 to vector<8x1xf32>
    %257 = arith.addf %253, %256 : vector<8x1xf32>
    %258 = math.rsqrt %257 : vector<8x1xf32>
    %259 = vector.broadcast %258 : vector<8x1xf32> to vector<8x768xf32>
    %260 = arith.mulf %255, %259 : vector<8x768xf32>
    %261 = vector.broadcast %14 : vector<1x768xf32> to vector<8x768xf32>
    %262 = arith.mulf %260, %261 : vector<8x768xf32>
    %263 = vector.broadcast %15 : vector<1x768xf32> to vector<8x768xf32>
    %264 = arith.addf %262, %263 : vector<8x768xf32>
    %c0_106 = arith.constant 0 : index
    %c0_107 = arith.constant 0 : index
    %c0_108 = arith.constant 0 : index
    %265 = vector.load %arg12[%c0_106, %c0_107, %c0_108] : memref<1x8x768xf32, #tpu.memory_space<vmem>>, vector<1x8x768xf32>
    %266 = vector.shape_cast %265 : vector<1x8x768xf32> to vector<8x768xf32>
    %267 = vector.shape_cast %264 : vector<8x768xf32> to vector<1x8x768xf32>
    tpu.vector_store %arg12[%c0_106, %c0_107, %c0_108], %267 {strides = array<i32>} : memref<1x8x768xf32, #tpu.memory_space<vmem>>, vector<1x8x768xf32>,
    return
  }
  func.func @transform_0(%arg0: i32, %arg1: i32) -> (i32, i32, i32) {
    %c0_i32 = arith.constant 0 : i32
    %c0_i32_0 = arith.constant 0 : i32
    return %arg0, %arg1, %c0_i32 : i32, i32, i32
  }
  func.func @transform_1(%arg0: i32, %arg1: i32) -> (i32, i32, i32) {
    %c0_i32 = arith.constant 0 : i32
    %c0_i32_0 = arith.constant 0 : i32
    %c0_i32_1 = arith.constant 0 : i32
    return %arg0, %c0_i32, %c0_i32_0 : i32, i32, i32
  }
  func.func @transform_2(%arg0: i32, %arg1: i32) -> (i32, i32, i32) {
    %c0_i32 = arith.constant 0 : i32
    %c0_i32_0 = arith.constant 0 : i32
    %c0_i32_1 = arith.constant 0 : i32
    return %arg0, %c0_i32, %c0_i32_0 : i32, i32, i32
  }
  func.func @transform_3(%arg0: i32, %arg1: i32) -> (i32, i32, i32) {
    %c0_i32 = arith.constant 0 : i32
    %c0_i32_0 = arith.constant 0 : i32
    return %arg0, %arg1, %c0_i32 : i32, i32, i32
  }
  func.func @transform_4(%arg0: i32, %arg1: i32) -> (i32, i32) {
    %c0_i32 = arith.constant 0 : i32
    %c0_i32_0 = arith.constant 0 : i32
    %c0_i32_1 = arith.constant 0 : i32
    return %c0_i32, %c0_i32_0 : i32, i32
  }
  func.func @transform_5(%arg0: i32, %arg1: i32) -> (i32, i32) {
    %c0_i32 = arith.constant 0 : i32
    %c0_i32_0 = arith.constant 0 : i32
    %c0_i32_1 = arith.constant 0 : i32
    return %c0_i32, %c0_i32_0 : i32, i32
  }
  func.func @transform_6(%arg0: i32, %arg1: i32) -> (i32, i32) {
    %c0_i32 = arith.constant 0 : i32
    %c0_i32_0 = arith.constant 0 : i32
    %c0_i32_1 = arith.constant 0 : i32
    return %c0_i32, %c0_i32_0 : i32, i32
  }
  func.func @transform_7(%arg0: i32, %arg1: i32) -> (i32, i32) {
    %c0_i32 = arith.constant 0 : i32
    %c0_i32_0 = arith.constant 0 : i32
    %c0_i32_1 = arith.constant 0 : i32
    return %c0_i32, %c0_i32_0 : i32, i32
  }
  func.func @transform_8(%arg0: i32, %arg1: i32) -> (i32, i32) {
    %c0_i32 = arith.constant 0 : i32
    %c0_i32_0 = arith.constant 0 : i32
    %c0_i32_1 = arith.constant 0 : i32
    return %c0_i32, %c0_i32_0 : i32, i32
  }
  func.func @transform_9(%arg0: i32, %arg1: i32) -> (i32, i32) {
    %c0_i32 = arith.constant 0 : i32
    %c0_i32_0 = arith.constant 0 : i32
    %c0_i32_1 = arith.constant 0 : i32
    return %c0_i32, %c0_i32_0 : i32, i32
  }
  func.func @transform_10(%arg0: i32, %arg1: i32) -> (i32, i32, i32) {
    %c0_i32 = arith.constant 0 : i32
    %c0_i32_0 = arith.constant 0 : i32
    return %arg0, %arg1, %c0_i32 : i32, i32, i32
  }
  func.func @transform_11(%arg0: i32, %arg1: i32) -> (i32, i32, i32, i32) {
    %c0_i32 = arith.constant 0 : i32
    %c0_i32_0 = arith.constant 0 : i32
    %c0_i32_1 = arith.constant 0 : i32
    return %arg0, %c0_i32, %arg1, %c0_i32_0 : i32, i32, i32, i32
  }
}

</mosaic_0001>

<llo_original>
// kernel: tpu_custom_call.1
$region0: #{tpu_custom_call.1}
  #allocation0 [shape = 'u32[]', space=smem, size = 0x4, offset = 0x4, fixed_abs, tag = 'smem constant byte address 0x4 - core index']
  #allocation1 [shape = 'u32[144,128]{1,0:T(1,128)}', space=vmem, size = 0x12000, scoped, tag = 'internal scratch']
  %s0 = inlined_call_operand.hbm [shape: bf16[2,8,768], index: 0, kind: input, shape index: {}]
  %s1 = inlined_call_operand.hbm [shape: bf16[2,8,768], index: 1, kind: input, shape index: {}]
  %s2 = inlined_call_operand.hbm [shape: bf16[2,8,768], index: 2, kind: input, shape index: {}]
  %s3 = inlined_call_operand.hbm [shape: s8[2,8,8], index: 3, kind: input, shape index: {}]
  %s4 = inlined_call_operand.hbm [shape: bf16[768,512], index: 4, kind: input, shape index: {}]
  %s5 = inlined_call_operand.hbm [shape: bf16[768,512], index: 5, kind: input, shape index: {}]
  %s6 = inlined_call_operand.hbm [shape: bf16[768,512], index: 6, kind: input, shape index: {}]
  %s7 = inlined_call_operand.hbm [shape: bf16[512,768], index: 7, kind: input, shape index: {}]
  %s8 = inlined_call_operand.vmem [shape: f32[1,768], index: 8, kind: input, shape index: {}]
  %s9 = inlined_call_operand.vmem [shape: f32[1,768], index: 9, kind: input, shape index: {}]
  %s10 = inlined_call_operand.hbm [shape: f32[2,8,768], index: 10, kind: output, shape index: {0}]
  %s11 = inlined_call_operand.hbm [shape: f32[2,8,8,8], index: 11, kind: output, shape index: {1}]
  %12 = xla_tuple %s10, %s11
  %s13 = sld [smem:[#allocation0]]
  $region113: #{tpu_custom_call.1} parent=0
    _
  %s15 = ssub.s32 1, %s13
  %s16 = scalar_select 0, %s15, %s13
  $region1: #{tpu_custom_call.1} parent=0
    #allocation2 [shape = 'u8[24576]{0}', space=vmem, size = 0x6000, scoped, tag = 'input window, operand 0']
    #allocation3 [shape = 's32[2]{0}', space=sflag, size = 0x8, scoped, tag = 'scoped memory for tpu_custom_call.1']
    #allocation4 [shape = 's32[2]{0}', space=sflag, size = 0x8, scoped, tag = 'scoped memory for tpu_custom_call.1']
    #allocation5 [shape = 'u8[24576]{0}', space=vmem, size = 0x6000, scoped, tag = 'input window, operand 1']
    #allocation6 [shape = 's32[2]{0}', space=sflag, size = 0x8, scoped, tag = 'scoped memory for tpu_custom_call.1']
    #allocation7 [shape = 'u8[24576]{0}', space=vmem, size = 0x6000, scoped, tag = 'input window, operand 2']
    #allocation8 [shape = 'u8[2048]{0}', space=vmem, size = 0x800, scoped, tag = 'input window, operand 3']
    #allocation9 [shape = 's32[2]{0}', space=sflag, size = 0x8, scoped, tag = 'scoped memory for tpu_custom_call.1']
    #allocation10 [shape = 'u8[786432]{0}', space=vmem, size = 0xc0000, scoped, tag = 'input window, operand 4, single buffered']
    #allocation11 [shape = 'u8[786432]{0}', space=vmem, size = 0xc0000, scoped, tag = 'input window, operand 5, single buffered']
    #allocation12 [shape = 's32[1]{0}', space=sflag, size = 0x4, scoped, tag = 'scoped memory for tpu_custom_call.1']
    #allocation13 [shape = 'u8[786432]{0}', space=vmem, size = 0xc0000, scoped, tag = 'input window, operand 6, single buffered']
    #allocation14 [shape = 'u8[786432]{0}', space=vmem, size = 0xc0000, scoped, tag = 'input window, operand 7, single buffered']
    #allocation15 [shape = 's32[1]{0}', space=sflag, size = 0x4, scoped, tag = 'scoped memory for tpu_custom_call.1']
    #allocation16 [shape = 'u8[49152]{0}', space=vmem, size = 0xc000, scoped, tag = 'output window, operand 0']
    #allocation17 [shape = 'u8[65536]{0}', space=vmem, size = 0x10000, scoped, tag = 'output window, operand 1']
    #allocation18 [shape = 's32[2]{0}', space=sflag, size = 0x8, scoped, tag = 'scoped memory for tpu_custom_call.1']
    %17 = vsyncpa [#allocation3], 0
    %s18 = scalar_lea.sflag [#allocation3], 1
    %19 = vsyncpa %s18, 0
    %20 = vsyncpa [#allocation6], 0
    %s21 = scalar_lea.sflag [#allocation6], 1
    %22 = vsyncpa %s21, 0
    %23 = vsyncpa [#allocation9], 0
    %s24 = scalar_lea.sflag [#allocation9], 1
    %25 = vsyncpa %s24, 0
    %26 = vsyncpa [#allocation12], 0
    %27 = vsyncpa [#allocation15], 0
    %28 = vsyncpa [#allocation4], 0
    %s29 = scalar_lea.sflag [#allocation4], 1
    %30 = vsyncpa %s29, 0
    %31 = vsyncpa [#allocation18], 0
    %s32 = scalar_lea.sflag [#allocation18], 1
    %33 = vsyncpa %s32, 0
    loop: start=0, step=1, limit=4
    $region2: #{tpu_custom_call.1} parent=1 // loop_pre_header
      _
    $region3: #{tpu_custom_call.1} parent=1 // loop_header
      %s35 = sphi 0, %s39
      %p36 = scmp.ge.s32.totalorder %s35, 4
      %s42 = sphi 0, %s54
      %s43 = sphi 0, %s50
      %s44 = sphi 0, %s42
      %s45 = sphi 0, %s43
      %s46 = sphi 0, %s44
      %s47 = sphi 0, %s45
      %s59 = sphi 0, %s61
      %s62 = sphi 0, %s59
      %s63 = sphi 0, %s62
      %s79 = sphi 0, %s63
      %s85 = sphi 0, %s87
      %s88 = sphi 0, %s85
      %s89 = sphi 0, %s88
      %s105 = sphi 0, %s89
      %s111 = sphi 0, %s113
      %s114 = sphi 0, %s111
      %s115 = sphi 0, %s114
      %s131 = sphi 0, %s115
      %s139 = sphi 0, %s141
      %s142 = sphi 0, %s139
      %s143 = sphi 0, %s142
      %s159 = sphi 0, %s143
      %s163 = sphi 0, %s163
      %s165 = sphi 0, %s163
      %s166 = sphi 0, %s165
      %s180 = sphi 0, %s166
      %s184 = sphi 0, %s184
      %s186 = sphi 0, %s184
      %s187 = sphi 0, %s186
      %s201 = sphi 0, %s187
      %s205 = sphi 0, %s205
      %s207 = sphi 0, %s205
      %s208 = sphi 0, %s207
      %s222 = sphi 0, %s208
      %s226 = sphi 0, %s226
      %s228 = sphi 0, %s226
      %s229 = sphi 0, %s228
      %s243 = sphi 0, %s229
      %s247 = sphi 0, %s247
      %s249 = sphi 0, %s247
      %s250 = sphi 0, %s249
      %s264 = sphi 0, %s250
      %s268 = sphi 0, %s268
      %s270 = sphi 0, %s268
      %s271 = sphi 0, %s270
      %s285 = sphi 0, %s271
      %s293 = sphi 0, %s295
      %s296 = sphi 0, %s293
      %s297 = sphi 0, %s296
      %s313 = sphi 0, %s297
      %s321 = sphi 0, %s323
      %s324 = sphi 0, %s321
      %s325 = sphi 0, %s324
      %s341 = sphi 0, %s325
    $region4: #{tpu_custom_call.1} parent=1 // loop_header_branch
      %38 = sbr.rel (%p36) target = $region8
    $region5: #{tpu_custom_call.1} parent=1 // loop_body
      %s40 = ssub.s32 %s35, 1
      %s41 = ssub.s32 %s35, 2
      %s48 = sadd.s32 1, %s43
      %p49 = scmp.ge.s32.totalorder %s48, 1
      %s50 = scalar_select %p49, 0, %s48
      %s51 = sadd.s32 1, %s42
      %s52 = scalar_select %p49, %s51, %s42
      %p53 = scmp.ge.s32.totalorder %s52, 2
      %s54 = scalar_select %p53, 0, %s52
      %s55 = ssub.s32 %s42, %s54
      %s56 = ssub.s32 %s43, %s50
      %s57 = sor.u32 %s55, %s56
      %p58 = scmp.eq.s32.totalorder %s57, 0
      %s60 = sadd.s32 %s59, 1
      %s61 = scalar_select %p58, %s59, %s60
      %p64 = pneg %p58
      %p65 = scmp.eq.s32.totalorder %s35, 1
      %p66 = por %p64, %p65
      %p67 = scmp.ne.s32.totalorder %s59, %s62
      %p68 = scmp.eq.s32.totalorder %s35, 0
      %p69 = por %p67, %p68
      %p70 = scmp.ne.s32.totalorder %s59, %s62
      %p71 = scmp.eq.s32.totalorder %s40, 1
      %p72 = por %p70, %p71
      %p73 = scmp.ne.s32.totalorder %s62, %s63
      %p74 = scmp.eq.s32.totalorder %s40, 0
      %p75 = por %p73, %p74
      %p76 = scmp.ne.s32.totalorder %s62, %s63
      %p77 = scmp.eq.s32.totalorder %s41, 1
      %p78 = por %p76, %p77
      %p80 = scmp.ne.s32.totalorder %s63, %s79
      %p81 = scmp.eq.s32.totalorder %s41, 0
      %p82 = por %p80, %p81
      %s83 = ssub.s32 %s42, %s54
      %p84 = scmp.eq.s32.totalorder %s83, 0
      %s86 = sadd.s32 %s85, 1
      %s87 = scalar_select %p84, %s85, %s86
      %p90 = pneg %p84
      %p91 = scmp.eq.s32.totalorder %s35, 1
      %p92 = por %p90, %p91
      %p93 = scmp.ne.s32.totalorder %s85, %s88
      %p94 = scmp.eq.s32.totalorder %s35, 0
      %p95 = por %p93, %p94
      %p96 = scmp.ne.s32.totalorder %s85, %s88
      %p97 = scmp.eq.s32.totalorder %s40, 1
      %p98 = por %p96, %p97
      %p99 = scmp.ne.s32.totalorder %s88, %s89
      %p100 = scmp.eq.s32.totalorder %s40, 0
      %p101 = por %p99, %p100
      %p102 = scmp.ne.s32.totalorder %s88, %s89
      %p103 = scmp.eq.s32.totalorder %s41, 1
      %p104 = por %p102, %p103
      %p106 = scmp.ne.s32.totalorder %s89, %s105
      %p107 = scmp.eq.s32.totalorder %s41, 0
      %p108 = por %p106, %p107
      %s109 = ssub.s32 %s42, %s54
      %p110 = scmp.eq.s32.totalorder %s109, 0
      %s112 = sadd.s32 %s111, 1
      %s113 = scalar_select %p110, %s111, %s112
      %p116 = pneg %p110
      %p117 = scmp.eq.s32.totalorder %s35, 1
      %p118 = por %p116, %p117
      %p119 = scmp.ne.s32.totalorder %s111, %s114
      %p120 = scmp.eq.s32.totalorder %s35, 0
      %p121 = por %p119, %p120
      %p122 = scmp.ne.s32.totalorder %s111, %s114
      %p123 = scmp.eq.s32.totalorder %s40, 1
      %p124 = por %p122, %p123
      %p125 = scmp.ne.s32.totalorder %s114, %s115
      %p126 = scmp.eq.s32.totalorder %s40, 0
      %p127 = por %p125, %p126
      %p128 = scmp.ne.s32.totalorder %s114, %s115
      %p129 = scmp.eq.s32.totalorder %s41, 1
      %p130 = por %p128, %p129
      %p132 = scmp.ne.s32.totalorder %s115, %s131
      %p133 = scmp.eq.s32.totalorder %s41, 0
      %p134 = por %p132, %p133
      %s135 = ssub.s32 %s42, %s54
      %s136 = ssub.s32 %s43, %s50
      %s137 = sor.u32 %s135, %s136
      %p138 = scmp.eq.s32.totalorder %s137, 0
      %s140 = sadd.s32 %s139, 1
      %s141 = scalar_select %p138, %s139, %s140
      %p144 = pneg %p138
      %p145 = scmp.eq.s32.totalorder %s35, 1
      %p146 = por %p144, %p145
      %p147 = scmp.ne.s32.totalorder %s139, %s142
      %p148 = scmp.eq.s32.totalorder %s35, 0
      %p149 = por %p147, %p148
      %p150 = scmp.ne.s32.totalorder %s139, %s142
      %p151 = scmp.eq.s32.totalorder %s40, 1
      %p152 = por %p150, %p151
      %p153 = scmp.ne.s32.totalorder %s142, %s143
      %p154 = scmp.eq.s32.totalorder %s40, 0
      %p155 = por %p153, %p154
      %p156 = scmp.ne.s32.totalorder %s142, %s143
      %p157 = scmp.eq.s32.totalorder %s41, 1
      %p158 = por %p156, %p157
      %p160 = scmp.ne.s32.totalorder %s143, %s159
      %p161 = scmp.eq.s32.totalorder %s41, 0
      %p162 = por %p160, %p161
      %s164 = sadd.s32 %s163, 1
      %p167 = scmp.eq.s32.totalorder %s35, 1
      %p168 = scmp.ne.s32.totalorder %s163, %s165
      %p169 = scmp.eq.s32.totalorder %s35, 0
      %p170 = por %p168, %p169
      %p171 = scmp.ne.s32.totalorder %s163, %s165
      %p172 = scmp.eq.s32.totalorder %s40, 1
      %p173 = por %p171, %p172
      %p174 = scmp.ne.s32.totalorder %s165, %s166
      %p175 = scmp.eq.s32.totalorder %s40, 0
      %p176 = por %p174, %p175
      %p177 = scmp.ne.s32.totalorder %s165, %s166
      %p178 = scmp.eq.s32.totalorder %s41, 1
      %p179 = por %p177, %p178
      %p181 = scmp.ne.s32.totalorder %s166, %s180
      %p182 = scmp.eq.s32.totalorder %s41, 0
      %p183 = por %p181, %p182
      %s185 = sadd.s32 %s184, 1
      %p188 = scmp.eq.s32.totalorder %s35, 1
      %p189 = scmp.ne.s32.totalorder %s184, %s186
      %p190 = scmp.eq.s32.totalorder %s35, 0
      %p191 = por %p189, %p190
      %p192 = scmp.ne.s32.totalorder %s184, %s186
      %p193 = scmp.eq.s32.totalorder %s40, 1
      %p194 = por %p192, %p193
      %p195 = scmp.ne.s32.totalorder %s186, %s187
      %p196 = scmp.eq.s32.totalorder %s40, 0
      %p197 = por %p195, %p196
      %p198 = scmp.ne.s32.totalorder %s186, %s187
      %p199 = scmp.eq.s32.totalorder %s41, 1
      %p200 = por %p198, %p199
      %p202 = scmp.ne.s32.totalorder %s187, %s201
      %p203 = scmp.eq.s32.totalorder %s41, 0
      %p204 = por %p202, %p203
      %s206 = sadd.s32 %s205, 1
      %p209 = scmp.eq.s32.totalorder %s35, 1
      %p210 = scmp.ne.s32.totalorder %s205, %s207
      %p211 = scmp.eq.s32.totalorder %s35, 0
      %p212 = por %p210, %p211
      %p213 = scmp.ne.s32.totalorder %s205, %s207
      %p214 = scmp.eq.s32.totalorder %s40, 1
      %p215 = por %p213, %p214
      %p216 = scmp.ne.s32.totalorder %s207, %s208
      %p217 = scmp.eq.s32.totalorder %s40, 0
      %p218 = por %p216, %p217
      %p219 = scmp.ne.s32.totalorder %s207, %s208
      %p220 = scmp.eq.s32.totalorder %s41, 1
      %p221 = por %p219, %p220
      %p223 = scmp.ne.s32.totalorder %s208, %s222
      %p224 = scmp.eq.s32.totalorder %s41, 0
      %p225 = por %p223, %p224
      %s227 = sadd.s32 %s226, 1
      %p230 = scmp.eq.s32.totalorder %s35, 1
      %p231 = scmp.ne.s32.totalorder %s226, %s228
      %p232 = scmp.eq.s32.totalorder %s35, 0
      %p233 = por %p231, %p232
      %p234 = scmp.ne.s32.totalorder %s226, %s228
      %p235 = scmp.eq.s32.totalorder %s40, 1
      %p236 = por %p234, %p235
      %p237 = scmp.ne.s32.totalorder %s228, %s229
      %p238 = scmp.eq.s32.totalorder %s40, 0
      %p239 = por %p237, %p238
      %p240 = scmp.ne.s32.totalorder %s228, %s229
      %p241 = scmp.eq.s32.totalorder %s41, 1
      %p242 = por %p240, %p241
      %p244 = scmp.ne.s32.totalorder %s229, %s243
      %p245 = scmp.eq.s32.totalorder %s41, 0
      %p246 = por %p244, %p245
      %s248 = sadd.s32 %s247, 1
      %p251 = scmp.eq.s32.totalorder %s35, 1
      %p252 = scmp.ne.s32.totalorder %s247, %s249
      %p253 = scmp.eq.s32.totalorder %s35, 0
      %p254 = por %p252, %p253
      %p255 = scmp.ne.s32.totalorder %s247, %s249
      %p256 = scmp.eq.s32.totalorder %s40, 1
      %p257 = por %p255, %p256
      %p258 = scmp.ne.s32.totalorder %s249, %s250
      %p259 = scmp.eq.s32.totalorder %s40, 0
      %p260 = por %p258, %p259
      %p261 = scmp.ne.s32.totalorder %s249, %s250
      %p262 = scmp.eq.s32.totalorder %s41, 1
      %p263 = por %p261, %p262
      %p265 = scmp.ne.s32.totalorder %s250, %s264
      %p266 = scmp.eq.s32.totalorder %s41, 0
      %p267 = por %p265, %p266
      %s269 = sadd.s32 %s268, 1
      %p272 = scmp.eq.s32.totalorder %s35, 1
      %p273 = scmp.ne.s32.totalorder %s268, %s270
      %p274 = scmp.eq.s32.totalorder %s35, 0
      %p275 = por %p273, %p274
      %p276 = scmp.ne.s32.totalorder %s268, %s270
      %p277 = scmp.eq.s32.totalorder %s40, 1
      %p278 = por %p276, %p277
      %p279 = scmp.ne.s32.totalorder %s270, %s271
      %p280 = scmp.eq.s32.totalorder %s40, 0
      %p281 = por %p279, %p280
      %p282 = scmp.ne.s32.totalorder %s270, %s271
      %p283 = scmp.eq.s32.totalorder %s41, 1
      %p284 = por %p282, %p283
      %p286 = scmp.ne.s32.totalorder %s271, %s285
      %p287 = scmp.eq.s32.totalorder %s41, 0
      %p288 = por %p286, %p287
      %s289 = ssub.s32 %s42, %s54
      %s290 = ssub.s32 %s43, %s50
      %s291 = sor.u32 %s289, %s290
      %p292 = scmp.eq.s32.totalorder %s291, 0
      %s294 = sadd.s32 %s293, 1
      %s295 = scalar_select %p292, %s293, %s294
      %p298 = pneg %p292
      %p299 = scmp.eq.s32.totalorder %s35, 1
      %p300 = por %p298, %p299
      %p301 = scmp.ne.s32.totalorder %s293, %s296
      %p302 = scmp.eq.s32.totalorder %s35, 0
      %p303 = por %p301, %p302
      %p304 = scmp.ne.s32.totalorder %s293, %s296
      %p305 = scmp.eq.s32.totalorder %s40, 1
      %p306 = por %p304, %p305
      %p307 = scmp.ne.s32.totalorder %s296, %s297
      %p308 = scmp.eq.s32.totalorder %s40, 0
      %p309 = por %p307, %p308
      %p310 = scmp.ne.s32.totalorder %s296, %s297
      %p311 = scmp.eq.s32.totalorder %s41, 1
      %p312 = por %p310, %p311
      %p314 = scmp.ne.s32.totalorder %s297, %s313
      %p315 = scmp.eq.s32.totalorder %s41, 0
      %p316 = por %p314, %p315
      %s317 = ssub.s32 %s42, %s54
      %s318 = ssub.s32 %s43, %s50
      %s319 = sor.u32 %s317, %s318
      %p320 = scmp.eq.s32.totalorder %s319, 0
      %s322 = sadd.s32 %s321, 1
      %s323 = scalar_select %p320, %s321, %s322
      %p326 = pneg %p320
      %p327 = scmp.eq.s32.totalorder %s35, 1
      %p328 = por %p326, %p327
      %p329 = scmp.ne.s32.totalorder %s321, %s324
      %p330 = scmp.eq.s32.totalorder %s35, 0
      %p331 = por %p329, %p330
      %p332 = scmp.ne.s32.totalorder %s321, %s324
      %p333 = scmp.eq.s32.totalorder %s40, 1
      %p334 = por %p332, %p333
      %p335 = scmp.ne.s32.totalorder %s324, %s325
      %p336 = scmp.eq.s32.totalorder %s40, 0
      %p337 = por %p335, %p336
      %p338 = scmp.ne.s32.totalorder %s324, %s325
      %p339 = scmp.eq.s32.totalorder %s41, 1
      %p340 = por %p338, %p339
      %p342 = scmp.ne.s32.totalorder %s325, %s341
      %p343 = scmp.eq.s32.totalorder %s41, 0
      %p344 = por %p342, %p343
      %p345 = scmp.le.s32.totalorder 1, %s35
      %p346 = scmp.lt.s32.totalorder %s35, 3
      %p347 = pnand %p345, %p346
      %p348 = pneg %p347
      // Predicated region
      $region9: #{tpu_custom_call.1} parent=5 // pred_check
        _
      $region10: #{tpu_custom_call.1} parent=5 // pred_check_branch
        %350 = sbr.rel (%p347) target = $region12
      $region11: #{tpu_custom_call.1} parent=5 // pred_region
        %s351 = ssub.s32 %s35, 1
        // Predicated region
        $region13: #{tpu_custom_call.1} parent=11 // pred_check
          %p352 = pneg %p176
        $region14: #{tpu_custom_call.1} parent=11 // pred_check_branch
          %354 = sbr.rel (%p352) target = $region16
        $region15: #{tpu_custom_call.1} parent=11 // pred_region
          %s356 = ssub.s32 24576, 24576
          %357 = vsyncadd [#allocation9], %s356
          %s358 = sshll.u32 [#allocation10], 4
          %s359 = int_to_ptr.vmem [resolvable:$true] %s358
          %364 = dma.hbm_to_vmem [thread:$0]  %s4, 24576, %s359, [#allocation9], 256, 256, 16
        $region16: #{tpu_custom_call.1} parent=11 // pred_fallthru
          _
        // Predicated region
        $region17: #{tpu_custom_call.1} parent=11 // pred_check
          %p365 = pneg %p197
        $region18: #{tpu_custom_call.1} parent=11 // pred_check_branch
          %367 = sbr.rel (%p365) target = $region20
        $region19: #{tpu_custom_call.1} parent=11 // pred_region
          %s369 = ssub.s32 24576, 24576
          %370 = vsyncadd [#allocation12], %s369
          %s371 = sshll.u32 [#allocation11], 4
          %s372 = int_to_ptr.vmem [resolvable:$true] %s371
          %377 = dma.hbm_to_vmem [thread:$0]  %s5, 24576, %s372, [#allocation12], 256, 256, 16
        $region20: #{tpu_custom_call.1} parent=11 // pred_fallthru
          _
        // Predicated region
        $region21: #{tpu_custom_call.1} parent=11 // pred_check
          %p378 = pneg %p218
        $region22: #{tpu_custom_call.1} parent=11 // pred_check_branch
          %380 = sbr.rel (%p378) target = $region24
        $region23: #{tpu_custom_call.1} parent=11 // pred_region
          %s382 = ssub.s32 24576, 24576
          %383 = vsyncadd [#allocation12], %s382
          %s384 = sshll.u32 [#allocation13], 4
          %s385 = int_to_ptr.vmem [resolvable:$true] %s384
          %390 = dma.hbm_to_vmem [thread:$0]  %s6, 24576, %s385, [#allocation12], 256, 256, 16
        $region24: #{tpu_custom_call.1} parent=11 // pred_fallthru
          _
        // Predicated region
        $region25: #{tpu_custom_call.1} parent=11 // pred_check
          %p391 = pneg %p239
        $region26: #{tpu_custom_call.1} parent=11 // pred_check_branch
          %393 = sbr.rel (%p391) target = $region28
        $region27: #{tpu_custom_call.1} parent=11 // pred_region
          %s395 = ssub.s32 24576, 24576
          %396 = vsyncadd [#allocation15], %s395
          %s397 = sshll.u32 [#allocation14], 4
          %s398 = int_to_ptr.vmem [resolvable:$true] %s397
          %403 = dma.hbm_to_vmem [thread:$0]  %s7, 24576, %s398, [#allocation15], 384, 384, 24
        $region28: #{tpu_custom_call.1} parent=11 // pred_fallthru
          _
        // Predicated region
        $region29: #{tpu_custom_call.1} parent=11 // pred_check
          %p404 = pneg %p260
        $region30: #{tpu_custom_call.1} parent=11 // pred_check_branch
          %406 = sbr.rel (%p404) target = $region32
        $region31: #{tpu_custom_call.1} parent=11 // pred_region
          _
        $region32: #{tpu_custom_call.1} parent=11 // pred_fallthru
          _
        // Predicated region
        $region33: #{tpu_custom_call.1} parent=11 // pred_check
          %p407 = pneg %p281
        $region34: #{tpu_custom_call.1} parent=11 // pred_check_branch
          %409 = sbr.rel (%p407) target = $region36
        $region35: #{tpu_custom_call.1} parent=11 // pred_region
          _
        $region36: #{tpu_custom_call.1} parent=11 // pred_fallthru
          _
      $region12: #{tpu_custom_call.1} parent=5 // pred_fallthru
        _
      %p410 = scmp.lt.s32.totalorder %s35, 2
      // Predicated region
      $region37: #{tpu_custom_call.1} parent=5 // pred_check
        %p411 = pneg %p410
      $region38: #{tpu_custom_call.1} parent=5 // pred_check_branch
        %413 = sbr.rel (%p411) target = $region40
      $region39: #{tpu_custom_call.1} parent=5 // pred_region
        // Predicated region
        $region41: #{tpu_custom_call.1} parent=39 // pred_check
          %p414 = pneg %p69
        $region42: #{tpu_custom_call.1} parent=39 // pred_check_branch
          %416 = sbr.rel (%p414) target = $region44
        $region43: #{tpu_custom_call.1} parent=39 // pred_region
          %s417 = sand.u32 %s59, 1
          %s418 = scalar_lea.sflag [#allocation3], %s417
          %s419 = sand.u32 %s59, 1
          %s420 = smul.addr %s419, 24
          %s421 = scalar_lea.vmem [#allocation2], %s420
          %s423 = ssub.s32 384, 384
          %424 = vsyncadd %s418, %s423
          %s425 = smul.addr %s43, 6
          %s426 = smul.addr %s42, 6
          %s427 = sadd.s32 %s425, %s426
          %s428 = smul.addr %s427, 64
          %s429 = scalar_lea.hbm %s0, %s428
          %s431 = sshll.u32 %s421, 4
          %s432 = int_to_ptr.vmem [resolvable:$true] %s431
          %434 = dma.hbm_to_vmem [thread:$0]  %s429, 384, %s432, %s418
        $region44: #{tpu_custom_call.1} parent=39 // pred_fallthru
          _
        // Predicated region
        $region45: #{tpu_custom_call.1} parent=39 // pred_check
          %p435 = pneg %p95
        $region46: #{tpu_custom_call.1} parent=39 // pred_check_branch
          %437 = sbr.rel (%p435) target = $region48
        $region47: #{tpu_custom_call.1} parent=39 // pred_region
          %s438 = sand.u32 %s35, 1
          %s439 = scalar_lea.sflag [#allocation6], %s438
          %s440 = sand.u32 %s85, 1
          %s441 = smul.addr %s440, 24
          %s442 = scalar_lea.vmem [#allocation5], %s441
          %s444 = ssub.s32 384, 384
          %445 = vsyncadd %s439, %s444
          %s446 = smul.addr %s42, 6
          %s447 = smul.addr %s446, 64
          %s448 = scalar_lea.hbm %s1, %s447
          %s450 = sshll.u32 %s442, 4
          %s451 = int_to_ptr.vmem [resolvable:$true] %s450
          %453 = dma.hbm_to_vmem [thread:$0]  %s448, 384, %s451, %s439
        $region48: #{tpu_custom_call.1} parent=39 // pred_fallthru
          _
        // Predicated region
        $region49: #{tpu_custom_call.1} parent=39 // pred_check
          %p454 = pneg %p121
        $region50: #{tpu_custom_call.1} parent=39 // pred_check_branch
          %456 = sbr.rel (%p454) target = $region52
        $region51: #{tpu_custom_call.1} parent=39 // pred_region
          %s457 = sand.u32 %s35, 1
          %s458 = scalar_lea.sflag [#allocation6], %s457
          %s459 = sand.u32 %s111, 1
          %s460 = smul.addr %s459, 24
          %s461 = scalar_lea.vmem [#allocation7], %s460
          %s463 = ssub.s32 384, 384
          %464 = vsyncadd %s458, %s463
          %s465 = smul.addr %s42, 6
          %s466 = smul.addr %s465, 64
          %s467 = scalar_lea.hbm %s2, %s466
          %s469 = sshll.u32 %s461, 4
          %s470 = int_to_ptr.vmem [resolvable:$true] %s469
          %472 = dma.hbm_to_vmem [thread:$0]  %s467, 384, %s470, %s458
        $region52: #{tpu_custom_call.1} parent=39 // pred_fallthru
          _
        // Predicated region
        $region53: #{tpu_custom_call.1} parent=39 // pred_check
          %p473 = pneg %p149
        $region54: #{tpu_custom_call.1} parent=39 // pred_check_branch
          %475 = sbr.rel (%p473) target = $region56
        $region55: #{tpu_custom_call.1} parent=39 // pred_region
          %s476 = sand.u32 %s35, 1
          %s477 = scalar_lea.sflag [#allocation9], %s476
          %s478 = sand.u32 %s139, 1
          %s479 = smul.addr %s478, 2
          %s480 = scalar_lea.vmem [#allocation8], %s479
          %s482 = ssub.s32 32, 32
          %483 = vsyncadd %s477, %s482
          %s484 = sadd.s32 %s43, %s42
          %s485 = smul.addr %s484, 32
          %s486 = scalar_lea.hbm %s3, %s485
          %s488 = sshll.u32 %s480, 4
          %s489 = int_to_ptr.vmem [resolvable:$true] %s488
          %491 = dma.hbm_to_vmem [thread:$0]  %s486, 32, %s489, %s477
        $region56: #{tpu_custom_call.1} parent=39 // pred_fallthru
          _
      $region40: #{tpu_custom_call.1} parent=5 // pred_fallthru
        _
      %p492 = scmp.le.s32.totalorder 1, %s35
      %p493 = scmp.lt.s32.totalorder %s35, 3
      %p494 = pnand %p492, %p493
      %p495 = pneg %p494
      // Predicated region
      $region57: #{tpu_custom_call.1} parent=5 // pred_check
        _
      $region58: #{tpu_custom_call.1} parent=5 // pred_check_branch
        %497 = sbr.rel (%p494) target = $region60
      $region59: #{tpu_custom_call.1} parent=5 // pred_region
        %s498 = ssub.s32 %s35, 1
        %s499 = sand.u32 %s62, 1
        %s500 = scalar_lea.sflag [#allocation3], %s499
        %s501 = sand.u32 %s62, 1
        %s502 = smul.addr %s501, 24
        %s503 = scalar_lea.vmem [#allocation2], %s502
        // Predicated region
        $region61: #{tpu_custom_call.1} parent=59 // pred_check
          %p504 = pneg %p75
        $region62: #{tpu_custom_call.1} parent=59 // pred_check_branch
          %506 = sbr.rel (%p504) target = $region64
        $region63: #{tpu_custom_call.1} parent=59 // pred_region
          %507 = dma.done %s500, 384
        $region64: #{tpu_custom_call.1} parent=59 // pred_fallthru
          _
        %s508 = sand.u32 %s40, 1
        %s509 = scalar_lea.sflag [#allocation6], %s508
        %s510 = sand.u32 %s88, 1
        %s511 = smul.addr %s510, 24
        %s512 = scalar_lea.vmem [#allocation5], %s511
        // Predicated region
        $region65: #{tpu_custom_call.1} parent=59 // pred_check
          %p513 = pneg %p101
        $region66: #{tpu_custom_call.1} parent=59 // pred_check_branch
          %515 = sbr.rel (%p513) target = $region68
        $region67: #{tpu_custom_call.1} parent=59 // pred_region
          %516 = dma.done %s509, 384
        $region68: #{tpu_custom_call.1} parent=59 // pred_fallthru
          _
        %s517 = sand.u32 %s40, 1
        %s518 = scalar_lea.sflag [#allocation6], %s517
        %s519 = sand.u32 %s114, 1
        %s520 = smul.addr %s519, 24
        %s521 = scalar_lea.vmem [#allocation7], %s520
        // Predicated region
        $region69: #{tpu_custom_call.1} parent=59 // pred_check
          %p522 = pneg %p127
        $region70: #{tpu_custom_call.1} parent=59 // pred_check_branch
          %524 = sbr.rel (%p522) target = $region72
        $region71: #{tpu_custom_call.1} parent=59 // pred_region
          %525 = dma.done %s518, 384
        $region72: #{tpu_custom_call.1} parent=59 // pred_fallthru
          _
        %s526 = sand.u32 %s40, 1
        %s527 = scalar_lea.sflag [#allocation9], %s526
        %s528 = sand.u32 %s142, 1
        %s529 = smul.addr %s528, 2
        %s530 = scalar_lea.vmem [#allocation8], %s529
        // Predicated region
        $region73: #{tpu_custom_call.1} parent=59 // pred_check
          %p531 = pneg %p155
        $region74: #{tpu_custom_call.1} parent=59 // pred_check_branch
          %533 = sbr.rel (%p531) target = $region76
        $region75: #{tpu_custom_call.1} parent=59 // pred_region
          %534 = dma.done %s527, 32
        $region76: #{tpu_custom_call.1} parent=59 // pred_fallthru
          _
        // Predicated region
        $region77: #{tpu_custom_call.1} parent=59 // pred_check
          %p535 = pneg %p176
        $region78: #{tpu_custom_call.1} parent=59 // pred_check_branch
          %537 = sbr.rel (%p535) target = $region80
        $region79: #{tpu_custom_call.1} parent=59 // pred_region
          %538 = dma.done [#allocation9], 24576
        $region80: #{tpu_custom_call.1} parent=59 // pred_fallthru
          _
        // Predicated region
        $region81: #{tpu_custom_call.1} parent=59 // pred_check
          %p539 = pneg %p197
        $region82: #{tpu_custom_call.1} parent=59 // pred_check_branch
          %541 = sbr.rel (%p539) target = $region84
        $region83: #{tpu_custom_call.1} parent=59 // pred_region
          %542 = dma.done [#allocation12], 24576
        $region84: #{tpu_custom_call.1} parent=59 // pred_fallthru
          _
        // Predicated region
        $region85: #{tpu_custom_call.1} parent=59 // pred_check
          %p543 = pneg %p218
        $region86: #{tpu_custom_call.1} parent=59 // pred_check_branch
          %545 = sbr.rel (%p543) target = $region88
        $region87: #{tpu_custom_call.1} parent=59 // pred_region
          %546 = dma.done [#allocation12], 24576
        $region88: #{tpu_custom_call.1} parent=59 // pred_fallthru
          _
        // Predicated region
        $region89: #{tpu_custom_call.1} parent=59 // pred_check
          %p547 = pneg %p239
        $region90: #{tpu_custom_call.1} parent=59 // pred_check_branch
          %549 = sbr.rel (%p547) target = $region92
        $region91: #{tpu_custom_call.1} parent=59 // pred_region
          %550 = dma.done [#allocation15], 24576
        $region92: #{tpu_custom_call.1} parent=59 // pred_fallthru
          _
        %s551 = sand.u32 %s62, 1
        %s552 = scalar_lea.sflag [#allocation3], %s551
        %s553 = sand.u32 %s62, 1
        %s554 = smul.addr %s553, 24
        %s555 = scalar_lea.vmem [#allocation2], %s554
        %p556 = pneg %p75
        %p557 = pneg %p72
        %s558 = sand.u32 %s40, 1
        %s559 = scalar_lea.sflag [#allocation6], %s558
        %s560 = sand.u32 %s88, 1
        %s561 = smul.addr %s560, 24
        %s562 = scalar_lea.vmem [#allocation5], %s561
        %p563 = pneg %p101
        %p564 = pneg %p98
        %s565 = sand.u32 %s40, 1
        %s566 = scalar_lea.sflag [#allocation6], %s565
        %s567 = sand.u32 %s114, 1
        %s568 = smul.addr %s567, 24
        %s569 = scalar_lea.vmem [#allocation7], %s568
        %p570 = pneg %p127
        %p571 = pneg %p124
        %s572 = sand.u32 %s40, 1
        %s573 = scalar_lea.sflag [#allocation9], %s572
        %s574 = sand.u32 %s142, 1
        %s575 = smul.addr %s574, 2
        %s576 = scalar_lea.vmem [#allocation8], %s575
        %p577 = pneg %p155
        %p578 = pneg %p152
        %p579 = pneg %p176
        %p580 = pneg %p173
        %p581 = pneg %p197
        %p582 = pneg %p194
        %p583 = pneg %p218
        %p584 = pneg %p215
        %p585 = pneg %p239
        %p586 = pneg %p236
        %p587 = pneg %p260
        %p588 = pneg %p257
        %p589 = pneg %p281
        %p590 = pneg %p278
        %p591 = pneg %p309
        %p592 = pneg %p306
        %s593 = sand.u32 %s296, 1
        %s594 = scalar_lea.sflag [#allocation4], %s593
        %s595 = sand.u32 %s296, 1
        %s596 = smul.addr %s595, 48
        %s597 = scalar_lea.vmem [#allocation16], %s596
        %p598 = pneg %p337
        %p599 = pneg %p334
        %s600 = sand.u32 %s324, 1
        %s601 = scalar_lea.sflag [#allocation18], %s600
        %s602 = sand.u32 %s324, 1
        %s603 = smul.addr %s602, 64
        %s604 = scalar_lea.vmem [#allocation17], %s603
        %v608 = vld [vmem:[%s503] sm:$0xff]
        %v609 = vld [vmem:[%s503 + $0x8] sm:$0xff]
        %v610 = vld [vmem:[%s503 + $0x10] sm:$0xff]
        %v611 = vld [vmem:[%s512] sm:$0xff]
        %v612 = vld [vmem:[%s512 + $0x8] sm:$0xff]
        %v613 = vld [vmem:[%s512 + $0x10] sm:$0xff]
        %v614 = vld [vmem:[%s521] sm:$0xff]
        %v615 = vld [vmem:[%s521 + $0x8] sm:$0xff]
        %v616 = vld [vmem:[%s521 + $0x10] sm:$0xff]
        %v617 = vld [vmem:[%s530] sm:$0x3]
        %vm618 = vnez %v617
        %v619 = vld [vmem:[#allocation10] sm:$0xff]
        %v620 = vld [vmem:[#allocation10 + $0x8] sm:$0xff]
        %v621 = vld [vmem:[#allocation10 + $0x10] sm:$0xff]
        %v622 = vld [vmem:[#allocation10 + $0x18] sm:$0xff]
        %v623 = vld [vmem:[#allocation10 + $0x20] sm:$0xff]
        %v624 = vld [vmem:[#allocation10 + $0x28] sm:$0xff]
        %v625 = vld [vmem:[#allocation10 + $0x30] sm:$0xff]
        %v626 = vld [vmem:[#allocation10 + $0x38] sm:$0xff]
        %v627 = vld [vmem:[#allocation10 + $0x40] sm:$0xff]
        %v628 = vld [vmem:[#allocation10 + $0x48] sm:$0xff]
        %v629 = vld [vmem:[#allocation10 + $0x50] sm:$0xff]
        %v630 = vld [vmem:[#allocation10 + $0x58] sm:$0xff]
        %v631 = vld [vmem:[#allocation10 + $0x60] sm:$0xff]
        %v632 = vld [vmem:[#allocation10 + $0x68] sm:$0xff]
        %v633 = vld [vmem:[#allocation10 + $0x70] sm:$0xff]
        %v634 = vld [vmem:[#allocation10 + $0x78] sm:$0xff]
        %v635 = vld [vmem:[#allocation10 + $0x80] sm:$0xff]
        %v636 = vld [vmem:[#allocation10 + $0x88] sm:$0xff]
        %v637 = vld [vmem:[#allocation10 + $0x90] sm:$0xff]
        %v638 = vld [vmem:[#allocation10 + $0x98] sm:$0xff]
        %v639 = vld [vmem:[#allocation10 + $0xa0] sm:$0xff]
        %v640 = vld [vmem:[#allocation10 + $0xa8] sm:$0xff]
        %v641 = vld [vmem:[#allocation10 + $0xb0] sm:$0xff]
        %v642 = vld [vmem:[#allocation10 + $0xb8] sm:$0xff]
        %v643 = vld [vmem:[#allocation10 + $0xc0] sm:$0xff]
        %v644 = vld [vmem:[#allocation10 + $0xc8] sm:$0xff]
        %v645 = vld [vmem:[#allocation10 + $0xd0] sm:$0xff]
        %v646 = vld [vmem:[#allocation10 + $0xd8] sm:$0xff]
        %v647 = vld [vmem:[#allocation10 + $0xe0] sm:$0xff]
        %v648 = vld [vmem:[#allocation10 + $0xe8] sm:$0xff]
        %v649 = vld [vmem:[#allocation10 + $0xf0] sm:$0xff]
        %v650 = vld [vmem:[#allocation10 + $0xf8] sm:$0xff]
        %v651 = vld [vmem:[#allocation10 + $0x100] sm:$0xff]
        %v652 = vld [vmem:[#allocation10 + $0x108] sm:$0xff]
        %v653 = vld [vmem:[#allocation10 + $0x110] sm:$0xff]
        %v654 = vld [vmem:[#allocation10 + $0x118] sm:$0xff]
        %v655 = vld [vmem:[#allocation10 + $0x120] sm:$0xff]
        %v656 = vld [vmem:[#allocation10 + $0x128] sm:$0xff]
        %v657 = vld [vmem:[#allocation10 + $0x130] sm:$0xff]
        %v658 = vld [vmem:[#allocation10 + $0x138] sm:$0xff]
        %v659 = vld [vmem:[#allocation10 + $0x140] sm:$0xff]
        %v660 = vld [vmem:[#allocation10 + $0x148] sm:$0xff]
        %v661 = vld [vmem:[#allocation10 + $0x150] sm:$0xff]
        %v662 = vld [vmem:[#allocation10 + $0x158] sm:$0xff]
        %v663 = vld [vmem:[#allocation10 + $0x160] sm:$0xff]
        %v664 = vld [vmem:[#allocation10 + $0x168] sm:$0xff]
        %v665 = vld [vmem:[#allocation10 + $0x170] sm:$0xff]
        %v666 = vld [vmem:[#allocation10 + $0x178] sm:$0xff]
        %v667 = vld [vmem:[#allocation10 + $0x180] sm:$0xff]
        %v668 = vld [vmem:[#allocation10 + $0x188] sm:$0xff]
        %v669 = vld [vmem:[#allocation10 + $0x190] sm:$0xff]
        %v670 = vld [vmem:[#allocation10 + $0x198] sm:$0xff]
        %v671 = vld [vmem:[#allocation10 + $0x1a0] sm:$0xff]
        %v672 = vld [vmem:[#allocation10 + $0x1a8] sm:$0xff]
        %v673 = vld [vmem:[#allocation10 + $0x1b0] sm:$0xff]
        %v674 = vld [vmem:[#allocation10 + $0x1b8] sm:$0xff]
        %v675 = vld [vmem:[#allocation10 + $0x1c0] sm:$0xff]
        %v676 = vld [vmem:[#allocation10 + $0x1c8] sm:$0xff]
        %v677 = vld [vmem:[#allocation10 + $0x1d0] sm:$0xff]
        %v678 = vld [vmem:[#allocation10 + $0x1d8] sm:$0xff]
        %v679 = vld [vmem:[#allocation10 + $0x1e0] sm:$0xff]
        %v680 = vld [vmem:[#allocation10 + $0x1e8] sm:$0xff]
        %v681 = vld [vmem:[#allocation10 + $0x1f0] sm:$0xff]
        %v682 = vld [vmem:[#allocation10 + $0x1f8] sm:$0xff]
        %v683 = vld [vmem:[#allocation10 + $0x200] sm:$0xff]
        %v684 = vld [vmem:[#allocation10 + $0x208] sm:$0xff]
        %v685 = vld [vmem:[#allocation10 + $0x210] sm:$0xff]
        %v686 = vld [vmem:[#allocation10 + $0x218] sm:$0xff]
        %v687 = vld [vmem:[#allocation10 + $0x220] sm:$0xff]
        %v688 = vld [vmem:[#allocation10 + $0x228] sm:$0xff]
        %v689 = vld [vmem:[#allocation10 + $0x230] sm:$0xff]
        %v690 = vld [vmem:[#allocation10 + $0x238] sm:$0xff]
        %v691 = vld [vmem:[#allocation10 + $0x240] sm:$0xff]
        %v692 = vld [vmem:[#allocation10 + $0x248] sm:$0xff]
        %v693 = vld [vmem:[#allocation10 + $0x250] sm:$0xff]
        %v694 = vld [vmem:[#allocation10 + $0x258] sm:$0xff]
        %v695 = vld [vmem:[#allocation10 + $0x260] sm:$0xff]
        %v696 = vld [vmem:[#allocation10 + $0x268] sm:$0xff]
        %v697 = vld [vmem:[#allocation10 + $0x270] sm:$0xff]
        %v698 = vld [vmem:[#allocation10 + $0x278] sm:$0xff]
        %v699 = vld [vmem:[#allocation10 + $0x280] sm:$0xff]
        %v700 = vld [vmem:[#allocation10 + $0x288] sm:$0xff]
        %v701 = vld [vmem:[#allocation10 + $0x290] sm:$0xff]
        %v702 = vld [vmem:[#allocation10 + $0x298] sm:$0xff]
        %v703 = vld [vmem:[#allocation10 + $0x2a0] sm:$0xff]
        %v704 = vld [vmem:[#allocation10 + $0x2a8] sm:$0xff]
        %v705 = vld [vmem:[#allocation10 + $0x2b0] sm:$0xff]
        %v706 = vld [vmem:[#allocation10 + $0x2b8] sm:$0xff]
        %v707 = vld [vmem:[#allocation10 + $0x2c0] sm:$0xff]
        %v708 = vld [vmem:[#allocation10 + $0x2c8] sm:$0xff]
        %v709 = vld [vmem:[#allocation10 + $0x2d0] sm:$0xff]
        %v710 = vld [vmem:[#allocation10 + $0x2d8] sm:$0xff]
        %v711 = vld [vmem:[#allocation10 + $0x2e0] sm:$0xff]
        %v712 = vld [vmem:[#allocation10 + $0x2e8] sm:$0xff]
        %v713 = vld [vmem:[#allocation10 + $0x2f0] sm:$0xff]
        %v714 = vld [vmem:[#allocation10 + $0x2f8] sm:$0xff]
        %v715 = vld [vmem:[#allocation10 + $0x300] sm:$0xff]
        %v716 = vld [vmem:[#allocation10 + $0x308] sm:$0xff]
        %v717 = vld [vmem:[#allocation10 + $0x310] sm:$0xff]
        %v718 = vld [vmem:[#allocation10 + $0x318] sm:$0xff]
        %v719 = vld [vmem:[#allocation10 + $0x320] sm:$0xff]
        %v720 = vld [vmem:[#allocation10 + $0x328] sm:$0xff]
        %v721 = vld [vmem:[#allocation10 + $0x330] sm:$0xff]
        %v722 = vld [vmem:[#allocation10 + $0x338] sm:$0xff]
        %v723 = vld [vmem:[#allocation10 + $0x340] sm:$0xff]
        %v724 = vld [vmem:[#allocation10 + $0x348] sm:$0xff]
        %v725 = vld [vmem:[#allocation10 + $0x350] sm:$0xff]
        %v726 = vld [vmem:[#allocation10 + $0x358] sm:$0xff]
        %v727 = vld [vmem:[#allocation10 + $0x360] sm:$0xff]
        %v728 = vld [vmem:[#allocation10 + $0x368] sm:$0xff]
        %v729 = vld [vmem:[#allocation10 + $0x370] sm:$0xff]
        %v730 = vld [vmem:[#allocation10 + $0x378] sm:$0xff]
        %v731 = vld [vmem:[#allocation10 + $0x380] sm:$0xff]
        %v732 = vld [vmem:[#allocation10 + $0x388] sm:$0xff]
        %v733 = vld [vmem:[#allocation10 + $0x390] sm:$0xff]
        %v734 = vld [vmem:[#allocation10 + $0x398] sm:$0xff]
        %v735 = vld [vmem:[#allocation10 + $0x3a0] sm:$0xff]
        %v736 = vld [vmem:[#allocation10 + $0x3a8] sm:$0xff]
        %v737 = vld [vmem:[#allocation10 + $0x3b0] sm:$0xff]
        %v738 = vld [vmem:[#allocation10 + $0x3b8] sm:$0xff]
        %v739 = vld [vmem:[#allocation10 + $0x3c0] sm:$0xff]
        %v740 = vld [vmem:[#allocation10 + $0x3c8] sm:$0xff]
        %v741 = vld [vmem:[#allocation10 + $0x3d0] sm:$0xff]
        %v742 = vld [vmem:[#allocation10 + $0x3d8] sm:$0xff]
        %v743 = vld [vmem:[#allocation10 + $0x3e0] sm:$0xff]
        %v744 = vld [vmem:[#allocation10 + $0x3e8] sm:$0xff]
        %v745 = vld [vmem:[#allocation10 + $0x3f0] sm:$0xff]
        %v746 = vld [vmem:[#allocation10 + $0x3f8] sm:$0xff]
        %v747 = vld [vmem:[#allocation10 + $0x400] sm:$0xff]
        %v748 = vld [vmem:[#allocation10 + $0x408] sm:$0xff]
        %v749 = vld [vmem:[#allocation10 + $0x410] sm:$0xff]
        %v750 = vld [vmem:[#allocation10 + $0x418] sm:$0xff]
        %v751 = vld [vmem:[#allocation10 + $0x420] sm:$0xff]
        %v752 = vld [vmem:[#allocation10 + $0x428] sm:$0xff]
        %v753 = vld [vmem:[#allocation10 + $0x430] sm:$0xff]
        %v754 = vld [vmem:[#allocation10 + $0x438] sm:$0xff]
        %v755 = vld [vmem:[#allocation10 + $0x440] sm:$0xff]
        %v756 = vld [vmem:[#allocation10 + $0x448] sm:$0xff]
        %v757 = vld [vmem:[#allocation10 + $0x450] sm:$0xff]
        %v758 = vld [vmem:[#allocation10 + $0x458] sm:$0xff]
        %v759 = vld [vmem:[#allocation10 + $0x460] sm:$0xff]
        %v760 = vld [vmem:[#allocation10 + $0x468] sm:$0xff]
        %v761 = vld [vmem:[#allocation10 + $0x470] sm:$0xff]
        %v762 = vld [vmem:[#allocation10 + $0x478] sm:$0xff]
        %v763 = vld [vmem:[#allocation10 + $0x480] sm:$0xff]
        %v764 = vld [vmem:[#allocation10 + $0x488] sm:$0xff]
        %v765 = vld [vmem:[#allocation10 + $0x490] sm:$0xff]
        %v766 = vld [vmem:[#allocation10 + $0x498] sm:$0xff]
        %v767 = vld [vmem:[#allocation10 + $0x4a0] sm:$0xff]
        %v768 = vld [vmem:[#allocation10 + $0x4a8] sm:$0xff]
        %v769 = vld [vmem:[#allocation10 + $0x4b0] sm:$0xff]
        %v770 = vld [vmem:[#allocation10 + $0x4b8] sm:$0xff]
        %v771 = vld [vmem:[#allocation10 + $0x4c0] sm:$0xff]
        %v772 = vld [vmem:[#allocation10 + $0x4c8] sm:$0xff]
        %v773 = vld [vmem:[#allocation10 + $0x4d0] sm:$0xff]
        %v774 = vld [vmem:[#allocation10 + $0x4d8] sm:$0xff]
        %v775 = vld [vmem:[#allocation10 + $0x4e0] sm:$0xff]
        %v776 = vld [vmem:[#allocation10 + $0x4e8] sm:$0xff]
        %v777 = vld [vmem:[#allocation10 + $0x4f0] sm:$0xff]
        %v778 = vld [vmem:[#allocation10 + $0x4f8] sm:$0xff]
        %v779 = vld [vmem:[#allocation10 + $0x500] sm:$0xff]
        %v780 = vld [vmem:[#allocation10 + $0x508] sm:$0xff]
        %v781 = vld [vmem:[#allocation10 + $0x510] sm:$0xff]
        %v782 = vld [vmem:[#allocation10 + $0x518] sm:$0xff]
        %v783 = vld [vmem:[#allocation10 + $0x520] sm:$0xff]
        %v784 = vld [vmem:[#allocation10 + $0x528] sm:$0xff]
        %v785 = vld [vmem:[#allocation10 + $0x530] sm:$0xff]
        %v786 = vld [vmem:[#allocation10 + $0x538] sm:$0xff]
        %v787 = vld [vmem:[#allocation10 + $0x540] sm:$0xff]
        %v788 = vld [vmem:[#allocation10 + $0x548] sm:$0xff]
        %v789 = vld [vmem:[#allocation10 + $0x550] sm:$0xff]
        %v790 = vld [vmem:[#allocation10 + $0x558] sm:$0xff]
        %v791 = vld [vmem:[#allocation10 + $0x560] sm:$0xff]
        %v792 = vld [vmem:[#allocation10 + $0x568] sm:$0xff]
        %v793 = vld [vmem:[#allocation10 + $0x570] sm:$0xff]
        %v794 = vld [vmem:[#allocation10 + $0x578] sm:$0xff]
        %v795 = vld [vmem:[#allocation10 + $0x580] sm:$0xff]
        %v796 = vld [vmem:[#allocation10 + $0x588] sm:$0xff]
        %v797 = vld [vmem:[#allocation10 + $0x590] sm:$0xff]
        %v798 = vld [vmem:[#allocation10 + $0x598] sm:$0xff]
        %v799 = vld [vmem:[#allocation10 + $0x5a0] sm:$0xff]
        %v800 = vld [vmem:[#allocation10 + $0x5a8] sm:$0xff]
        %v801 = vld [vmem:[#allocation10 + $0x5b0] sm:$0xff]
        %v802 = vld [vmem:[#allocation10 + $0x5b8] sm:$0xff]
        %v803 = vld [vmem:[#allocation10 + $0x5c0] sm:$0xff]
        %v804 = vld [vmem:[#allocation10 + $0x5c8] sm:$0xff]
        %v805 = vld [vmem:[#allocation10 + $0x5d0] sm:$0xff]
        %v806 = vld [vmem:[#allocation10 + $0x5d8] sm:$0xff]
        %v807 = vld [vmem:[#allocation10 + $0x5e0] sm:$0xff]
        %v808 = vld [vmem:[#allocation10 + $0x5e8] sm:$0xff]
        %v809 = vld [vmem:[#allocation10 + $0x5f0] sm:$0xff]
        %v810 = vld [vmem:[#allocation10 + $0x5f8] sm:$0xff]
        %v811 = vld [vmem:[#allocation11] sm:$0xff]
        %v812 = vld [vmem:[#allocation11 + $0x8] sm:$0xff]
        %v813 = vld [vmem:[#allocation11 + $0x10] sm:$0xff]
        %v814 = vld [vmem:[#allocation11 + $0x18] sm:$0xff]
        %v815 = vld [vmem:[#allocation11 + $0x20] sm:$0xff]
        %v816 = vld [vmem:[#allocation11 + $0x28] sm:$0xff]
        %v817 = vld [vmem:[#allocation11 + $0x30] sm:$0xff]
        %v818 = vld [vmem:[#allocation11 + $0x38] sm:$0xff]
        %v819 = vld [vmem:[#allocation11 + $0x40] sm:$0xff]
        %v820 = vld [vmem:[#allocation11 + $0x48] sm:$0xff]
        %v821 = vld [vmem:[#allocation11 + $0x50] sm:$0xff]
        %v822 = vld [vmem:[#allocation11 + $0x58] sm:$0xff]
        %v823 = vld [vmem:[#allocation11 + $0x60] sm:$0xff]
        %v824 = vld [vmem:[#allocation11 + $0x68] sm:$0xff]
        %v825 = vld [vmem:[#allocation11 + $0x70] sm:$0xff]
        %v826 = vld [vmem:[#allocation11 + $0x78] sm:$0xff]
        %v827 = vld [vmem:[#allocation11 + $0x80] sm:$0xff]
        %v828 = vld [vmem:[#allocation11 + $0x88] sm:$0xff]
        %v829 = vld [vmem:[#allocation11 + $0x90] sm:$0xff]
        %v830 = vld [vmem:[#allocation11 + $0x98] sm:$0xff]
        %v831 = vld [vmem:[#allocation11 + $0xa0] sm:$0xff]
        %v832 = vld [vmem:[#allocation11 + $0xa8] sm:$0xff]
        %v833 = vld [vmem:[#allocation11 + $0xb0] sm:$0xff]
        %v834 = vld [vmem:[#allocation11 + $0xb8] sm:$0xff]
        %v835 = vld [vmem:[#allocation11 + $0xc0] sm:$0xff]
        %v836 = vld [vmem:[#allocation11 + $0xc8] sm:$0xff]
        %v837 = vld [vmem:[#allocation11 + $0xd0] sm:$0xff]
        %v838 = vld [vmem:[#allocation11 + $0xd8] sm:$0xff]
        %v839 = vld [vmem:[#allocation11 + $0xe0] sm:$0xff]
        %v840 = vld [vmem:[#allocation11 + $0xe8] sm:$0xff]
        %v841 = vld [vmem:[#allocation11 + $0xf0] sm:$0xff]
        %v842 = vld [vmem:[#allocation11 + $0xf8] sm:$0xff]
        %v843 = vld [vmem:[#allocation11 + $0x100] sm:$0xff]
        %v844 = vld [vmem:[#allocation11 + $0x108] sm:$0xff]
        %v845 = vld [vmem:[#allocation11 + $0x110] sm:$0xff]
        %v846 = vld [vmem:[#allocation11 + $0x118] sm:$0xff]
        %v847 = vld [vmem:[#allocation11 + $0x120] sm:$0xff]
        %v848 = vld [vmem:[#allocation11 + $0x128] sm:$0xff]
        %v849 = vld [vmem:[#allocation11 + $0x130] sm:$0xff]
        %v850 = vld [vmem:[#allocation11 + $0x138] sm:$0xff]
        %v851 = vld [vmem:[#allocation11 + $0x140] sm:$0xff]
        %v852 = vld [vmem:[#allocation11 + $0x148] sm:$0xff]
        %v853 = vld [vmem:[#allocation11 + $0x150] sm:$0xff]
        %v854 = vld [vmem:[#allocation11 + $0x158] sm:$0xff]
        %v855 = vld [vmem:[#allocation11 + $0x160] sm:$0xff]
        %v856 = vld [vmem:[#allocation11 + $0x168] sm:$0xff]
        %v857 = vld [vmem:[#allocation11 + $0x170] sm:$0xff]
        %v858 = vld [vmem:[#allocation11 + $0x178] sm:$0xff]
        %v859 = vld [vmem:[#allocation11 + $0x180] sm:$0xff]
        %v860 = vld [vmem:[#allocation11 + $0x188] sm:$0xff]
        %v861 = vld [vmem:[#allocation11 + $0x190] sm:$0xff]
        %v862 = vld [vmem:[#allocation11 + $0x198] sm:$0xff]
        %v863 = vld [vmem:[#allocation11 + $0x1a0] sm:$0xff]
        %v864 = vld [vmem:[#allocation11 + $0x1a8] sm:$0xff]
        %v865 = vld [vmem:[#allocation11 + $0x1b0] sm:$0xff]
        %v866 = vld [vmem:[#allocation11 + $0x1b8] sm:$0xff]
        %v867 = vld [vmem:[#allocation11 + $0x1c0] sm:$0xff]
        %v868 = vld [vmem:[#allocation11 + $0x1c8] sm:$0xff]
        %v869 = vld [vmem:[#allocation11 + $0x1d0] sm:$0xff]
        %v870 = vld [vmem:[#allocation11 + $0x1d8] sm:$0xff]
        %v871 = vld [vmem:[#allocation11 + $0x1e0] sm:$0xff]
        %v872 = vld [vmem:[#allocation11 + $0x1e8] sm:$0xff]
        %v873 = vld [vmem:[#allocation11 + $0x1f0] sm:$0xff]
        %v874 = vld [vmem:[#allocation11 + $0x1f8] sm:$0xff]
        %v875 = vld [vmem:[#allocation11 + $0x200] sm:$0xff]
        %v876 = vld [vmem:[#allocation11 + $0x208] sm:$0xff]
        %v877 = vld [vmem:[#allocation11 + $0x210] sm:$0xff]
        %v878 = vld [vmem:[#allocation11 + $0x218] sm:$0xff]
        %v879 = vld [vmem:[#allocation11 + $0x220] sm:$0xff]
        %v880 = vld [vmem:[#allocation11 + $0x228] sm:$0xff]
        %v881 = vld [vmem:[#allocation11 + $0x230] sm:$0xff]
        %v882 = vld [vmem:[#allocation11 + $0x238] sm:$0xff]
        %v883 = vld [vmem:[#allocation11 + $0x240] sm:$0xff]
        %v884 = vld [vmem:[#allocation11 + $0x248] sm:$0xff]
        %v885 = vld [vmem:[#allocation11 + $0x250] sm:$0xff]
        %v886 = vld [vmem:[#allocation11 + $0x258] sm:$0xff]
        %v887 = vld [vmem:[#allocation11 + $0x260] sm:$0xff]
        %v888 = vld [vmem:[#allocation11 + $0x268] sm:$0xff]
        %v889 = vld [vmem:[#allocation11 + $0x270] sm:$0xff]
        %v890 = vld [vmem:[#allocation11 + $0x278] sm:$0xff]
        %v891 = vld [vmem:[#allocation11 + $0x280] sm:$0xff]
        %v892 = vld [vmem:[#allocation11 + $0x288] sm:$0xff]
        %v893 = vld [vmem:[#allocation11 + $0x290] sm:$0xff]
        %v894 = vld [vmem:[#allocation11 + $0x298] sm:$0xff]
        %v895 = vld [vmem:[#allocation11 + $0x2a0] sm:$0xff]
        %v896 = vld [vmem:[#allocation11 + $0x2a8] sm:$0xff]
        %v897 = vld [vmem:[#allocation11 + $0x2b0] sm:$0xff]
        %v898 = vld [vmem:[#allocation11 + $0x2b8] sm:$0xff]
        %v899 = vld [vmem:[#allocation11 + $0x2c0] sm:$0xff]
        %v900 = vld [vmem:[#allocation11 + $0x2c8] sm:$0xff]
        %v901 = vld [vmem:[#allocation11 + $0x2d0] sm:$0xff]
        %v902 = vld [vmem:[#allocation11 + $0x2d8] sm:$0xff]
        %v903 = vld [vmem:[#allocation11 + $0x2e0] sm:$0xff]
        %v904 = vld [vmem:[#allocation11 + $0x2e8] sm:$0xff]
        %v905 = vld [vmem:[#allocation11 + $0x2f0] sm:$0xff]
        %v906 = vld [vmem:[#allocation11 + $0x2f8] sm:$0xff]
        %v907 = vld [vmem:[#allocation11 + $0x300] sm:$0xff]
        %v908 = vld [vmem:[#allocation11 + $0x308] sm:$0xff]
        %v909 = vld [vmem:[#allocation11 + $0x310] sm:$0xff]
        %v910 = vld [vmem:[#allocation11 + $0x318] sm:$0xff]
        %v911 = vld [vmem:[#allocation11 + $0x320] sm:$0xff]
        %v912 = vld [vmem:[#allocation11 + $0x328] sm:$0xff]
        %v913 = vld [vmem:[#allocation11 + $0x330] sm:$0xff]
        %v914 = vld [vmem:[#allocation11 + $0x338] sm:$0xff]
        %v915 = vld [vmem:[#allocation11 + $0x340] sm:$0xff]
        %v916 = vld [vmem:[#allocation11 + $0x348] sm:$0xff]
        %v917 = vld [vmem:[#allocation11 + $0x350] sm:$0xff]
        %v918 = vld [vmem:[#allocation11 + $0x358] sm:$0xff]
        %v919 = vld [vmem:[#allocation11 + $0x360] sm:$0xff]
        %v920 = vld [vmem:[#allocation11 + $0x368] sm:$0xff]
        %v921 = vld [vmem:[#allocation11 + $0x370] sm:$0xff]
        %v922 = vld [vmem:[#allocation11 + $0x378] sm:$0xff]
        %v923 = vld [vmem:[#allocation11 + $0x380] sm:$0xff]
        %v924 = vld [vmem:[#allocation11 + $0x388] sm:$0xff]
        %v925 = vld [vmem:[#allocation11 + $0x390] sm:$0xff]
        %v926 = vld [vmem:[#allocation11 + $0x398] sm:$0xff]
        %v927 = vld [vmem:[#allocation11 + $0x3a0] sm:$0xff]
        %v928 = vld [vmem:[#allocation11 + $0x3a8] sm:$0xff]
        %v929 = vld [vmem:[#allocation11 + $0x3b0] sm:$0xff]
        %v930 = vld [vmem:[#allocation11 + $0x3b8] sm:$0xff]
        %v931 = vld [vmem:[#allocation11 + $0x3c0] sm:$0xff]
        %v932 = vld [vmem:[#allocation11 + $0x3c8] sm:$0xff]
        %v933 = vld [vmem:[#allocation11 + $0x3d0] sm:$0xff]
        %v934 = vld [vmem:[#allocation11 + $0x3d8] sm:$0xff]
        %v935 = vld [vmem:[#allocation11 + $0x3e0] sm:$0xff]
        %v936 = vld [vmem:[#allocation11 + $0x3e8] sm:$0xff]
        %v937 = vld [vmem:[#allocation11 + $0x3f0] sm:$0xff]
        %v938 = vld [vmem:[#allocation11 + $0x3f8] sm:$0xff]
        %v939 = vld [vmem:[#allocation11 + $0x400] sm:$0xff]
        %v940 = vld [vmem:[#allocation11 + $0x408] sm:$0xff]
        %v941 = vld [vmem:[#allocation11 + $0x410] sm:$0xff]
        %v942 = vld [vmem:[#allocation11 + $0x418] sm:$0xff]
        %v943 = vld [vmem:[#allocation11 + $0x420] sm:$0xff]
        %v944 = vld [vmem:[#allocation11 + $0x428] sm:$0xff]
        %v945 = vld [vmem:[#allocation11 + $0x430] sm:$0xff]
        %v946 = vld [vmem:[#allocation11 + $0x438] sm:$0xff]
        %v947 = vld [vmem:[#allocation11 + $0x440] sm:$0xff]
        %v948 = vld [vmem:[#allocation11 + $0x448] sm:$0xff]
        %v949 = vld [vmem:[#allocation11 + $0x450] sm:$0xff]
        %v950 = vld [vmem:[#allocation11 + $0x458] sm:$0xff]
        %v951 = vld [vmem:[#allocation11 + $0x460] sm:$0xff]
        %v952 = vld [vmem:[#allocation11 + $0x468] sm:$0xff]
        %v953 = vld [vmem:[#allocation11 + $0x470] sm:$0xff]
        %v954 = vld [vmem:[#allocation11 + $0x478] sm:$0xff]
        %v955 = vld [vmem:[#allocation11 + $0x480] sm:$0xff]
        %v956 = vld [vmem:[#allocation11 + $0x488] sm:$0xff]
        %v957 = vld [vmem:[#allocation11 + $0x490] sm:$0xff]
        %v958 = vld [vmem:[#allocation11 + $0x498] sm:$0xff]
        %v959 = vld [vmem:[#allocation11 + $0x4a0] sm:$0xff]
        %v960 = vld [vmem:[#allocation11 + $0x4a8] sm:$0xff]
        %v961 = vld [vmem:[#allocation11 + $0x4b0] sm:$0xff]
        %v962 = vld [vmem:[#allocation11 + $0x4b8] sm:$0xff]
        %v963 = vld [vmem:[#allocation11 + $0x4c0] sm:$0xff]
        %v964 = vld [vmem:[#allocation11 + $0x4c8] sm:$0xff]
        %v965 = vld [vmem:[#allocation11 + $0x4d0] sm:$0xff]
        %v966 = vld [vmem:[#allocation11 + $0x4d8] sm:$0xff]
        %v967 = vld [vmem:[#allocation11 + $0x4e0] sm:$0xff]
        %v968 = vld [vmem:[#allocation11 + $0x4e8] sm:$0xff]
        %v969 = vld [vmem:[#allocation11 + $0x4f0] sm:$0xff]
        %v970 = vld [vmem:[#allocation11 + $0x4f8] sm:$0xff]
        %v971 = vld [vmem:[#allocation11 + $0x500] sm:$0xff]
        %v972 = vld [vmem:[#allocation11 + $0x508] sm:$0xff]
        %v973 = vld [vmem:[#allocation11 + $0x510] sm:$0xff]
        %v974 = vld [vmem:[#allocation11 + $0x518] sm:$0xff]
        %v975 = vld [vmem:[#allocation11 + $0x520] sm:$0xff]
        %v976 = vld [vmem:[#allocation11 + $0x528] sm:$0xff]
        %v977 = vld [vmem:[#allocation11 + $0x530] sm:$0xff]
        %v978 = vld [vmem:[#allocation11 + $0x538] sm:$0xff]
        %v979 = vld [vmem:[#allocation11 + $0x540] sm:$0xff]
        %v980 = vld [vmem:[#allocation11 + $0x548] sm:$0xff]
        %v981 = vld [vmem:[#allocation11 + $0x550] sm:$0xff]
        %v982 = vld [vmem:[#allocation11 + $0x558] sm:$0xff]
        %v983 = vld [vmem:[#allocation11 + $0x560] sm:$0xff]
        %v984 = vld [vmem:[#allocation11 + $0x568] sm:$0xff]
        %v985 = vld [vmem:[#allocation11 + $0x570] sm:$0xff]
        %v986 = vld [vmem:[#allocation11 + $0x578] sm:$0xff]
        %v987 = vld [vmem:[#allocation11 + $0x580] sm:$0xff]
        %v988 = vld [vmem:[#allocation11 + $0x588] sm:$0xff]
        %v989 = vld [vmem:[#allocation11 + $0x590] sm:$0xff]
        %v990 = vld [vmem:[#allocation11 + $0x598] sm:$0xff]
        %v991 = vld [vmem:[#allocation11 + $0x5a0] sm:$0xff]
        %v992 = vld [vmem:[#allocation11 + $0x5a8] sm:$0xff]
        %v993 = vld [vmem:[#allocation11 + $0x5b0] sm:$0xff]
        %v994 = vld [vmem:[#allocation11 + $0x5b8] sm:$0xff]
        %v995 = vld [vmem:[#allocation11 + $0x5c0] sm:$0xff]
        %v996 = vld [vmem:[#allocation11 + $0x5c8] sm:$0xff]
        %v997 = vld [vmem:[#allocation11 + $0x5d0] sm:$0xff]
        %v998 = vld [vmem:[#allocation11 + $0x5d8] sm:$0xff]
        %v999 = vld [vmem:[#allocation11 + $0x5e0] sm:$0xff]
        %v1000 = vld [vmem:[#allocation11 + $0x5e8] sm:$0xff]
        %v1001 = vld [vmem:[#allocation11 + $0x5f0] sm:$0xff]
        %v1002 = vld [vmem:[#allocation11 + $0x5f8] sm:$0xff]
        %v1003 = vld [vmem:[#allocation13] sm:$0xff]
        %v1004 = vld [vmem:[#allocation13 + $0x8] sm:$0xff]
        %v1005 = vld [vmem:[#allocation13 + $0x10] sm:$0xff]
        %v1006 = vld [vmem:[#allocation13 + $0x18] sm:$0xff]
        %v1007 = vld [vmem:[#allocation13 + $0x20] sm:$0xff]
        %v1008 = vld [vmem:[#allocation13 + $0x28] sm:$0xff]
        %v1009 = vld [vmem:[#allocation13 + $0x30] sm:$0xff]
        %v1010 = vld [vmem:[#allocation13 + $0x38] sm:$0xff]
        %v1011 = vld [vmem:[#allocation13 + $0x40] sm:$0xff]
        %v1012 = vld [vmem:[#allocation13 + $0x48] sm:$0xff]
        %v1013 = vld [vmem:[#allocation13 + $0x50] sm:$0xff]
        %v1014 = vld [vmem:[#allocation13 + $0x58] sm:$0xff]
        %v1015 = vld [vmem:[#allocation13 + $0x60] sm:$0xff]
        %v1016 = vld [vmem:[#allocation13 + $0x68] sm:$0xff]
        %v1017 = vld [vmem:[#allocation13 + $0x70] sm:$0xff]
        %v1018 = vld [vmem:[#allocation13 + $0x78] sm:$0xff]
        %v1019 = vld [vmem:[#allocation13 + $0x80] sm:$0xff]
        %v1020 = vld [vmem:[#allocation13 + $0x88] sm:$0xff]
        %v1021 = vld [vmem:[#allocation13 + $0x90] sm:$0xff]
        %v1022 = vld [vmem:[#allocation13 + $0x98] sm:$0xff]
        %v1023 = vld [vmem:[#allocation13 + $0xa0] sm:$0xff]
        %v1024 = vld [vmem:[#allocation13 + $0xa8] sm:$0xff]
        %v1025 = vld [vmem:[#allocation13 + $0xb0] sm:$0xff]
        %v1026 = vld [vmem:[#allocation13 + $0xb8] sm:$0xff]
        %v1027 = vld [vmem:[#allocation13 + $0xc0] sm:$0xff]
        %v1028 = vld [vmem:[#allocation13 + $0xc8] sm:$0xff]
        %v1029 = vld [vmem:[#allocation13 + $0xd0] sm:$0xff]
        %v1030 = vld [vmem:[#allocation13 + $0xd8] sm:$0xff]
        %v1031 = vld [vmem:[#allocation13 + $0xe0] sm:$0xff]
        %v1032 = vld [vmem:[#allocation13 + $0xe8] sm:$0xff]
        %v1033 = vld [vmem:[#allocation13 + $0xf0] sm:$0xff]
        %v1034 = vld [vmem:[#allocation13 + $0xf8] sm:$0xff]
        %v1035 = vld [vmem:[#allocation13 + $0x100] sm:$0xff]
        %v1036 = vld [vmem:[#allocation13 + $0x108] sm:$0xff]
        %v1037 = vld [vmem:[#allocation13 + $0x110] sm:$0xff]
        %v1038 = vld [vmem:[#allocation13 + $0x118] sm:$0xff]
        %v1039 = vld [vmem:[#allocation13 + $0x120] sm:$0xff]
        %v1040 = vld [vmem:[#allocation13 + $0x128] sm:$0xff]
        %v1041 = vld [vmem:[#allocation13 + $0x130] sm:$0xff]
        %v1042 = vld [vmem:[#allocation13 + $0x138] sm:$0xff]
        %v1043 = vld [vmem:[#allocation13 + $0x140] sm:$0xff]
        %v1044 = vld [vmem:[#allocation13 + $0x148] sm:$0xff]
        %v1045 = vld [vmem:[#allocation13 + $0x150] sm:$0xff]
        %v1046 = vld [vmem:[#allocation13 + $0x158] sm:$0xff]
        %v1047 = vld [vmem:[#allocation13 + $0x160] sm:$0xff]
        %v1048 = vld [vmem:[#allocation13 + $0x168] sm:$0xff]
        %v1049 = vld [vmem:[#allocation13 + $0x170] sm:$0xff]
        %v1050 = vld [vmem:[#allocation13 + $0x178] sm:$0xff]
        %v1051 = vld [vmem:[#allocation13 + $0x180] sm:$0xff]
        %v1052 = vld [vmem:[#allocation13 + $0x188] sm:$0xff]
        %v1053 = vld [vmem:[#allocation13 + $0x190] sm:$0xff]
        %v1054 = vld [vmem:[#allocation13 + $0x198] sm:$0xff]
        %v1055 = vld [vmem:[#allocation13 + $0x1a0] sm:$0xff]
        %v1056 = vld [vmem:[#allocation13 + $0x1a8] sm:$0xff]
        %v1057 = vld [vmem:[#allocation13 + $0x1b0] sm:$0xff]
        %v1058 = vld [vmem:[#allocation13 + $0x1b8] sm:$0xff]
        %v1059 = vld [vmem:[#allocation13 + $0x1c0] sm:$0xff]
        %v1060 = vld [vmem:[#allocation13 + $0x1c8] sm:$0xff]
        %v1061 = vld [vmem:[#allocation13 + $0x1d0] sm:$0xff]
        %v1062 = vld [vmem:[#allocation13 + $0x1d8] sm:$0xff]
        %v1063 = vld [vmem:[#allocation13 + $0x1e0] sm:$0xff]
        %v1064 = vld [vmem:[#allocation13 + $0x1e8] sm:$0xff]
        %v1065 = vld [vmem:[#allocation13 + $0x1f0] sm:$0xff]
        %v1066 = vld [vmem:[#allocation13 + $0x1f8] sm:$0xff]
        %v1067 = vld [vmem:[#allocation13 + $0x200] sm:$0xff]
        %v1068 = vld [vmem:[#allocation13 + $0x208] sm:$0xff]
        %v1069 = vld [vmem:[#allocation13 + $0x210] sm:$0xff]
        %v1070 = vld [vmem:[#allocation13 + $0x218] sm:$0xff]
        %v1071 = vld [vmem:[#allocation13 + $0x220] sm:$0xff]
        %v1072 = vld [vmem:[#allocation13 + $0x228] sm:$0xff]
        %v1073 = vld [vmem:[#allocation13 + $0x230] sm:$0xff]
        %v1074 = vld [vmem:[#allocation13 + $0x238] sm:$0xff]
        %v1075 = vld [vmem:[#allocation13 + $0x240] sm:$0xff]
        %v1076 = vld [vmem:[#allocation13 + $0x248] sm:$0xff]
        %v1077 = vld [vmem:[#allocation13 + $0x250] sm:$0xff]
        %v1078 = vld [vmem:[#allocation13 + $0x258] sm:$0xff]
        %v1079 = vld [vmem:[#allocation13 + $0x260] sm:$0xff]
        %v1080 = vld [vmem:[#allocation13 + $0x268] sm:$0xff]
        %v1081 = vld [vmem:[#allocation13 + $0x270] sm:$0xff]
        %v1082 = vld [vmem:[#allocation13 + $0x278] sm:$0xff]
        %v1083 = vld [vmem:[#allocation13 + $0x280] sm:$0xff]
        %v1084 = vld [vmem:[#allocation13 + $0x288] sm:$0xff]
        %v1085 = vld [vmem:[#allocation13 + $0x290] sm:$0xff]
        %v1086 = vld [vmem:[#allocation13 + $0x298] sm:$0xff]
        %v1087 = vld [vmem:[#allocation13 + $0x2a0] sm:$0xff]
        %v1088 = vld [vmem:[#allocation13 + $0x2a8] sm:$0xff]
        %v1089 = vld [vmem:[#allocation13 + $0x2b0] sm:$0xff]
        %v1090 = vld [vmem:[#allocation13 + $0x2b8] sm:$0xff]
        %v1091 = vld [vmem:[#allocation13 + $0x2c0] sm:$0xff]
        %v1092 = vld [vmem:[#allocation13 + $0x2c8] sm:$0xff]
        %v1093 = vld [vmem:[#allocation13 + $0x2d0] sm:$0xff]
        %v1094 = vld [vmem:[#allocation13 + $0x2d8] sm:$0xff]
        %v1095 = vld [vmem:[#allocation13 + $0x2e0] sm:$0xff]
        %v1096 = vld [vmem:[#allocation13 + $0x2e8] sm:$0xff]
        %v1097 = vld [vmem:[#allocation13 + $0x2f0] sm:$0xff]
        %v1098 = vld [vmem:[#allocation13 + $0x2f8] sm:$0xff]
        %v1099 = vld [vmem:[#allocation13 + $0x300] sm:$0xff]
        %v1100 = vld [vmem:[#allocation13 + $0x308] sm:$0xff]
        %v1101 = vld [vmem:[#allocation13 + $0x310] sm:$0xff]
        %v1102 = vld [vmem:[#allocation13 + $0x318] sm:$0xff]
        %v1103 = vld [vmem:[#allocation13 + $0x320] sm:$0xff]
        %v1104 = vld [vmem:[#allocation13 + $0x328] sm:$0xff]
        %v1105 = vld [vmem:[#allocation13 + $0x330] sm:$0xff]
        %v1106 = vld [vmem:[#allocation13 + $0x338] sm:$0xff]
        %v1107 = vld [vmem:[#allocation13 + $0x340] sm:$0xff]
        %v1108 = vld [vmem:[#allocation13 + $0x348] sm:$0xff]
        %v1109 = vld [vmem:[#allocation13 + $0x350] sm:$0xff]
        %v1110 = vld [vmem:[#allocation13 + $0x358] sm:$0xff]
        %v1111 = vld [vmem:[#allocation13 + $0x360] sm:$0xff]
        %v1112 = vld [vmem:[#allocation13 + $0x368] sm:$0xff]
        %v1113 = vld [vmem:[#allocation13 + $0x370] sm:$0xff]
        %v1114 = vld [vmem:[#allocation13 + $0x378] sm:$0xff]
        %v1115 = vld [vmem:[#allocation13 + $0x380] sm:$0xff]
        %v1116 = vld [vmem:[#allocation13 + $0x388] sm:$0xff]
        %v1117 = vld [vmem:[#allocation13 + $0x390] sm:$0xff]
        %v1118 = vld [vmem:[#allocation13 + $0x398] sm:$0xff]
        %v1119 = vld [vmem:[#allocation13 + $0x3a0] sm:$0xff]
        %v1120 = vld [vmem:[#allocation13 + $0x3a8] sm:$0xff]
        %v1121 = vld [vmem:[#allocation13 + $0x3b0] sm:$0xff]
        %v1122 = vld [vmem:[#allocation13 + $0x3b8] sm:$0xff]
        %v1123 = vld [vmem:[#allocation13 + $0x3c0] sm:$0xff]
        %v1124 = vld [vmem:[#allocation13 + $0x3c8] sm:$0xff]
        %v1125 = vld [vmem:[#allocation13 + $0x3d0] sm:$0xff]
        %v1126 = vld [vmem:[#allocation13 + $0x3d8] sm:$0xff]
        %v1127 = vld [vmem:[#allocation13 + $0x3e0] sm:$0xff]
        %v1128 = vld [vmem:[#allocation13 + $0x3e8] sm:$0xff]
        %v1129 = vld [vmem:[#allocation13 + $0x3f0] sm:$0xff]
        %v1130 = vld [vmem:[#allocation13 + $0x3f8] sm:$0xff]
        %v1131 = vld [vmem:[#allocation13 + $0x400] sm:$0xff]
        %v1132 = vld [vmem:[#allocation13 + $0x408] sm:$0xff]
        %v1133 = vld [vmem:[#allocation13 + $0x410] sm:$0xff]
        %v1134 = vld [vmem:[#allocation13 + $0x418] sm:$0xff]
        %v1135 = vld [vmem:[#allocation13 + $0x420] sm:$0xff]
        %v1136 = vld [vmem:[#allocation13 + $0x428] sm:$0xff]
        %v1137 = vld [vmem:[#allocation13 + $0x430] sm:$0xff]
        %v1138 = vld [vmem:[#allocation13 + $0x438] sm:$0xff]
        %v1139 = vld [vmem:[#allocation13 + $0x440] sm:$0xff]
        %v1140 = vld [vmem:[#allocation13 + $0x448] sm:$0xff]
        %v1141 = vld [vmem:[#allocation13 + $0x450] sm:$0xff]
        %v1142 = vld [vmem:[#allocation13 + $0x458] sm:$0xff]
        %v1143 = vld [vmem:[#allocation13 + $0x460] sm:$0xff]
        %v1144 = vld [vmem:[#allocation13 + $0x468] sm:$0xff]
        %v1145 = vld [vmem:[#allocation13 + $0x470] sm:$0xff]
        %v1146 = vld [vmem:[#allocation13 + $0x478] sm:$0xff]
        %v1147 = vld [vmem:[#allocation13 + $0x480] sm:$0xff]
        %v1148 = vld [vmem:[#allocation13 + $0x488] sm:$0xff]
        %v1149 = vld [vmem:[#allocation13 + $0x490] sm:$0xff]
        %v1150 = vld [vmem:[#allocation13 + $0x498] sm:$0xff]
        %v1151 = vld [vmem:[#allocation13 + $0x4a0] sm:$0xff]
        %v1152 = vld [vmem:[#allocation13 + $0x4a8] sm:$0xff]
        %v1153 = vld [vmem:[#allocation13 + $0x4b0] sm:$0xff]
        %v1154 = vld [vmem:[#allocation13 + $0x4b8] sm:$0xff]
        %v1155 = vld [vmem:[#allocation13 + $0x4c0] sm:$0xff]
        %v1156 = vld [vmem:[#allocation13 + $0x4c8] sm:$0xff]
        %v1157 = vld [vmem:[#allocation13 + $0x4d0] sm:$0xff]
        %v1158 = vld [vmem:[#allocation13 + $0x4d8] sm:$0xff]
        %v1159 = vld [vmem:[#allocation13 + $0x4e0] sm:$0xff]
        %v1160 = vld [vmem:[#allocation13 + $0x4e8] sm:$0xff]
        %v1161 = vld [vmem:[#allocation13 + $0x4f0] sm:$0xff]
        %v1162 = vld [vmem:[#allocation13 + $0x4f8] sm:$0xff]
        %v1163 = vld [vmem:[#allocation13 + $0x500] sm:$0xff]
        %v1164 = vld [vmem:[#allocation13 + $0x508] sm:$0xff]
        %v1165 = vld [vmem:[#allocation13 + $0x510] sm:$0xff]
        %v1166 = vld [vmem:[#allocation13 + $0x518] sm:$0xff]
        %v1167 = vld [vmem:[#allocation13 + $0x520] sm:$0xff]
        %v1168 = vld [vmem:[#allocation13 + $0x528] sm:$0xff]
        %v1169 = vld [vmem:[#allocation13 + $0x530] sm:$0xff]
        %v1170 = vld [vmem:[#allocation13 + $0x538] sm:$0xff]
        %v1171 = vld [vmem:[#allocation13 + $0x540] sm:$0xff]
        %v1172 = vld [vmem:[#allocation13 + $0x548] sm:$0xff]
        %v1173 = vld [vmem:[#allocation13 + $0x550] sm:$0xff]
        %v1174 = vld [vmem:[#allocation13 + $0x558] sm:$0xff]
        %v1175 = vld [vmem:[#allocation13 + $0x560] sm:$0xff]
        %v1176 = vld [vmem:[#allocation13 + $0x568] sm:$0xff]
        %v1177 = vld [vmem:[#allocation13 + $0x570] sm:$0xff]
        %v1178 = vld [vmem:[#allocation13 + $0x578] sm:$0xff]
        %v1179 = vld [vmem:[#allocation13 + $0x580] sm:$0xff]
        %v1180 = vld [vmem:[#allocation13 + $0x588] sm:$0xff]
        %v1181 = vld [vmem:[#allocation13 + $0x590] sm:$0xff]
        %v1182 = vld [vmem:[#allocation13 + $0x598] sm:$0xff]
        %v1183 = vld [vmem:[#allocation13 + $0x5a0] sm:$0xff]
        %v1184 = vld [vmem:[#allocation13 + $0x5a8] sm:$0xff]
        %v1185 = vld [vmem:[#allocation13 + $0x5b0] sm:$0xff]
        %v1186 = vld [vmem:[#allocation13 + $0x5b8] sm:$0xff]
        %v1187 = vld [vmem:[#allocation13 + $0x5c0] sm:$0xff]
        %v1188 = vld [vmem:[#allocation13 + $0x5c8] sm:$0xff]
        %v1189 = vld [vmem:[#allocation13 + $0x5d0] sm:$0xff]
        %v1190 = vld [vmem:[#allocation13 + $0x5d8] sm:$0xff]
        %v1191 = vld [vmem:[#allocation13 + $0x5e0] sm:$0xff]
        %v1192 = vld [vmem:[#allocation13 + $0x5e8] sm:$0xff]
        %v1193 = vld [vmem:[#allocation13 + $0x5f0] sm:$0xff]
        %v1194 = vld [vmem:[#allocation13 + $0x5f8] sm:$0xff]
        %v1195 = vld [vmem:[#allocation14] sm:$0xff]
        %v1196 = vld [vmem:[#allocation14 + $0x8] sm:$0xff]
        %v1197 = vld [vmem:[#allocation14 + $0x10] sm:$0xff]
        %v1198 = vld [vmem:[#allocation14 + $0x18] sm:$0xff]
        %v1199 = vld [vmem:[#allocation14 + $0x20] sm:$0xff]
        %v1200 = vld [vmem:[#allocation14 + $0x28] sm:$0xff]
        %v1201 = vld [vmem:[#allocation14 + $0x30] sm:$0xff]
        %v1202 = vld [vmem:[#allocation14 + $0x38] sm:$0xff]
        %v1203 = vld [vmem:[#allocation14 + $0x40] sm:$0xff]
        %v1204 = vld [vmem:[#allocation14 + $0x48] sm:$0xff]
        %v1205 = vld [vmem:[#allocation14 + $0x50] sm:$0xff]
        %v1206 = vld [vmem:[#allocation14 + $0x58] sm:$0xff]
        %v1207 = vld [vmem:[#allocation14 + $0x60] sm:$0xff]
        %v1208 = vld [vmem:[#allocation14 + $0x68] sm:$0xff]
        %v1209 = vld [vmem:[#allocation14 + $0x70] sm:$0xff]
        %v1210 = vld [vmem:[#allocation14 + $0x78] sm:$0xff]
        %v1211 = vld [vmem:[#allocation14 + $0x80] sm:$0xff]
        %v1212 = vld [vmem:[#allocation14 + $0x88] sm:$0xff]
        %v1213 = vld [vmem:[#allocation14 + $0x90] sm:$0xff]
        %v1214 = vld [vmem:[#allocation14 + $0x98] sm:$0xff]
        %v1215 = vld [vmem:[#allocation14 + $0xa0] sm:$0xff]
        %v1216 = vld [vmem:[#allocation14 + $0xa8] sm:$0xff]
        %v1217 = vld [vmem:[#allocation14 + $0xb0] sm:$0xff]
        %v1218 = vld [vmem:[#allocation14 + $0xb8] sm:$0xff]
        %v1219 = vld [vmem:[#allocation14 + $0xc0] sm:$0xff]
        %v1220 = vld [vmem:[#allocation14 + $0xc8] sm:$0xff]
        %v1221 = vld [vmem:[#allocation14 + $0xd0] sm:$0xff]
        %v1222 = vld [vmem:[#allocation14 + $0xd8] sm:$0xff]
        %v1223 = vld [vmem:[#allocation14 + $0xe0] sm:$0xff]
        %v1224 = vld [vmem:[#allocation14 + $0xe8] sm:$0xff]
        %v1225 = vld [vmem:[#allocation14 + $0xf0] sm:$0xff]
        %v1226 = vld [vmem:[#allocation14 + $0xf8] sm:$0xff]
        %v1227 = vld [vmem:[#allocation14 + $0x100] sm:$0xff]
        %v1228 = vld [vmem:[#allocation14 + $0x108] sm:$0xff]
        %v1229 = vld [vmem:[#allocation14 + $0x110] sm:$0xff]
        %v1230 = vld [vmem:[#allocation14 + $0x118] sm:$0xff]
        %v1231 = vld [vmem:[#allocation14 + $0x120] sm:$0xff]
        %v1232 = vld [vmem:[#allocation14 + $0x128] sm:$0xff]
        %v1233 = vld [vmem:[#allocation14 + $0x130] sm:$0xff]
        %v1234 = vld [vmem:[#allocation14 + $0x138] sm:$0xff]
        %v1235 = vld [vmem:[#allocation14 + $0x140] sm:$0xff]
        %v1236 = vld [vmem:[#allocation14 + $0x148] sm:$0xff]
        %v1237 = vld [vmem:[#allocation14 + $0x150] sm:$0xff]
        %v1238 = vld [vmem:[#allocation14 + $0x158] sm:$0xff]
        %v1239 = vld [vmem:[#allocation14 + $0x160] sm:$0xff]
        %v1240 = vld [vmem:[#allocation14 + $0x168] sm:$0xff]
        %v1241 = vld [vmem:[#allocation14 + $0x170] sm:$0xff]
        %v1242 = vld [vmem:[#allocation14 + $0x178] sm:$0xff]
        %v1243 = vld [vmem:[#allocation14 + $0x180] sm:$0xff]
        %v1244 = vld [vmem:[#allocation14 + $0x188] sm:$0xff]
        %v1245 = vld [vmem:[#allocation14 + $0x190] sm:$0xff]
        %v1246 = vld [vmem:[#allocation14 + $0x198] sm:$0xff]
        %v1247 = vld [vmem:[#allocation14 + $0x1a0] sm:$0xff]
        %v1248 = vld [vmem:[#allocation14 + $0x1a8] sm:$0xff]
        %v1249 = vld [vmem:[#allocation14 + $0x1b0] sm:$0xff]
        %v1250 = vld [vmem:[#allocation14 + $0x1b8] sm:$0xff]
        %v1251 = vld [vmem:[#allocation14 + $0x1c0] sm:$0xff]
        %v1252 = vld [vmem:[#allocation14 + $0x1c8] sm:$0xff]
        %v1253 = vld [vmem:[#allocation14 + $0x1d0] sm:$0xff]
        %v1254 = vld [vmem:[#allocation14 + $0x1d8] sm:$0xff]
        %v1255 = vld [vmem:[#allocation14 + $0x1e0] sm:$0xff]
        %v1256 = vld [vmem:[#allocation14 + $0x1e8] sm:$0xff]
        %v1257 = vld [vmem:[#allocation14 + $0x1f0] sm:$0xff]
        %v1258 = vld [vmem:[#allocation14 + $0x1f8] sm:$0xff]
        %v1259 = vld [vmem:[#allocation14 + $0x200] sm:$0xff]
        %v1260 = vld [vmem:[#allocation14 + $0x208] sm:$0xff]
        %v1261 = vld [vmem:[#allocation14 + $0x210] sm:$0xff]
        %v1262 = vld [vmem:[#allocation14 + $0x218] sm:$0xff]
        %v1263 = vld [vmem:[#allocation14 + $0x220] sm:$0xff]
        %v1264 = vld [vmem:[#allocation14 + $0x228] sm:$0xff]
        %v1265 = vld [vmem:[#allocation14 + $0x230] sm:$0xff]
        %v1266 = vld [vmem:[#allocation14 + $0x238] sm:$0xff]
        %v1267 = vld [vmem:[#allocation14 + $0x240] sm:$0xff]
        %v1268 = vld [vmem:[#allocation14 + $0x248] sm:$0xff]
        %v1269 = vld [vmem:[#allocation14 + $0x250] sm:$0xff]
        %v1270 = vld [vmem:[#allocation14 + $0x258] sm:$0xff]
        %v1271 = vld [vmem:[#allocation14 + $0x260] sm:$0xff]
        %v1272 = vld [vmem:[#allocation14 + $0x268] sm:$0xff]
        %v1273 = vld [vmem:[#allocation14 + $0x270] sm:$0xff]
        %v1274 = vld [vmem:[#allocation14 + $0x278] sm:$0xff]
        %v1275 = vld [vmem:[#allocation14 + $0x280] sm:$0xff]
        %v1276 = vld [vmem:[#allocation14 + $0x288] sm:$0xff]
        %v1277 = vld [vmem:[#allocation14 + $0x290] sm:$0xff]
        %v1278 = vld [vmem:[#allocation14 + $0x298] sm:$0xff]
        %v1279 = vld [vmem:[#allocation14 + $0x2a0] sm:$0xff]
        %v1280 = vld [vmem:[#allocation14 + $0x2a8] sm:$0xff]
        %v1281 = vld [vmem:[#allocation14 + $0x2b0] sm:$0xff]
        %v1282 = vld [vmem:[#allocation14 + $0x2b8] sm:$0xff]
        %v1283 = vld [vmem:[#allocation14 + $0x2c0] sm:$0xff]
        %v1284 = vld [vmem:[#allocation14 + $0x2c8] sm:$0xff]
        %v1285 = vld [vmem:[#allocation14 + $0x2d0] sm:$0xff]
        %v1286 = vld [vmem:[#allocation14 + $0x2d8] sm:$0xff]
        %v1287 = vld [vmem:[#allocation14 + $0x2e0] sm:$0xff]
        %v1288 = vld [vmem:[#allocation14 + $0x2e8] sm:$0xff]
        %v1289 = vld [vmem:[#allocation14 + $0x2f0] sm:$0xff]
        %v1290 = vld [vmem:[#allocation14 + $0x2f8] sm:$0xff]
        %v1291 = vld [vmem:[#allocation14 + $0x300] sm:$0xff]
        %v1292 = vld [vmem:[#allocation14 + $0x308] sm:$0xff]
        %v1293 = vld [vmem:[#allocation14 + $0x310] sm:$0xff]
        %v1294 = vld [vmem:[#allocation14 + $0x318] sm:$0xff]
        %v1295 = vld [vmem:[#allocation14 + $0x320] sm:$0xff]
        %v1296 = vld [vmem:[#allocation14 + $0x328] sm:$0xff]
        %v1297 = vld [vmem:[#allocation14 + $0x330] sm:$0xff]
        %v1298 = vld [vmem:[#allocation14 + $0x338] sm:$0xff]
        %v1299 = vld [vmem:[#allocation14 + $0x340] sm:$0xff]
        %v1300 = vld [vmem:[#allocation14 + $0x348] sm:$0xff]
        %v1301 = vld [vmem:[#allocation14 + $0x350] sm:$0xff]
        %v1302 = vld [vmem:[#allocation14 + $0x358] sm:$0xff]
        %v1303 = vld [vmem:[#allocation14 + $0x360] sm:$0xff]
        %v1304 = vld [vmem:[#allocation14 + $0x368] sm:$0xff]
        %v1305 = vld [vmem:[#allocation14 + $0x370] sm:$0xff]
        %v1306 = vld [vmem:[#allocation14 + $0x378] sm:$0xff]
        %v1307 = vld [vmem:[#allocation14 + $0x380] sm:$0xff]
        %v1308 = vld [vmem:[#allocation14 + $0x388] sm:$0xff]
        %v1309 = vld [vmem:[#allocation14 + $0x390] sm:$0xff]
        %v1310 = vld [vmem:[#allocation14 + $0x398] sm:$0xff]
        %v1311 = vld [vmem:[#allocation14 + $0x3a0] sm:$0xff]
        %v1312 = vld [vmem:[#allocation14 + $0x3a8] sm:$0xff]
        %v1313 = vld [vmem:[#allocation14 + $0x3b0] sm:$0xff]
        %v1314 = vld [vmem:[#allocation14 + $0x3b8] sm:$0xff]
        %v1315 = vld [vmem:[#allocation14 + $0x3c0] sm:$0xff]
        %v1316 = vld [vmem:[#allocation14 + $0x3c8] sm:$0xff]
        %v1317 = vld [vmem:[#allocation14 + $0x3d0] sm:$0xff]
        %v1318 = vld [vmem:[#allocation14 + $0x3d8] sm:$0xff]
        %v1319 = vld [vmem:[#allocation14 + $0x3e0] sm:$0xff]
        %v1320 = vld [vmem:[#allocation14 + $0x3e8] sm:$0xff]
        %v1321 = vld [vmem:[#allocation14 + $0x3f0] sm:$0xff]
        %v1322 = vld [vmem:[#allocation14 + $0x3f8] sm:$0xff]
        %v1323 = vld [vmem:[#allocation14 + $0x400] sm:$0xff]
        %v1324 = vld [vmem:[#allocation14 + $0x408] sm:$0xff]
        %v1325 = vld [vmem:[#allocation14 + $0x410] sm:$0xff]
        %v1326 = vld [vmem:[#allocation14 + $0x418] sm:$0xff]
        %v1327 = vld [vmem:[#allocation14 + $0x420] sm:$0xff]
        %v1328 = vld [vmem:[#allocation14 + $0x428] sm:$0xff]
        %v1329 = vld [vmem:[#allocation14 + $0x430] sm:$0xff]
        %v1330 = vld [vmem:[#allocation14 + $0x438] sm:$0xff]
        %v1331 = vld [vmem:[#allocation14 + $0x440] sm:$0xff]
        %v1332 = vld [vmem:[#allocation14 + $0x448] sm:$0xff]
        %v1333 = vld [vmem:[#allocation14 + $0x450] sm:$0xff]
        %v1334 = vld [vmem:[#allocation14 + $0x458] sm:$0xff]
        %v1335 = vld [vmem:[#allocation14 + $0x460] sm:$0xff]
        %v1336 = vld [vmem:[#allocation14 + $0x468] sm:$0xff]
        %v1337 = vld [vmem:[#allocation14 + $0x470] sm:$0xff]
        %v1338 = vld [vmem:[#allocation14 + $0x478] sm:$0xff]
        %v1339 = vld [vmem:[#allocation14 + $0x480] sm:$0xff]
        %v1340 = vld [vmem:[#allocation14 + $0x488] sm:$0xff]
        %v1341 = vld [vmem:[#allocation14 + $0x490] sm:$0xff]
        %v1342 = vld [vmem:[#allocation14 + $0x498] sm:$0xff]
        %v1343 = vld [vmem:[#allocation14 + $0x4a0] sm:$0xff]
        %v1344 = vld [vmem:[#allocation14 + $0x4a8] sm:$0xff]
        %v1345 = vld [vmem:[#allocation14 + $0x4b0] sm:$0xff]
        %v1346 = vld [vmem:[#allocation14 + $0x4b8] sm:$0xff]
        %v1347 = vld [vmem:[#allocation14 + $0x4c0] sm:$0xff]
        %v1348 = vld [vmem:[#allocation14 + $0x4c8] sm:$0xff]
        %v1349 = vld [vmem:[#allocation14 + $0x4d0] sm:$0xff]
        %v1350 = vld [vmem:[#allocation14 + $0x4d8] sm:$0xff]
        %v1351 = vld [vmem:[#allocation14 + $0x4e0] sm:$0xff]
        %v1352 = vld [vmem:[#allocation14 + $0x4e8] sm:$0xff]
        %v1353 = vld [vmem:[#allocation14 + $0x4f0] sm:$0xff]
        %v1354 = vld [vmem:[#allocation14 + $0x4f8] sm:$0xff]
        %v1355 = vld [vmem:[#allocation14 + $0x500] sm:$0xff]
        %v1356 = vld [vmem:[#allocation14 + $0x508] sm:$0xff]
        %v1357 = vld [vmem:[#allocation14 + $0x510] sm:$0xff]
        %v1358 = vld [vmem:[#allocation14 + $0x518] sm:$0xff]
        %v1359 = vld [vmem:[#allocation14 + $0x520] sm:$0xff]
        %v1360 = vld [vmem:[#allocation14 + $0x528] sm:$0xff]
        %v1361 = vld [vmem:[#allocation14 + $0x530] sm:$0xff]
        %v1362 = vld [vmem:[#allocation14 + $0x538] sm:$0xff]
        %v1363 = vld [vmem:[#allocation14 + $0x540] sm:$0xff]
        %v1364 = vld [vmem:[#allocation14 + $0x548] sm:$0xff]
        %v1365 = vld [vmem:[#allocation14 + $0x550] sm:$0xff]
        %v1366 = vld [vmem:[#allocation14 + $0x558] sm:$0xff]
        %v1367 = vld [vmem:[#allocation14 + $0x560] sm:$0xff]
        %v1368 = vld [vmem:[#allocation14 + $0x568] sm:$0xff]
        %v1369 = vld [vmem:[#allocation14 + $0x570] sm:$0xff]
        %v1370 = vld [vmem:[#allocation14 + $0x578] sm:$0xff]
        %v1371 = vld [vmem:[#allocation14 + $0x580] sm:$0xff]
        %v1372 = vld [vmem:[#allocation14 + $0x588] sm:$0xff]
        %v1373 = vld [vmem:[#allocation14 + $0x590] sm:$0xff]
        %v1374 = vld [vmem:[#allocation14 + $0x598] sm:$0xff]
        %v1375 = vld [vmem:[#allocation14 + $0x5a0] sm:$0xff]
        %v1376 = vld [vmem:[#allocation14 + $0x5a8] sm:$0xff]
        %v1377 = vld [vmem:[#allocation14 + $0x5b0] sm:$0xff]
        %v1378 = vld [vmem:[#allocation14 + $0x5b8] sm:$0xff]
        %v1379 = vld [vmem:[#allocation14 + $0x5c0] sm:$0xff]
        %v1380 = vld [vmem:[#allocation14 + $0x5c8] sm:$0xff]
        %v1381 = vld [vmem:[#allocation14 + $0x5d0] sm:$0xff]
        %v1382 = vld [vmem:[#allocation14 + $0x5d8] sm:$0xff]
        %v1383 = vld [vmem:[#allocation14 + $0x5e0] sm:$0xff]
        %v1384 = vld [vmem:[#allocation14 + $0x5e8] sm:$0xff]
        %v1385 = vld [vmem:[#allocation14 + $0x5f0] sm:$0xff]
        %v1386 = vld [vmem:[#allocation14 + $0x5f8] sm:$0xff]
        %v1387 = vld [vmem:[%s8] sm:$0x3f]
        %v1388 = vld [vmem:[%s9] sm:$0x3f]
        %v1392 = vunpack.c.l.b16 %v608
        %v1393 = vunpack.c.h.b16 %v608
        %v1394 = vunpack.c.l.b16 %v609
        %v1395 = vunpack.c.h.b16 %v609
        %v1396 = vunpack.c.l.b16 %v610
        %v1397 = vunpack.c.h.b16 %v610
        %v1398 = vpack.c.b16 %v1392, %v1392
        %v1399 = vpack.c.b16 %v1393, %v1393
        %v1400 = vpack.c.b16 %v1394, %v1394
        %v1401 = vpack.c.b16 %v1395, %v1395
        %v1402 = vpack.c.b16 %v1396, %v1396
        %v1403 = vpack.c.b16 %v1397, %v1397
        %v1602 = vunpack.c.l.b16 %v619
        %v1603 = vunpack.c.h.b16 %v619
        %v1604 = vunpack.c.l.b16 %v620
        %v1605 = vunpack.c.h.b16 %v620
        %v1606 = vunpack.c.l.b16 %v621
        %v1607 = vunpack.c.h.b16 %v621
        %v1608 = vunpack.c.l.b16 %v622
        %v1609 = vunpack.c.h.b16 %v622
        %v1610 = vunpack.c.l.b16 %v623
        %v1611 = vunpack.c.h.b16 %v623
        %v1612 = vunpack.c.l.b16 %v624
        %v1613 = vunpack.c.h.b16 %v624
        %v1614 = vunpack.c.l.b16 %v625
        %v1615 = vunpack.c.h.b16 %v625
        %v1616 = vunpack.c.l.b16 %v626
        %v1617 = vunpack.c.h.b16 %v626
        %v1618 = vunpack.c.l.b16 %v627
        %v1619 = vunpack.c.h.b16 %v627
        %v1620 = vunpack.c.l.b16 %v628
        %v1621 = vunpack.c.h.b16 %v628
        %v1622 = vunpack.c.l.b16 %v629
        %v1623 = vunpack.c.h.b16 %v629
        %v1624 = vunpack.c.l.b16 %v630
        %v1625 = vunpack.c.h.b16 %v630
        %v1626 = vunpack.c.l.b16 %v631
        %v1627 = vunpack.c.h.b16 %v631
        %v1628 = vunpack.c.l.b16 %v632
        %v1629 = vunpack.c.h.b16 %v632
        %v1630 = vunpack.c.l.b16 %v633
        %v1631 = vunpack.c.h.b16 %v633
        %v1632 = vunpack.c.l.b16 %v634
        %v1633 = vunpack.c.h.b16 %v634
        %v1634 = vunpack.c.l.b16 %v635
        %v1635 = vunpack.c.h.b16 %v635
        %v1636 = vunpack.c.l.b16 %v636
        %v1637 = vunpack.c.h.b16 %v636
        %v1638 = vunpack.c.l.b16 %v637
        %v1639 = vunpack.c.h.b16 %v637
        %v1640 = vunpack.c.l.b16 %v638
        %v1641 = vunpack.c.h.b16 %v638
        %v1642 = vunpack.c.l.b16 %v639
        %v1643 = vunpack.c.h.b16 %v639
        %v1644 = vunpack.c.l.b16 %v640
        %v1645 = vunpack.c.h.b16 %v640
        %v1646 = vunpack.c.l.b16 %v641
        %v1647 = vunpack.c.h.b16 %v641
        %v1648 = vunpack.c.l.b16 %v642
        %v1649 = vunpack.c.h.b16 %v642
        %v1650 = vunpack.c.l.b16 %v643
        %v1651 = vunpack.c.h.b16 %v643
        %v1652 = vunpack.c.l.b16 %v644
        %v1653 = vunpack.c.h.b16 %v644
        %v1654 = vunpack.c.l.b16 %v645
        %v1655 = vunpack.c.h.b16 %v645
        %v1656 = vunpack.c.l.b16 %v646
        %v1657 = vunpack.c.h.b16 %v646
        %v1658 = vunpack.c.l.b16 %v647
        %v1659 = vunpack.c.h.b16 %v647
        %v1660 = vunpack.c.l.b16 %v648
        %v1661 = vunpack.c.h.b16 %v648
        %v1662 = vunpack.c.l.b16 %v649
        %v1663 = vunpack.c.h.b16 %v649
        %v1664 = vunpack.c.l.b16 %v650
        %v1665 = vunpack.c.h.b16 %v650
        %v1666 = vunpack.c.l.b16 %v651
        %v1667 = vunpack.c.h.b16 %v651
        %v1668 = vunpack.c.l.b16 %v652
        %v1669 = vunpack.c.h.b16 %v652
        %v1670 = vunpack.c.l.b16 %v653
        %v1671 = vunpack.c.h.b16 %v653
        %v1672 = vunpack.c.l.b16 %v654
        %v1673 = vunpack.c.h.b16 %v654
        %v1674 = vunpack.c.l.b16 %v655
        %v1675 = vunpack.c.h.b16 %v655
        %v1676 = vunpack.c.l.b16 %v656
        %v1677 = vunpack.c.h.b16 %v656
        %v1678 = vunpack.c.l.b16 %v657
        %v1679 = vunpack.c.h.b16 %v657
        %v1680 = vunpack.c.l.b16 %v658
        %v1681 = vunpack.c.h.b16 %v658
        %v1682 = vunpack.c.l.b16 %v659
        %v1683 = vunpack.c.h.b16 %v659
        %v1684 = vunpack.c.l.b16 %v660
        %v1685 = vunpack.c.h.b16 %v660
        %v1686 = vunpack.c.l.b16 %v661
        %v1687 = vunpack.c.h.b16 %v661
        %v1688 = vunpack.c.l.b16 %v662
        %v1689 = vunpack.c.h.b16 %v662
        %v1690 = vunpack.c.l.b16 %v663
        %v1691 = vunpack.c.h.b16 %v663
        %v1692 = vunpack.c.l.b16 %v664
        %v1693 = vunpack.c.h.b16 %v664
        %v1694 = vunpack.c.l.b16 %v665
        %v1695 = vunpack.c.h.b16 %v665
        %v1696 = vunpack.c.l.b16 %v666
        %v1697 = vunpack.c.h.b16 %v666
        %v1698 = vunpack.c.l.b16 %v667
        %v1699 = vunpack.c.h.b16 %v667
        %v1700 = vunpack.c.l.b16 %v668
        %v1701 = vunpack.c.h.b16 %v668
        %v1702 = vunpack.c.l.b16 %v669
        %v1703 = vunpack.c.h.b16 %v669
        %v1704 = vunpack.c.l.b16 %v670
        %v1705 = vunpack.c.h.b16 %v670
        %v1706 = vunpack.c.l.b16 %v671
        %v1707 = vunpack.c.h.b16 %v671
        %v1708 = vunpack.c.l.b16 %v672
        %v1709 = vunpack.c.h.b16 %v672
        %v1710 = vunpack.c.l.b16 %v673
        %v1711 = vunpack.c.h.b16 %v673
        %v1712 = vunpack.c.l.b16 %v674
        %v1713 = vunpack.c.h.b16 %v674
        %v1714 = vunpack.c.l.b16 %v675
        %v1715 = vunpack.c.h.b16 %v675
        %v1716 = vunpack.c.l.b16 %v676
        %v1717 = vunpack.c.h.b16 %v676
        %v1718 = vunpack.c.l.b16 %v677
        %v1719 = vunpack.c.h.b16 %v677
        %v1720 = vunpack.c.l.b16 %v678
        %v1721 = vunpack.c.h.b16 %v678
        %v1722 = vunpack.c.l.b16 %v679
        %v1723 = vunpack.c.h.b16 %v679
        %v1724 = vunpack.c.l.b16 %v680
        %v1725 = vunpack.c.h.b16 %v680
        %v1726 = vunpack.c.l.b16 %v681
        %v1727 = vunpack.c.h.b16 %v681
        %v1728 = vunpack.c.l.b16 %v682
        %v1729 = vunpack.c.h.b16 %v682
        %v1730 = vunpack.c.l.b16 %v683
        %v1731 = vunpack.c.h.b16 %v683
        %v1732 = vunpack.c.l.b16 %v684
        %v1733 = vunpack.c.h.b16 %v684
        %v1734 = vunpack.c.l.b16 %v685
        %v1735 = vunpack.c.h.b16 %v685
        %v1736 = vunpack.c.l.b16 %v686
        %v1737 = vunpack.c.h.b16 %v686
        %v1738 = vunpack.c.l.b16 %v687
        %v1739 = vunpack.c.h.b16 %v687
        %v1740 = vunpack.c.l.b16 %v688
        %v1741 = vunpack.c.h.b16 %v688
        %v1742 = vunpack.c.l.b16 %v689
        %v1743 = vunpack.c.h.b16 %v689
        %v1744 = vunpack.c.l.b16 %v690
        %v1745 = vunpack.c.h.b16 %v690
        %v1746 = vunpack.c.l.b16 %v691
        %v1747 = vunpack.c.h.b16 %v691
        %v1748 = vunpack.c.l.b16 %v692
        %v1749 = vunpack.c.h.b16 %v692
        %v1750 = vunpack.c.l.b16 %v693
        %v1751 = vunpack.c.h.b16 %v693
        %v1752 = vunpack.c.l.b16 %v694
        %v1753 = vunpack.c.h.b16 %v694
        %v1754 = vunpack.c.l.b16 %v695
        %v1755 = vunpack.c.h.b16 %v695
        %v1756 = vunpack.c.l.b16 %v696
        %v1757 = vunpack.c.h.b16 %v696
        %v1758 = vunpack.c.l.b16 %v697
        %v1759 = vunpack.c.h.b16 %v697
        %v1760 = vunpack.c.l.b16 %v698
        %v1761 = vunpack.c.h.b16 %v698
        %v1762 = vunpack.c.l.b16 %v699
        %v1763 = vunpack.c.h.b16 %v699
        %v1764 = vunpack.c.l.b16 %v700
        %v1765 = vunpack.c.h.b16 %v700
        %v1766 = vunpack.c.l.b16 %v701
        %v1767 = vunpack.c.h.b16 %v701
        %v1768 = vunpack.c.l.b16 %v702
        %v1769 = vunpack.c.h.b16 %v702
        %v1770 = vunpack.c.l.b16 %v703
        %v1771 = vunpack.c.h.b16 %v703
        %v1772 = vunpack.c.l.b16 %v704
        %v1773 = vunpack.c.h.b16 %v704
        %v1774 = vunpack.c.l.b16 %v705
        %v1775 = vunpack.c.h.b16 %v705
        %v1776 = vunpack.c.l.b16 %v706
        %v1777 = vunpack.c.h.b16 %v706
        %v1778 = vunpack.c.l.b16 %v707
        %v1779 = vunpack.c.h.b16 %v707
        %v1780 = vunpack.c.l.b16 %v708
        %v1781 = vunpack.c.h.b16 %v708
        %v1782 = vunpack.c.l.b16 %v709
        %v1783 = vunpack.c.h.b16 %v709
        %v1784 = vunpack.c.l.b16 %v710
        %v1785 = vunpack.c.h.b16 %v710
        %v1786 = vunpack.c.l.b16 %v711
        %v1787 = vunpack.c.h.b16 %v711
        %v1788 = vunpack.c.l.b16 %v712
        %v1789 = vunpack.c.h.b16 %v712
        %v1790 = vunpack.c.l.b16 %v713
        %v1791 = vunpack.c.h.b16 %v713
        %v1792 = vunpack.c.l.b16 %v714
        %v1793 = vunpack.c.h.b16 %v714
        %v1794 = vunpack.c.l.b16 %v715
        %v1795 = vunpack.c.h.b16 %v715
        %v1796 = vunpack.c.l.b16 %v716
        %v1797 = vunpack.c.h.b16 %v716
        %v1798 = vunpack.c.l.b16 %v717
        %v1799 = vunpack.c.h.b16 %v717
        %v1800 = vunpack.c.l.b16 %v718
        %v1801 = vunpack.c.h.b16 %v718
        %v1802 = vunpack.c.l.b16 %v719
        %v1803 = vunpack.c.h.b16 %v719
        %v1804 = vunpack.c.l.b16 %v720
        %v1805 = vunpack.c.h.b16 %v720
        %v1806 = vunpack.c.l.b16 %v721
        %v1807 = vunpack.c.h.b16 %v721
        %v1808 = vunpack.c.l.b16 %v722
        %v1809 = vunpack.c.h.b16 %v722
        %v1810 = vunpack.c.l.b16 %v723
        %v1811 = vunpack.c.h.b16 %v723
        %v1812 = vunpack.c.l.b16 %v724
        %v1813 = vunpack.c.h.b16 %v724
        %v1814 = vunpack.c.l.b16 %v725
        %v1815 = vunpack.c.h.b16 %v725
        %v1816 = vunpack.c.l.b16 %v726
        %v1817 = vunpack.c.h.b16 %v726
        %v1818 = vunpack.c.l.b16 %v727
        %v1819 = vunpack.c.h.b16 %v727
        %v1820 = vunpack.c.l.b16 %v728
        %v1821 = vunpack.c.h.b16 %v728
        %v1822 = vunpack.c.l.b16 %v729
        %v1823 = vunpack.c.h.b16 %v729
        %v1824 = vunpack.c.l.b16 %v730
        %v1825 = vunpack.c.h.b16 %v730
        %v1826 = vunpack.c.l.b16 %v731
        %v1827 = vunpack.c.h.b16 %v731
        %v1828 = vunpack.c.l.b16 %v732
        %v1829 = vunpack.c.h.b16 %v732
        %v1830 = vunpack.c.l.b16 %v733
        %v1831 = vunpack.c.h.b16 %v733
        %v1832 = vunpack.c.l.b16 %v734
        %v1833 = vunpack.c.h.b16 %v734
        %v1834 = vunpack.c.l.b16 %v735
        %v1835 = vunpack.c.h.b16 %v735
        %v1836 = vunpack.c.l.b16 %v736
        %v1837 = vunpack.c.h.b16 %v736
        %v1838 = vunpack.c.l.b16 %v737
        %v1839 = vunpack.c.h.b16 %v737
        %v1840 = vunpack.c.l.b16 %v738
        %v1841 = vunpack.c.h.b16 %v738
        %v1842 = vunpack.c.l.b16 %v739
        %v1843 = vunpack.c.h.b16 %v739
        %v1844 = vunpack.c.l.b16 %v740
        %v1845 = vunpack.c.h.b16 %v740
        %v1846 = vunpack.c.l.b16 %v741
        %v1847 = vunpack.c.h.b16 %v741
        %v1848 = vunpack.c.l.b16 %v742
        %v1849 = vunpack.c.h.b16 %v742
        %v1850 = vunpack.c.l.b16 %v743
        %v1851 = vunpack.c.h.b16 %v743
        %v1852 = vunpack.c.l.b16 %v744
        %v1853 = vunpack.c.h.b16 %v744
        %v1854 = vunpack.c.l.b16 %v745
        %v1855 = vunpack.c.h.b16 %v745
        %v1856 = vunpack.c.l.b16 %v746
        %v1857 = vunpack.c.h.b16 %v746
        %v1858 = vunpack.c.l.b16 %v747
        %v1859 = vunpack.c.h.b16 %v747
        %v1860 = vunpack.c.l.b16 %v748
        %v1861 = vunpack.c.h.b16 %v748
        %v1862 = vunpack.c.l.b16 %v749
        %v1863 = vunpack.c.h.b16 %v749
        %v1864 = vunpack.c.l.b16 %v750
        %v1865 = vunpack.c.h.b16 %v750
        %v1866 = vunpack.c.l.b16 %v751
        %v1867 = vunpack.c.h.b16 %v751
        %v1868 = vunpack.c.l.b16 %v752
        %v1869 = vunpack.c.h.b16 %v752
        %v1870 = vunpack.c.l.b16 %v753
        %v1871 = vunpack.c.h.b16 %v753
        %v1872 = vunpack.c.l.b16 %v754
        %v1873 = vunpack.c.h.b16 %v754
        %v1874 = vunpack.c.l.b16 %v755
        %v1875 = vunpack.c.h.b16 %v755
        %v1876 = vunpack.c.l.b16 %v756
        %v1877 = vunpack.c.h.b16 %v756
        %v1878 = vunpack.c.l.b16 %v757
        %v1879 = vunpack.c.h.b16 %v757
        %v1880 = vunpack.c.l.b16 %v758
        %v1881 = vunpack.c.h.b16 %v758
        %v1882 = vunpack.c.l.b16 %v759
        %v1883 = vunpack.c.h.b16 %v759
        %v1884 = vunpack.c.l.b16 %v760
        %v1885 = vunpack.c.h.b16 %v760
        %v1886 = vunpack.c.l.b16 %v761
        %v1887 = vunpack.c.h.b16 %v761
        %v1888 = vunpack.c.l.b16 %v762
        %v1889 = vunpack.c.h.b16 %v762
        %v1890 = vunpack.c.l.b16 %v763
        %v1891 = vunpack.c.h.b16 %v763
        %v1892 = vunpack.c.l.b16 %v764
        %v1893 = vunpack.c.h.b16 %v764
        %v1894 = vunpack.c.l.b16 %v765
        %v1895 = vunpack.c.h.b16 %v765
        %v1896 = vunpack.c.l.b16 %v766
        %v1897 = vunpack.c.h.b16 %v766
        %v1898 = vunpack.c.l.b16 %v767
        %v1899 = vunpack.c.h.b16 %v767
        %v1900 = vunpack.c.l.b16 %v768
        %v1901 = vunpack.c.h.b16 %v768
        %v1902 = vunpack.c.l.b16 %v769
        %v1903 = vunpack.c.h.b16 %v769
        %v1904 = vunpack.c.l.b16 %v770
        %v1905 = vunpack.c.h.b16 %v770
        %v1906 = vunpack.c.l.b16 %v771
        %v1907 = vunpack.c.h.b16 %v771
        %v1908 = vunpack.c.l.b16 %v772
        %v1909 = vunpack.c.h.b16 %v772
        %v1910 = vunpack.c.l.b16 %v773
        %v1911 = vunpack.c.h.b16 %v773
        %v1912 = vunpack.c.l.b16 %v774
        %v1913 = vunpack.c.h.b16 %v774
        %v1914 = vunpack.c.l.b16 %v775
        %v1915 = vunpack.c.h.b16 %v775
        %v1916 = vunpack.c.l.b16 %v776
        %v1917 = vunpack.c.h.b16 %v776
        %v1918 = vunpack.c.l.b16 %v777
        %v1919 = vunpack.c.h.b16 %v777
        %v1920 = vunpack.c.l.b16 %v778
        %v1921 = vunpack.c.h.b16 %v778
        %v1922 = vunpack.c.l.b16 %v779
        %v1923 = vunpack.c.h.b16 %v779
        %v1924 = vunpack.c.l.b16 %v780
        %v1925 = vunpack.c.h.b16 %v780
        %v1926 = vunpack.c.l.b16 %v781
        %v1927 = vunpack.c.h.b16 %v781
        %v1928 = vunpack.c.l.b16 %v782
        %v1929 = vunpack.c.h.b16 %v782
        %v1930 = vunpack.c.l.b16 %v783
        %v1931 = vunpack.c.h.b16 %v783
        %v1932 = vunpack.c.l.b16 %v784
        %v1933 = vunpack.c.h.b16 %v784
        %v1934 = vunpack.c.l.b16 %v785
        %v1935 = vunpack.c.h.b16 %v785
        %v1936 = vunpack.c.l.b16 %v786
        %v1937 = vunpack.c.h.b16 %v786
        %v1938 = vunpack.c.l.b16 %v787
        %v1939 = vunpack.c.h.b16 %v787
        %v1940 = vunpack.c.l.b16 %v788
        %v1941 = vunpack.c.h.b16 %v788
        %v1942 = vunpack.c.l.b16 %v789
        %v1943 = vunpack.c.h.b16 %v789
        %v1944 = vunpack.c.l.b16 %v790
        %v1945 = vunpack.c.h.b16 %v790
        %v1946 = vunpack.c.l.b16 %v791
        %v1947 = vunpack.c.h.b16 %v791
        %v1948 = vunpack.c.l.b16 %v792
        %v1949 = vunpack.c.h.b16 %v792
        %v1950 = vunpack.c.l.b16 %v793
        %v1951 = vunpack.c.h.b16 %v793
        %v1952 = vunpack.c.l.b16 %v794
        %v1953 = vunpack.c.h.b16 %v794
        %v1954 = vunpack.c.l.b16 %v795
        %v1955 = vunpack.c.h.b16 %v795
        %v1956 = vunpack.c.l.b16 %v796
        %v1957 = vunpack.c.h.b16 %v796
        %v1958 = vunpack.c.l.b16 %v797
        %v1959 = vunpack.c.h.b16 %v797
        %v1960 = vunpack.c.l.b16 %v798
        %v1961 = vunpack.c.h.b16 %v798
        %v1962 = vunpack.c.l.b16 %v799
        %v1963 = vunpack.c.h.b16 %v799
        %v1964 = vunpack.c.l.b16 %v800
        %v1965 = vunpack.c.h.b16 %v800
        %v1966 = vunpack.c.l.b16 %v801
        %v1967 = vunpack.c.h.b16 %v801
        %v1968 = vunpack.c.l.b16 %v802
        %v1969 = vunpack.c.h.b16 %v802
        %v1970 = vunpack.c.l.b16 %v803
        %v1971 = vunpack.c.h.b16 %v803
        %v1972 = vunpack.c.l.b16 %v804
        %v1973 = vunpack.c.h.b16 %v804
        %v1974 = vunpack.c.l.b16 %v805
        %v1975 = vunpack.c.h.b16 %v805
        %v1976 = vunpack.c.l.b16 %v806
        %v1977 = vunpack.c.h.b16 %v806
        %v1978 = vunpack.c.l.b16 %v807
        %v1979 = vunpack.c.h.b16 %v807
        %v1980 = vunpack.c.l.b16 %v808
        %v1981 = vunpack.c.h.b16 %v808
        %v1982 = vunpack.c.l.b16 %v809
        %v1983 = vunpack.c.h.b16 %v809
        %v1984 = vunpack.c.l.b16 %v810
        %v1985 = vunpack.c.h.b16 %v810
        %v1986 = vpack.c.b16 %v1606, %v1602
        %v1987 = vpack.c.b16 %v1607, %v1603
        %v1988 = vpack.c.b16 %v1608, %v1604
        %v1989 = vpack.c.b16 %v1609, %v1605
        %v1990 = vpack.c.b16 %v1614, %v1610
        %v1991 = vpack.c.b16 %v1615, %v1611
        %v1992 = vpack.c.b16 %v1616, %v1612
        %v1993 = vpack.c.b16 %v1617, %v1613
        %v1994 = vpack.c.b16 %v1622, %v1618
        %v1995 = vpack.c.b16 %v1623, %v1619
        %v1996 = vpack.c.b16 %v1624, %v1620
        %v1997 = vpack.c.b16 %v1625, %v1621
        %v1998 = vpack.c.b16 %v1630, %v1626
        %v1999 = vpack.c.b16 %v1631, %v1627
        %v2000 = vpack.c.b16 %v1632, %v1628
        %v2001 = vpack.c.b16 %v1633, %v1629
        %v2002 = vpack.c.b16 %v1638, %v1634
        %v2003 = vpack.c.b16 %v1639, %v1635
        %v2004 = vpack.c.b16 %v1640, %v1636
        %v2005 = vpack.c.b16 %v1641, %v1637
        %v2006 = vpack.c.b16 %v1646, %v1642
        %v2007 = vpack.c.b16 %v1647, %v1643
        %v2008 = vpack.c.b16 %v1648, %v1644
        %v2009 = vpack.c.b16 %v1649, %v1645
        %v2010 = vpack.c.b16 %v1654, %v1650
        %v2011 = vpack.c.b16 %v1655, %v1651
        %v2012 = vpack.c.b16 %v1656, %v1652
        %v2013 = vpack.c.b16 %v1657, %v1653
        %v2014 = vpack.c.b16 %v1662, %v1658
        %v2015 = vpack.c.b16 %v1663, %v1659
        %v2016 = vpack.c.b16 %v1664, %v1660
        %v2017 = vpack.c.b16 %v1665, %v1661
        %v2018 = vpack.c.b16 %v1670, %v1666
        %v2019 = vpack.c.b16 %v1671, %v1667
        %v2020 = vpack.c.b16 %v1672, %v1668
        %v2021 = vpack.c.b16 %v1673, %v1669
        %v2022 = vpack.c.b16 %v1678, %v1674
        %v2023 = vpack.c.b16 %v1679, %v1675
        %v2024 = vpack.c.b16 %v1680, %v1676
        %v2025 = vpack.c.b16 %v1681, %v1677
        %v2026 = vpack.c.b16 %v1686, %v1682
        %v2027 = vpack.c.b16 %v1687, %v1683
        %v2028 = vpack.c.b16 %v1688, %v1684
        %v2029 = vpack.c.b16 %v1689, %v1685
        %v2030 = vpack.c.b16 %v1694, %v1690
        %v2031 = vpack.c.b16 %v1695, %v1691
        %v2032 = vpack.c.b16 %v1696, %v1692
        %v2033 = vpack.c.b16 %v1697, %v1693
        %v2034 = vpack.c.b16 %v1702, %v1698
        %v2035 = vpack.c.b16 %v1703, %v1699
        %v2036 = vpack.c.b16 %v1704, %v1700
        %v2037 = vpack.c.b16 %v1705, %v1701
        %v2038 = vpack.c.b16 %v1710, %v1706
        %v2039 = vpack.c.b16 %v1711, %v1707
        %v2040 = vpack.c.b16 %v1712, %v1708
        %v2041 = vpack.c.b16 %v1713, %v1709
        %v2042 = vpack.c.b16 %v1718, %v1714
        %v2043 = vpack.c.b16 %v1719, %v1715
        %v2044 = vpack.c.b16 %v1720, %v1716
        %v2045 = vpack.c.b16 %v1721, %v1717
        %v2046 = vpack.c.b16 %v1726, %v1722
        %v2047 = vpack.c.b16 %v1727, %v1723
        %v2048 = vpack.c.b16 %v1728, %v1724
        %v2049 = vpack.c.b16 %v1729, %v1725
        %v2050 = vpack.c.b16 %v1734, %v1730
        %v2051 = vpack.c.b16 %v1735, %v1731
        %v2052 = vpack.c.b16 %v1736, %v1732
        %v2053 = vpack.c.b16 %v1737, %v1733
        %v2054 = vpack.c.b16 %v1742, %v1738
        %v2055 = vpack.c.b16 %v1743, %v1739
        %v2056 = vpack.c.b16 %v1744, %v1740
        %v2057 = vpack.c.b16 %v1745, %v1741
        %v2058 = vpack.c.b16 %v1750, %v1746
        %v2059 = vpack.c.b16 %v1751, %v1747
        %v2060 = vpack.c.b16 %v1752, %v1748
        %v2061 = vpack.c.b16 %v1753, %v1749
        %v2062 = vpack.c.b16 %v1758, %v1754
        %v2063 = vpack.c.b16 %v1759, %v1755
        %v2064 = vpack.c.b16 %v1760, %v1756
        %v2065 = vpack.c.b16 %v1761, %v1757
        %v2066 = vpack.c.b16 %v1766, %v1762
        %v2067 = vpack.c.b16 %v1767, %v1763
        %v2068 = vpack.c.b16 %v1768, %v1764
        %v2069 = vpack.c.b16 %v1769, %v1765
        %v2070 = vpack.c.b16 %v1774, %v1770
        %v2071 = vpack.c.b16 %v1775, %v1771
        %v2072 = vpack.c.b16 %v1776, %v1772
        %v2073 = vpack.c.b16 %v1777, %v1773
        %v2074 = vpack.c.b16 %v1782, %v1778
        %v2075 = vpack.c.b16 %v1783, %v1779
        %v2076 = vpack.c.b16 %v1784, %v1780
        %v2077 = vpack.c.b16 %v1785, %v1781
        %v2078 = vpack.c.b16 %v1790, %v1786
        %v2079 = vpack.c.b16 %v1791, %v1787
        %v2080 = vpack.c.b16 %v1792, %v1788
        %v2081 = vpack.c.b16 %v1793, %v1789
        %v2082 = vpack.c.b16 %v1798, %v1794
        %v2083 = vpack.c.b16 %v1799, %v1795
        %v2084 = vpack.c.b16 %v1800, %v1796
        %v2085 = vpack.c.b16 %v1801, %v1797
        %v2086 = vpack.c.b16 %v1806, %v1802
        %v2087 = vpack.c.b16 %v1807, %v1803
        %v2088 = vpack.c.b16 %v1808, %v1804
        %v2089 = vpack.c.b16 %v1809, %v1805
        %v2090 = vpack.c.b16 %v1814, %v1810
        %v2091 = vpack.c.b16 %v1815, %v1811
        %v2092 = vpack.c.b16 %v1816, %v1812
        %v2093 = vpack.c.b16 %v1817, %v1813
        %v2094 = vpack.c.b16 %v1822, %v1818
        %v2095 = vpack.c.b16 %v1823, %v1819
        %v2096 = vpack.c.b16 %v1824, %v1820
        %v2097 = vpack.c.b16 %v1825, %v1821
        %v2098 = vpack.c.b16 %v1830, %v1826
        %v2099 = vpack.c.b16 %v1831, %v1827
        %v2100 = vpack.c.b16 %v1832, %v1828
        %v2101 = vpack.c.b16 %v1833, %v1829
        %v2102 = vpack.c.b16 %v1838, %v1834
        %v2103 = vpack.c.b16 %v1839, %v1835
        %v2104 = vpack.c.b16 %v1840, %v1836
        %v2105 = vpack.c.b16 %v1841, %v1837
        %v2106 = vpack.c.b16 %v1846, %v1842
        %v2107 = vpack.c.b16 %v1847, %v1843
        %v2108 = vpack.c.b16 %v1848, %v1844
        %v2109 = vpack.c.b16 %v1849, %v1845
        %v2110 = vpack.c.b16 %v1854, %v1850
        %v2111 = vpack.c.b16 %v1855, %v1851
        %v2112 = vpack.c.b16 %v1856, %v1852
        %v2113 = vpack.c.b16 %v1857, %v1853
        %v2114 = vpack.c.b16 %v1862, %v1858
        %v2115 = vpack.c.b16 %v1863, %v1859
        %v2116 = vpack.c.b16 %v1864, %v1860
        %v2117 = vpack.c.b16 %v1865, %v1861
        %v2118 = vpack.c.b16 %v1870, %v1866
        %v2119 = vpack.c.b16 %v1871, %v1867
        %v2120 = vpack.c.b16 %v1872, %v1868
        %v2121 = vpack.c.b16 %v1873, %v1869
        %v2122 = vpack.c.b16 %v1878, %v1874
        %v2123 = vpack.c.b16 %v1879, %v1875
        %v2124 = vpack.c.b16 %v1880, %v1876
        %v2125 = vpack.c.b16 %v1881, %v1877
        %v2126 = vpack.c.b16 %v1886, %v1882
        %v2127 = vpack.c.b16 %v1887, %v1883
        %v2128 = vpack.c.b16 %v1888, %v1884
        %v2129 = vpack.c.b16 %v1889, %v1885
        %v2130 = vpack.c.b16 %v1894, %v1890
        %v2131 = vpack.c.b16 %v1895, %v1891
        %v2132 = vpack.c.b16 %v1896, %v1892
        %v2133 = vpack.c.b16 %v1897, %v1893
        %v2134 = vpack.c.b16 %v1902, %v1898
        %v2135 = vpack.c.b16 %v1903, %v1899
        %v2136 = vpack.c.b16 %v1904, %v1900
        %v2137 = vpack.c.b16 %v1905, %v1901
        %v2138 = vpack.c.b16 %v1910, %v1906
        %v2139 = vpack.c.b16 %v1911, %v1907
        %v2140 = vpack.c.b16 %v1912, %v1908
        %v2141 = vpack.c.b16 %v1913, %v1909
        %v2142 = vpack.c.b16 %v1918, %v1914
        %v2143 = vpack.c.b16 %v1919, %v1915
        %v2144 = vpack.c.b16 %v1920, %v1916
        %v2145 = vpack.c.b16 %v1921, %v1917
        %v2146 = vpack.c.b16 %v1926, %v1922
        %v2147 = vpack.c.b16 %v1927, %v1923
        %v2148 = vpack.c.b16 %v1928, %v1924
        %v2149 = vpack.c.b16 %v1929, %v1925
        %v2150 = vpack.c.b16 %v1934, %v1930
        %v2151 = vpack.c.b16 %v1935, %v1931
        %v2152 = vpack.c.b16 %v1936, %v1932
        %v2153 = vpack.c.b16 %v1937, %v1933
        %v2154 = vpack.c.b16 %v1942, %v1938
        %v2155 = vpack.c.b16 %v1943, %v1939
        %v2156 = vpack.c.b16 %v1944, %v1940
        %v2157 = vpack.c.b16 %v1945, %v1941
        %v2158 = vpack.c.b16 %v1950, %v1946
        %v2159 = vpack.c.b16 %v1951, %v1947
        %v2160 = vpack.c.b16 %v1952, %v1948
        %v2161 = vpack.c.b16 %v1953, %v1949
        %v2162 = vpack.c.b16 %v1958, %v1954
        %v2163 = vpack.c.b16 %v1959, %v1955
        %v2164 = vpack.c.b16 %v1960, %v1956
        %v2165 = vpack.c.b16 %v1961, %v1957
        %v2166 = vpack.c.b16 %v1966, %v1962
        %v2167 = vpack.c.b16 %v1967, %v1963
        %v2168 = vpack.c.b16 %v1968, %v1964
        %v2169 = vpack.c.b16 %v1969, %v1965
        %v2170 = vpack.c.b16 %v1974, %v1970
        %v2171 = vpack.c.b16 %v1975, %v1971
        %v2172 = vpack.c.b16 %v1976, %v1972
        %v2173 = vpack.c.b16 %v1977, %v1973
        %v2174 = vpack.c.b16 %v1982, %v1978
        %v2175 = vpack.c.b16 %v1983, %v1979
        %v2176 = vpack.c.b16 %v1984, %v1980
        %v2177 = vpack.c.b16 %v1985, %v1981
        %2370 = vmatprep.subr.bf16.mxu0 %v1987
        %2371 = vmatpush1.bf16.msra.mxu0 %v1986
        %2372 = vmatprep.subr.bf16.mxu0 %v1991
        %2373 = vmatpush1.bf16.msra.mxu0 %v1990
        %2374 = vmatprep.subr.bf16.mxu0 %v1995
        %2375 = vmatpush1.bf16.msra.mxu0 %v1994
        %2376 = vmatprep.subr.bf16.mxu0 %v1999
        %2377 = vmatpush1.bf16.msra.mxu0 %v1998
        %2378 = vmatprep.subr.bf16.mxu0 %v2003
        %2379 = vmatpush1.bf16.msra.mxu0 %v2002
        %2380 = vmatprep.subr.bf16.mxu0 %v2007
        %2381 = vmatpush1.bf16.msra.mxu0 %v2006
        %2382 = vmatprep.subr.bf16.mxu0 %v2011
        %2383 = vmatpush1.bf16.msra.mxu0 %v2010
        %2384 = vmatprep.subr.bf16.mxu0 %v2015
        %2385 = vmatpush1.bf16.msra.mxu0 %v2014
        %2386 = vmatprep.subr.bf16.mxu0 %v2019
        %2387 = vmatpush1.bf16.msra.mxu0 %v2018
        %2388 = vmatprep.subr.bf16.mxu0 %v2023
        %2389 = vmatpush1.bf16.msra.mxu0 %v2022
        %2390 = vmatprep.subr.bf16.mxu0 %v2027
        %2391 = vmatpush1.bf16.msra.mxu0 %v2026
        %2392 = vmatprep.subr.bf16.mxu0 %v2031
        %2393 = vmatpush1.bf16.msra.mxu0 %v2030
        %2394 = vmatprep.subr.bf16.mxu0 %v2035
        %2395 = vmatpush1.bf16.msra.mxu0 %v2034
        %2396 = vmatprep.subr.bf16.mxu0 %v2039
        %2397 = vmatpush1.bf16.msra.mxu0 %v2038
        %2398 = vmatprep.subr.bf16.mxu0 %v2043
        %2399 = vmatpush1.bf16.msra.mxu0 %v2042
        %2400 = vmatprep.subr.bf16.mxu0 %v2047
        %2401 = vmatpush1.bf16.msra.mxu0 %v2046
        %2402 = vmatprep.mubr.bf16.mxu0 %v1399
        %2403 = vmatmul.mubr.bf16.gmra.mrb[0].mxu0 %v1398
        %v2404 = vpop.f32.mrb[0].mxu0
        %v2405 = vadd.f32 0.0, %v2404
        %v2406 = vpop.f32.mrb[0].mxu0
        %v2407 = vadd.f32 0.0, %v2406
        %v2408 = vpop.f32.mrb[0].mxu0
        %v2409 = vpop.f32.mrb[0].mxu0
        %2410 = vdwg.mxu0
        %2411 = vmatprep.subr.bf16.mxu0 %v2051
        %2412 = vmatpush1.bf16.msra.mxu0 %v2050
        %2413 = vmatprep.subr.bf16.mxu0 %v2055
        %2414 = vmatpush1.bf16.msra.mxu0 %v2054
        %2415 = vmatprep.subr.bf16.mxu0 %v2059
        %2416 = vmatpush1.bf16.msra.mxu0 %v2058
        %2417 = vmatprep.subr.bf16.mxu0 %v2063
        %2418 = vmatpush1.bf16.msra.mxu0 %v2062
        %2419 = vmatprep.subr.bf16.mxu0 %v2067
        %2420 = vmatpush1.bf16.msra.mxu0 %v2066
        %2421 = vmatprep.subr.bf16.mxu0 %v2071
        %2422 = vmatpush1.bf16.msra.mxu0 %v2070
        %2423 = vmatprep.subr.bf16.mxu0 %v2075
        %2424 = vmatpush1.bf16.msra.mxu0 %v2074
        %2425 = vmatprep.subr.bf16.mxu0 %v2079
        %2426 = vmatpush1.bf16.msra.mxu0 %v2078
        %2427 = vmatprep.subr.bf16.mxu0 %v2083
        %2428 = vmatpush1.bf16.msra.mxu0 %v2082
        %2429 = vmatprep.subr.bf16.mxu0 %v2087
        %2430 = vmatpush1.bf16.msra.mxu0 %v2086
        %2431 = vmatprep.subr.bf16.mxu0 %v2091
        %2432 = vmatpush1.bf16.msra.mxu0 %v2090
        %2433 = vmatprep.subr.bf16.mxu0 %v2095
        %2434 = vmatpush1.bf16.msra.mxu0 %v2094
        %2435 = vmatprep.subr.bf16.mxu0 %v2099
        %2436 = vmatpush1.bf16.msra.mxu0 %v2098
        %2437 = vmatprep.subr.bf16.mxu0 %v2103
        %2438 = vmatpush1.bf16.msra.mxu0 %v2102
        %2439 = vmatprep.subr.bf16.mxu0 %v2107
        %2440 = vmatpush1.bf16.msra.mxu0 %v2106
        %2441 = vmatprep.subr.bf16.mxu0 %v2111
        %2442 = vmatpush1.bf16.msra.mxu0 %v2110
        %2443 = vmatprep.mubr.bf16.mxu0 %v1401
        %2444 = vmatmul.mubr.bf16.gmra.mrb[0].mxu0 %v1400
        %v2445 = vpop.f32.mrb[0].mxu0
        %v2446 = vadd.f32 %v2405, %v2445
        %v2447 = vpop.f32.mrb[0].mxu0
        %v2448 = vadd.f32 %v2407, %v2447
        %v2449 = vpop.f32.mrb[0].mxu0
        %v2450 = vpop.f32.mrb[0].mxu0
        %2451 = vdwg.mxu0
        %2452 = vmatprep.subr.bf16.mxu0 %v2115
        %2453 = vmatpush1.bf16.msra.mxu0 %v2114
        %2454 = vmatprep.subr.bf16.mxu0 %v2119
        %2455 = vmatpush1.bf16.msra.mxu0 %v2118
        %2456 = vmatprep.subr.bf16.mxu0 %v2123
        %2457 = vmatpush1.bf16.msra.mxu0 %v2122
        %2458 = vmatprep.subr.bf16.mxu0 %v2127
        %2459 = vmatpush1.bf16.msra.mxu0 %v2126
        %2460 = vmatprep.subr.bf16.mxu0 %v2131
        %2461 = vmatpush1.bf16.msra.mxu0 %v2130
        %2462 = vmatprep.subr.bf16.mxu0 %v2135
        %2463 = vmatpush1.bf16.msra.mxu0 %v2134
        %2464 = vmatprep.subr.bf16.mxu0 %v2139
        %2465 = vmatpush1.bf16.msra.mxu0 %v2138
        %2466 = vmatprep.subr.bf16.mxu0 %v2143
        %2467 = vmatpush1.bf16.msra.mxu0 %v2142
        %2468 = vmatprep.subr.bf16.mxu0 %v2147
        %2469 = vmatpush1.bf16.msra.mxu0 %v2146
        %2470 = vmatprep.subr.bf16.mxu0 %v2151
        %2471 = vmatpush1.bf16.msra.mxu0 %v2150
        %2472 = vmatprep.subr.bf16.mxu0 %v2155
        %2473 = vmatpush1.bf16.msra.mxu0 %v2154
        %2474 = vmatprep.subr.bf16.mxu0 %v2159
        %2475 = vmatpush1.bf16.msra.mxu0 %v2158
        %2476 = vmatprep.subr.bf16.mxu0 %v2163
        %2477 = vmatpush1.bf16.msra.mxu0 %v2162
        %2478 = vmatprep.subr.bf16.mxu0 %v2167
        %2479 = vmatpush1.bf16.msra.mxu0 %v2166
        %2480 = vmatprep.subr.bf16.mxu0 %v2171
        %2481 = vmatpush1.bf16.msra.mxu0 %v2170
        %2482 = vmatprep.subr.bf16.mxu0 %v2175
        %2483 = vmatpush1.bf16.msra.mxu0 %v2174
        %2484 = vmatprep.mubr.bf16.mxu0 %v1403
        %2485 = vmatmul.mubr.bf16.gmra.mrb[0].mxu0 %v1402
        %v2486 = vpop.f32.mrb[0].mxu0
        %v2487 = vadd.f32 %v2446, %v2486
        %v2488 = vpop.f32.mrb[0].mxu0
        %v2489 = vadd.f32 %v2448, %v2488
        %v2490 = vpop.f32.mrb[0].mxu0
        %v2491 = vpop.f32.mrb[0].mxu0
        %2492 = vdwg.mxu0
        %2493 = vmatprep.subr.bf16.mxu0 %v1989
        %2494 = vmatpush1.bf16.msra.mxu0 %v1988
        %2495 = vmatprep.subr.bf16.mxu0 %v1993
        %2496 = vmatpush1.bf16.msra.mxu0 %v1992
        %2497 = vmatprep.subr.bf16.mxu0 %v1997
        %2498 = vmatpush1.bf16.msra.mxu0 %v1996
        %2499 = vmatprep.subr.bf16.mxu0 %v2001
        %2500 = vmatpush1.bf16.msra.mxu0 %v2000
        %2501 = vmatprep.subr.bf16.mxu0 %v2005
        %2502 = vmatpush1.bf16.msra.mxu0 %v2004
        %2503 = vmatprep.subr.bf16.mxu0 %v2009
        %2504 = vmatpush1.bf16.msra.mxu0 %v2008
        %2505 = vmatprep.subr.bf16.mxu0 %v2013
        %2506 = vmatpush1.bf16.msra.mxu0 %v2012
        %2507 = vmatprep.subr.bf16.mxu0 %v2017
        %2508 = vmatpush1.bf16.msra.mxu0 %v2016
        %2509 = vmatprep.subr.bf16.mxu0 %v2021
        %2510 = vmatpush1.bf16.msra.mxu0 %v2020
        %2511 = vmatprep.subr.bf16.mxu0 %v2025
        %2512 = vmatpush1.bf16.msra.mxu0 %v2024
        %2513 = vmatprep.subr.bf16.mxu0 %v2029
        %2514 = vmatpush1.bf16.msra.mxu0 %v2028
        %2515 = vmatprep.subr.bf16.mxu0 %v2033
        %2516 = vmatpush1.bf16.msra.mxu0 %v2032
        %2517 = vmatprep.subr.bf16.mxu0 %v2037
        %2518 = vmatpush1.bf16.msra.mxu0 %v2036
        %2519 = vmatprep.subr.bf16.mxu0 %v2041
        %2520 = vmatpush1.bf16.msra.mxu0 %v2040
        %2521 = vmatprep.subr.bf16.mxu0 %v2045
        %2522 = vmatpush1.bf16.msra.mxu0 %v2044
        %2523 = vmatprep.subr.bf16.mxu0 %v2049
        %2524 = vmatpush1.bf16.msra.mxu0 %v2048
        %2525 = vmatprep.mubr.bf16.mxu0 %v1399
        %2526 = vmatmul.mubr.bf16.gmra.mrb[0].mxu0 %v1398
        %v2527 = vpop.f32.mrb[0].mxu0
        %v2528 = vadd.f32 0.0, %v2527
        %v2529 = vpop.f32.mrb[0].mxu0
        %v2530 = vadd.f32 0.0, %v2529
        %v2531 = vpop.f32.mrb[0].mxu0
        %v2532 = vpop.f32.mrb[0].mxu0
        %2533 = vdwg.mxu0
        %2534 = vmatprep.subr.bf16.mxu0 %v2053
        %2535 = vmatpush1.bf16.msra.mxu0 %v2052
        %2536 = vmatprep.subr.bf16.mxu0 %v2057
        %2537 = vmatpush1.bf16.msra.mxu0 %v2056
        %2538 = vmatprep.subr.bf16.mxu0 %v2061
        %2539 = vmatpush1.bf16.msra.mxu0 %v2060
        %2540 = vmatprep.subr.bf16.mxu0 %v2065
        %2541 = vmatpush1.bf16.msra.mxu0 %v2064
        %2542 = vmatprep.subr.bf16.mxu0 %v2069
        %2543 = vmatpush1.bf16.msra.mxu0 %v2068
        %2544 = vmatprep.subr.bf16.mxu0 %v2073
        %2545 = vmatpush1.bf16.msra.mxu0 %v2072
        %2546 = vmatprep.subr.bf16.mxu0 %v2077
        %2547 = vmatpush1.bf16.msra.mxu0 %v2076
        %2548 = vmatprep.subr.bf16.mxu0 %v2081
        %2549 = vmatpush1.bf16.msra.mxu0 %v2080
        %2550 = vmatprep.subr.bf16.mxu0 %v2085
        %2551 = vmatpush1.bf16.msra.mxu0 %v2084
        %2552 = vmatprep.subr.bf16.mxu0 %v2089
        %2553 = vmatpush1.bf16.msra.mxu0 %v2088
        %2554 = vmatprep.subr.bf16.mxu0 %v2093
        %2555 = vmatpush1.bf16.msra.mxu0 %v2092
        %2556 = vmatprep.subr.bf16.mxu0 %v2097
        %2557 = vmatpush1.bf16.msra.mxu0 %v2096
        %2558 = vmatprep.subr.bf16.mxu0 %v2101
        %2559 = vmatpush1.bf16.msra.mxu0 %v2100
        %2560 = vmatprep.subr.bf16.mxu0 %v2105
        %2561 = vmatpush1.bf16.msra.mxu0 %v2104
        %2562 = vmatprep.subr.bf16.mxu0 %v2109
        %2563 = vmatpush1.bf16.msra.mxu0 %v2108
        %2564 = vmatprep.subr.bf16.mxu0 %v2113
        %2565 = vmatpush1.bf16.msra.mxu0 %v2112
        %2566 = vmatprep.mubr.bf16.mxu0 %v1401
        %2567 = vmatmul.mubr.bf16.gmra.mrb[0].mxu0 %v1400
        %v2568 = vpop.f32.mrb[0].mxu0
        %v2569 = vadd.f32 %v2528, %v2568
        %v2570 = vpop.f32.mrb[0].mxu0
        %v2571 = vadd.f32 %v2530, %v2570
        %v2572 = vpop.f32.mrb[0].mxu0
        %v2573 = vpop.f32.mrb[0].mxu0
        %2574 = vdwg.mxu0
        %2575 = vmatprep.subr.bf16.mxu0 %v2117
        %2576 = vmatpush1.bf16.msra.mxu0 %v2116
        %2577 = vmatprep.subr.bf16.mxu0 %v2121
        %2578 = vmatpush1.bf16.msra.mxu0 %v2120
        %2579 = vmatprep.subr.bf16.mxu0 %v2125
        %2580 = vmatpush1.bf16.msra.mxu0 %v2124
        %2581 = vmatprep.subr.bf16.mxu0 %v2129
        %2582 = vmatpush1.bf16.msra.mxu0 %v2128
        %2583 = vmatprep.subr.bf16.mxu0 %v2133
        %2584 = vmatpush1.bf16.msra.mxu0 %v2132
        %2585 = vmatprep.subr.bf16.mxu0 %v2137
        %2586 = vmatpush1.bf16.msra.mxu0 %v2136
        %2587 = vmatprep.subr.bf16.mxu0 %v2141
        %2588 = vmatpush1.bf16.msra.mxu0 %v2140
        %2589 = vmatprep.subr.bf16.mxu0 %v2145
        %2590 = vmatpush1.bf16.msra.mxu0 %v2144
        %2591 = vmatprep.subr.bf16.mxu0 %v2149
        %2592 = vmatpush1.bf16.msra.mxu0 %v2148
        %2593 = vmatprep.subr.bf16.mxu0 %v2153
        %2594 = vmatpush1.bf16.msra.mxu0 %v2152
        %2595 = vmatprep.subr.bf16.mxu0 %v2157
        %2596 = vmatpush1.bf16.msra.mxu0 %v2156
        %2597 = vmatprep.subr.bf16.mxu0 %v2161
        %2598 = vmatpush1.bf16.msra.mxu0 %v2160
        %2599 = vmatprep.subr.bf16.mxu0 %v2165
        %2600 = vmatpush1.bf16.msra.mxu0 %v2164
        %2601 = vmatprep.subr.bf16.mxu0 %v2169
        %2602 = vmatpush1.bf16.msra.mxu0 %v2168
        %2603 = vmatprep.subr.bf16.mxu0 %v2173
        %2604 = vmatpush1.bf16.msra.mxu0 %v2172
        %2605 = vmatprep.subr.bf16.mxu0 %v2177
        %2606 = vmatpush1.bf16.msra.mxu0 %v2176
        %2607 = vmatprep.mubr.bf16.mxu0 %v1403
        %2608 = vmatmul.mubr.bf16.gmra.mrb[0].mxu0 %v1402
        %v2609 = vpop.f32.mrb[0].mxu0
        %v2610 = vadd.f32 %v2569, %v2609
        %v2611 = vpop.f32.mrb[0].mxu0
        %v2612 = vadd.f32 %v2571, %v2611
        %v2613 = vpop.f32.mrb[0].mxu0
        %v2614 = vpop.f32.mrb[0].mxu0
        %2615 = vdwg.mxu0
        %v2619 = vunpack.c.l.b16 %v611
        %v2620 = vunpack.c.h.b16 %v611
        %v2621 = vunpack.c.l.b16 %v612
        %v2622 = vunpack.c.h.b16 %v612
        %v2623 = vunpack.c.l.b16 %v613
        %v2624 = vunpack.c.h.b16 %v613
        %v2625 = vpack.c.b16 %v2619, %v2619
        %v2626 = vpack.c.b16 %v2620, %v2620
        %v2627 = vpack.c.b16 %v2621, %v2621
        %v2628 = vpack.c.b16 %v2622, %v2622
        %v2629 = vpack.c.b16 %v2623, %v2623
        %v2630 = vpack.c.b16 %v2624, %v2624
        %v2829 = vunpack.c.l.b16 %v811
        %v2830 = vunpack.c.h.b16 %v811
        %v2831 = vunpack.c.l.b16 %v812
        %v2832 = vunpack.c.h.b16 %v812
        %v2833 = vunpack.c.l.b16 %v813
        %v2834 = vunpack.c.h.b16 %v813
        %v2835 = vunpack.c.l.b16 %v814
        %v2836 = vunpack.c.h.b16 %v814
        %v2837 = vunpack.c.l.b16 %v815
        %v2838 = vunpack.c.h.b16 %v815
        %v2839 = vunpack.c.l.b16 %v816
        %v2840 = vunpack.c.h.b16 %v816
        %v2841 = vunpack.c.l.b16 %v817
        %v2842 = vunpack.c.h.b16 %v817
        %v2843 = vunpack.c.l.b16 %v818
        %v2844 = vunpack.c.h.b16 %v818
        %v2845 = vunpack.c.l.b16 %v819
        %v2846 = vunpack.c.h.b16 %v819
        %v2847 = vunpack.c.l.b16 %v820
        %v2848 = vunpack.c.h.b16 %v820
        %v2849 = vunpack.c.l.b16 %v821
        %v2850 = vunpack.c.h.b16 %v821
        %v2851 = vunpack.c.l.b16 %v822
        %v2852 = vunpack.c.h.b16 %v822
        %v2853 = vunpack.c.l.b16 %v823
        %v2854 = vunpack.c.h.b16 %v823
        %v2855 = vunpack.c.l.b16 %v824
        %v2856 = vunpack.c.h.b16 %v824
        %v2857 = vunpack.c.l.b16 %v825
        %v2858 = vunpack.c.h.b16 %v825
        %v2859 = vunpack.c.l.b16 %v826
        %v2860 = vunpack.c.h.b16 %v826
        %v2861 = vunpack.c.l.b16 %v827
        %v2862 = vunpack.c.h.b16 %v827
        %v2863 = vunpack.c.l.b16 %v828
        %v2864 = vunpack.c.h.b16 %v828
        %v2865 = vunpack.c.l.b16 %v829
        %v2866 = vunpack.c.h.b16 %v829
        %v2867 = vunpack.c.l.b16 %v830
        %v2868 = vunpack.c.h.b16 %v830
        %v2869 = vunpack.c.l.b16 %v831
        %v2870 = vunpack.c.h.b16 %v831
        %v2871 = vunpack.c.l.b16 %v832
        %v2872 = vunpack.c.h.b16 %v832
        %v2873 = vunpack.c.l.b16 %v833
        %v2874 = vunpack.c.h.b16 %v833
        %v2875 = vunpack.c.l.b16 %v834
        %v2876 = vunpack.c.h.b16 %v834
        %v2877 = vunpack.c.l.b16 %v835
        %v2878 = vunpack.c.h.b16 %v835
        %v2879 = vunpack.c.l.b16 %v836
        %v2880 = vunpack.c.h.b16 %v836
        %v2881 = vunpack.c.l.b16 %v837
        %v2882 = vunpack.c.h.b16 %v837
        %v2883 = vunpack.c.l.b16 %v838
        %v2884 = vunpack.c.h.b16 %v838
        %v2885 = vunpack.c.l.b16 %v839
        %v2886 = vunpack.c.h.b16 %v839
        %v2887 = vunpack.c.l.b16 %v840
        %v2888 = vunpack.c.h.b16 %v840
        %v2889 = vunpack.c.l.b16 %v841
        %v2890 = vunpack.c.h.b16 %v841
        %v2891 = vunpack.c.l.b16 %v842
        %v2892 = vunpack.c.h.b16 %v842
        %v2893 = vunpack.c.l.b16 %v843
        %v2894 = vunpack.c.h.b16 %v843
        %v2895 = vunpack.c.l.b16 %v844
        %v2896 = vunpack.c.h.b16 %v844
        %v2897 = vunpack.c.l.b16 %v845
        %v2898 = vunpack.c.h.b16 %v845
        %v2899 = vunpack.c.l.b16 %v846
        %v2900 = vunpack.c.h.b16 %v846
        %v2901 = vunpack.c.l.b16 %v847
        %v2902 = vunpack.c.h.b16 %v847
        %v2903 = vunpack.c.l.b16 %v848
        %v2904 = vunpack.c.h.b16 %v848
        %v2905 = vunpack.c.l.b16 %v849
        %v2906 = vunpack.c.h.b16 %v849
        %v2907 = vunpack.c.l.b16 %v850
        %v2908 = vunpack.c.h.b16 %v850
        %v2909 = vunpack.c.l.b16 %v851
        %v2910 = vunpack.c.h.b16 %v851
        %v2911 = vunpack.c.l.b16 %v852
        %v2912 = vunpack.c.h.b16 %v852
        %v2913 = vunpack.c.l.b16 %v853
        %v2914 = vunpack.c.h.b16 %v853
        %v2915 = vunpack.c.l.b16 %v854
        %v2916 = vunpack.c.h.b16 %v854
        %v2917 = vunpack.c.l.b16 %v855
        %v2918 = vunpack.c.h.b16 %v855
        %v2919 = vunpack.c.l.b16 %v856
        %v2920 = vunpack.c.h.b16 %v856
        %v2921 = vunpack.c.l.b16 %v857
        %v2922 = vunpack.c.h.b16 %v857
        %v2923 = vunpack.c.l.b16 %v858
        %v2924 = vunpack.c.h.b16 %v858
        %v2925 = vunpack.c.l.b16 %v859
        %v2926 = vunpack.c.h.b16 %v859
        %v2927 = vunpack.c.l.b16 %v860
        %v2928 = vunpack.c.h.b16 %v860
        %v2929 = vunpack.c.l.b16 %v861
        %v2930 = vunpack.c.h.b16 %v861
        %v2931 = vunpack.c.l.b16 %v862
        %v2932 = vunpack.c.h.b16 %v862
        %v2933 = vunpack.c.l.b16 %v863
        %v2934 = vunpack.c.h.b16 %v863
        %v2935 = vunpack.c.l.b16 %v864
        %v2936 = vunpack.c.h.b16 %v864
        %v2937 = vunpack.c.l.b16 %v865
        %v2938 = vunpack.c.h.b16 %v865
        %v2939 = vunpack.c.l.b16 %v866
        %v2940 = vunpack.c.h.b16 %v866
        %v2941 = vunpack.c.l.b16 %v867
        %v2942 = vunpack.c.h.b16 %v867
        %v2943 = vunpack.c.l.b16 %v868
        %v2944 = vunpack.c.h.b16 %v868
        %v2945 = vunpack.c.l.b16 %v869
        %v2946 = vunpack.c.h.b16 %v869
        %v2947 = vunpack.c.l.b16 %v870
        %v2948 = vunpack.c.h.b16 %v870
        %v2949 = vunpack.c.l.b16 %v871
        %v2950 = vunpack.c.h.b16 %v871
        %v2951 = vunpack.c.l.b16 %v872
        %v2952 = vunpack.c.h.b16 %v872
        %v2953 = vunpack.c.l.b16 %v873
        %v2954 = vunpack.c.h.b16 %v873
        %v2955 = vunpack.c.l.b16 %v874
        %v2956 = vunpack.c.h.b16 %v874
        %v2957 = vunpack.c.l.b16 %v875
        %v2958 = vunpack.c.h.b16 %v875
        %v2959 = vunpack.c.l.b16 %v876
        %v2960 = vunpack.c.h.b16 %v876
        %v2961 = vunpack.c.l.b16 %v877
        %v2962 = vunpack.c.h.b16 %v877
        %v2963 = vunpack.c.l.b16 %v878
        %v2964 = vunpack.c.h.b16 %v878
        %v2965 = vunpack.c.l.b16 %v879
        %v2966 = vunpack.c.h.b16 %v879
        %v2967 = vunpack.c.l.b16 %v880
        %v2968 = vunpack.c.h.b16 %v880
        %v2969 = vunpack.c.l.b16 %v881
        %v2970 = vunpack.c.h.b16 %v881
        %v2971 = vunpack.c.l.b16 %v882
        %v2972 = vunpack.c.h.b16 %v882
        %v2973 = vunpack.c.l.b16 %v883
        %v2974 = vunpack.c.h.b16 %v883
        %v2975 = vunpack.c.l.b16 %v884
        %v2976 = vunpack.c.h.b16 %v884
        %v2977 = vunpack.c.l.b16 %v885
        %v2978 = vunpack.c.h.b16 %v885
        %v2979 = vunpack.c.l.b16 %v886
        %v2980 = vunpack.c.h.b16 %v886
        %v2981 = vunpack.c.l.b16 %v887
        %v2982 = vunpack.c.h.b16 %v887
        %v2983 = vunpack.c.l.b16 %v888
        %v2984 = vunpack.c.h.b16 %v888
        %v2985 = vunpack.c.l.b16 %v889
        %v2986 = vunpack.c.h.b16 %v889
        %v2987 = vunpack.c.l.b16 %v890
        %v2988 = vunpack.c.h.b16 %v890
        %v2989 = vunpack.c.l.b16 %v891
        %v2990 = vunpack.c.h.b16 %v891
        %v2991 = vunpack.c.l.b16 %v892
        %v2992 = vunpack.c.h.b16 %v892
        %v2993 = vunpack.c.l.b16 %v893
        %v2994 = vunpack.c.h.b16 %v893
        %v2995 = vunpack.c.l.b16 %v894
        %v2996 = vunpack.c.h.b16 %v894
        %v2997 = vunpack.c.l.b16 %v895
        %v2998 = vunpack.c.h.b16 %v895
        %v2999 = vunpack.c.l.b16 %v896
        %v3000 = vunpack.c.h.b16 %v896
        %v3001 = vunpack.c.l.b16 %v897
        %v3002 = vunpack.c.h.b16 %v897
        %v3003 = vunpack.c.l.b16 %v898
        %v3004 = vunpack.c.h.b16 %v898
        %v3005 = vunpack.c.l.b16 %v899
        %v3006 = vunpack.c.h.b16 %v899
        %v3007 = vunpack.c.l.b16 %v900
        %v3008 = vunpack.c.h.b16 %v900
        %v3009 = vunpack.c.l.b16 %v901
        %v3010 = vunpack.c.h.b16 %v901
        %v3011 = vunpack.c.l.b16 %v902
        %v3012 = vunpack.c.h.b16 %v902
        %v3013 = vunpack.c.l.b16 %v903
        %v3014 = vunpack.c.h.b16 %v903
        %v3015 = vunpack.c.l.b16 %v904
        %v3016 = vunpack.c.h.b16 %v904
        %v3017 = vunpack.c.l.b16 %v905
        %v3018 = vunpack.c.h.b16 %v905
        %v3019 = vunpack.c.l.b16 %v906
        %v3020 = vunpack.c.h.b16 %v906
        %v3021 = vunpack.c.l.b16 %v907
        %v3022 = vunpack.c.h.b16 %v907
        %v3023 = vunpack.c.l.b16 %v908
        %v3024 = vunpack.c.h.b16 %v908
        %v3025 = vunpack.c.l.b16 %v909
        %v3026 = vunpack.c.h.b16 %v909
        %v3027 = vunpack.c.l.b16 %v910
        %v3028 = vunpack.c.h.b16 %v910
        %v3029 = vunpack.c.l.b16 %v911
        %v3030 = vunpack.c.h.b16 %v911
        %v3031 = vunpack.c.l.b16 %v912
        %v3032 = vunpack.c.h.b16 %v912
        %v3033 = vunpack.c.l.b16 %v913
        %v3034 = vunpack.c.h.b16 %v913
        %v3035 = vunpack.c.l.b16 %v914
        %v3036 = vunpack.c.h.b16 %v914
        %v3037 = vunpack.c.l.b16 %v915
        %v3038 = vunpack.c.h.b16 %v915
        %v3039 = vunpack.c.l.b16 %v916
        %v3040 = vunpack.c.h.b16 %v916
        %v3041 = vunpack.c.l.b16 %v917
        %v3042 = vunpack.c.h.b16 %v917
        %v3043 = vunpack.c.l.b16 %v918
        %v3044 = vunpack.c.h.b16 %v918
        %v3045 = vunpack.c.l.b16 %v919
        %v3046 = vunpack.c.h.b16 %v919
        %v3047 = vunpack.c.l.b16 %v920
        %v3048 = vunpack.c.h.b16 %v920
        %v3049 = vunpack.c.l.b16 %v921
        %v3050 = vunpack.c.h.b16 %v921
        %v3051 = vunpack.c.l.b16 %v922
        %v3052 = vunpack.c.h.b16 %v922
        %v3053 = vunpack.c.l.b16 %v923
        %v3054 = vunpack.c.h.b16 %v923
        %v3055 = vunpack.c.l.b16 %v924
        %v3056 = vunpack.c.h.b16 %v924
        %v3057 = vunpack.c.l.b16 %v925
        %v3058 = vunpack.c.h.b16 %v925
        %v3059 = vunpack.c.l.b16 %v926
        %v3060 = vunpack.c.h.b16 %v926
        %v3061 = vunpack.c.l.b16 %v927
        %v3062 = vunpack.c.h.b16 %v927
        %v3063 = vunpack.c.l.b16 %v928
        %v3064 = vunpack.c.h.b16 %v928
        %v3065 = vunpack.c.l.b16 %v929
        %v3066 = vunpack.c.h.b16 %v929
        %v3067 = vunpack.c.l.b16 %v930
        %v3068 = vunpack.c.h.b16 %v930
        %v3069 = vunpack.c.l.b16 %v931
        %v3070 = vunpack.c.h.b16 %v931
        %v3071 = vunpack.c.l.b16 %v932
        %v3072 = vunpack.c.h.b16 %v932
        %v3073 = vunpack.c.l.b16 %v933
        %v3074 = vunpack.c.h.b16 %v933
        %v3075 = vunpack.c.l.b16 %v934
        %v3076 = vunpack.c.h.b16 %v934
        %v3077 = vunpack.c.l.b16 %v935
        %v3078 = vunpack.c.h.b16 %v935
        %v3079 = vunpack.c.l.b16 %v936
        %v3080 = vunpack.c.h.b16 %v936
        %v3081 = vunpack.c.l.b16 %v937
        %v3082 = vunpack.c.h.b16 %v937
        %v3083 = vunpack.c.l.b16 %v938
        %v3084 = vunpack.c.h.b16 %v938
        %v3085 = vunpack.c.l.b16 %v939
        %v3086 = vunpack.c.h.b16 %v939
        %v3087 = vunpack.c.l.b16 %v940
        %v3088 = vunpack.c.h.b16 %v940
        %v3089 = vunpack.c.l.b16 %v941
        %v3090 = vunpack.c.h.b16 %v941
        %v3091 = vunpack.c.l.b16 %v942
        %v3092 = vunpack.c.h.b16 %v942
        %v3093 = vunpack.c.l.b16 %v943
        %v3094 = vunpack.c.h.b16 %v943
        %v3095 = vunpack.c.l.b16 %v944
        %v3096 = vunpack.c.h.b16 %v944
        %v3097 = vunpack.c.l.b16 %v945
        %v3098 = vunpack.c.h.b16 %v945
        %v3099 = vunpack.c.l.b16 %v946
        %v3100 = vunpack.c.h.b16 %v946
        %v3101 = vunpack.c.l.b16 %v947
        %v3102 = vunpack.c.h.b16 %v947
        %v3103 = vunpack.c.l.b16 %v948
        %v3104 = vunpack.c.h.b16 %v948
        %v3105 = vunpack.c.l.b16 %v949
        %v3106 = vunpack.c.h.b16 %v949
        %v3107 = vunpack.c.l.b16 %v950
        %v3108 = vunpack.c.h.b16 %v950
        %v3109 = vunpack.c.l.b16 %v951
        %v3110 = vunpack.c.h.b16 %v951
        %v3111 = vunpack.c.l.b16 %v952
        %v3112 = vunpack.c.h.b16 %v952
        %v3113 = vunpack.c.l.b16 %v953
        %v3114 = vunpack.c.h.b16 %v953
        %v3115 = vunpack.c.l.b16 %v954
        %v3116 = vunpack.c.h.b16 %v954
        %v3117 = vunpack.c.l.b16 %v955
        %v3118 = vunpack.c.h.b16 %v955
        %v3119 = vunpack.c.l.b16 %v956
        %v3120 = vunpack.c.h.b16 %v956
        %v3121 = vunpack.c.l.b16 %v957
        %v3122 = vunpack.c.h.b16 %v957
        %v3123 = vunpack.c.l.b16 %v958
        %v3124 = vunpack.c.h.b16 %v958
        %v3125 = vunpack.c.l.b16 %v959
        %v3126 = vunpack.c.h.b16 %v959
        %v3127 = vunpack.c.l.b16 %v960
        %v3128 = vunpack.c.h.b16 %v960
        %v3129 = vunpack.c.l.b16 %v961
        %v3130 = vunpack.c.h.b16 %v961
        %v3131 = vunpack.c.l.b16 %v962
        %v3132 = vunpack.c.h.b16 %v962
        %v3133 = vunpack.c.l.b16 %v963
        %v3134 = vunpack.c.h.b16 %v963
        %v3135 = vunpack.c.l.b16 %v964
        %v3136 = vunpack.c.h.b16 %v964
        %v3137 = vunpack.c.l.b16 %v965
        %v3138 = vunpack.c.h.b16 %v965
        %v3139 = vunpack.c.l.b16 %v966
        %v3140 = vunpack.c.h.b16 %v966
        %v3141 = vunpack.c.l.b16 %v967
        %v3142 = vunpack.c.h.b16 %v967
        %v3143 = vunpack.c.l.b16 %v968
        %v3144 = vunpack.c.h.b16 %v968
        %v3145 = vunpack.c.l.b16 %v969
        %v3146 = vunpack.c.h.b16 %v969
        %v3147 = vunpack.c.l.b16 %v970
        %v3148 = vunpack.c.h.b16 %v970
        %v3149 = vunpack.c.l.b16 %v971
        %v3150 = vunpack.c.h.b16 %v971
        %v3151 = vunpack.c.l.b16 %v972
        %v3152 = vunpack.c.h.b16 %v972
        %v3153 = vunpack.c.l.b16 %v973
        %v3154 = vunpack.c.h.b16 %v973
        %v3155 = vunpack.c.l.b16 %v974
        %v3156 = vunpack.c.h.b16 %v974
        %v3157 = vunpack.c.l.b16 %v975
        %v3158 = vunpack.c.h.b16 %v975
        %v3159 = vunpack.c.l.b16 %v976
        %v3160 = vunpack.c.h.b16 %v976
        %v3161 = vunpack.c.l.b16 %v977
        %v3162 = vunpack.c.h.b16 %v977
        %v3163 = vunpack.c.l.b16 %v978
        %v3164 = vunpack.c.h.b16 %v978
        %v3165 = vunpack.c.l.b16 %v979
        %v3166 = vunpack.c.h.b16 %v979
        %v3167 = vunpack.c.l.b16 %v980
        %v3168 = vunpack.c.h.b16 %v980
        %v3169 = vunpack.c.l.b16 %v981
        %v3170 = vunpack.c.h.b16 %v981
        %v3171 = vunpack.c.l.b16 %v982
        %v3172 = vunpack.c.h.b16 %v982
        %v3173 = vunpack.c.l.b16 %v983
        %v3174 = vunpack.c.h.b16 %v983
        %v3175 = vunpack.c.l.b16 %v984
        %v3176 = vunpack.c.h.b16 %v984
        %v3177 = vunpack.c.l.b16 %v985
        %v3178 = vunpack.c.h.b16 %v985
        %v3179 = vunpack.c.l.b16 %v986
        %v3180 = vunpack.c.h.b16 %v986
        %v3181 = vunpack.c.l.b16 %v987
        %v3182 = vunpack.c.h.b16 %v987
        %v3183 = vunpack.c.l.b16 %v988
        %v3184 = vunpack.c.h.b16 %v988
        %v3185 = vunpack.c.l.b16 %v989
        %v3186 = vunpack.c.h.b16 %v989
        %v3187 = vunpack.c.l.b16 %v990
        %v3188 = vunpack.c.h.b16 %v990
        %v3189 = vunpack.c.l.b16 %v991
        %v3190 = vunpack.c.h.b16 %v991
        %v3191 = vunpack.c.l.b16 %v992
        %v3192 = vunpack.c.h.b16 %v992
        %v3193 = vunpack.c.l.b16 %v993
        %v3194 = vunpack.c.h.b16 %v993
        %v3195 = vunpack.c.l.b16 %v994
        %v3196 = vunpack.c.h.b16 %v994
        %v3197 = vunpack.c.l.b16 %v995
        %v3198 = vunpack.c.h.b16 %v995
        %v3199 = vunpack.c.l.b16 %v996
        %v3200 = vunpack.c.h.b16 %v996
        %v3201 = vunpack.c.l.b16 %v997
        %v3202 = vunpack.c.h.b16 %v997
        %v3203 = vunpack.c.l.b16 %v998
        %v3204 = vunpack.c.h.b16 %v998
        %v3205 = vunpack.c.l.b16 %v999
        %v3206 = vunpack.c.h.b16 %v999
        %v3207 = vunpack.c.l.b16 %v1000
        %v3208 = vunpack.c.h.b16 %v1000
        %v3209 = vunpack.c.l.b16 %v1001
        %v3210 = vunpack.c.h.b16 %v1001
        %v3211 = vunpack.c.l.b16 %v1002
        %v3212 = vunpack.c.h.b16 %v1002
        %v3213 = vpack.c.b16 %v2833, %v2829
        %v3214 = vpack.c.b16 %v2834, %v2830
        %v3215 = vpack.c.b16 %v2835, %v2831
        %v3216 = vpack.c.b16 %v2836, %v2832
        %v3217 = vpack.c.b16 %v2841, %v2837
        %v3218 = vpack.c.b16 %v2842, %v2838
        %v3219 = vpack.c.b16 %v2843, %v2839
        %v3220 = vpack.c.b16 %v2844, %v2840
        %v3221 = vpack.c.b16 %v2849, %v2845
        %v3222 = vpack.c.b16 %v2850, %v2846
        %v3223 = vpack.c.b16 %v2851, %v2847
        %v3224 = vpack.c.b16 %v2852, %v2848
        %v3225 = vpack.c.b16 %v2857, %v2853
        %v3226 = vpack.c.b16 %v2858, %v2854
        %v3227 = vpack.c.b16 %v2859, %v2855
        %v3228 = vpack.c.b16 %v2860, %v2856
        %v3229 = vpack.c.b16 %v2865, %v2861
        %v3230 = vpack.c.b16 %v2866, %v2862
        %v3231 = vpack.c.b16 %v2867, %v2863
        %v3232 = vpack.c.b16 %v2868, %v2864
        %v3233 = vpack.c.b16 %v2873, %v2869
        %v3234 = vpack.c.b16 %v2874, %v2870
        %v3235 = vpack.c.b16 %v2875, %v2871
        %v3236 = vpack.c.b16 %v2876, %v2872
        %v3237 = vpack.c.b16 %v2881, %v2877
        %v3238 = vpack.c.b16 %v2882, %v2878
        %v3239 = vpack.c.b16 %v2883, %v2879
        %v3240 = vpack.c.b16 %v2884, %v2880
        %v3241 = vpack.c.b16 %v2889, %v2885
        %v3242 = vpack.c.b16 %v2890, %v2886
        %v3243 = vpack.c.b16 %v2891, %v2887
        %v3244 = vpack.c.b16 %v2892, %v2888
        %v3245 = vpack.c.b16 %v2897, %v2893
        %v3246 = vpack.c.b16 %v2898, %v2894
        %v3247 = vpack.c.b16 %v2899, %v2895
        %v3248 = vpack.c.b16 %v2900, %v2896
        %v3249 = vpack.c.b16 %v2905, %v2901
        %v3250 = vpack.c.b16 %v2906, %v2902
        %v3251 = vpack.c.b16 %v2907, %v2903
        %v3252 = vpack.c.b16 %v2908, %v2904
        %v3253 = vpack.c.b16 %v2913, %v2909
        %v3254 = vpack.c.b16 %v2914, %v2910
        %v3255 = vpack.c.b16 %v2915, %v2911
        %v3256 = vpack.c.b16 %v2916, %v2912
        %v3257 = vpack.c.b16 %v2921, %v2917
        %v3258 = vpack.c.b16 %v2922, %v2918
        %v3259 = vpack.c.b16 %v2923, %v2919
        %v3260 = vpack.c.b16 %v2924, %v2920
        %v3261 = vpack.c.b16 %v2929, %v2925
        %v3262 = vpack.c.b16 %v2930, %v2926
        %v3263 = vpack.c.b16 %v2931, %v2927
        %v3264 = vpack.c.b16 %v2932, %v2928
        %v3265 = vpack.c.b16 %v2937, %v2933
        %v3266 = vpack.c.b16 %v2938, %v2934
        %v3267 = vpack.c.b16 %v2939, %v2935
        %v3268 = vpack.c.b16 %v2940, %v2936
        %v3269 = vpack.c.b16 %v2945, %v2941
        %v3270 = vpack.c.b16 %v2946, %v2942
        %v3271 = vpack.c.b16 %v2947, %v2943
        %v3272 = vpack.c.b16 %v2948, %v2944
        %v3273 = vpack.c.b16 %v2953, %v2949
        %v3274 = vpack.c.b16 %v2954, %v2950
        %v3275 = vpack.c.b16 %v2955, %v2951
        %v3276 = vpack.c.b16 %v2956, %v2952
        %v3277 = vpack.c.b16 %v2961, %v2957
        %v3278 = vpack.c.b16 %v2962, %v2958
        %v3279 = vpack.c.b16 %v2963, %v2959
        %v3280 = vpack.c.b16 %v2964, %v2960
        %v3281 = vpack.c.b16 %v2969, %v2965
        %v3282 = vpack.c.b16 %v2970, %v2966
        %v3283 = vpack.c.b16 %v2971, %v2967
        %v3284 = vpack.c.b16 %v2972, %v2968
        %v3285 = vpack.c.b16 %v2977, %v2973
        %v3286 = vpack.c.b16 %v2978, %v2974
        %v3287 = vpack.c.b16 %v2979, %v2975
        %v3288 = vpack.c.b16 %v2980, %v2976
        %v3289 = vpack.c.b16 %v2985, %v2981
        %v3290 = vpack.c.b16 %v2986, %v2982
        %v3291 = vpack.c.b16 %v2987, %v2983
        %v3292 = vpack.c.b16 %v2988, %v2984
        %v3293 = vpack.c.b16 %v2993, %v2989
        %v3294 = vpack.c.b16 %v2994, %v2990
        %v3295 = vpack.c.b16 %v2995, %v2991
        %v3296 = vpack.c.b16 %v2996, %v2992
        %v3297 = vpack.c.b16 %v3001, %v2997
        %v3298 = vpack.c.b16 %v3002, %v2998
        %v3299 = vpack.c.b16 %v3003, %v2999
        %v3300 = vpack.c.b16 %v3004, %v3000
        %v3301 = vpack.c.b16 %v3009, %v3005
        %v3302 = vpack.c.b16 %v3010, %v3006
        %v3303 = vpack.c.b16 %v3011, %v3007
        %v3304 = vpack.c.b16 %v3012, %v3008
        %v3305 = vpack.c.b16 %v3017, %v3013
        %v3306 = vpack.c.b16 %v3018, %v3014
        %v3307 = vpack.c.b16 %v3019, %v3015
        %v3308 = vpack.c.b16 %v3020, %v3016
        %v3309 = vpack.c.b16 %v3025, %v3021
        %v3310 = vpack.c.b16 %v3026, %v3022
        %v3311 = vpack.c.b16 %v3027, %v3023
        %v3312 = vpack.c.b16 %v3028, %v3024
        %v3313 = vpack.c.b16 %v3033, %v3029
        %v3314 = vpack.c.b16 %v3034, %v3030
        %v3315 = vpack.c.b16 %v3035, %v3031
        %v3316 = vpack.c.b16 %v3036, %v3032
        %v3317 = vpack.c.b16 %v3041, %v3037
        %v3318 = vpack.c.b16 %v3042, %v3038
        %v3319 = vpack.c.b16 %v3043, %v3039
        %v3320 = vpack.c.b16 %v3044, %v3040
        %v3321 = vpack.c.b16 %v3049, %v3045
        %v3322 = vpack.c.b16 %v3050, %v3046
        %v3323 = vpack.c.b16 %v3051, %v3047
        %v3324 = vpack.c.b16 %v3052, %v3048
        %v3325 = vpack.c.b16 %v3057, %v3053
        %v3326 = vpack.c.b16 %v3058, %v3054
        %v3327 = vpack.c.b16 %v3059, %v3055
        %v3328 = vpack.c.b16 %v3060, %v3056
        %v3329 = vpack.c.b16 %v3065, %v3061
        %v3330 = vpack.c.b16 %v3066, %v3062
        %v3331 = vpack.c.b16 %v3067, %v3063
        %v3332 = vpack.c.b16 %v3068, %v3064
        %v3333 = vpack.c.b16 %v3073, %v3069
        %v3334 = vpack.c.b16 %v3074, %v3070
        %v3335 = vpack.c.b16 %v3075, %v3071
        %v3336 = vpack.c.b16 %v3076, %v3072
        %v3337 = vpack.c.b16 %v3081, %v3077
        %v3338 = vpack.c.b16 %v3082, %v3078
        %v3339 = vpack.c.b16 %v3083, %v3079
        %v3340 = vpack.c.b16 %v3084, %v3080
        %v3341 = vpack.c.b16 %v3089, %v3085
        %v3342 = vpack.c.b16 %v3090, %v3086
        %v3343 = vpack.c.b16 %v3091, %v3087
        %v3344 = vpack.c.b16 %v3092, %v3088
        %v3345 = vpack.c.b16 %v3097, %v3093
        %v3346 = vpack.c.b16 %v3098, %v3094
        %v3347 = vpack.c.b16 %v3099, %v3095
        %v3348 = vpack.c.b16 %v3100, %v3096
        %v3349 = vpack.c.b16 %v3105, %v3101
        %v3350 = vpack.c.b16 %v3106, %v3102
        %v3351 = vpack.c.b16 %v3107, %v3103
        %v3352 = vpack.c.b16 %v3108, %v3104
        %v3353 = vpack.c.b16 %v3113, %v3109
        %v3354 = vpack.c.b16 %v3114, %v3110
        %v3355 = vpack.c.b16 %v3115, %v3111
        %v3356 = vpack.c.b16 %v3116, %v3112
        %v3357 = vpack.c.b16 %v3121, %v3117
        %v3358 = vpack.c.b16 %v3122, %v3118
        %v3359 = vpack.c.b16 %v3123, %v3119
        %v3360 = vpack.c.b16 %v3124, %v3120
        %v3361 = vpack.c.b16 %v3129, %v3125
        %v3362 = vpack.c.b16 %v3130, %v3126
        %v3363 = vpack.c.b16 %v3131, %v3127
        %v3364 = vpack.c.b16 %v3132, %v3128
        %v3365 = vpack.c.b16 %v3137, %v3133
        %v3366 = vpack.c.b16 %v3138, %v3134
        %v3367 = vpack.c.b16 %v3139, %v3135
        %v3368 = vpack.c.b16 %v3140, %v3136
        %v3369 = vpack.c.b16 %v3145, %v3141
        %v3370 = vpack.c.b16 %v3146, %v3142
        %v3371 = vpack.c.b16 %v3147, %v3143
        %v3372 = vpack.c.b16 %v3148, %v3144
        %v3373 = vpack.c.b16 %v3153, %v3149
        %v3374 = vpack.c.b16 %v3154, %v3150
        %v3375 = vpack.c.b16 %v3155, %v3151
        %v3376 = vpack.c.b16 %v3156, %v3152
        %v3377 = vpack.c.b16 %v3161, %v3157
        %v3378 = vpack.c.b16 %v3162, %v3158
        %v3379 = vpack.c.b16 %v3163, %v3159
        %v3380 = vpack.c.b16 %v3164, %v3160
        %v3381 = vpack.c.b16 %v3169, %v3165
        %v3382 = vpack.c.b16 %v3170, %v3166
        %v3383 = vpack.c.b16 %v3171, %v3167
        %v3384 = vpack.c.b16 %v3172, %v3168
        %v3385 = vpack.c.b16 %v3177, %v3173
        %v3386 = vpack.c.b16 %v3178, %v3174
        %v3387 = vpack.c.b16 %v3179, %v3175
        %v3388 = vpack.c.b16 %v3180, %v3176
        %v3389 = vpack.c.b16 %v3185, %v3181
        %v3390 = vpack.c.b16 %v3186, %v3182
        %v3391 = vpack.c.b16 %v3187, %v3183
        %v3392 = vpack.c.b16 %v3188, %v3184
        %v3393 = vpack.c.b16 %v3193, %v3189
        %v3394 = vpack.c.b16 %v3194, %v3190
        %v3395 = vpack.c.b16 %v3195, %v3191
        %v3396 = vpack.c.b16 %v3196, %v3192
        %v3397 = vpack.c.b16 %v3201, %v3197
        %v3398 = vpack.c.b16 %v3202, %v3198
        %v3399 = vpack.c.b16 %v3203, %v3199
        %v3400 = vpack.c.b16 %v3204, %v3200
        %v3401 = vpack.c.b16 %v3209, %v3205
        %v3402 = vpack.c.b16 %v3210, %v3206
        %v3403 = vpack.c.b16 %v3211, %v3207
        %v3404 = vpack.c.b16 %v3212, %v3208
        %3597 = vmatprep.subr.bf16.mxu0 %v3214
        %3598 = vmatpush1.bf16.msra.mxu0 %v3213
        %3599 = vmatprep.subr.bf16.mxu0 %v3218
        %3600 = vmatpush1.bf16.msra.mxu0 %v3217
        %3601 = vmatprep.subr.bf16.mxu0 %v3222
        %3602 = vmatpush1.bf16.msra.mxu0 %v3221
        %3603 = vmatprep.subr.bf16.mxu0 %v3226
        %3604 = vmatpush1.bf16.msra.mxu0 %v3225
        %3605 = vmatprep.subr.bf16.mxu0 %v3230
        %3606 = vmatpush1.bf16.msra.mxu0 %v3229
        %3607 = vmatprep.subr.bf16.mxu0 %v3234
        %3608 = vmatpush1.bf16.msra.mxu0 %v3233
        %3609 = vmatprep.subr.bf16.mxu0 %v3238
        %3610 = vmatpush1.bf16.msra.mxu0 %v3237
        %3611 = vmatprep.subr.bf16.mxu0 %v3242
        %3612 = vmatpush1.bf16.msra.mxu0 %v3241
        %3613 = vmatprep.subr.bf16.mxu0 %v3246
        %3614 = vmatpush1.bf16.msra.mxu0 %v3245
        %3615 = vmatprep.subr.bf16.mxu0 %v3250
        %3616 = vmatpush1.bf16.msra.mxu0 %v3249
        %3617 = vmatprep.subr.bf16.mxu0 %v3254
        %3618 = vmatpush1.bf16.msra.mxu0 %v3253
        %3619 = vmatprep.subr.bf16.mxu0 %v3258
        %3620 = vmatpush1.bf16.msra.mxu0 %v3257
        %3621 = vmatprep.subr.bf16.mxu0 %v3262
        %3622 = vmatpush1.bf16.msra.mxu0 %v3261
        %3623 = vmatprep.subr.bf16.mxu0 %v3266
        %3624 = vmatpush1.bf16.msra.mxu0 %v3265
        %3625 = vmatprep.subr.bf16.mxu0 %v3270
        %3626 = vmatpush1.bf16.msra.mxu0 %v3269
        %3627 = vmatprep.subr.bf16.mxu0 %v3274
        %3628 = vmatpush1.bf16.msra.mxu0 %v3273
        %3629 = vmatprep.mubr.bf16.mxu0 %v2626
        %3630 = vmatmul.mubr.bf16.gmra.mrb[0].mxu0 %v2625
        %v3631 = vpop.f32.mrb[0].mxu0
        %v3632 = vadd.f32 0.0, %v3631
        %v3633 = vpop.f32.mrb[0].mxu0
        %v3634 = vadd.f32 0.0, %v3633
        %v3635 = vpop.f32.mrb[0].mxu0
        %v3636 = vpop.f32.mrb[0].mxu0
        %3637 = vdwg.mxu0
        %3638 = vmatprep.subr.bf16.mxu0 %v3278
        %3639 = vmatpush1.bf16.msra.mxu0 %v3277
        %3640 = vmatprep.subr.bf16.mxu0 %v3282
        %3641 = vmatpush1.bf16.msra.mxu0 %v3281
        %3642 = vmatprep.subr.bf16.mxu0 %v3286
        %3643 = vmatpush1.bf16.msra.mxu0 %v3285
        %3644 = vmatprep.subr.bf16.mxu0 %v3290
        %3645 = vmatpush1.bf16.msra.mxu0 %v3289
        %3646 = vmatprep.subr.bf16.mxu0 %v3294
        %3647 = vmatpush1.bf16.msra.mxu0 %v3293
        %3648 = vmatprep.subr.bf16.mxu0 %v3298
        %3649 = vmatpush1.bf16.msra.mxu0 %v3297
        %3650 = vmatprep.subr.bf16.mxu0 %v3302
        %3651 = vmatpush1.bf16.msra.mxu0 %v3301
        %3652 = vmatprep.subr.bf16.mxu0 %v3306
        %3653 = vmatpush1.bf16.msra.mxu0 %v3305
        %3654 = vmatprep.subr.bf16.mxu0 %v3310
        %3655 = vmatpush1.bf16.msra.mxu0 %v3309
        %3656 = vmatprep.subr.bf16.mxu0 %v3314
        %3657 = vmatpush1.bf16.msra.mxu0 %v3313
        %3658 = vmatprep.subr.bf16.mxu0 %v3318
        %3659 = vmatpush1.bf16.msra.mxu0 %v3317
        %3660 = vmatprep.subr.bf16.mxu0 %v3322
        %3661 = vmatpush1.bf16.msra.mxu0 %v3321
        %3662 = vmatprep.subr.bf16.mxu0 %v3326
        %3663 = vmatpush1.bf16.msra.mxu0 %v3325
        %3664 = vmatprep.subr.bf16.mxu0 %v3330
        %3665 = vmatpush1.bf16.msra.mxu0 %v3329
        %3666 = vmatprep.subr.bf16.mxu0 %v3334
        %3667 = vmatpush1.bf16.msra.mxu0 %v3333
        %3668 = vmatprep.subr.bf16.mxu0 %v3338
        %3669 = vmatpush1.bf16.msra.mxu0 %v3337
        %3670 = vmatprep.mubr.bf16.mxu0 %v2628
        %3671 = vmatmul.mubr.bf16.gmra.mrb[0].mxu0 %v2627
        %v3672 = vpop.f32.mrb[0].mxu0
        %v3673 = vadd.f32 %v3632, %v3672
        %v3674 = vpop.f32.mrb[0].mxu0
        %v3675 = vadd.f32 %v3634, %v3674
        %v3676 = vpop.f32.mrb[0].mxu0
        %v3677 = vpop.f32.mrb[0].mxu0
        %3678 = vdwg.mxu0
        %3679 = vmatprep.subr.bf16.mxu0 %v3342
        %3680 = vmatpush1.bf16.msra.mxu0 %v3341
        %3681 = vmatprep.subr.bf16.mxu0 %v3346
        %3682 = vmatpush1.bf16.msra.mxu0 %v3345
        %3683 = vmatprep.subr.bf16.mxu0 %v3350
        %3684 = vmatpush1.bf16.msra.mxu0 %v3349
        %3685 = vmatprep.subr.bf16.mxu0 %v3354
        %3686 = vmatpush1.bf16.msra.mxu0 %v3353
        %3687 = vmatprep.subr.bf16.mxu0 %v3358
        %3688 = vmatpush1.bf16.msra.mxu0 %v3357
        %3689 = vmatprep.subr.bf16.mxu0 %v3362
        %3690 = vmatpush1.bf16.msra.mxu0 %v3361
        %3691 = vmatprep.subr.bf16.mxu0 %v3366
        %3692 = vmatpush1.bf16.msra.mxu0 %v3365
        %3693 = vmatprep.subr.bf16.mxu0 %v3370
        %3694 = vmatpush1.bf16.msra.mxu0 %v3369
        %3695 = vmatprep.subr.bf16.mxu0 %v3374
        %3696 = vmatpush1.bf16.msra.mxu0 %v3373
        %3697 = vmatprep.subr.bf16.mxu0 %v3378
        %3698 = vmatpush1.bf16.msra.mxu0 %v3377
        %3699 = vmatprep.subr.bf16.mxu0 %v3382
        %3700 = vmatpush1.bf16.msra.mxu0 %v3381
        %3701 = vmatprep.subr.bf16.mxu0 %v3386
        %3702 = vmatpush1.bf16.msra.mxu0 %v3385
        %3703 = vmatprep.subr.bf16.mxu0 %v3390
        %3704 = vmatpush1.bf16.msra.mxu0 %v3389
        %3705 = vmatprep.subr.bf16.mxu0 %v3394
        %3706 = vmatpush1.bf16.msra.mxu0 %v3393
        %3707 = vmatprep.subr.bf16.mxu0 %v3398
        %3708 = vmatpush1.bf16.msra.mxu0 %v3397
        %3709 = vmatprep.subr.bf16.mxu0 %v3402
        %3710 = vmatpush1.bf16.msra.mxu0 %v3401
        %3711 = vmatprep.mubr.bf16.mxu0 %v2630
        %3712 = vmatmul.mubr.bf16.gmra.mrb[0].mxu0 %v2629
        %v3713 = vpop.f32.mrb[0].mxu0
        %v3714 = vadd.f32 %v3673, %v3713
        %v3715 = vpop.f32.mrb[0].mxu0
        %v3716 = vadd.f32 %v3675, %v3715
        %v3717 = vpop.f32.mrb[0].mxu0
        %v3718 = vpop.f32.mrb[0].mxu0
        %3719 = vdwg.mxu0
        %3720 = vmatprep.subr.bf16.mxu0 %v3216
        %3721 = vmatpush1.bf16.msra.mxu0 %v3215
        %3722 = vmatprep.subr.bf16.mxu0 %v3220
        %3723 = vmatpush1.bf16.msra.mxu0 %v3219
        %3724 = vmatprep.subr.bf16.mxu0 %v3224
        %3725 = vmatpush1.bf16.msra.mxu0 %v3223
        %3726 = vmatprep.subr.bf16.mxu0 %v3228
        %3727 = vmatpush1.bf16.msra.mxu0 %v3227
        %3728 = vmatprep.subr.bf16.mxu0 %v3232
        %3729 = vmatpush1.bf16.msra.mxu0 %v3231
        %3730 = vmatprep.subr.bf16.mxu0 %v3236
        %3731 = vmatpush1.bf16.msra.mxu0 %v3235
        %3732 = vmatprep.subr.bf16.mxu0 %v3240
        %3733 = vmatpush1.bf16.msra.mxu0 %v3239
        %3734 = vmatprep.subr.bf16.mxu0 %v3244
        %3735 = vmatpush1.bf16.msra.mxu0 %v3243
        %3736 = vmatprep.subr.bf16.mxu0 %v3248
        %3737 = vmatpush1.bf16.msra.mxu0 %v3247
        %3738 = vmatprep.subr.bf16.mxu0 %v3252
        %3739 = vmatpush1.bf16.msra.mxu0 %v3251
        %3740 = vmatprep.subr.bf16.mxu0 %v3256
        %3741 = vmatpush1.bf16.msra.mxu0 %v3255
        %3742 = vmatprep.subr.bf16.mxu0 %v3260
        %3743 = vmatpush1.bf16.msra.mxu0 %v3259
        %3744 = vmatprep.subr.bf16.mxu0 %v3264
        %3745 = vmatpush1.bf16.msra.mxu0 %v3263
        %3746 = vmatprep.subr.bf16.mxu0 %v3268
        %3747 = vmatpush1.bf16.msra.mxu0 %v3267
        %3748 = vmatprep.subr.bf16.mxu0 %v3272
        %3749 = vmatpush1.bf16.msra.mxu0 %v3271
        %3750 = vmatprep.subr.bf16.mxu0 %v3276
        %3751 = vmatpush1.bf16.msra.mxu0 %v3275
        %3752 = vmatprep.mubr.bf16.mxu0 %v2626
        %3753 = vmatmul.mubr.bf16.gmra.mrb[0].mxu0 %v2625
        %v3754 = vpop.f32.mrb[0].mxu0
        %v3755 = vadd.f32 0.0, %v3754
        %v3756 = vpop.f32.mrb[0].mxu0
        %v3757 = vadd.f32 0.0, %v3756
        %v3758 = vpop.f32.mrb[0].mxu0
        %v3759 = vpop.f32.mrb[0].mxu0
        %3760 = vdwg.mxu0
        %3761 = vmatprep.subr.bf16.mxu0 %v3280
        %3762 = vmatpush1.bf16.msra.mxu0 %v3279
        %3763 = vmatprep.subr.bf16.mxu0 %v3284
        %3764 = vmatpush1.bf16.msra.mxu0 %v3283
        %3765 = vmatprep.subr.bf16.mxu0 %v3288
        %3766 = vmatpush1.bf16.msra.mxu0 %v3287
        %3767 = vmatprep.subr.bf16.mxu0 %v3292
        %3768 = vmatpush1.bf16.msra.mxu0 %v3291
        %3769 = vmatprep.subr.bf16.mxu0 %v3296
        %3770 = vmatpush1.bf16.msra.mxu0 %v3295
        %3771 = vmatprep.subr.bf16.mxu0 %v3300
        %3772 = vmatpush1.bf16.msra.mxu0 %v3299
        %3773 = vmatprep.subr.bf16.mxu0 %v3304
        %3774 = vmatpush1.bf16.msra.mxu0 %v3303
        %3775 = vmatprep.subr.bf16.mxu0 %v3308
        %3776 = vmatpush1.bf16.msra.mxu0 %v3307
        %3777 = vmatprep.subr.bf16.mxu0 %v3312
        %3778 = vmatpush1.bf16.msra.mxu0 %v3311
        %3779 = vmatprep.subr.bf16.mxu0 %v3316
        %3780 = vmatpush1.bf16.msra.mxu0 %v3315
        %3781 = vmatprep.subr.bf16.mxu0 %v3320
        %3782 = vmatpush1.bf16.msra.mxu0 %v3319
        %3783 = vmatprep.subr.bf16.mxu0 %v3324
        %3784 = vmatpush1.bf16.msra.mxu0 %v3323
        %3785 = vmatprep.subr.bf16.mxu0 %v3328
        %3786 = vmatpush1.bf16.msra.mxu0 %v3327
        %3787 = vmatprep.subr.bf16.mxu0 %v3332
        %3788 = vmatpush1.bf16.msra.mxu0 %v3331
        %3789 = vmatprep.subr.bf16.mxu0 %v3336
        %3790 = vmatpush1.bf16.msra.mxu0 %v3335
        %3791 = vmatprep.subr.bf16.mxu0 %v3340
        %3792 = vmatpush1.bf16.msra.mxu0 %v3339
        %3793 = vmatprep.mubr.bf16.mxu0 %v2628
        %3794 = vmatmul.mubr.bf16.gmra.mrb[0].mxu0 %v2627
        %v3795 = vpop.f32.mrb[0].mxu0
        %v3796 = vadd.f32 %v3755, %v3795
        %v3797 = vpop.f32.mrb[0].mxu0
        %v3798 = vadd.f32 %v3757, %v3797
        %v3799 = vpop.f32.mrb[0].mxu0
        %v3800 = vpop.f32.mrb[0].mxu0
        %3801 = vdwg.mxu0
        %3802 = vmatprep.subr.bf16.mxu0 %v3344
        %3803 = vmatpush1.bf16.msra.mxu0 %v3343
        %3804 = vmatprep.subr.bf16.mxu0 %v3348
        %3805 = vmatpush1.bf16.msra.mxu0 %v3347
        %3806 = vmatprep.subr.bf16.mxu0 %v3352
        %3807 = vmatpush1.bf16.msra.mxu0 %v3351
        %3808 = vmatprep.subr.bf16.mxu0 %v3356
        %3809 = vmatpush1.bf16.msra.mxu0 %v3355
        %3810 = vmatprep.subr.bf16.mxu0 %v3360
        %3811 = vmatpush1.bf16.msra.mxu0 %v3359
        %3812 = vmatprep.subr.bf16.mxu0 %v3364
        %3813 = vmatpush1.bf16.msra.mxu0 %v3363
        %3814 = vmatprep.subr.bf16.mxu0 %v3368
        %3815 = vmatpush1.bf16.msra.mxu0 %v3367
        %3816 = vmatprep.subr.bf16.mxu0 %v3372
        %3817 = vmatpush1.bf16.msra.mxu0 %v3371
        %3818 = vmatprep.subr.bf16.mxu0 %v3376
        %3819 = vmatpush1.bf16.msra.mxu0 %v3375
        %3820 = vmatprep.subr.bf16.mxu0 %v3380
        %3821 = vmatpush1.bf16.msra.mxu0 %v3379
        %3822 = vmatprep.subr.bf16.mxu0 %v3384
        %3823 = vmatpush1.bf16.msra.mxu0 %v3383
        %3824 = vmatprep.subr.bf16.mxu0 %v3388
        %3825 = vmatpush1.bf16.msra.mxu0 %v3387
        %3826 = vmatprep.subr.bf16.mxu0 %v3392
        %3827 = vmatpush1.bf16.msra.mxu0 %v3391
        %3828 = vmatprep.subr.bf16.mxu0 %v3396
        %3829 = vmatpush1.bf16.msra.mxu0 %v3395
        %3830 = vmatprep.subr.bf16.mxu0 %v3400
        %3831 = vmatpush1.bf16.msra.mxu0 %v3399
        %3832 = vmatprep.subr.bf16.mxu0 %v3404
        %3833 = vmatpush1.bf16.msra.mxu0 %v3403
        %3834 = vmatprep.mubr.bf16.mxu0 %v2630
        %3835 = vmatmul.mubr.bf16.gmra.mrb[0].mxu0 %v2629
        %v3836 = vpop.f32.mrb[0].mxu0
        %v3837 = vadd.f32 %v3796, %v3836
        %v3838 = vpop.f32.mrb[0].mxu0
        %v3839 = vadd.f32 %v3798, %v3838
        %v3840 = vpop.f32.mrb[0].mxu0
        %v3841 = vpop.f32.mrb[0].mxu0
        %3842 = vdwg.mxu0
        %v3846 = vunpack.c.l.b16 %v614
        %v3847 = vunpack.c.h.b16 %v614
        %v3848 = vunpack.c.l.b16 %v615
        %v3849 = vunpack.c.h.b16 %v615
        %v3850 = vunpack.c.l.b16 %v616
        %v3851 = vunpack.c.h.b16 %v616
        %v3852 = vpack.c.b16 %v3846, %v3846
        %v3853 = vpack.c.b16 %v3847, %v3847
        %v3854 = vpack.c.b16 %v3848, %v3848
        %v3855 = vpack.c.b16 %v3849, %v3849
        %v3856 = vpack.c.b16 %v3850, %v3850
        %v3857 = vpack.c.b16 %v3851, %v3851
        %v4056 = vunpack.c.l.b16 %v1003
        %v4057 = vunpack.c.h.b16 %v1003
        %v4058 = vunpack.c.l.b16 %v1004
        %v4059 = vunpack.c.h.b16 %v1004
        %v4060 = vunpack.c.l.b16 %v1005
        %v4061 = vunpack.c.h.b16 %v1005
        %v4062 = vunpack.c.l.b16 %v1006
        %v4063 = vunpack.c.h.b16 %v1006
        %v4064 = vunpack.c.l.b16 %v1007
        %v4065 = vunpack.c.h.b16 %v1007
        %v4066 = vunpack.c.l.b16 %v1008
        %v4067 = vunpack.c.h.b16 %v1008
        %v4068 = vunpack.c.l.b16 %v1009
        %v4069 = vunpack.c.h.b16 %v1009
        %v4070 = vunpack.c.l.b16 %v1010
        %v4071 = vunpack.c.h.b16 %v1010
        %v4072 = vunpack.c.l.b16 %v1011
        %v4073 = vunpack.c.h.b16 %v1011
        %v4074 = vunpack.c.l.b16 %v1012
        %v4075 = vunpack.c.h.b16 %v1012
        %v4076 = vunpack.c.l.b16 %v1013
        %v4077 = vunpack.c.h.b16 %v1013
        %v4078 = vunpack.c.l.b16 %v1014
        %v4079 = vunpack.c.h.b16 %v1014
        %v4080 = vunpack.c.l.b16 %v1015
        %v4081 = vunpack.c.h.b16 %v1015
        %v4082 = vunpack.c.l.b16 %v1016
        %v4083 = vunpack.c.h.b16 %v1016
        %v4084 = vunpack.c.l.b16 %v1017
        %v4085 = vunpack.c.h.b16 %v1017
        %v4086 = vunpack.c.l.b16 %v1018
        %v4087 = vunpack.c.h.b16 %v1018
        %v4088 = vunpack.c.l.b16 %v1019
        %v4089 = vunpack.c.h.b16 %v1019
        %v4090 = vunpack.c.l.b16 %v1020
        %v4091 = vunpack.c.h.b16 %v1020
        %v4092 = vunpack.c.l.b16 %v1021
        %v4093 = vunpack.c.h.b16 %v1021
        %v4094 = vunpack.c.l.b16 %v1022
        %v4095 = vunpack.c.h.b16 %v1022
        %v4096 = vunpack.c.l.b16 %v1023
        %v4097 = vunpack.c.h.b16 %v1023
        %v4098 = vunpack.c.l.b16 %v1024
        %v4099 = vunpack.c.h.b16 %v1024
        %v4100 = vunpack.c.l.b16 %v1025
        %v4101 = vunpack.c.h.b16 %v1025
        %v4102 = vunpack.c.l.b16 %v1026
        %v4103 = vunpack.c.h.b16 %v1026
        %v4104 = vunpack.c.l.b16 %v1027
        %v4105 = vunpack.c.h.b16 %v1027
        %v4106 = vunpack.c.l.b16 %v1028
        %v4107 = vunpack.c.h.b16 %v1028
        %v4108 = vunpack.c.l.b16 %v1029
        %v4109 = vunpack.c.h.b16 %v1029
        %v4110 = vunpack.c.l.b16 %v1030
        %v4111 = vunpack.c.h.b16 %v1030
        %v4112 = vunpack.c.l.b16 %v1031
        %v4113 = vunpack.c.h.b16 %v1031
        %v4114 = vunpack.c.l.b16 %v1032
        %v4115 = vunpack.c.h.b16 %v1032
        %v4116 = vunpack.c.l.b16 %v1033
        %v4117 = vunpack.c.h.b16 %v1033
        %v4118 = vunpack.c.l.b16 %v1034
        %v4119 = vunpack.c.h.b16 %v1034
        %v4120 = vunpack.c.l.b16 %v1035
        %v4121 = vunpack.c.h.b16 %v1035
        %v4122 = vunpack.c.l.b16 %v1036
        %v4123 = vunpack.c.h.b16 %v1036
        %v4124 = vunpack.c.l.b16 %v1037
        %v4125 = vunpack.c.h.b16 %v1037
        %v4126 = vunpack.c.l.b16 %v1038
        %v4127 = vunpack.c.h.b16 %v1038
        %v4128 = vunpack.c.l.b16 %v1039
        %v4129 = vunpack.c.h.b16 %v1039
        %v4130 = vunpack.c.l.b16 %v1040
        %v4131 = vunpack.c.h.b16 %v1040
        %v4132 = vunpack.c.l.b16 %v1041
        %v4133 = vunpack.c.h.b16 %v1041
        %v4134 = vunpack.c.l.b16 %v1042
        %v4135 = vunpack.c.h.b16 %v1042
        %v4136 = vunpack.c.l.b16 %v1043
        %v4137 = vunpack.c.h.b16 %v1043
        %v4138 = vunpack.c.l.b16 %v1044
        %v4139 = vunpack.c.h.b16 %v1044
        %v4140 = vunpack.c.l.b16 %v1045
        %v4141 = vunpack.c.h.b16 %v1045
        %v4142 = vunpack.c.l.b16 %v1046
        %v4143 = vunpack.c.h.b16 %v1046
        %v4144 = vunpack.c.l.b16 %v1047
        %v4145 = vunpack.c.h.b16 %v1047
        %v4146 = vunpack.c.l.b16 %v1048
        %v4147 = vunpack.c.h.b16 %v1048
        %v4148 = vunpack.c.l.b16 %v1049
        %v4149 = vunpack.c.h.b16 %v1049
        %v4150 = vunpack.c.l.b16 %v1050
        %v4151 = vunpack.c.h.b16 %v1050
        %v4152 = vunpack.c.l.b16 %v1051
        %v4153 = vunpack.c.h.b16 %v1051
        %v4154 = vunpack.c.l.b16 %v1052
        %v4155 = vunpack.c.h.b16 %v1052
        %v4156 = vunpack.c.l.b16 %v1053
        %v4157 = vunpack.c.h.b16 %v1053
        %v4158 = vunpack.c.l.b16 %v1054
        %v4159 = vunpack.c.h.b16 %v1054
        %v4160 = vunpack.c.l.b16 %v1055
        %v4161 = vunpack.c.h.b16 %v1055
        %v4162 = vunpack.c.l.b16 %v1056
        %v4163 = vunpack.c.h.b16 %v1056
        %v4164 = vunpack.c.l.b16 %v1057
        %v4165 = vunpack.c.h.b16 %v1057
        %v4166 = vunpack.c.l.b16 %v1058
        %v4167 = vunpack.c.h.b16 %v1058
        %v4168 = vunpack.c.l.b16 %v1059
        %v4169 = vunpack.c.h.b16 %v1059
        %v4170 = vunpack.c.l.b16 %v1060
        %v4171 = vunpack.c.h.b16 %v1060
        %v4172 = vunpack.c.l.b16 %v1061
        %v4173 = vunpack.c.h.b16 %v1061
        %v4174 = vunpack.c.l.b16 %v1062
        %v4175 = vunpack.c.h.b16 %v1062
        %v4176 = vunpack.c.l.b16 %v1063
        %v4177 = vunpack.c.h.b16 %v1063
        %v4178 = vunpack.c.l.b16 %v1064
        %v4179 = vunpack.c.h.b16 %v1064
        %v4180 = vunpack.c.l.b16 %v1065
        %v4181 = vunpack.c.h.b16 %v1065
        %v4182 = vunpack.c.l.b16 %v1066
        %v4183 = vunpack.c.h.b16 %v1066
        %v4184 = vunpack.c.l.b16 %v1067
        %v4185 = vunpack.c.h.b16 %v1067
        %v4186 = vunpack.c.l.b16 %v1068
        %v4187 = vunpack.c.h.b16 %v1068
        %v4188 = vunpack.c.l.b16 %v1069
        %v4189 = vunpack.c.h.b16 %v1069
        %v4190 = vunpack.c.l.b16 %v1070
        %v4191 = vunpack.c.h.b16 %v1070
        %v4192 = vunpack.c.l.b16 %v1071
        %v4193 = vunpack.c.h.b16 %v1071
        %v4194 = vunpack.c.l.b16 %v1072
        %v4195 = vunpack.c.h.b16 %v1072
        %v4196 = vunpack.c.l.b16 %v1073
        %v4197 = vunpack.c.h.b16 %v1073
        %v4198 = vunpack.c.l.b16 %v1074
        %v4199 = vunpack.c.h.b16 %v1074
        %v4200 = vunpack.c.l.b16 %v1075
        %v4201 = vunpack.c.h.b16 %v1075
        %v4202 = vunpack.c.l.b16 %v1076
        %v4203 = vunpack.c.h.b16 %v1076
        %v4204 = vunpack.c.l.b16 %v1077
        %v4205 = vunpack.c.h.b16 %v1077
        %v4206 = vunpack.c.l.b16 %v1078
        %v4207 = vunpack.c.h.b16 %v1078
        %v4208 = vunpack.c.l.b16 %v1079
        %v4209 = vunpack.c.h.b16 %v1079
        %v4210 = vunpack.c.l.b16 %v1080
        %v4211 = vunpack.c.h.b16 %v1080
        %v4212 = vunpack.c.l.b16 %v1081
        %v4213 = vunpack.c.h.b16 %v1081
        %v4214 = vunpack.c.l.b16 %v1082
        %v4215 = vunpack.c.h.b16 %v1082
        %v4216 = vunpack.c.l.b16 %v1083
        %v4217 = vunpack.c.h.b16 %v1083
        %v4218 = vunpack.c.l.b16 %v1084
        %v4219 = vunpack.c.h.b16 %v1084
        %v4220 = vunpack.c.l.b16 %v1085
        %v4221 = vunpack.c.h.b16 %v1085
        %v4222 = vunpack.c.l.b16 %v1086
        %v4223 = vunpack.c.h.b16 %v1086
        %v4224 = vunpack.c.l.b16 %v1087
        %v4225 = vunpack.c.h.b16 %v1087
        %v4226 = vunpack.c.l.b16 %v1088
        %v4227 = vunpack.c.h.b16 %v1088
        %v4228 = vunpack.c.l.b16 %v1089
        %v4229 = vunpack.c.h.b16 %v1089
        %v4230 = vunpack.c.l.b16 %v1090
        %v4231 = vunpack.c.h.b16 %v1090
        %v4232 = vunpack.c.l.b16 %v1091
        %v4233 = vunpack.c.h.b16 %v1091
        %v4234 = vunpack.c.l.b16 %v1092
        %v4235 = vunpack.c.h.b16 %v1092
        %v4236 = vunpack.c.l.b16 %v1093
        %v4237 = vunpack.c.h.b16 %v1093
        %v4238 = vunpack.c.l.b16 %v1094
        %v4239 = vunpack.c.h.b16 %v1094
        %v4240 = vunpack.c.l.b16 %v1095
        %v4241 = vunpack.c.h.b16 %v1095
        %v4242 = vunpack.c.l.b16 %v1096
        %v4243 = vunpack.c.h.b16 %v1096
        %v4244 = vunpack.c.l.b16 %v1097
        %v4245 = vunpack.c.h.b16 %v1097
        %v4246 = vunpack.c.l.b16 %v1098
        %v4247 = vunpack.c.h.b16 %v1098
        %v4248 = vunpack.c.l.b16 %v1099
        %v4249 = vunpack.c.h.b16 %v1099
        %v4250 = vunpack.c.l.b16 %v1100
        %v4251 = vunpack.c.h.b16 %v1100
        %v4252 = vunpack.c.l.b16 %v1101
        %v4253 = vunpack.c.h.b16 %v1101
        %v4254 = vunpack.c.l.b16 %v1102
        %v4255 = vunpack.c.h.b16 %v1102
        %v4256 = vunpack.c.l.b16 %v1103
        %v4257 = vunpack.c.h.b16 %v1103
        %v4258 = vunpack.c.l.b16 %v1104
        %v4259 = vunpack.c.h.b16 %v1104
        %v4260 = vunpack.c.l.b16 %v1105
        %v4261 = vunpack.c.h.b16 %v1105
        %v4262 = vunpack.c.l.b16 %v1106
        %v4263 = vunpack.c.h.b16 %v1106
        %v4264 = vunpack.c.l.b16 %v1107
        %v4265 = vunpack.c.h.b16 %v1107
        %v4266 = vunpack.c.l.b16 %v1108
        %v4267 = vunpack.c.h.b16 %v1108
        %v4268 = vunpack.c.l.b16 %v1109
        %v4269 = vunpack.c.h.b16 %v1109
        %v4270 = vunpack.c.l.b16 %v1110
        %v4271 = vunpack.c.h.b16 %v1110
        %v4272 = vunpack.c.l.b16 %v1111
        %v4273 = vunpack.c.h.b16 %v1111
        %v4274 = vunpack.c.l.b16 %v1112
        %v4275 = vunpack.c.h.b16 %v1112
        %v4276 = vunpack.c.l.b16 %v1113
        %v4277 = vunpack.c.h.b16 %v1113
        %v4278 = vunpack.c.l.b16 %v1114
        %v4279 = vunpack.c.h.b16 %v1114
        %v4280 = vunpack.c.l.b16 %v1115
        %v4281 = vunpack.c.h.b16 %v1115
        %v4282 = vunpack.c.l.b16 %v1116
        %v4283 = vunpack.c.h.b16 %v1116
        %v4284 = vunpack.c.l.b16 %v1117
        %v4285 = vunpack.c.h.b16 %v1117
        %v4286 = vunpack.c.l.b16 %v1118
        %v4287 = vunpack.c.h.b16 %v1118
        %v4288 = vunpack.c.l.b16 %v1119
        %v4289 = vunpack.c.h.b16 %v1119
        %v4290 = vunpack.c.l.b16 %v1120
        %v4291 = vunpack.c.h.b16 %v1120
        %v4292 = vunpack.c.l.b16 %v1121
        %v4293 = vunpack.c.h.b16 %v1121
        %v4294 = vunpack.c.l.b16 %v1122
        %v4295 = vunpack.c.h.b16 %v1122
        %v4296 = vunpack.c.l.b16 %v1123
        %v4297 = vunpack.c.h.b16 %v1123
        %v4298 = vunpack.c.l.b16 %v1124
        %v4299 = vunpack.c.h.b16 %v1124
        %v4300 = vunpack.c.l.b16 %v1125
        %v4301 = vunpack.c.h.b16 %v1125
        %v4302 = vunpack.c.l.b16 %v1126
        %v4303 = vunpack.c.h.b16 %v1126
        %v4304 = vunpack.c.l.b16 %v1127
        %v4305 = vunpack.c.h.b16 %v1127
        %v4306 = vunpack.c.l.b16 %v1128
        %v4307 = vunpack.c.h.b16 %v1128
        %v4308 = vunpack.c.l.b16 %v1129
        %v4309 = vunpack.c.h.b16 %v1129
        %v4310 = vunpack.c.l.b16 %v1130
        %v4311 = vunpack.c.h.b16 %v1130
        %v4312 = vunpack.c.l.b16 %v1131
        %v4313 = vunpack.c.h.b16 %v1131
        %v4314 = vunpack.c.l.b16 %v1132
        %v4315 = vunpack.c.h.b16 %v1132
        %v4316 = vunpack.c.l.b16 %v1133
        %v4317 = vunpack.c.h.b16 %v1133
        %v4318 = vunpack.c.l.b16 %v1134
        %v4319 = vunpack.c.h.b16 %v1134
        %v4320 = vunpack.c.l.b16 %v1135
        %v4321 = vunpack.c.h.b16 %v1135
        %v4322 = vunpack.c.l.b16 %v1136
        %v4323 = vunpack.c.h.b16 %v1136
        %v4324 = vunpack.c.l.b16 %v1137
        %v4325 = vunpack.c.h.b16 %v1137
        %v4326 = vunpack.c.l.b16 %v1138
        %v4327 = vunpack.c.h.b16 %v1138
        %v4328 = vunpack.c.l.b16 %v1139
        %v4329 = vunpack.c.h.b16 %v1139
        %v4330 = vunpack.c.l.b16 %v1140
        %v4331 = vunpack.c.h.b16 %v1140
        %v4332 = vunpack.c.l.b16 %v1141
        %v4333 = vunpack.c.h.b16 %v1141
        %v4334 = vunpack.c.l.b16 %v1142
        %v4335 = vunpack.c.h.b16 %v1142
        %v4336 = vunpack.c.l.b16 %v1143
        %v4337 = vunpack.c.h.b16 %v1143
        %v4338 = vunpack.c.l.b16 %v1144
        %v4339 = vunpack.c.h.b16 %v1144
        %v4340 = vunpack.c.l.b16 %v1145
        %v4341 = vunpack.c.h.b16 %v1145
        %v4342 = vunpack.c.l.b16 %v1146
        %v4343 = vunpack.c.h.b16 %v1146
        %v4344 = vunpack.c.l.b16 %v1147
        %v4345 = vunpack.c.h.b16 %v1147
        %v4346 = vunpack.c.l.b16 %v1148
        %v4347 = vunpack.c.h.b16 %v1148
        %v4348 = vunpack.c.l.b16 %v1149
        %v4349 = vunpack.c.h.b16 %v1149
        %v4350 = vunpack.c.l.b16 %v1150
        %v4351 = vunpack.c.h.b16 %v1150
        %v4352 = vunpack.c.l.b16 %v1151
        %v4353 = vunpack.c.h.b16 %v1151
        %v4354 = vunpack.c.l.b16 %v1152
        %v4355 = vunpack.c.h.b16 %v1152
        %v4356 = vunpack.c.l.b16 %v1153
        %v4357 = vunpack.c.h.b16 %v1153
        %v4358 = vunpack.c.l.b16 %v1154
        %v4359 = vunpack.c.h.b16 %v1154
        %v4360 = vunpack.c.l.b16 %v1155
        %v4361 = vunpack.c.h.b16 %v1155
        %v4362 = vunpack.c.l.b16 %v1156
        %v4363 = vunpack.c.h.b16 %v1156
        %v4364 = vunpack.c.l.b16 %v1157
        %v4365 = vunpack.c.h.b16 %v1157
        %v4366 = vunpack.c.l.b16 %v1158
        %v4367 = vunpack.c.h.b16 %v1158
        %v4368 = vunpack.c.l.b16 %v1159
        %v4369 = vunpack.c.h.b16 %v1159
        %v4370 = vunpack.c.l.b16 %v1160
        %v4371 = vunpack.c.h.b16 %v1160
        %v4372 = vunpack.c.l.b16 %v1161
        %v4373 = vunpack.c.h.b16 %v1161
        %v4374 = vunpack.c.l.b16 %v1162
        %v4375 = vunpack.c.h.b16 %v1162
        %v4376 = vunpack.c.l.b16 %v1163
        %v4377 = vunpack.c.h.b16 %v1163
        %v4378 = vunpack.c.l.b16 %v1164
        %v4379 = vunpack.c.h.b16 %v1164
        %v4380 = vunpack.c.l.b16 %v1165
        %v4381 = vunpack.c.h.b16 %v1165
        %v4382 = vunpack.c.l.b16 %v1166
        %v4383 = vunpack.c.h.b16 %v1166
        %v4384 = vunpack.c.l.b16 %v1167
        %v4385 = vunpack.c.h.b16 %v1167
        %v4386 = vunpack.c.l.b16 %v1168
        %v4387 = vunpack.c.h.b16 %v1168
        %v4388 = vunpack.c.l.b16 %v1169
        %v4389 = vunpack.c.h.b16 %v1169
        %v4390 = vunpack.c.l.b16 %v1170
        %v4391 = vunpack.c.h.b16 %v1170
        %v4392 = vunpack.c.l.b16 %v1171
        %v4393 = vunpack.c.h.b16 %v1171
        %v4394 = vunpack.c.l.b16 %v1172
        %v4395 = vunpack.c.h.b16 %v1172
        %v4396 = vunpack.c.l.b16 %v1173
        %v4397 = vunpack.c.h.b16 %v1173
        %v4398 = vunpack.c.l.b16 %v1174
        %v4399 = vunpack.c.h.b16 %v1174
        %v4400 = vunpack.c.l.b16 %v1175
        %v4401 = vunpack.c.h.b16 %v1175
        %v4402 = vunpack.c.l.b16 %v1176
        %v4403 = vunpack.c.h.b16 %v1176
        %v4404 = vunpack.c.l.b16 %v1177
        %v4405 = vunpack.c.h.b16 %v1177
        %v4406 = vunpack.c.l.b16 %v1178
        %v4407 = vunpack.c.h.b16 %v1178
        %v4408 = vunpack.c.l.b16 %v1179
        %v4409 = vunpack.c.h.b16 %v1179
        %v4410 = vunpack.c.l.b16 %v1180
        %v4411 = vunpack.c.h.b16 %v1180
        %v4412 = vunpack.c.l.b16 %v1181
        %v4413 = vunpack.c.h.b16 %v1181
        %v4414 = vunpack.c.l.b16 %v1182
        %v4415 = vunpack.c.h.b16 %v1182
        %v4416 = vunpack.c.l.b16 %v1183
        %v4417 = vunpack.c.h.b16 %v1183
        %v4418 = vunpack.c.l.b16 %v1184
        %v4419 = vunpack.c.h.b16 %v1184
        %v4420 = vunpack.c.l.b16 %v1185
        %v4421 = vunpack.c.h.b16 %v1185
        %v4422 = vunpack.c.l.b16 %v1186
        %v4423 = vunpack.c.h.b16 %v1186
        %v4424 = vunpack.c.l.b16 %v1187
        %v4425 = vunpack.c.h.b16 %v1187
        %v4426 = vunpack.c.l.b16 %v1188
        %v4427 = vunpack.c.h.b16 %v1188
        %v4428 = vunpack.c.l.b16 %v1189
        %v4429 = vunpack.c.h.b16 %v1189
        %v4430 = vunpack.c.l.b16 %v1190
        %v4431 = vunpack.c.h.b16 %v1190
        %v4432 = vunpack.c.l.b16 %v1191
        %v4433 = vunpack.c.h.b16 %v1191
        %v4434 = vunpack.c.l.b16 %v1192
        %v4435 = vunpack.c.h.b16 %v1192
        %v4436 = vunpack.c.l.b16 %v1193
        %v4437 = vunpack.c.h.b16 %v1193
        %v4438 = vunpack.c.l.b16 %v1194
        %v4439 = vunpack.c.h.b16 %v1194
        %v4440 = vpack.c.b16 %v4060, %v4056
        %v4441 = vpack.c.b16 %v4061, %v4057
        %v4442 = vpack.c.b16 %v4062, %v4058
        %v4443 = vpack.c.b16 %v4063, %v4059
        %v4444 = vpack.c.b16 %v4068, %v4064
        %v4445 = vpack.c.b16 %v4069, %v4065
        %v4446 = vpack.c.b16 %v4070, %v4066
        %v4447 = vpack.c.b16 %v4071, %v4067
        %v4448 = vpack.c.b16 %v4076, %v4072
        %v4449 = vpack.c.b16 %v4077, %v4073
        %v4450 = vpack.c.b16 %v4078, %v4074
        %v4451 = vpack.c.b16 %v4079, %v4075
        %v4452 = vpack.c.b16 %v4084, %v4080
        %v4453 = vpack.c.b16 %v4085, %v4081
        %v4454 = vpack.c.b16 %v4086, %v4082
        %v4455 = vpack.c.b16 %v4087, %v4083
        %v4456 = vpack.c.b16 %v4092, %v4088
        %v4457 = vpack.c.b16 %v4093, %v4089
        %v4458 = vpack.c.b16 %v4094, %v4090
        %v4459 = vpack.c.b16 %v4095, %v4091
        %v4460 = vpack.c.b16 %v4100, %v4096
        %v4461 = vpack.c.b16 %v4101, %v4097
        %v4462 = vpack.c.b16 %v4102, %v4098
        %v4463 = vpack.c.b16 %v4103, %v4099
        %v4464 = vpack.c.b16 %v4108, %v4104
        %v4465 = vpack.c.b16 %v4109, %v4105
        %v4466 = vpack.c.b16 %v4110, %v4106
        %v4467 = vpack.c.b16 %v4111, %v4107
        %v4468 = vpack.c.b16 %v4116, %v4112
        %v4469 = vpack.c.b16 %v4117, %v4113
        %v4470 = vpack.c.b16 %v4118, %v4114
        %v4471 = vpack.c.b16 %v4119, %v4115
        %v4472 = vpack.c.b16 %v4124, %v4120
        %v4473 = vpack.c.b16 %v4125, %v4121
        %v4474 = vpack.c.b16 %v4126, %v4122
        %v4475 = vpack.c.b16 %v4127, %v4123
        %v4476 = vpack.c.b16 %v4132, %v4128
        %v4477 = vpack.c.b16 %v4133, %v4129
        %v4478 = vpack.c.b16 %v4134, %v4130
        %v4479 = vpack.c.b16 %v4135, %v4131
        %v4480 = vpack.c.b16 %v4140, %v4136
        %v4481 = vpack.c.b16 %v4141, %v4137
        %v4482 = vpack.c.b16 %v4142, %v4138
        %v4483 = vpack.c.b16 %v4143, %v4139
        %v4484 = vpack.c.b16 %v4148, %v4144
        %v4485 = vpack.c.b16 %v4149, %v4145
        %v4486 = vpack.c.b16 %v4150, %v4146
        %v4487 = vpack.c.b16 %v4151, %v4147
        %v4488 = vpack.c.b16 %v4156, %v4152
        %v4489 = vpack.c.b16 %v4157, %v4153
        %v4490 = vpack.c.b16 %v4158, %v4154
        %v4491 = vpack.c.b16 %v4159, %v4155
        %v4492 = vpack.c.b16 %v4164, %v4160
        %v4493 = vpack.c.b16 %v4165, %v4161
        %v4494 = vpack.c.b16 %v4166, %v4162
        %v4495 = vpack.c.b16 %v4167, %v4163
        %v4496 = vpack.c.b16 %v4172, %v4168
        %v4497 = vpack.c.b16 %v4173, %v4169
        %v4498 = vpack.c.b16 %v4174, %v4170
        %v4499 = vpack.c.b16 %v4175, %v4171
        %v4500 = vpack.c.b16 %v4180, %v4176
        %v4501 = vpack.c.b16 %v4181, %v4177
        %v4502 = vpack.c.b16 %v4182, %v4178
        %v4503 = vpack.c.b16 %v4183, %v4179
        %v4504 = vpack.c.b16 %v4188, %v4184
        %v4505 = vpack.c.b16 %v4189, %v4185
        %v4506 = vpack.c.b16 %v4190, %v4186
        %v4507 = vpack.c.b16 %v4191, %v4187
        %v4508 = vpack.c.b16 %v4196, %v4192
        %v4509 = vpack.c.b16 %v4197, %v4193
        %v4510 = vpack.c.b16 %v4198, %v4194
        %v4511 = vpack.c.b16 %v4199, %v4195
        %v4512 = vpack.c.b16 %v4204, %v4200
        %v4513 = vpack.c.b16 %v4205, %v4201
        %v4514 = vpack.c.b16 %v4206, %v4202
        %v4515 = vpack.c.b16 %v4207, %v4203
        %v4516 = vpack.c.b16 %v4212, %v4208
        %v4517 = vpack.c.b16 %v4213, %v4209
        %v4518 = vpack.c.b16 %v4214, %v4210
        %v4519 = vpack.c.b16 %v4215, %v4211
        %v4520 = vpack.c.b16 %v4220, %v4216
        %v4521 = vpack.c.b16 %v4221, %v4217
        %v4522 = vpack.c.b16 %v4222, %v4218
        %v4523 = vpack.c.b16 %v4223, %v4219
        %v4524 = vpack.c.b16 %v4228, %v4224
        %v4525 = vpack.c.b16 %v4229, %v4225
        %v4526 = vpack.c.b16 %v4230, %v4226
        %v4527 = vpack.c.b16 %v4231, %v4227
        %v4528 = vpack.c.b16 %v4236, %v4232
        %v4529 = vpack.c.b16 %v4237, %v4233
        %v4530 = vpack.c.b16 %v4238, %v4234
        %v4531 = vpack.c.b16 %v4239, %v4235
        %v4532 = vpack.c.b16 %v4244, %v4240
        %v4533 = vpack.c.b16 %v4245, %v4241
        %v4534 = vpack.c.b16 %v4246, %v4242
        %v4535 = vpack.c.b16 %v4247, %v4243
        %v4536 = vpack.c.b16 %v4252, %v4248
        %v4537 = vpack.c.b16 %v4253, %v4249
        %v4538 = vpack.c.b16 %v4254, %v4250
        %v4539 = vpack.c.b16 %v4255, %v4251
        %v4540 = vpack.c.b16 %v4260, %v4256
        %v4541 = vpack.c.b16 %v4261, %v4257
        %v4542 = vpack.c.b16 %v4262, %v4258
        %v4543 = vpack.c.b16 %v4263, %v4259
        %v4544 = vpack.c.b16 %v4268, %v4264
        %v4545 = vpack.c.b16 %v4269, %v4265
        %v4546 = vpack.c.b16 %v4270, %v4266
        %v4547 = vpack.c.b16 %v4271, %v4267
        %v4548 = vpack.c.b16 %v4276, %v4272
        %v4549 = vpack.c.b16 %v4277, %v4273
        %v4550 = vpack.c.b16 %v4278, %v4274
        %v4551 = vpack.c.b16 %v4279, %v4275
        %v4552 = vpack.c.b16 %v4284, %v4280
        %v4553 = vpack.c.b16 %v4285, %v4281
        %v4554 = vpack.c.b16 %v4286, %v4282
        %v4555 = vpack.c.b16 %v4287, %v4283
        %v4556 = vpack.c.b16 %v4292, %v4288
        %v4557 = vpack.c.b16 %v4293, %v4289
        %v4558 = vpack.c.b16 %v4294, %v4290
        %v4559 = vpack.c.b16 %v4295, %v4291
        %v4560 = vpack.c.b16 %v4300, %v4296
        %v4561 = vpack.c.b16 %v4301, %v4297
        %v4562 = vpack.c.b16 %v4302, %v4298
        %v4563 = vpack.c.b16 %v4303, %v4299
        %v4564 = vpack.c.b16 %v4308, %v4304
        %v4565 = vpack.c.b16 %v4309, %v4305
        %v4566 = vpack.c.b16 %v4310, %v4306
        %v4567 = vpack.c.b16 %v4311, %v4307
        %v4568 = vpack.c.b16 %v4316, %v4312
        %v4569 = vpack.c.b16 %v4317, %v4313
        %v4570 = vpack.c.b16 %v4318, %v4314
        %v4571 = vpack.c.b16 %v4319, %v4315
        %v4572 = vpack.c.b16 %v4324, %v4320
        %v4573 = vpack.c.b16 %v4325, %v4321
        %v4574 = vpack.c.b16 %v4326, %v4322
        %v4575 = vpack.c.b16 %v4327, %v4323
        %v4576 = vpack.c.b16 %v4332, %v4328
        %v4577 = vpack.c.b16 %v4333, %v4329
        %v4578 = vpack.c.b16 %v4334, %v4330
        %v4579 = vpack.c.b16 %v4335, %v4331
        %v4580 = vpack.c.b16 %v4340, %v4336
        %v4581 = vpack.c.b16 %v4341, %v4337
        %v4582 = vpack.c.b16 %v4342, %v4338
        %v4583 = vpack.c.b16 %v4343, %v4339
        %v4584 = vpack.c.b16 %v4348, %v4344
        %v4585 = vpack.c.b16 %v4349, %v4345
        %v4586 = vpack.c.b16 %v4350, %v4346
        %v4587 = vpack.c.b16 %v4351, %v4347
        %v4588 = vpack.c.b16 %v4356, %v4352
        %v4589 = vpack.c.b16 %v4357, %v4353
        %v4590 = vpack.c.b16 %v4358, %v4354
        %v4591 = vpack.c.b16 %v4359, %v4355
        %v4592 = vpack.c.b16 %v4364, %v4360
        %v4593 = vpack.c.b16 %v4365, %v4361
        %v4594 = vpack.c.b16 %v4366, %v4362
        %v4595 = vpack.c.b16 %v4367, %v4363
        %v4596 = vpack.c.b16 %v4372, %v4368
        %v4597 = vpack.c.b16 %v4373, %v4369
        %v4598 = vpack.c.b16 %v4374, %v4370
        %v4599 = vpack.c.b16 %v4375, %v4371
        %v4600 = vpack.c.b16 %v4380, %v4376
        %v4601 = vpack.c.b16 %v4381, %v4377
        %v4602 = vpack.c.b16 %v4382, %v4378
        %v4603 = vpack.c.b16 %v4383, %v4379
        %v4604 = vpack.c.b16 %v4388, %v4384
        %v4605 = vpack.c.b16 %v4389, %v4385
        %v4606 = vpack.c.b16 %v4390, %v4386
        %v4607 = vpack.c.b16 %v4391, %v4387
        %v4608 = vpack.c.b16 %v4396, %v4392
        %v4609 = vpack.c.b16 %v4397, %v4393
        %v4610 = vpack.c.b16 %v4398, %v4394
        %v4611 = vpack.c.b16 %v4399, %v4395
        %v4612 = vpack.c.b16 %v4404, %v4400
        %v4613 = vpack.c.b16 %v4405, %v4401
        %v4614 = vpack.c.b16 %v4406, %v4402
        %v4615 = vpack.c.b16 %v4407, %v4403
        %v4616 = vpack.c.b16 %v4412, %v4408
        %v4617 = vpack.c.b16 %v4413, %v4409
        %v4618 = vpack.c.b16 %v4414, %v4410
        %v4619 = vpack.c.b16 %v4415, %v4411
        %v4620 = vpack.c.b16 %v4420, %v4416
        %v4621 = vpack.c.b16 %v4421, %v4417
        %v4622 = vpack.c.b16 %v4422, %v4418
        %v4623 = vpack.c.b16 %v4423, %v4419
        %v4624 = vpack.c.b16 %v4428, %v4424
        %v4625 = vpack.c.b16 %v4429, %v4425
        %v4626 = vpack.c.b16 %v4430, %v4426
        %v4627 = vpack.c.b16 %v4431, %v4427
        %v4628 = vpack.c.b16 %v4436, %v4432
        %v4629 = vpack.c.b16 %v4437, %v4433
        %v4630 = vpack.c.b16 %v4438, %v4434
        %v4631 = vpack.c.b16 %v4439, %v4435
        %4824 = vmatprep.subr.bf16.mxu0 %v4441
        %4825 = vmatpush1.bf16.msra.mxu0 %v4440
        %4826 = vmatprep.subr.bf16.mxu0 %v4445
        %4827 = vmatpush1.bf16.msra.mxu0 %v4444
        %4828 = vmatprep.subr.bf16.mxu0 %v4449
        %4829 = vmatpush1.bf16.msra.mxu0 %v4448
        %4830 = vmatprep.subr.bf16.mxu0 %v4453
        %4831 = vmatpush1.bf16.msra.mxu0 %v4452
        %4832 = vmatprep.subr.bf16.mxu0 %v4457
        %4833 = vmatpush1.bf16.msra.mxu0 %v4456
        %4834 = vmatprep.subr.bf16.mxu0 %v4461
        %4835 = vmatpush1.bf16.msra.mxu0 %v4460
        %4836 = vmatprep.subr.bf16.mxu0 %v4465
        %4837 = vmatpush1.bf16.msra.mxu0 %v4464
        %4838 = vmatprep.subr.bf16.mxu0 %v4469
        %4839 = vmatpush1.bf16.msra.mxu0 %v4468
        %4840 = vmatprep.subr.bf16.mxu0 %v4473
        %4841 = vmatpush1.bf16.msra.mxu0 %v4472
        %4842 = vmatprep.subr.bf16.mxu0 %v4477
        %4843 = vmatpush1.bf16.msra.mxu0 %v4476
        %4844 = vmatprep.subr.bf16.mxu0 %v4481
        %4845 = vmatpush1.bf16.msra.mxu0 %v4480
        %4846 = vmatprep.subr.bf16.mxu0 %v4485
        %4847 = vmatpush1.bf16.msra.mxu0 %v4484
        %4848 = vmatprep.subr.bf16.mxu0 %v4489
        %4849 = vmatpush1.bf16.msra.mxu0 %v4488
        %4850 = vmatprep.subr.bf16.mxu0 %v4493
        %4851 = vmatpush1.bf16.msra.mxu0 %v4492
        %4852 = vmatprep.subr.bf16.mxu0 %v4497
        %4853 = vmatpush1.bf16.msra.mxu0 %v4496
        %4854 = vmatprep.subr.bf16.mxu0 %v4501
        %4855 = vmatpush1.bf16.msra.mxu0 %v4500
        %4856 = vmatprep.mubr.bf16.mxu0 %v3853
        %4857 = vmatmul.mubr.bf16.gmra.mrb[0].mxu0 %v3852
        %v4858 = vpop.f32.mrb[0].mxu0
        %v4859 = vadd.f32 0.0, %v4858
        %v4860 = vpop.f32.mrb[0].mxu0
        %v4861 = vadd.f32 0.0, %v4860
        %v4862 = vpop.f32.mrb[0].mxu0
        %v4863 = vpop.f32.mrb[0].mxu0
        %4864 = vdwg.mxu0
        %4865 = vmatprep.subr.bf16.mxu0 %v4505
        %4866 = vmatpush1.bf16.msra.mxu0 %v4504
        %4867 = vmatprep.subr.bf16.mxu0 %v4509
        %4868 = vmatpush1.bf16.msra.mxu0 %v4508
        %4869 = vmatprep.subr.bf16.mxu0 %v4513
        %4870 = vmatpush1.bf16.msra.mxu0 %v4512
        %4871 = vmatprep.subr.bf16.mxu0 %v4517
        %4872 = vmatpush1.bf16.msra.mxu0 %v4516
        %4873 = vmatprep.subr.bf16.mxu0 %v4521
        %4874 = vmatpush1.bf16.msra.mxu0 %v4520
        %4875 = vmatprep.subr.bf16.mxu0 %v4525
        %4876 = vmatpush1.bf16.msra.mxu0 %v4524
        %4877 = vmatprep.subr.bf16.mxu0 %v4529
        %4878 = vmatpush1.bf16.msra.mxu0 %v4528
        %4879 = vmatprep.subr.bf16.mxu0 %v4533
        %4880 = vmatpush1.bf16.msra.mxu0 %v4532
        %4881 = vmatprep.subr.bf16.mxu0 %v4537
        %4882 = vmatpush1.bf16.msra.mxu0 %v4536
        %4883 = vmatprep.subr.bf16.mxu0 %v4541
        %4884 = vmatpush1.bf16.msra.mxu0 %v4540
        %4885 = vmatprep.subr.bf16.mxu0 %v4545
        %4886 = vmatpush1.bf16.msra.mxu0 %v4544
        %4887 = vmatprep.subr.bf16.mxu0 %v4549
        %4888 = vmatpush1.bf16.msra.mxu0 %v4548
        %4889 = vmatprep.subr.bf16.mxu0 %v4553
        %4890 = vmatpush1.bf16.msra.mxu0 %v4552
        %4891 = vmatprep.subr.bf16.mxu0 %v4557
        %4892 = vmatpush1.bf16.msra.mxu0 %v4556
        %4893 = vmatprep.subr.bf16.mxu0 %v4561
        %4894 = vmatpush1.bf16.msra.mxu0 %v4560
        %4895 = vmatprep.subr.bf16.mxu0 %v4565
        %4896 = vmatpush1.bf16.msra.mxu0 %v4564
        %4897 = vmatprep.mubr.bf16.mxu0 %v3855
        %4898 = vmatmul.mubr.bf16.gmra.mrb[0].mxu0 %v3854
        %v4899 = vpop.f32.mrb[0].mxu0
        %v4900 = vadd.f32 %v4859, %v4899
        %v4901 = vpop.f32.mrb[0].mxu0
        %v4902 = vadd.f32 %v4861, %v4901
        %v4903 = vpop.f32.mrb[0].mxu0
        %v4904 = vpop.f32.mrb[0].mxu0
        %4905 = vdwg.mxu0
        %4906 = vmatprep.subr.bf16.mxu0 %v4569
        %4907 = vmatpush1.bf16.msra.mxu0 %v4568
        %4908 = vmatprep.subr.bf16.mxu0 %v4573
        %4909 = vmatpush1.bf16.msra.mxu0 %v4572
        %4910 = vmatprep.subr.bf16.mxu0 %v4577
        %4911 = vmatpush1.bf16.msra.mxu0 %v4576
        %4912 = vmatprep.subr.bf16.mxu0 %v4581
        %4913 = vmatpush1.bf16.msra.mxu0 %v4580
        %4914 = vmatprep.subr.bf16.mxu0 %v4585
        %4915 = vmatpush1.bf16.msra.mxu0 %v4584
        %4916 = vmatprep.subr.bf16.mxu0 %v4589
        %4917 = vmatpush1.bf16.msra.mxu0 %v4588
        %4918 = vmatprep.subr.bf16.mxu0 %v4593
        %4919 = vmatpush1.bf16.msra.mxu0 %v4592
        %4920 = vmatprep.subr.bf16.mxu0 %v4597
        %4921 = vmatpush1.bf16.msra.mxu0 %v4596
        %4922 = vmatprep.subr.bf16.mxu0 %v4601
        %4923 = vmatpush1.bf16.msra.mxu0 %v4600
        %4924 = vmatprep.subr.bf16.mxu0 %v4605
        %4925 = vmatpush1.bf16.msra.mxu0 %v4604
        %4926 = vmatprep.subr.bf16.mxu0 %v4609
        %4927 = vmatpush1.bf16.msra.mxu0 %v4608
        %4928 = vmatprep.subr.bf16.mxu0 %v4613
        %4929 = vmatpush1.bf16.msra.mxu0 %v4612
        %4930 = vmatprep.subr.bf16.mxu0 %v4617
        %4931 = vmatpush1.bf16.msra.mxu0 %v4616
        %4932 = vmatprep.subr.bf16.mxu0 %v4621
        %4933 = vmatpush1.bf16.msra.mxu0 %v4620
        %4934 = vmatprep.subr.bf16.mxu0 %v4625
        %4935 = vmatpush1.bf16.msra.mxu0 %v4624
        %4936 = vmatprep.subr.bf16.mxu0 %v4629
        %4937 = vmatpush1.bf16.msra.mxu0 %v4628
        %4938 = vmatprep.mubr.bf16.mxu0 %v3857
        %4939 = vmatmul.mubr.bf16.gmra.mrb[0].mxu0 %v3856
        %v4940 = vpop.f32.mrb[0].mxu0
        %v4941 = vadd.f32 %v4900, %v4940
        %v4942 = vpop.f32.mrb[0].mxu0
        %v4943 = vadd.f32 %v4902, %v4942
        %v4944 = vpop.f32.mrb[0].mxu0
        %v4945 = vpop.f32.mrb[0].mxu0
        %4946 = vdwg.mxu0
        %4947 = vmatprep.subr.bf16.mxu0 %v4443
        %4948 = vmatpush1.bf16.msra.mxu0 %v4442
        %4949 = vmatprep.subr.bf16.mxu0 %v4447
        %4950 = vmatpush1.bf16.msra.mxu0 %v4446
        %4951 = vmatprep.subr.bf16.mxu0 %v4451
        %4952 = vmatpush1.bf16.msra.mxu0 %v4450
        %4953 = vmatprep.subr.bf16.mxu0 %v4455
        %4954 = vmatpush1.bf16.msra.mxu0 %v4454
        %4955 = vmatprep.subr.bf16.mxu0 %v4459
        %4956 = vmatpush1.bf16.msra.mxu0 %v4458
        %4957 = vmatprep.subr.bf16.mxu0 %v4463
        %4958 = vmatpush1.bf16.msra.mxu0 %v4462
        %4959 = vmatprep.subr.bf16.mxu0 %v4467
        %4960 = vmatpush1.bf16.msra.mxu0 %v4466
        %4961 = vmatprep.subr.bf16.mxu0 %v4471
        %4962 = vmatpush1.bf16.msra.mxu0 %v4470
        %4963 = vmatprep.subr.bf16.mxu0 %v4475
        %4964 = vmatpush1.bf16.msra.mxu0 %v4474
        %4965 = vmatprep.subr.bf16.mxu0 %v4479
        %4966 = vmatpush1.bf16.msra.mxu0 %v4478
        %4967 = vmatprep.subr.bf16.mxu0 %v4483
        %4968 = vmatpush1.bf16.msra.mxu0 %v4482
        %4969 = vmatprep.subr.bf16.mxu0 %v4487
        %4970 = vmatpush1.bf16.msra.mxu0 %v4486
        %4971 = vmatprep.subr.bf16.mxu0 %v4491
        %4972 = vmatpush1.bf16.msra.mxu0 %v4490
        %4973 = vmatprep.subr.bf16.mxu0 %v4495
        %4974 = vmatpush1.bf16.msra.mxu0 %v4494
        %4975 = vmatprep.subr.bf16.mxu0 %v4499
        %4976 = vmatpush1.bf16.msra.mxu0 %v4498
        %4977 = vmatprep.subr.bf16.mxu0 %v4503
        %4978 = vmatpush1.bf16.msra.mxu0 %v4502
        %4979 = vmatprep.mubr.bf16.mxu0 %v3853
        %4980 = vmatmul.mubr.bf16.gmra.mrb[0].mxu0 %v3852
        %v4981 = vpop.f32.mrb[0].mxu0
        %v4982 = vadd.f32 0.0, %v4981
        %v4983 = vpop.f32.mrb[0].mxu0
        %v4984 = vadd.f32 0.0, %v4983
        %v4985 = vpop.f32.mrb[0].mxu0
        %v4986 = vpop.f32.mrb[0].mxu0
        %4987 = vdwg.mxu0
        %4988 = vmatprep.subr.bf16.mxu0 %v4507
        %4989 = vmatpush1.bf16.msra.mxu0 %v4506
        %4990 = vmatprep.subr.bf16.mxu0 %v4511
        %4991 = vmatpush1.bf16.msra.mxu0 %v4510
        %4992 = vmatprep.subr.bf16.mxu0 %v4515
        %4993 = vmatpush1.bf16.msra.mxu0 %v4514
        %4994 = vmatprep.subr.bf16.mxu0 %v4519
        %4995 = vmatpush1.bf16.msra.mxu0 %v4518
        %4996 = vmatprep.subr.bf16.mxu0 %v4523
        %4997 = vmatpush1.bf16.msra.mxu0 %v4522
        %4998 = vmatprep.subr.bf16.mxu0 %v4527
        %4999 = vmatpush1.bf16.msra.mxu0 %v4526
        %5000 = vmatprep.subr.bf16.mxu0 %v4531
        %5001 = vmatpush1.bf16.msra.mxu0 %v4530
        %5002 = vmatprep.subr.bf16.mxu0 %v4535
        %5003 = vmatpush1.bf16.msra.mxu0 %v4534
        %5004 = vmatprep.subr.bf16.mxu0 %v4539
        %5005 = vmatpush1.bf16.msra.mxu0 %v4538
        %5006 = vmatprep.subr.bf16.mxu0 %v4543
        %5007 = vmatpush1.bf16.msra.mxu0 %v4542
        %5008 = vmatprep.subr.bf16.mxu0 %v4547
        %5009 = vmatpush1.bf16.msra.mxu0 %v4546
        %5010 = vmatprep.subr.bf16.mxu0 %v4551
        %5011 = vmatpush1.bf16.msra.mxu0 %v4550
        %5012 = vmatprep.subr.bf16.mxu0 %v4555
        %5013 = vmatpush1.bf16.msra.mxu0 %v4554
        %5014 = vmatprep.subr.bf16.mxu0 %v4559
        %5015 = vmatpush1.bf16.msra.mxu0 %v4558
        %5016 = vmatprep.subr.bf16.mxu0 %v4563
        %5017 = vmatpush1.bf16.msra.mxu0 %v4562
        %5018 = vmatprep.subr.bf16.mxu0 %v4567
        %5019 = vmatpush1.bf16.msra.mxu0 %v4566
        %5020 = vmatprep.mubr.bf16.mxu0 %v3855
        %5021 = vmatmul.mubr.bf16.gmra.mrb[0].mxu0 %v3854
        %v5022 = vpop.f32.mrb[0].mxu0
        %v5023 = vadd.f32 %v4982, %v5022
        %v5024 = vpop.f32.mrb[0].mxu0
        %v5025 = vadd.f32 %v4984, %v5024
        %v5026 = vpop.f32.mrb[0].mxu0
        %v5027 = vpop.f32.mrb[0].mxu0
        %5028 = vdwg.mxu0
        %5029 = vmatprep.subr.bf16.mxu0 %v4571
        %5030 = vmatpush1.bf16.msra.mxu0 %v4570
        %5031 = vmatprep.subr.bf16.mxu0 %v4575
        %5032 = vmatpush1.bf16.msra.mxu0 %v4574
        %5033 = vmatprep.subr.bf16.mxu0 %v4579
        %5034 = vmatpush1.bf16.msra.mxu0 %v4578
        %5035 = vmatprep.subr.bf16.mxu0 %v4583
        %5036 = vmatpush1.bf16.msra.mxu0 %v4582
        %5037 = vmatprep.subr.bf16.mxu0 %v4587
        %5038 = vmatpush1.bf16.msra.mxu0 %v4586
        %5039 = vmatprep.subr.bf16.mxu0 %v4591
        %5040 = vmatpush1.bf16.msra.mxu0 %v4590
        %5041 = vmatprep.subr.bf16.mxu0 %v4595
        %5042 = vmatpush1.bf16.msra.mxu0 %v4594
        %5043 = vmatprep.subr.bf16.mxu0 %v4599
        %5044 = vmatpush1.bf16.msra.mxu0 %v4598
        %5045 = vmatprep.subr.bf16.mxu0 %v4603
        %5046 = vmatpush1.bf16.msra.mxu0 %v4602
        %5047 = vmatprep.subr.bf16.mxu0 %v4607
        %5048 = vmatpush1.bf16.msra.mxu0 %v4606
        %5049 = vmatprep.subr.bf16.mxu0 %v4611
        %5050 = vmatpush1.bf16.msra.mxu0 %v4610
        %5051 = vmatprep.subr.bf16.mxu0 %v4615
        %5052 = vmatpush1.bf16.msra.mxu0 %v4614
        %5053 = vmatprep.subr.bf16.mxu0 %v4619
        %5054 = vmatpush1.bf16.msra.mxu0 %v4618
        %5055 = vmatprep.subr.bf16.mxu0 %v4623
        %5056 = vmatpush1.bf16.msra.mxu0 %v4622
        %5057 = vmatprep.subr.bf16.mxu0 %v4627
        %5058 = vmatpush1.bf16.msra.mxu0 %v4626
        %5059 = vmatprep.subr.bf16.mxu0 %v4631
        %5060 = vmatpush1.bf16.msra.mxu0 %v4630
        %5061 = vmatprep.mubr.bf16.mxu0 %v3857
        %5062 = vmatmul.mubr.bf16.gmra.mrb[0].mxu0 %v3856
        %v5063 = vpop.f32.mrb[0].mxu0
        %v5064 = vadd.f32 %v5023, %v5063
        %v5065 = vpop.f32.mrb[0].mxu0
        %v5066 = vadd.f32 %v5025, %v5065
        %v5067 = vpop.f32.mrb[0].mxu0
        %v5068 = vpop.f32.mrb[0].mxu0
        %5069 = vdwg.mxu0
        %v5070 = vpack.c.bf16 %v2487, %v2487
        %v5071 = vpack.c.bf16 %v2489, %v2489
        %v5072 = vpack.c.bf16 %v2610, %v2610
        %v5073 = vpack.c.bf16 %v2612, %v2612
        %v5074 = vpack.c.bf16 %v3714, %v3714
        %v5075 = vpack.c.bf16 %v3716, %v3716
        %v5076 = vpack.c.bf16 %v3837, %v3837
        %v5077 = vpack.c.bf16 %v3839, %v3839
        %v5078 = vpack.c.bf16 %v4941, %v4941
        %v5079 = vpack.c.bf16 %v4943, %v4943
        %v5080 = vpack.c.bf16 %v5064, %v5064
        %v5081 = vpack.c.bf16 %v5066, %v5066
        %vm5082 = vcmask 523264
        %v5084 = vsel %vm5082, %v5070, 0
        %v5087 = vsel %vm5082, %v5074, 0
        %5089 = vmatprep.subr.bf16.mxu0 0
        %5090 = vmatpush1.bf16.xpose.msra.mxu0 %v5087
        %5091 = vmatprep.subr.bf16.mxu0 0
        %5092 = vmatpush1.bf16.xpose.msra.mxu0 0
        %5093 = vmatprep.subr.bf16.mxu0 0
        %5094 = vmatpush1.bf16.xpose.msra.mxu0 0
        %5095 = vmatprep.subr.bf16.mxu0 0
        %5096 = vmatpush1.bf16.xpose.msra.mxu0 0
        %5097 = vmatprep.subr.bf16.mxu0 0
        %5098 = vmatpush1.bf16.xpose.msra.mxu0 0
        %5099 = vmatprep.subr.bf16.mxu0 0
        %5100 = vmatpush1.bf16.xpose.msra.mxu0 0
        %5101 = vmatprep.subr.bf16.mxu0 0
        %5102 = vmatpush1.bf16.xpose.msra.mxu0 0
        %5103 = vmatprep.subr.bf16.mxu0 0
        %5104 = vmatpush1.bf16.xpose.msra.mxu0 0
        %5105 = vmatprep.subr.bf16.mxu0 0
        %5106 = vmatpush1.bf16.xpose.msra.mxu0 0
        %5107 = vmatprep.subr.bf16.mxu0 0
        %5108 = vmatpush1.bf16.xpose.msra.mxu0 0
        %5109 = vmatprep.subr.bf16.mxu0 0
        %5110 = vmatpush1.bf16.xpose.msra.mxu0 0
        %5111 = vmatprep.subr.bf16.mxu0 0
        %5112 = vmatpush1.bf16.xpose.msra.mxu0 0
        %5113 = vmatprep.subr.bf16.mxu0 0
        %5114 = vmatpush1.bf16.xpose.msra.mxu0 0
        %5115 = vmatprep.subr.bf16.mxu0 0
        %5116 = vmatpush1.bf16.xpose.msra.mxu0 0
        %5117 = vmatprep.subr.bf16.mxu0 0
        %5118 = vmatpush1.bf16.xpose.msra.mxu0 0
        %5119 = vmatprep.subr.bf16.mxu0 0
        %5120 = vmatpush1.bf16.xpose.msra.mxu0 0
        %5121 = vmatprep.mubr.bf16.mxu0 0
        %5122 = vmatmul.mubr.bf16.gmra.mrb[0].mxu0 %v5084
        %v5123 = vpop.f32.mrb[0].mxu0
        %v5124 = vadd.f32 0.0, %v5123
        %v5125 = vpop.f32.mrb[0].mxu0
        %v5126 = vpop.f32.mrb[0].mxu0
        %v5127 = vpop.f32.mrb[0].mxu0
        %5128 = vdwg.mxu0
        %v5129 = vmul.f32 %v5124, 0.125
        %v5130 = vsel %vm618, 16843009, 0
        %v5131 = vunpack.c.0.s8 %v5130
        %vm5132 = vcmp.ne.s32.totalorder %v5131, 0
        %v5133 = vsel %vm5132, -1e+09, %v5129
        %vm5134 = vcmask 64512
        %v5135 = vsel %vm5134, %v5133, -inf
        %5136 = vmax.xlane.f32.xlu0 %v5135
        %v5137 = vpop.xlane.xlu0 %5136
        %v5138 = vsub.f32 %v5133, %v5137
        %v5139 = vmul.f32 %v5138, 1.442695
        %v5140 = vpow.pop %v5139
        %v5141 = vsel %vm5134, %v5140, 0.0
        %5142 = vadd.xlane.f32.xlu0 %v5141
        %v5143 = vpop.xlane.xlu0 %5142
        %v5144 = vrcp.pop %v5143
        %v5145 = vmul.f32 %v5140, %v5144
        %5146 = vst.msk [vmem:[%s604] sm:$0xff] %vm5134, %v5145
        %v5147 = vpack.c.bf16 %v5145, %v5145
        %v5149 = vsel %vm5134, %v5147, 0
        %vm5151 = vcmask 1043456
        %v5153 = vsel %vm5151, %v5078, 0
        %5155 = vmatprep.subr.bf16.mxu0 0
        %5156 = vmatpush1.bf16.msra.mxu0 %v5153
        %5157 = vmatprep.subr.bf16.mxu0 0
        %5158 = vmatpush1.bf16.msra.mxu0 0
        %5159 = vmatprep.subr.bf16.mxu0 0
        %5160 = vmatpush1.bf16.msra.mxu0 0
        %5161 = vmatprep.subr.bf16.mxu0 0
        %5162 = vmatpush1.bf16.msra.mxu0 0
        %5163 = vmatprep.subr.bf16.mxu0 0
        %5164 = vmatpush1.bf16.msra.mxu0 0
        %5165 = vmatprep.subr.bf16.mxu0 0
        %5166 = vmatpush1.bf16.msra.mxu0 0
        %5167 = vmatprep.subr.bf16.mxu0 0
        %5168 = vmatpush1.bf16.msra.mxu0 0
        %5169 = vmatprep.subr.bf16.mxu0 0
        %5170 = vmatpush1.bf16.msra.mxu0 0
        %5171 = vmatprep.subr.bf16.mxu0 0
        %5172 = vmatpush1.bf16.msra.mxu0 0
        %5173 = vmatprep.subr.bf16.mxu0 0
        %5174 = vmatpush1.bf16.msra.mxu0 0
        %5175 = vmatprep.subr.bf16.mxu0 0
        %5176 = vmatpush1.bf16.msra.mxu0 0
        %5177 = vmatprep.subr.bf16.mxu0 0
        %5178 = vmatpush1.bf16.msra.mxu0 0
        %5179 = vmatprep.subr.bf16.mxu0 0
        %5180 = vmatpush1.bf16.msra.mxu0 0
        %5181 = vmatprep.subr.bf16.mxu0 0
        %5182 = vmatpush1.bf16.msra.mxu0 0
        %5183 = vmatprep.subr.bf16.mxu0 0
        %5184 = vmatpush1.bf16.msra.mxu0 0
        %5185 = vmatprep.subr.bf16.mxu0 0
        %5186 = vmatpush1.bf16.msra.mxu0 0
        %5187 = vmatprep.mubr.bf16.mxu0 0
        %5188 = vmatmul.mubr.bf16.gmra.mrb[0].mxu0 %v5149
        %v5189 = vpop.f32.mrb[0].mxu0
        %v5190 = vadd.f32 0.0, %v5189
        %v5191 = vpop.f32.mrb[0].mxu0
        %v5192 = vpop.f32.mrb[0].mxu0
        %v5193 = vpop.f32.mrb[0].mxu0
        %5194 = vdwg.mxu0
        %v5195 = vpack.c.bf16 %v5190, %v5190
        %5197 = vrot.lane.b32.xlu0 %v5070, 64
        %v5198 = vpop.permute.xlu0 %5197
        %5200 = vrot.lane.b32.xlu0 %v5074, 64
        %v5201 = vpop.permute.xlu0 %5200
        %v5203 = vsel %vm5082, %v5198, 0
        %v5206 = vsel %vm5082, %v5201, 0
        %5208 = vmatprep.subr.bf16.mxu0 0
        %5209 = vmatpush1.bf16.xpose.msra.mxu0 %v5206
        %5210 = vmatprep.subr.bf16.mxu0 0
        %5211 = vmatpush1.bf16.xpose.msra.mxu0 0
        %5212 = vmatprep.subr.bf16.mxu0 0
        %5213 = vmatpush1.bf16.xpose.msra.mxu0 0
        %5214 = vmatprep.subr.bf16.mxu0 0
        %5215 = vmatpush1.bf16.xpose.msra.mxu0 0
        %5216 = vmatprep.subr.bf16.mxu0 0
        %5217 = vmatpush1.bf16.xpose.msra.mxu0 0
        %5218 = vmatprep.subr.bf16.mxu0 0
        %5219 = vmatpush1.bf16.xpose.msra.mxu0 0
        %5220 = vmatprep.subr.bf16.mxu0 0
        %5221 = vmatpush1.bf16.xpose.msra.mxu0 0
        %5222 = vmatprep.subr.bf16.mxu0 0
        %5223 = vmatpush1.bf16.xpose.msra.mxu0 0
        %5224 = vmatprep.subr.bf16.mxu0 0
        %5225 = vmatpush1.bf16.xpose.msra.mxu0 0
        %5226 = vmatprep.subr.bf16.mxu0 0
        %5227 = vmatpush1.bf16.xpose.msra.mxu0 0
        %5228 = vmatprep.subr.bf16.mxu0 0
        %5229 = vmatpush1.bf16.xpose.msra.mxu0 0
        %5230 = vmatprep.subr.bf16.mxu0 0
        %5231 = vmatpush1.bf16.xpose.msra.mxu0 0
        %5232 = vmatprep.subr.bf16.mxu0 0
        %5233 = vmatpush1.bf16.xpose.msra.mxu0 0
        %5234 = vmatprep.subr.bf16.mxu0 0
        %5235 = vmatpush1.bf16.xpose.msra.mxu0 0
        %5236 = vmatprep.subr.bf16.mxu0 0
        %5237 = vmatpush1.bf16.xpose.msra.mxu0 0
        %5238 = vmatprep.subr.bf16.mxu0 0
        %5239 = vmatpush1.bf16.xpose.msra.mxu0 0
        %5240 = vmatprep.mubr.bf16.mxu0 0
        %5241 = vmatmul.mubr.bf16.gmra.mrb[0].mxu0 %v5203
        %v5242 = vpop.f32.mrb[0].mxu0
        %v5243 = vadd.f32 0.0, %v5242
        %v5244 = vpop.f32.mrb[0].mxu0
        %v5245 = vpop.f32.mrb[0].mxu0
        %v5246 = vpop.f32.mrb[0].mxu0
        %5247 = vdwg.mxu0
        %v5248 = vmul.f32 %v5243, 0.125
        %v5249 = vsel %vm5132, -1e+09, %v5248
        %v5250 = vsel %vm5134, %v5249, -inf
        %5251 = vmax.xlane.f32.xlu0 %v5250
        %v5252 = vpop.xlane.xlu0 %5251
        %v5253 = vsub.f32 %v5249, %v5252
        %v5254 = vmul.f32 %v5253, 1.442695
        %v5255 = vpow.pop %v5254
        %v5256 = vsel %vm5134, %v5255, 0.0
        %5257 = vadd.xlane.f32.xlu0 %v5256
        %v5258 = vpop.xlane.xlu0 %5257
        %v5259 = vrcp.pop %v5258
        %v5260 = vmul.f32 %v5255, %v5259
        %s5261 = scalar_lea.vmem %s604, 8 [#allocation17]
        %5262 = vst.msk [vmem:[%s5261] sm:$0xff] %vm5134, %v5260
        %v5263 = vpack.c.bf16 %v5260, %v5260
        %5265 = vrot.lane.b32.xlu0 %v5078, 64
        %v5266 = vpop.permute.xlu0 %5265
        %v5268 = vsel %vm5134, %v5263, 0
        %v5271 = vsel %vm5151, %v5266, 0
        %5273 = vmatprep.subr.bf16.mxu0 0
        %5274 = vmatpush1.bf16.msra.mxu0 %v5271
        %5275 = vmatprep.subr.bf16.mxu0 0
        %5276 = vmatpush1.bf16.msra.mxu0 0
        %5277 = vmatprep.subr.bf16.mxu0 0
        %5278 = vmatpush1.bf16.msra.mxu0 0
        %5279 = vmatprep.subr.bf16.mxu0 0
        %5280 = vmatpush1.bf16.msra.mxu0 0
        %5281 = vmatprep.subr.bf16.mxu0 0
        %5282 = vmatpush1.bf16.msra.mxu0 0
        %5283 = vmatprep.subr.bf16.mxu0 0
        %5284 = vmatpush1.bf16.msra.mxu0 0
        %5285 = vmatprep.subr.bf16.mxu0 0
        %5286 = vmatpush1.bf16.msra.mxu0 0
        %5287 = vmatprep.subr.bf16.mxu0 0
        %5288 = vmatpush1.bf16.msra.mxu0 0
        %5289 = vmatprep.subr.bf16.mxu0 0
        %5290 = vmatpush1.bf16.msra.mxu0 0
        %5291 = vmatprep.subr.bf16.mxu0 0
        %5292 = vmatpush1.bf16.msra.mxu0 0
        %5293 = vmatprep.subr.bf16.mxu0 0
        %5294 = vmatpush1.bf16.msra.mxu0 0
        %5295 = vmatprep.subr.bf16.mxu0 0
        %5296 = vmatpush1.bf16.msra.mxu0 0
        %5297 = vmatprep.subr.bf16.mxu0 0
        %5298 = vmatpush1.bf16.msra.mxu0 0
        %5299 = vmatprep.subr.bf16.mxu0 0
        %5300 = vmatpush1.bf16.msra.mxu0 0
        %5301 = vmatprep.subr.bf16.mxu0 0
        %5302 = vmatpush1.bf16.msra.mxu0 0
        %5303 = vmatprep.subr.bf16.mxu0 0
        %5304 = vmatpush1.bf16.msra.mxu0 0
        %5305 = vmatprep.mubr.bf16.mxu0 0
        %5306 = vmatmul.mubr.bf16.gmra.mrb[0].mxu0 %v5268
        %v5307 = vpop.f32.mrb[0].mxu0
        %v5308 = vadd.f32 0.0, %v5307
        %v5309 = vpop.f32.mrb[0].mxu0
        %v5310 = vpop.f32.mrb[0].mxu0
        %v5311 = vpop.f32.mrb[0].mxu0
        %5312 = vdwg.mxu0
        %v5313 = vpack.c.bf16 %v5308, %v5308
        %v5338 = vunpack.c.l.b16 %v1219
        %v5339 = vunpack.c.h.b16 %v1219
        %v5340 = vunpack.c.l.b16 %v1220
        %v5341 = vunpack.c.h.b16 %v1220
        %v5342 = vunpack.c.l.b16 %v1221
        %v5343 = vunpack.c.h.b16 %v1221
        %v5344 = vunpack.c.l.b16 %v1222
        %v5345 = vunpack.c.h.b16 %v1222
        %v5346 = vunpack.c.l.b16 %v1223
        %v5347 = vunpack.c.h.b16 %v1223
        %v5348 = vunpack.c.l.b16 %v1224
        %v5349 = vunpack.c.h.b16 %v1224
        %v5350 = vunpack.c.l.b16 %v1225
        %v5351 = vunpack.c.h.b16 %v1225
        %v5352 = vunpack.c.l.b16 %v1226
        %v5353 = vunpack.c.h.b16 %v1226
        %v5354 = vunpack.c.l.b16 %v1227
        %v5355 = vunpack.c.h.b16 %v1227
        %v5356 = vunpack.c.l.b16 %v1228
        %v5357 = vunpack.c.h.b16 %v1228
        %v5358 = vunpack.c.l.b16 %v1229
        %v5359 = vunpack.c.h.b16 %v1229
        %v5360 = vunpack.c.l.b16 %v1230
        %v5361 = vunpack.c.h.b16 %v1230
        %v5362 = vunpack.c.l.b16 %v1231
        %v5363 = vunpack.c.h.b16 %v1231
        %v5364 = vunpack.c.l.b16 %v1232
        %v5365 = vunpack.c.h.b16 %v1232
        %v5366 = vunpack.c.l.b16 %v1233
        %v5367 = vunpack.c.h.b16 %v1233
        %v5368 = vunpack.c.l.b16 %v1234
        %v5369 = vunpack.c.h.b16 %v1234
        %v5370 = vunpack.c.l.b16 %v1235
        %v5371 = vunpack.c.h.b16 %v1235
        %v5372 = vunpack.c.l.b16 %v1236
        %v5373 = vunpack.c.h.b16 %v1236
        %v5374 = vunpack.c.l.b16 %v1237
        %v5375 = vunpack.c.h.b16 %v1237
        %v5376 = vunpack.c.l.b16 %v1238
        %v5377 = vunpack.c.h.b16 %v1238
        %v5378 = vunpack.c.l.b16 %v1239
        %v5379 = vunpack.c.h.b16 %v1239
        %v5380 = vunpack.c.l.b16 %v1240
        %v5381 = vunpack.c.h.b16 %v1240
        %v5382 = vunpack.c.l.b16 %v1241
        %v5383 = vunpack.c.h.b16 %v1241
        %v5384 = vunpack.c.l.b16 %v1242
        %v5385 = vunpack.c.h.b16 %v1242
        %v5386 = vpack.c.b16 %v5344, %v5338
        %v5387 = vpack.c.b16 %v5345, %v5339
        %v5388 = vpack.c.b16 %v5346, %v5340
        %v5389 = vpack.c.b16 %v5347, %v5341
        %v5390 = vpack.c.b16 %v5348, %v5342
        %v5391 = vpack.c.b16 %v5349, %v5343
        %v5392 = vpack.c.b16 %v5356, %v5350
        %v5393 = vpack.c.b16 %v5357, %v5351
        %v5394 = vpack.c.b16 %v5358, %v5352
        %v5395 = vpack.c.b16 %v5359, %v5353
        %v5396 = vpack.c.b16 %v5360, %v5354
        %v5397 = vpack.c.b16 %v5361, %v5355
        %v5398 = vpack.c.b16 %v5368, %v5362
        %v5399 = vpack.c.b16 %v5369, %v5363
        %v5400 = vpack.c.b16 %v5370, %v5364
        %v5401 = vpack.c.b16 %v5371, %v5365
        %v5402 = vpack.c.b16 %v5372, %v5366
        %v5403 = vpack.c.b16 %v5373, %v5367
        %v5404 = vpack.c.b16 %v5380, %v5374
        %v5405 = vpack.c.b16 %v5381, %v5375
        %v5406 = vpack.c.b16 %v5382, %v5376
        %v5407 = vpack.c.b16 %v5383, %v5377
        %v5408 = vpack.c.b16 %v5384, %v5378
        %v5409 = vpack.c.b16 %v5385, %v5379
        %v5435 = vsel %vm5082, %v5313, 0
        %5437 = vmatprep.subr.bf16.mxu0 %v5387
        %5438 = vmatpush1.bf16.msra.mxu0 %v5386
        %5439 = vmatprep.subr.bf16.mxu0 %v5393
        %5440 = vmatpush1.bf16.msra.mxu0 %v5392
        %5441 = vmatprep.subr.bf16.mxu0 %v5399
        %5442 = vmatpush1.bf16.msra.mxu0 %v5398
        %5443 = vmatprep.subr.bf16.mxu0 %v5405
        %5444 = vmatpush1.bf16.msra.mxu0 %v5404
        %5445 = vmatprep.subr.bf16.mxu0 0
        %5446 = vmatpush1.bf16.msra.mxu0 0
        %5447 = vmatprep.subr.bf16.mxu0 0
        %5448 = vmatpush1.bf16.msra.mxu0 0
        %5449 = vmatprep.subr.bf16.mxu0 0
        %5450 = vmatpush1.bf16.msra.mxu0 0
        %5451 = vmatprep.subr.bf16.mxu0 0
        %5452 = vmatpush1.bf16.msra.mxu0 0
        %5453 = vmatprep.subr.bf16.mxu0 0
        %5454 = vmatpush1.bf16.msra.mxu0 0
        %5455 = vmatprep.subr.bf16.mxu0 0
        %5456 = vmatpush1.bf16.msra.mxu0 0
        %5457 = vmatprep.subr.bf16.mxu0 0
        %5458 = vmatpush1.bf16.msra.mxu0 0
        %5459 = vmatprep.subr.bf16.mxu0 0
        %5460 = vmatpush1.bf16.msra.mxu0 0
        %5461 = vmatprep.subr.bf16.mxu0 0
        %5462 = vmatpush1.bf16.msra.mxu0 0
        %5463 = vmatprep.subr.bf16.mxu0 0
        %5464 = vmatpush1.bf16.msra.mxu0 0
        %5465 = vmatprep.subr.bf16.mxu0 0
        %5466 = vmatpush1.bf16.msra.mxu0 0
        %5467 = vmatprep.subr.bf16.mxu0 0
        %5468 = vmatpush1.bf16.msra.mxu0 0
        %5469 = vmatprep.mubr.bf16.mxu0 0
        %5470 = vmatmul.mubr.bf16.gmra.mrb[0].mxu0 %v5435
        %v5471 = vpop.f32.mrb[0].mxu0
        %v5472 = vadd.f32 0.0, %v5471
        %v5473 = vpop.f32.mrb[0].mxu0
        %v5474 = vadd.f32 0.0, %v5473
        %v5475 = vpop.f32.mrb[0].mxu0
        %v5476 = vpop.f32.mrb[0].mxu0
        %5477 = vdwg.mxu0
        %5478 = vmatprep.subr.bf16.mxu0 %v5389
        %5479 = vmatpush1.bf16.msra.mxu0 %v5388
        %5480 = vmatprep.subr.bf16.mxu0 %v5395
        %5481 = vmatpush1.bf16.msra.mxu0 %v5394
        %5482 = vmatprep.subr.bf16.mxu0 %v5401
        %5483 = vmatpush1.bf16.msra.mxu0 %v5400
        %5484 = vmatprep.subr.bf16.mxu0 %v5407
        %5485 = vmatpush1.bf16.msra.mxu0 %v5406
        %5486 = vmatprep.subr.bf16.mxu0 0
        %5487 = vmatpush1.bf16.msra.mxu0 0
        %5488 = vmatprep.subr.bf16.mxu0 0
        %5489 = vmatpush1.bf16.msra.mxu0 0
        %5490 = vmatprep.subr.bf16.mxu0 0
        %5491 = vmatpush1.bf16.msra.mxu0 0
        %5492 = vmatprep.subr.bf16.mxu0 0
        %5493 = vmatpush1.bf16.msra.mxu0 0
        %5494 = vmatprep.subr.bf16.mxu0 0
        %5495 = vmatpush1.bf16.msra.mxu0 0
        %5496 = vmatprep.subr.bf16.mxu0 0
        %5497 = vmatpush1.bf16.msra.mxu0 0
        %5498 = vmatprep.subr.bf16.mxu0 0
        %5499 = vmatpush1.bf16.msra.mxu0 0
        %5500 = vmatprep.subr.bf16.mxu0 0
        %5501 = vmatpush1.bf16.msra.mxu0 0
        %5502 = vmatprep.subr.bf16.mxu0 0
        %5503 = vmatpush1.bf16.msra.mxu0 0
        %5504 = vmatprep.subr.bf16.mxu0 0
        %5505 = vmatpush1.bf16.msra.mxu0 0
        %5506 = vmatprep.subr.bf16.mxu0 0
        %5507 = vmatpush1.bf16.msra.mxu0 0
        %5508 = vmatprep.subr.bf16.mxu0 0
        %5509 = vmatpush1.bf16.msra.mxu0 0
        %5510 = vmatprep.mubr.bf16.mxu0 0
        %5511 = vmatmul.mubr.bf16.gmra.mrb[0].mxu0 %v5435
        %v5512 = vpop.f32.mrb[0].mxu0
        %v5513 = vadd.f32 0.0, %v5512
        %v5514 = vpop.f32.mrb[0].mxu0
        %v5515 = vadd.f32 0.0, %v5514
        %v5516 = vpop.f32.mrb[0].mxu0
        %v5517 = vpop.f32.mrb[0].mxu0
        %5518 = vdwg.mxu0
        %5519 = vmatprep.subr.bf16.mxu0 %v5391
        %5520 = vmatpush1.bf16.msra.mxu0 %v5390
        %5521 = vmatprep.subr.bf16.mxu0 %v5397
        %5522 = vmatpush1.bf16.msra.mxu0 %v5396
        %5523 = vmatprep.subr.bf16.mxu0 %v5403
        %5524 = vmatpush1.bf16.msra.mxu0 %v5402
        %5525 = vmatprep.subr.bf16.mxu0 %v5409
        %5526 = vmatpush1.bf16.msra.mxu0 %v5408
        %5527 = vmatprep.subr.bf16.mxu0 0
        %5528 = vmatpush1.bf16.msra.mxu0 0
        %5529 = vmatprep.subr.bf16.mxu0 0
        %5530 = vmatpush1.bf16.msra.mxu0 0
        %5531 = vmatprep.subr.bf16.mxu0 0
        %5532 = vmatpush1.bf16.msra.mxu0 0
        %5533 = vmatprep.subr.bf16.mxu0 0
        %5534 = vmatpush1.bf16.msra.mxu0 0
        %5535 = vmatprep.subr.bf16.mxu0 0
        %5536 = vmatpush1.bf16.msra.mxu0 0
        %5537 = vmatprep.subr.bf16.mxu0 0
        %5538 = vmatpush1.bf16.msra.mxu0 0
        %5539 = vmatprep.subr.bf16.mxu0 0
        %5540 = vmatpush1.bf16.msra.mxu0 0
        %5541 = vmatprep.subr.bf16.mxu0 0
        %5542 = vmatpush1.bf16.msra.mxu0 0
        %5543 = vmatprep.subr.bf16.mxu0 0
        %5544 = vmatpush1.bf16.msra.mxu0 0
        %5545 = vmatprep.subr.bf16.mxu0 0
        %5546 = vmatpush1.bf16.msra.mxu0 0
        %5547 = vmatprep.subr.bf16.mxu0 0
        %5548 = vmatpush1.bf16.msra.mxu0 0
        %5549 = vmatprep.subr.bf16.mxu0 0
        %5550 = vmatpush1.bf16.msra.mxu0 0
        %5551 = vmatprep.mubr.bf16.mxu0 0
        %5552 = vmatmul.mubr.bf16.gmra.mrb[0].mxu0 %v5435
        %v5553 = vpop.f32.mrb[0].mxu0
        %v5554 = vadd.f32 0.0, %v5553
        %v5555 = vpop.f32.mrb[0].mxu0
        %v5556 = vadd.f32 0.0, %v5555
        %v5557 = vpop.f32.mrb[0].mxu0
        %v5558 = vpop.f32.mrb[0].mxu0
        %5559 = vdwg.mxu0
        %v5584 = vunpack.c.l.b16 %v1195
        %v5585 = vunpack.c.h.b16 %v1195
        %v5586 = vunpack.c.l.b16 %v1196
        %v5587 = vunpack.c.h.b16 %v1196
        %v5588 = vunpack.c.l.b16 %v1197
        %v5589 = vunpack.c.h.b16 %v1197
        %v5590 = vunpack.c.l.b16 %v1198
        %v5591 = vunpack.c.h.b16 %v1198
        %v5592 = vunpack.c.l.b16 %v1199
        %v5593 = vunpack.c.h.b16 %v1199
        %v5594 = vunpack.c.l.b16 %v1200
        %v5595 = vunpack.c.h.b16 %v1200
        %v5596 = vunpack.c.l.b16 %v1201
        %v5597 = vunpack.c.h.b16 %v1201
        %v5598 = vunpack.c.l.b16 %v1202
        %v5599 = vunpack.c.h.b16 %v1202
        %v5600 = vunpack.c.l.b16 %v1203
        %v5601 = vunpack.c.h.b16 %v1203
        %v5602 = vunpack.c.l.b16 %v1204
        %v5603 = vunpack.c.h.b16 %v1204
        %v5604 = vunpack.c.l.b16 %v1205
        %v5605 = vunpack.c.h.b16 %v1205
        %v5606 = vunpack.c.l.b16 %v1206
        %v5607 = vunpack.c.h.b16 %v1206
        %v5608 = vunpack.c.l.b16 %v1207
        %v5609 = vunpack.c.h.b16 %v1207
        %v5610 = vunpack.c.l.b16 %v1208
        %v5611 = vunpack.c.h.b16 %v1208
        %v5612 = vunpack.c.l.b16 %v1209
        %v5613 = vunpack.c.h.b16 %v1209
        %v5614 = vunpack.c.l.b16 %v1210
        %v5615 = vunpack.c.h.b16 %v1210
        %v5616 = vunpack.c.l.b16 %v1211
        %v5617 = vunpack.c.h.b16 %v1211
        %v5618 = vunpack.c.l.b16 %v1212
        %v5619 = vunpack.c.h.b16 %v1212
        %v5620 = vunpack.c.l.b16 %v1213
        %v5621 = vunpack.c.h.b16 %v1213
        %v5622 = vunpack.c.l.b16 %v1214
        %v5623 = vunpack.c.h.b16 %v1214
        %v5624 = vunpack.c.l.b16 %v1215
        %v5625 = vunpack.c.h.b16 %v1215
        %v5626 = vunpack.c.l.b16 %v1216
        %v5627 = vunpack.c.h.b16 %v1216
        %v5628 = vunpack.c.l.b16 %v1217
        %v5629 = vunpack.c.h.b16 %v1217
        %v5630 = vunpack.c.l.b16 %v1218
        %v5631 = vunpack.c.h.b16 %v1218
        %v5632 = vpack.c.b16 %v5590, %v5584
        %v5633 = vpack.c.b16 %v5591, %v5585
        %v5634 = vpack.c.b16 %v5592, %v5586
        %v5635 = vpack.c.b16 %v5593, %v5587
        %v5636 = vpack.c.b16 %v5594, %v5588
        %v5637 = vpack.c.b16 %v5595, %v5589
        %v5638 = vpack.c.b16 %v5602, %v5596
        %v5639 = vpack.c.b16 %v5603, %v5597
        %v5640 = vpack.c.b16 %v5604, %v5598
        %v5641 = vpack.c.b16 %v5605, %v5599
        %v5642 = vpack.c.b16 %v5606, %v5600
        %v5643 = vpack.c.b16 %v5607, %v5601
        %v5644 = vpack.c.b16 %v5614, %v5608
        %v5645 = vpack.c.b16 %v5615, %v5609
        %v5646 = vpack.c.b16 %v5616, %v5610
        %v5647 = vpack.c.b16 %v5617, %v5611
        %v5648 = vpack.c.b16 %v5618, %v5612
        %v5649 = vpack.c.b16 %v5619, %v5613
        %v5650 = vpack.c.b16 %v5626, %v5620
        %v5651 = vpack.c.b16 %v5627, %v5621
        %v5652 = vpack.c.b16 %v5628, %v5622
        %v5653 = vpack.c.b16 %v5629, %v5623
        %v5654 = vpack.c.b16 %v5630, %v5624
        %v5655 = vpack.c.b16 %v5631, %v5625
        %v5681 = vsel %vm5082, %v5195, 0
        %5683 = vmatprep.subr.bf16.mxu0 %v5633
        %5684 = vmatpush1.bf16.msra.mxu0 %v5632
        %5685 = vmatprep.subr.bf16.mxu0 %v5639
        %5686 = vmatpush1.bf16.msra.mxu0 %v5638
        %5687 = vmatprep.subr.bf16.mxu0 %v5645
        %5688 = vmatpush1.bf16.msra.mxu0 %v5644
        %5689 = vmatprep.subr.bf16.mxu0 %v5651
        %5690 = vmatpush1.bf16.msra.mxu0 %v5650
        %5691 = vmatprep.subr.bf16.mxu0 0
        %5692 = vmatpush1.bf16.msra.mxu0 0
        %5693 = vmatprep.subr.bf16.mxu0 0
        %5694 = vmatpush1.bf16.msra.mxu0 0
        %5695 = vmatprep.subr.bf16.mxu0 0
        %5696 = vmatpush1.bf16.msra.mxu0 0
        %5697 = vmatprep.subr.bf16.mxu0 0
        %5698 = vmatpush1.bf16.msra.mxu0 0
        %5699 = vmatprep.subr.bf16.mxu0 0
        %5700 = vmatpush1.bf16.msra.mxu0 0
        %5701 = vmatprep.subr.bf16.mxu0 0
        %5702 = vmatpush1.bf16.msra.mxu0 0
        %5703 = vmatprep.subr.bf16.mxu0 0
        %5704 = vmatpush1.bf16.msra.mxu0 0
        %5705 = vmatprep.subr.bf16.mxu0 0
        %5706 = vmatpush1.bf16.msra.mxu0 0
        %5707 = vmatprep.subr.bf16.mxu0 0
        %5708 = vmatpush1.bf16.msra.mxu0 0
        %5709 = vmatprep.subr.bf16.mxu0 0
        %5710 = vmatpush1.bf16.msra.mxu0 0
        %5711 = vmatprep.subr.bf16.mxu0 0
        %5712 = vmatpush1.bf16.msra.mxu0 0
        %5713 = vmatprep.subr.bf16.mxu0 0
        %5714 = vmatpush1.bf16.msra.mxu0 0
        %5715 = vmatprep.mubr.bf16.mxu0 0
        %5716 = vmatmul.mubr.bf16.gmra.mrb[0].mxu0 %v5681
        %v5717 = vpop.f32.mrb[0].mxu0
        %v5718 = vadd.f32 %v5472, %v5717
        %v5719 = vpop.f32.mrb[0].mxu0
        %v5720 = vadd.f32 %v5474, %v5719
        %v5721 = vpop.f32.mrb[0].mxu0
        %v5722 = vpop.f32.mrb[0].mxu0
        %5723 = vdwg.mxu0
        %5724 = vmatprep.subr.bf16.mxu0 %v5635
        %5725 = vmatpush1.bf16.msra.mxu0 %v5634
        %5726 = vmatprep.subr.bf16.mxu0 %v5641
        %5727 = vmatpush1.bf16.msra.mxu0 %v5640
        %5728 = vmatprep.subr.bf16.mxu0 %v5647
        %5729 = vmatpush1.bf16.msra.mxu0 %v5646
        %5730 = vmatprep.subr.bf16.mxu0 %v5653
        %5731 = vmatpush1.bf16.msra.mxu0 %v5652
        %5732 = vmatprep.subr.bf16.mxu0 0
        %5733 = vmatpush1.bf16.msra.mxu0 0
        %5734 = vmatprep.subr.bf16.mxu0 0
        %5735 = vmatpush1.bf16.msra.mxu0 0
        %5736 = vmatprep.subr.bf16.mxu0 0
        %5737 = vmatpush1.bf16.msra.mxu0 0
        %5738 = vmatprep.subr.bf16.mxu0 0
        %5739 = vmatpush1.bf16.msra.mxu0 0
        %5740 = vmatprep.subr.bf16.mxu0 0
        %5741 = vmatpush1.bf16.msra.mxu0 0
        %5742 = vmatprep.subr.bf16.mxu0 0
        %5743 = vmatpush1.bf16.msra.mxu0 0
        %5744 = vmatprep.subr.bf16.mxu0 0
        %5745 = vmatpush1.bf16.msra.mxu0 0
        %5746 = vmatprep.subr.bf16.mxu0 0
        %5747 = vmatpush1.bf16.msra.mxu0 0
        %5748 = vmatprep.subr.bf16.mxu0 0
        %5749 = vmatpush1.bf16.msra.mxu0 0
        %5750 = vmatprep.subr.bf16.mxu0 0
        %5751 = vmatpush1.bf16.msra.mxu0 0
        %5752 = vmatprep.subr.bf16.mxu0 0
        %5753 = vmatpush1.bf16.msra.mxu0 0
        %5754 = vmatprep.subr.bf16.mxu0 0
        %5755 = vmatpush1.bf16.msra.mxu0 0
        %5756 = vmatprep.mubr.bf16.mxu0 0
        %5757 = vmatmul.mubr.bf16.gmra.mrb[0].mxu0 %v5681
        %v5758 = vpop.f32.mrb[0].mxu0
        %v5759 = vadd.f32 %v5513, %v5758
        %v5760 = vpop.f32.mrb[0].mxu0
        %v5761 = vadd.f32 %v5515, %v5760
        %v5762 = vpop.f32.mrb[0].mxu0
        %v5763 = vpop.f32.mrb[0].mxu0
        %5764 = vdwg.mxu0
        %5765 = vmatprep.subr.bf16.mxu0 %v5637
        %5766 = vmatpush1.bf16.msra.mxu0 %v5636
        %5767 = vmatprep.subr.bf16.mxu0 %v5643
        %5768 = vmatpush1.bf16.msra.mxu0 %v5642
        %5769 = vmatprep.subr.bf16.mxu0 %v5649
        %5770 = vmatpush1.bf16.msra.mxu0 %v5648
        %5771 = vmatprep.subr.bf16.mxu0 %v5655
        %5772 = vmatpush1.bf16.msra.mxu0 %v5654
        %5773 = vmatprep.subr.bf16.mxu0 0
        %5774 = vmatpush1.bf16.msra.mxu0 0
        %5775 = vmatprep.subr.bf16.mxu0 0
        %5776 = vmatpush1.bf16.msra.mxu0 0
        %5777 = vmatprep.subr.bf16.mxu0 0
        %5778 = vmatpush1.bf16.msra.mxu0 0
        %5779 = vmatprep.subr.bf16.mxu0 0
        %5780 = vmatpush1.bf16.msra.mxu0 0
        %5781 = vmatprep.subr.bf16.mxu0 0
        %5782 = vmatpush1.bf16.msra.mxu0 0
        %5783 = vmatprep.subr.bf16.mxu0 0
        %5784 = vmatpush1.bf16.msra.mxu0 0
        %5785 = vmatprep.subr.bf16.mxu0 0
        %5786 = vmatpush1.bf16.msra.mxu0 0
        %5787 = vmatprep.subr.bf16.mxu0 0
        %5788 = vmatpush1.bf16.msra.mxu0 0
        %5789 = vmatprep.subr.bf16.mxu0 0
        %5790 = vmatpush1.bf16.msra.mxu0 0
        %5791 = vmatprep.subr.bf16.mxu0 0
        %5792 = vmatpush1.bf16.msra.mxu0 0
        %5793 = vmatprep.subr.bf16.mxu0 0
        %5794 = vmatpush1.bf16.msra.mxu0 0
        %5795 = vmatprep.subr.bf16.mxu0 0
        %5796 = vmatpush1.bf16.msra.mxu0 0
        %5797 = vmatprep.mubr.bf16.mxu0 0
        %5798 = vmatmul.mubr.bf16.gmra.mrb[0].mxu0 %v5681
        %v5799 = vpop.f32.mrb[0].mxu0
        %v5800 = vadd.f32 %v5554, %v5799
        %v5801 = vpop.f32.mrb[0].mxu0
        %v5802 = vadd.f32 %v5556, %v5801
        %v5803 = vpop.f32.mrb[0].mxu0
        %v5804 = vpop.f32.mrb[0].mxu0
        %5805 = vdwg.mxu0
        %v5807 = vsel %vm5082, %v5071, 0
        %v5810 = vsel %vm5082, %v5075, 0
        %5812 = vmatprep.subr.bf16.mxu0 0
        %5813 = vmatpush1.bf16.xpose.msra.mxu0 %v5810
        %5814 = vmatprep.subr.bf16.mxu0 0
        %5815 = vmatpush1.bf16.xpose.msra.mxu0 0
        %5816 = vmatprep.subr.bf16.mxu0 0
        %5817 = vmatpush1.bf16.xpose.msra.mxu0 0
        %5818 = vmatprep.subr.bf16.mxu0 0
        %5819 = vmatpush1.bf16.xpose.msra.mxu0 0
        %5820 = vmatprep.subr.bf16.mxu0 0
        %5821 = vmatpush1.bf16.xpose.msra.mxu0 0
        %5822 = vmatprep.subr.bf16.mxu0 0
        %5823 = vmatpush1.bf16.xpose.msra.mxu0 0
        %5824 = vmatprep.subr.bf16.mxu0 0
        %5825 = vmatpush1.bf16.xpose.msra.mxu0 0
        %5826 = vmatprep.subr.bf16.mxu0 0
        %5827 = vmatpush1.bf16.xpose.msra.mxu0 0
        %5828 = vmatprep.subr.bf16.mxu0 0
        %5829 = vmatpush1.bf16.xpose.msra.mxu0 0
        %5830 = vmatprep.subr.bf16.mxu0 0
        %5831 = vmatpush1.bf16.xpose.msra.mxu0 0
        %5832 = vmatprep.subr.bf16.mxu0 0
        %5833 = vmatpush1.bf16.xpose.msra.mxu0 0
        %5834 = vmatprep.subr.bf16.mxu0 0
        %5835 = vmatpush1.bf16.xpose.msra.mxu0 0
        %5836 = vmatprep.subr.bf16.mxu0 0
        %5837 = vmatpush1.bf16.xpose.msra.mxu0 0
        %5838 = vmatprep.subr.bf16.mxu0 0
        %5839 = vmatpush1.bf16.xpose.msra.mxu0 0
        %5840 = vmatprep.subr.bf16.mxu0 0
        %5841 = vmatpush1.bf16.xpose.msra.mxu0 0
        %5842 = vmatprep.subr.bf16.mxu0 0
        %5843 = vmatpush1.bf16.xpose.msra.mxu0 0
        %5844 = vmatprep.mubr.bf16.mxu0 0
        %5845 = vmatmul.mubr.bf16.gmra.mrb[0].mxu0 %v5807
        %v5846 = vpop.f32.mrb[0].mxu0
        %v5847 = vadd.f32 0.0, %v5846
        %v5848 = vpop.f32.mrb[0].mxu0
        %v5849 = vpop.f32.mrb[0].mxu0
        %v5850 = vpop.f32.mrb[0].mxu0
        %5851 = vdwg.mxu0
        %v5852 = vmul.f32 %v5847, 0.125
        %v5853 = vsel %vm5132, -1e+09, %v5852
        %v5854 = vsel %vm5134, %v5853, -inf
        %5855 = vmax.xlane.f32.xlu0 %v5854
        %v5856 = vpop.xlane.xlu0 %5855
        %v5857 = vsub.f32 %v5853, %v5856
        %v5858 = vmul.f32 %v5857, 1.442695
        %v5859 = vpow.pop %v5858
        %v5860 = vsel %vm5134, %v5859, 0.0
        %5861 = vadd.xlane.f32.xlu0 %v5860
        %v5862 = vpop.xlane.xlu0 %5861
        %v5863 = vrcp.pop %v5862
        %v5864 = vmul.f32 %v5859, %v5863
        %s5865 = scalar_lea.vmem %s604, 16 [#allocation17]
        %5866 = vst.msk [vmem:[%s5865] sm:$0xff] %vm5134, %v5864
        %v5867 = vpack.c.bf16 %v5864, %v5864
        %v5869 = vsel %vm5134, %v5867, 0
        %v5872 = vsel %vm5151, %v5079, 0
        %5874 = vmatprep.subr.bf16.mxu0 0
        %5875 = vmatpush1.bf16.msra.mxu0 %v5872
        %5876 = vmatprep.subr.bf16.mxu0 0
        %5877 = vmatpush1.bf16.msra.mxu0 0
        %5878 = vmatprep.subr.bf16.mxu0 0
        %5879 = vmatpush1.bf16.msra.mxu0 0
        %5880 = vmatprep.subr.bf16.mxu0 0
        %5881 = vmatpush1.bf16.msra.mxu0 0
        %5882 = vmatprep.subr.bf16.mxu0 0
        %5883 = vmatpush1.bf16.msra.mxu0 0
        %5884 = vmatprep.subr.bf16.mxu0 0
        %5885 = vmatpush1.bf16.msra.mxu0 0
        %5886 = vmatprep.subr.bf16.mxu0 0
        %5887 = vmatpush1.bf16.msra.mxu0 0
        %5888 = vmatprep.subr.bf16.mxu0 0
        %5889 = vmatpush1.bf16.msra.mxu0 0
        %5890 = vmatprep.subr.bf16.mxu0 0
        %5891 = vmatpush1.bf16.msra.mxu0 0
        %5892 = vmatprep.subr.bf16.mxu0 0
        %5893 = vmatpush1.bf16.msra.mxu0 0
        %5894 = vmatprep.subr.bf16.mxu0 0
        %5895 = vmatpush1.bf16.msra.mxu0 0
        %5896 = vmatprep.subr.bf16.mxu0 0
        %5897 = vmatpush1.bf16.msra.mxu0 0
        %5898 = vmatprep.subr.bf16.mxu0 0
        %5899 = vmatpush1.bf16.msra.mxu0 0
        %5900 = vmatprep.subr.bf16.mxu0 0
        %5901 = vmatpush1.bf16.msra.mxu0 0
        %5902 = vmatprep.subr.bf16.mxu0 0
        %5903 = vmatpush1.bf16.msra.mxu0 0
        %5904 = vmatprep.subr.bf16.mxu0 0
        %5905 = vmatpush1.bf16.msra.mxu0 0
        %5906 = vmatprep.mubr.bf16.mxu0 0
        %5907 = vmatmul.mubr.bf16.gmra.mrb[0].mxu0 %v5869
        %v5908 = vpop.f32.mrb[0].mxu0
        %v5909 = vadd.f32 0.0, %v5908
        %v5910 = vpop.f32.mrb[0].mxu0
        %v5911 = vpop.f32.mrb[0].mxu0
        %v5912 = vpop.f32.mrb[0].mxu0
        %5913 = vdwg.mxu0
        %v5914 = vpack.c.bf16 %v5909, %v5909
        %v5939 = vunpack.c.l.b16 %v1243
        %v5940 = vunpack.c.h.b16 %v1243
        %v5941 = vunpack.c.l.b16 %v1244
        %v5942 = vunpack.c.h.b16 %v1244
        %v5943 = vunpack.c.l.b16 %v1245
        %v5944 = vunpack.c.h.b16 %v1245
        %v5945 = vunpack.c.l.b16 %v1246
        %v5946 = vunpack.c.h.b16 %v1246
        %v5947 = vunpack.c.l.b16 %v1247
        %v5948 = vunpack.c.h.b16 %v1247
        %v5949 = vunpack.c.l.b16 %v1248
        %v5950 = vunpack.c.h.b16 %v1248
        %v5951 = vunpack.c.l.b16 %v1249
        %v5952 = vunpack.c.h.b16 %v1249
        %v5953 = vunpack.c.l.b16 %v1250
        %v5954 = vunpack.c.h.b16 %v1250
        %v5955 = vunpack.c.l.b16 %v1251
        %v5956 = vunpack.c.h.b16 %v1251
        %v5957 = vunpack.c.l.b16 %v1252
        %v5958 = vunpack.c.h.b16 %v1252
        %v5959 = vunpack.c.l.b16 %v1253
        %v5960 = vunpack.c.h.b16 %v1253
        %v5961 = vunpack.c.l.b16 %v1254
        %v5962 = vunpack.c.h.b16 %v1254
        %v5963 = vunpack.c.l.b16 %v1255
        %v5964 = vunpack.c.h.b16 %v1255
        %v5965 = vunpack.c.l.b16 %v1256
        %v5966 = vunpack.c.h.b16 %v1256
        %v5967 = vunpack.c.l.b16 %v1257
        %v5968 = vunpack.c.h.b16 %v1257
        %v5969 = vunpack.c.l.b16 %v1258
        %v5970 = vunpack.c.h.b16 %v1258
        %v5971 = vunpack.c.l.b16 %v1259
        %v5972 = vunpack.c.h.b16 %v1259
        %v5973 = vunpack.c.l.b16 %v1260
        %v5974 = vunpack.c.h.b16 %v1260
        %v5975 = vunpack.c.l.b16 %v1261
        %v5976 = vunpack.c.h.b16 %v1261
        %v5977 = vunpack.c.l.b16 %v1262
        %v5978 = vunpack.c.h.b16 %v1262
        %v5979 = vunpack.c.l.b16 %v1263
        %v5980 = vunpack.c.h.b16 %v1263
        %v5981 = vunpack.c.l.b16 %v1264
        %v5982 = vunpack.c.h.b16 %v1264
        %v5983 = vunpack.c.l.b16 %v1265
        %v5984 = vunpack.c.h.b16 %v1265
        %v5985 = vunpack.c.l.b16 %v1266
        %v5986 = vunpack.c.h.b16 %v1266
        %v5987 = vpack.c.b16 %v5945, %v5939
        %v5988 = vpack.c.b16 %v5946, %v5940
        %v5989 = vpack.c.b16 %v5947, %v5941
        %v5990 = vpack.c.b16 %v5948, %v5942
        %v5991 = vpack.c.b16 %v5949, %v5943
        %v5992 = vpack.c.b16 %v5950, %v5944
        %v5993 = vpack.c.b16 %v5957, %v5951
        %v5994 = vpack.c.b16 %v5958, %v5952
        %v5995 = vpack.c.b16 %v5959, %v5953
        %v5996 = vpack.c.b16 %v5960, %v5954
        %v5997 = vpack.c.b16 %v5961, %v5955
        %v5998 = vpack.c.b16 %v5962, %v5956
        %v5999 = vpack.c.b16 %v5969, %v5963
        %v6000 = vpack.c.b16 %v5970, %v5964
        %v6001 = vpack.c.b16 %v5971, %v5965
        %v6002 = vpack.c.b16 %v5972, %v5966
        %v6003 = vpack.c.b16 %v5973, %v5967
        %v6004 = vpack.c.b16 %v5974, %v5968
        %v6005 = vpack.c.b16 %v5981, %v5975
        %v6006 = vpack.c.b16 %v5982, %v5976
        %v6007 = vpack.c.b16 %v5983, %v5977
        %v6008 = vpack.c.b16 %v5984, %v5978
        %v6009 = vpack.c.b16 %v5985, %v5979
        %v6010 = vpack.c.b16 %v5986, %v5980
        %v6036 = vsel %vm5082, %v5914, 0
        %6038 = vmatprep.subr.bf16.mxu0 %v5988
        %6039 = vmatpush1.bf16.msra.mxu0 %v5987
        %6040 = vmatprep.subr.bf16.mxu0 %v5994
        %6041 = vmatpush1.bf16.msra.mxu0 %v5993
        %6042 = vmatprep.subr.bf16.mxu0 %v6000
        %6043 = vmatpush1.bf16.msra.mxu0 %v5999
        %6044 = vmatprep.subr.bf16.mxu0 %v6006
        %6045 = vmatpush1.bf16.msra.mxu0 %v6005
        %6046 = vmatprep.subr.bf16.mxu0 0
        %6047 = vmatpush1.bf16.msra.mxu0 0
        %6048 = vmatprep.subr.bf16.mxu0 0
        %6049 = vmatpush1.bf16.msra.mxu0 0
        %6050 = vmatprep.subr.bf16.mxu0 0
        %6051 = vmatpush1.bf16.msra.mxu0 0
        %6052 = vmatprep.subr.bf16.mxu0 0
        %6053 = vmatpush1.bf16.msra.mxu0 0
        %6054 = vmatprep.subr.bf16.mxu0 0
        %6055 = vmatpush1.bf16.msra.mxu0 0
        %6056 = vmatprep.subr.bf16.mxu0 0
        %6057 = vmatpush1.bf16.msra.mxu0 0
        %6058 = vmatprep.subr.bf16.mxu0 0
        %6059 = vmatpush1.bf16.msra.mxu0 0
        %6060 = vmatprep.subr.bf16.mxu0 0
        %6061 = vmatpush1.bf16.msra.mxu0 0
        %6062 = vmatprep.subr.bf16.mxu0 0
        %6063 = vmatpush1.bf16.msra.mxu0 0
        %6064 = vmatprep.subr.bf16.mxu0 0
        %6065 = vmatpush1.bf16.msra.mxu0 0
        %6066 = vmatprep.subr.bf16.mxu0 0
        %6067 = vmatpush1.bf16.msra.mxu0 0
        %6068 = vmatprep.subr.bf16.mxu0 0
        %6069 = vmatpush1.bf16.msra.mxu0 0
        %6070 = vmatprep.mubr.bf16.mxu0 0
        %6071 = vmatmul.mubr.bf16.gmra.mrb[0].mxu0 %v6036
        %v6072 = vpop.f32.mrb[0].mxu0
        %v6073 = vadd.f32 0.0, %v6072
        %v6074 = vpop.f32.mrb[0].mxu0
        %v6075 = vadd.f32 0.0, %v6074
        %v6076 = vpop.f32.mrb[0].mxu0
        %v6077 = vpop.f32.mrb[0].mxu0
        %6078 = vdwg.mxu0
        %6079 = vmatprep.subr.bf16.mxu0 %v5990
        %6080 = vmatpush1.bf16.msra.mxu0 %v5989
        %6081 = vmatprep.subr.bf16.mxu0 %v5996
        %6082 = vmatpush1.bf16.msra.mxu0 %v5995
        %6083 = vmatprep.subr.bf16.mxu0 %v6002
        %6084 = vmatpush1.bf16.msra.mxu0 %v6001
        %6085 = vmatprep.subr.bf16.mxu0 %v6008
        %6086 = vmatpush1.bf16.msra.mxu0 %v6007
        %6087 = vmatprep.subr.bf16.mxu0 0
        %6088 = vmatpush1.bf16.msra.mxu0 0
        %6089 = vmatprep.subr.bf16.mxu0 0
        %6090 = vmatpush1.bf16.msra.mxu0 0
        %6091 = vmatprep.subr.bf16.mxu0 0
        %6092 = vmatpush1.bf16.msra.mxu0 0
        %6093 = vmatprep.subr.bf16.mxu0 0
        %6094 = vmatpush1.bf16.msra.mxu0 0
        %6095 = vmatprep.subr.bf16.mxu0 0
        %6096 = vmatpush1.bf16.msra.mxu0 0
        %6097 = vmatprep.subr.bf16.mxu0 0
        %6098 = vmatpush1.bf16.msra.mxu0 0
        %6099 = vmatprep.subr.bf16.mxu0 0
        %6100 = vmatpush1.bf16.msra.mxu0 0
        %6101 = vmatprep.subr.bf16.mxu0 0
        %6102 = vmatpush1.bf16.msra.mxu0 0
        %6103 = vmatprep.subr.bf16.mxu0 0
        %6104 = vmatpush1.bf16.msra.mxu0 0
        %6105 = vmatprep.subr.bf16.mxu0 0
        %6106 = vmatpush1.bf16.msra.mxu0 0
        %6107 = vmatprep.subr.bf16.mxu0 0
        %6108 = vmatpush1.bf16.msra.mxu0 0
        %6109 = vmatprep.subr.bf16.mxu0 0
        %6110 = vmatpush1.bf16.msra.mxu0 0
        %6111 = vmatprep.mubr.bf16.mxu0 0
        %6112 = vmatmul.mubr.bf16.gmra.mrb[0].mxu0 %v6036
        %v6113 = vpop.f32.mrb[0].mxu0
        %v6114 = vadd.f32 0.0, %v6113
        %v6115 = vpop.f32.mrb[0].mxu0
        %v6116 = vadd.f32 0.0, %v6115
        %v6117 = vpop.f32.mrb[0].mxu0
        %v6118 = vpop.f32.mrb[0].mxu0
        %6119 = vdwg.mxu0
        %6120 = vmatprep.subr.bf16.mxu0 %v5992
        %6121 = vmatpush1.bf16.msra.mxu0 %v5991
        %6122 = vmatprep.subr.bf16.mxu0 %v5998
        %6123 = vmatpush1.bf16.msra.mxu0 %v5997
        %6124 = vmatprep.subr.bf16.mxu0 %v6004
        %6125 = vmatpush1.bf16.msra.mxu0 %v6003
        %6126 = vmatprep.subr.bf16.mxu0 %v6010
        %6127 = vmatpush1.bf16.msra.mxu0 %v6009
        %6128 = vmatprep.subr.bf16.mxu0 0
        %6129 = vmatpush1.bf16.msra.mxu0 0
        %6130 = vmatprep.subr.bf16.mxu0 0
        %6131 = vmatpush1.bf16.msra.mxu0 0
        %6132 = vmatprep.subr.bf16.mxu0 0
        %6133 = vmatpush1.bf16.msra.mxu0 0
        %6134 = vmatprep.subr.bf16.mxu0 0
        %6135 = vmatpush1.bf16.msra.mxu0 0
        %6136 = vmatprep.subr.bf16.mxu0 0
        %6137 = vmatpush1.bf16.msra.mxu0 0
        %6138 = vmatprep.subr.bf16.mxu0 0
        %6139 = vmatpush1.bf16.msra.mxu0 0
        %6140 = vmatprep.subr.bf16.mxu0 0
        %6141 = vmatpush1.bf16.msra.mxu0 0
        %6142 = vmatprep.subr.bf16.mxu0 0
        %6143 = vmatpush1.bf16.msra.mxu0 0
        %6144 = vmatprep.subr.bf16.mxu0 0
        %6145 = vmatpush1.bf16.msra.mxu0 0
        %6146 = vmatprep.subr.bf16.mxu0 0
        %6147 = vmatpush1.bf16.msra.mxu0 0
        %6148 = vmatprep.subr.bf16.mxu0 0
        %6149 = vmatpush1.bf16.msra.mxu0 0
        %6150 = vmatprep.subr.bf16.mxu0 0
        %6151 = vmatpush1.bf16.msra.mxu0 0
        %6152 = vmatprep.mubr.bf16.mxu0 0
        %6153 = vmatmul.mubr.bf16.gmra.mrb[0].mxu0 %v6036
        %v6154 = vpop.f32.mrb[0].mxu0
        %v6155 = vadd.f32 0.0, %v6154
        %v6156 = vpop.f32.mrb[0].mxu0
        %v6157 = vadd.f32 0.0, %v6156
        %v6158 = vpop.f32.mrb[0].mxu0
        %v6159 = vpop.f32.mrb[0].mxu0
        %6160 = vdwg.mxu0
        %v6161 = vadd.f32 %v5718, %v6073
        %v6162 = vadd.f32 %v5720, %v6075
        %v6163 = vadd.f32 %v5759, %v6114
        %v6164 = vadd.f32 %v5761, %v6116
        %v6165 = vadd.f32 %v5800, %v6155
        %v6166 = vadd.f32 %v5802, %v6157
        %6168 = vrot.lane.b32.xlu0 %v5071, 64
        %v6169 = vpop.permute.xlu0 %6168
        %6171 = vrot.lane.b32.xlu0 %v5075, 64
        %v6172 = vpop.permute.xlu0 %6171
        %v6174 = vsel %vm5082, %v6169, 0
        %v6177 = vsel %vm5082, %v6172, 0
        %6179 = vmatprep.subr.bf16.mxu0 0
        %6180 = vmatpush1.bf16.xpose.msra.mxu0 %v6177
        %6181 = vmatprep.subr.bf16.mxu0 0
        %6182 = vmatpush1.bf16.xpose.msra.mxu0 0
        %6183 = vmatprep.subr.bf16.mxu0 0
        %6184 = vmatpush1.bf16.xpose.msra.mxu0 0
        %6185 = vmatprep.subr.bf16.mxu0 0
        %6186 = vmatpush1.bf16.xpose.msra.mxu0 0
        %6187 = vmatprep.subr.bf16.mxu0 0
        %6188 = vmatpush1.bf16.xpose.msra.mxu0 0
        %6189 = vmatprep.subr.bf16.mxu0 0
        %6190 = vmatpush1.bf16.xpose.msra.mxu0 0
        %6191 = vmatprep.subr.bf16.mxu0 0
        %6192 = vmatpush1.bf16.xpose.msra.mxu0 0
        %6193 = vmatprep.subr.bf16.mxu0 0
        %6194 = vmatpush1.bf16.xpose.msra.mxu0 0
        %6195 = vmatprep.subr.bf16.mxu0 0
        %6196 = vmatpush1.bf16.xpose.msra.mxu0 0
        %6197 = vmatprep.subr.bf16.mxu0 0
        %6198 = vmatpush1.bf16.xpose.msra.mxu0 0
        %6199 = vmatprep.subr.bf16.mxu0 0
        %6200 = vmatpush1.bf16.xpose.msra.mxu0 0
        %6201 = vmatprep.subr.bf16.mxu0 0
        %6202 = vmatpush1.bf16.xpose.msra.mxu0 0
        %6203 = vmatprep.subr.bf16.mxu0 0
        %6204 = vmatpush1.bf16.xpose.msra.mxu0 0
        %6205 = vmatprep.subr.bf16.mxu0 0
        %6206 = vmatpush1.bf16.xpose.msra.mxu0 0
        %6207 = vmatprep.subr.bf16.mxu0 0
        %6208 = vmatpush1.bf16.xpose.msra.mxu0 0
        %6209 = vmatprep.subr.bf16.mxu0 0
        %6210 = vmatpush1.bf16.xpose.msra.mxu0 0
        %6211 = vmatprep.mubr.bf16.mxu0 0
        %6212 = vmatmul.mubr.bf16.gmra.mrb[0].mxu0 %v6174
        %v6213 = vpop.f32.mrb[0].mxu0
        %v6214 = vadd.f32 0.0, %v6213
        %v6215 = vpop.f32.mrb[0].mxu0
        %v6216 = vpop.f32.mrb[0].mxu0
        %v6217 = vpop.f32.mrb[0].mxu0
        %6218 = vdwg.mxu0
        %v6219 = vmul.f32 %v6214, 0.125
        %v6220 = vsel %vm5132, -1e+09, %v6219
        %v6221 = vsel %vm5134, %v6220, -inf
        %6222 = vmax.xlane.f32.xlu0 %v6221
        %v6223 = vpop.xlane.xlu0 %6222
        %v6224 = vsub.f32 %v6220, %v6223
        %v6225 = vmul.f32 %v6224, 1.442695
        %v6226 = vpow.pop %v6225
        %v6227 = vsel %vm5134, %v6226, 0.0
        %6228 = vadd.xlane.f32.xlu0 %v6227
        %v6229 = vpop.xlane.xlu0 %6228
        %v6230 = vrcp.pop %v6229
        %v6231 = vmul.f32 %v6226, %v6230
        %s6232 = scalar_lea.vmem %s604, 24 [#allocation17]
        %6233 = vst.msk [vmem:[%s6232] sm:$0xff] %vm5134, %v6231
        %v6234 = vpack.c.bf16 %v6231, %v6231
        %6236 = vrot.lane.b32.xlu0 %v5079, 64
        %v6237 = vpop.permute.xlu0 %6236
        %v6239 = vsel %vm5134, %v6234, 0
        %v6242 = vsel %vm5151, %v6237, 0
        %6244 = vmatprep.subr.bf16.mxu0 0
        %6245 = vmatpush1.bf16.msra.mxu0 %v6242
        %6246 = vmatprep.subr.bf16.mxu0 0
        %6247 = vmatpush1.bf16.msra.mxu0 0
        %6248 = vmatprep.subr.bf16.mxu0 0
        %6249 = vmatpush1.bf16.msra.mxu0 0
        %6250 = vmatprep.subr.bf16.mxu0 0
        %6251 = vmatpush1.bf16.msra.mxu0 0
        %6252 = vmatprep.subr.bf16.mxu0 0
        %6253 = vmatpush1.bf16.msra.mxu0 0
        %6254 = vmatprep.subr.bf16.mxu0 0
        %6255 = vmatpush1.bf16.msra.mxu0 0
        %6256 = vmatprep.subr.bf16.mxu0 0
        %6257 = vmatpush1.bf16.msra.mxu0 0
        %6258 = vmatprep.subr.bf16.mxu0 0
        %6259 = vmatpush1.bf16.msra.mxu0 0
        %6260 = vmatprep.subr.bf16.mxu0 0
        %6261 = vmatpush1.bf16.msra.mxu0 0
        %6262 = vmatprep.subr.bf16.mxu0 0
        %6263 = vmatpush1.bf16.msra.mxu0 0
        %6264 = vmatprep.subr.bf16.mxu0 0
        %6265 = vmatpush1.bf16.msra.mxu0 0
        %6266 = vmatprep.subr.bf16.mxu0 0
        %6267 = vmatpush1.bf16.msra.mxu0 0
        %6268 = vmatprep.subr.bf16.mxu0 0
        %6269 = vmatpush1.bf16.msra.mxu0 0
        %6270 = vmatprep.subr.bf16.mxu0 0
        %6271 = vmatpush1.bf16.msra.mxu0 0
        %6272 = vmatprep.subr.bf16.mxu0 0
        %6273 = vmatpush1.bf16.msra.mxu0 0
        %6274 = vmatprep.subr.bf16.mxu0 0
        %6275 = vmatpush1.bf16.msra.mxu0 0
        %6276 = vmatprep.mubr.bf16.mxu0 0
        %6277 = vmatmul.mubr.bf16.gmra.mrb[0].mxu0 %v6239
        %v6278 = vpop.f32.mrb[0].mxu0
        %v6279 = vadd.f32 0.0, %v6278
        %v6280 = vpop.f32.mrb[0].mxu0
        %v6281 = vpop.f32.mrb[0].mxu0
        %v6282 = vpop.f32.mrb[0].mxu0
        %6283 = vdwg.mxu0
        %v6284 = vpack.c.bf16 %v6279, %v6279
        %v6309 = vunpack.c.l.b16 %v1267
        %v6310 = vunpack.c.h.b16 %v1267
        %v6311 = vunpack.c.l.b16 %v1268
        %v6312 = vunpack.c.h.b16 %v1268
        %v6313 = vunpack.c.l.b16 %v1269
        %v6314 = vunpack.c.h.b16 %v1269
        %v6315 = vunpack.c.l.b16 %v1270
        %v6316 = vunpack.c.h.b16 %v1270
        %v6317 = vunpack.c.l.b16 %v1271
        %v6318 = vunpack.c.h.b16 %v1271
        %v6319 = vunpack.c.l.b16 %v1272
        %v6320 = vunpack.c.h.b16 %v1272
        %v6321 = vunpack.c.l.b16 %v1273
        %v6322 = vunpack.c.h.b16 %v1273
        %v6323 = vunpack.c.l.b16 %v1274
        %v6324 = vunpack.c.h.b16 %v1274
        %v6325 = vunpack.c.l.b16 %v1275
        %v6326 = vunpack.c.h.b16 %v1275
        %v6327 = vunpack.c.l.b16 %v1276
        %v6328 = vunpack.c.h.b16 %v1276
        %v6329 = vunpack.c.l.b16 %v1277
        %v6330 = vunpack.c.h.b16 %v1277
        %v6331 = vunpack.c.l.b16 %v1278
        %v6332 = vunpack.c.h.b16 %v1278
        %v6333 = vunpack.c.l.b16 %v1279
        %v6334 = vunpack.c.h.b16 %v1279
        %v6335 = vunpack.c.l.b16 %v1280
        %v6336 = vunpack.c.h.b16 %v1280
        %v6337 = vunpack.c.l.b16 %v1281
        %v6338 = vunpack.c.h.b16 %v1281
        %v6339 = vunpack.c.l.b16 %v1282
        %v6340 = vunpack.c.h.b16 %v1282
        %v6341 = vunpack.c.l.b16 %v1283
        %v6342 = vunpack.c.h.b16 %v1283
        %v6343 = vunpack.c.l.b16 %v1284
        %v6344 = vunpack.c.h.b16 %v1284
        %v6345 = vunpack.c.l.b16 %v1285
        %v6346 = vunpack.c.h.b16 %v1285
        %v6347 = vunpack.c.l.b16 %v1286
        %v6348 = vunpack.c.h.b16 %v1286
        %v6349 = vunpack.c.l.b16 %v1287
        %v6350 = vunpack.c.h.b16 %v1287
        %v6351 = vunpack.c.l.b16 %v1288
        %v6352 = vunpack.c.h.b16 %v1288
        %v6353 = vunpack.c.l.b16 %v1289
        %v6354 = vunpack.c.h.b16 %v1289
        %v6355 = vunpack.c.l.b16 %v1290
        %v6356 = vunpack.c.h.b16 %v1290
        %v6357 = vpack.c.b16 %v6315, %v6309
        %v6358 = vpack.c.b16 %v6316, %v6310
        %v6359 = vpack.c.b16 %v6317, %v6311
        %v6360 = vpack.c.b16 %v6318, %v6312
        %v6361 = vpack.c.b16 %v6319, %v6313
        %v6362 = vpack.c.b16 %v6320, %v6314
        %v6363 = vpack.c.b16 %v6327, %v6321
        %v6364 = vpack.c.b16 %v6328, %v6322
        %v6365 = vpack.c.b16 %v6329, %v6323
        %v6366 = vpack.c.b16 %v6330, %v6324
        %v6367 = vpack.c.b16 %v6331, %v6325
        %v6368 = vpack.c.b16 %v6332, %v6326
        %v6369 = vpack.c.b16 %v6339, %v6333
        %v6370 = vpack.c.b16 %v6340, %v6334
        %v6371 = vpack.c.b16 %v6341, %v6335
        %v6372 = vpack.c.b16 %v6342, %v6336
        %v6373 = vpack.c.b16 %v6343, %v6337
        %v6374 = vpack.c.b16 %v6344, %v6338
        %v6375 = vpack.c.b16 %v6351, %v6345
        %v6376 = vpack.c.b16 %v6352, %v6346
        %v6377 = vpack.c.b16 %v6353, %v6347
        %v6378 = vpack.c.b16 %v6354, %v6348
        %v6379 = vpack.c.b16 %v6355, %v6349
        %v6380 = vpack.c.b16 %v6356, %v6350
        %v6406 = vsel %vm5082, %v6284, 0
        %6408 = vmatprep.subr.bf16.mxu0 %v6358
        %6409 = vmatpush1.bf16.msra.mxu0 %v6357
        %6410 = vmatprep.subr.bf16.mxu0 %v6364
        %6411 = vmatpush1.bf16.msra.mxu0 %v6363
        %6412 = vmatprep.subr.bf16.mxu0 %v6370
        %6413 = vmatpush1.bf16.msra.mxu0 %v6369
        %6414 = vmatprep.subr.bf16.mxu0 %v6376
        %6415 = vmatpush1.bf16.msra.mxu0 %v6375
        %6416 = vmatprep.subr.bf16.mxu0 0
        %6417 = vmatpush1.bf16.msra.mxu0 0
        %6418 = vmatprep.subr.bf16.mxu0 0
        %6419 = vmatpush1.bf16.msra.mxu0 0
        %6420 = vmatprep.subr.bf16.mxu0 0
        %6421 = vmatpush1.bf16.msra.mxu0 0
        %6422 = vmatprep.subr.bf16.mxu0 0
        %6423 = vmatpush1.bf16.msra.mxu0 0
        %6424 = vmatprep.subr.bf16.mxu0 0
        %6425 = vmatpush1.bf16.msra.mxu0 0
        %6426 = vmatprep.subr.bf16.mxu0 0
        %6427 = vmatpush1.bf16.msra.mxu0 0
        %6428 = vmatprep.subr.bf16.mxu0 0
        %6429 = vmatpush1.bf16.msra.mxu0 0
        %6430 = vmatprep.subr.bf16.mxu0 0
        %6431 = vmatpush1.bf16.msra.mxu0 0
        %6432 = vmatprep.subr.bf16.mxu0 0
        %6433 = vmatpush1.bf16.msra.mxu0 0
        %6434 = vmatprep.subr.bf16.mxu0 0
        %6435 = vmatpush1.bf16.msra.mxu0 0
        %6436 = vmatprep.subr.bf16.mxu0 0
        %6437 = vmatpush1.bf16.msra.mxu0 0
        %6438 = vmatprep.subr.bf16.mxu0 0
        %6439 = vmatpush1.bf16.msra.mxu0 0
        %6440 = vmatprep.mubr.bf16.mxu0 0
        %6441 = vmatmul.mubr.bf16.gmra.mrb[0].mxu0 %v6406
        %v6442 = vpop.f32.mrb[0].mxu0
        %v6443 = vadd.f32 0.0, %v6442
        %v6444 = vpop.f32.mrb[0].mxu0
        %v6445 = vadd.f32 0.0, %v6444
        %v6446 = vpop.f32.mrb[0].mxu0
        %v6447 = vpop.f32.mrb[0].mxu0
        %6448 = vdwg.mxu0
        %6449 = vmatprep.subr.bf16.mxu0 %v6360
        %6450 = vmatpush1.bf16.msra.mxu0 %v6359
        %6451 = vmatprep.subr.bf16.mxu0 %v6366
        %6452 = vmatpush1.bf16.msra.mxu0 %v6365
        %6453 = vmatprep.subr.bf16.mxu0 %v6372
        %6454 = vmatpush1.bf16.msra.mxu0 %v6371
        %6455 = vmatprep.subr.bf16.mxu0 %v6378
        %6456 = vmatpush1.bf16.msra.mxu0 %v6377
        %6457 = vmatprep.subr.bf16.mxu0 0
        %6458 = vmatpush1.bf16.msra.mxu0 0
        %6459 = vmatprep.subr.bf16.mxu0 0
        %6460 = vmatpush1.bf16.msra.mxu0 0
        %6461 = vmatprep.subr.bf16.mxu0 0
        %6462 = vmatpush1.bf16.msra.mxu0 0
        %6463 = vmatprep.subr.bf16.mxu0 0
        %6464 = vmatpush1.bf16.msra.mxu0 0
        %6465 = vmatprep.subr.bf16.mxu0 0
        %6466 = vmatpush1.bf16.msra.mxu0 0
        %6467 = vmatprep.subr.bf16.mxu0 0
        %6468 = vmatpush1.bf16.msra.mxu0 0
        %6469 = vmatprep.subr.bf16.mxu0 0
        %6470 = vmatpush1.bf16.msra.mxu0 0
        %6471 = vmatprep.subr.bf16.mxu0 0
        %6472 = vmatpush1.bf16.msra.mxu0 0
        %6473 = vmatprep.subr.bf16.mxu0 0
        %6474 = vmatpush1.bf16.msra.mxu0 0
        %6475 = vmatprep.subr.bf16.mxu0 0
        %6476 = vmatpush1.bf16.msra.mxu0 0
        %6477 = vmatprep.subr.bf16.mxu0 0
        %6478 = vmatpush1.bf16.msra.mxu0 0
        %6479 = vmatprep.subr.bf16.mxu0 0
        %6480 = vmatpush1.bf16.msra.mxu0 0
        %6481 = vmatprep.mubr.bf16.mxu0 0
        %6482 = vmatmul.mubr.bf16.gmra.mrb[0].mxu0 %v6406
        %v6483 = vpop.f32.mrb[0].mxu0
        %v6484 = vadd.f32 0.0, %v6483
        %v6485 = vpop.f32.mrb[0].mxu0
        %v6486 = vadd.f32 0.0, %v6485
        %v6487 = vpop.f32.mrb[0].mxu0
        %v6488 = vpop.f32.mrb[0].mxu0
        %6489 = vdwg.mxu0
        %6490 = vmatprep.subr.bf16.mxu0 %v6362
        %6491 = vmatpush1.bf16.msra.mxu0 %v6361
        %6492 = vmatprep.subr.bf16.mxu0 %v6368
        %6493 = vmatpush1.bf16.msra.mxu0 %v6367
        %6494 = vmatprep.subr.bf16.mxu0 %v6374
        %6495 = vmatpush1.bf16.msra.mxu0 %v6373
        %6496 = vmatprep.subr.bf16.mxu0 %v6380
        %6497 = vmatpush1.bf16.msra.mxu0 %v6379
        %6498 = vmatprep.subr.bf16.mxu0 0
        %6499 = vmatpush1.bf16.msra.mxu0 0
        %6500 = vmatprep.subr.bf16.mxu0 0
        %6501 = vmatpush1.bf16.msra.mxu0 0
        %6502 = vmatprep.subr.bf16.mxu0 0
        %6503 = vmatpush1.bf16.msra.mxu0 0
        %6504 = vmatprep.subr.bf16.mxu0 0
        %6505 = vmatpush1.bf16.msra.mxu0 0
        %6506 = vmatprep.subr.bf16.mxu0 0
        %6507 = vmatpush1.bf16.msra.mxu0 0
        %6508 = vmatprep.subr.bf16.mxu0 0
        %6509 = vmatpush1.bf16.msra.mxu0 0
        %6510 = vmatprep.subr.bf16.mxu0 0
        %6511 = vmatpush1.bf16.msra.mxu0 0
        %6512 = vmatprep.subr.bf16.mxu0 0
        %6513 = vmatpush1.bf16.msra.mxu0 0
        %6514 = vmatprep.subr.bf16.mxu0 0
        %6515 = vmatpush1.bf16.msra.mxu0 0
        %6516 = vmatprep.subr.bf16.mxu0 0
        %6517 = vmatpush1.bf16.msra.mxu0 0
        %6518 = vmatprep.subr.bf16.mxu0 0
        %6519 = vmatpush1.bf16.msra.mxu0 0
        %6520 = vmatprep.subr.bf16.mxu0 0
        %6521 = vmatpush1.bf16.msra.mxu0 0
        %6522 = vmatprep.mubr.bf16.mxu0 0
        %6523 = vmatmul.mubr.bf16.gmra.mrb[0].mxu0 %v6406
        %v6524 = vpop.f32.mrb[0].mxu0
        %v6525 = vadd.f32 0.0, %v6524
        %v6526 = vpop.f32.mrb[0].mxu0
        %v6527 = vadd.f32 0.0, %v6526
        %v6528 = vpop.f32.mrb[0].mxu0
        %v6529 = vpop.f32.mrb[0].mxu0
        %6530 = vdwg.mxu0
        %v6531 = vadd.f32 %v6161, %v6443
        %v6532 = vadd.f32 %v6162, %v6445
        %v6533 = vadd.f32 %v6163, %v6484
        %v6534 = vadd.f32 %v6164, %v6486
        %v6535 = vadd.f32 %v6165, %v6525
        %v6536 = vadd.f32 %v6166, %v6527
        %v6538 = vsel %vm5082, %v5072, 0
        %v6541 = vsel %vm5082, %v5076, 0
        %6543 = vmatprep.subr.bf16.mxu0 0
        %6544 = vmatpush1.bf16.xpose.msra.mxu0 %v6541
        %6545 = vmatprep.subr.bf16.mxu0 0
        %6546 = vmatpush1.bf16.xpose.msra.mxu0 0
        %6547 = vmatprep.subr.bf16.mxu0 0
        %6548 = vmatpush1.bf16.xpose.msra.mxu0 0
        %6549 = vmatprep.subr.bf16.mxu0 0
        %6550 = vmatpush1.bf16.xpose.msra.mxu0 0
        %6551 = vmatprep.subr.bf16.mxu0 0
        %6552 = vmatpush1.bf16.xpose.msra.mxu0 0
        %6553 = vmatprep.subr.bf16.mxu0 0
        %6554 = vmatpush1.bf16.xpose.msra.mxu0 0
        %6555 = vmatprep.subr.bf16.mxu0 0
        %6556 = vmatpush1.bf16.xpose.msra.mxu0 0
        %6557 = vmatprep.subr.bf16.mxu0 0
        %6558 = vmatpush1.bf16.xpose.msra.mxu0 0
        %6559 = vmatprep.subr.bf16.mxu0 0
        %6560 = vmatpush1.bf16.xpose.msra.mxu0 0
        %6561 = vmatprep.subr.bf16.mxu0 0
        %6562 = vmatpush1.bf16.xpose.msra.mxu0 0
        %6563 = vmatprep.subr.bf16.mxu0 0
        %6564 = vmatpush1.bf16.xpose.msra.mxu0 0
        %6565 = vmatprep.subr.bf16.mxu0 0
        %6566 = vmatpush1.bf16.xpose.msra.mxu0 0
        %6567 = vmatprep.subr.bf16.mxu0 0
        %6568 = vmatpush1.bf16.xpose.msra.mxu0 0
        %6569 = vmatprep.subr.bf16.mxu0 0
        %6570 = vmatpush1.bf16.xpose.msra.mxu0 0
        %6571 = vmatprep.subr.bf16.mxu0 0
        %6572 = vmatpush1.bf16.xpose.msra.mxu0 0
        %6573 = vmatprep.subr.bf16.mxu0 0
        %6574 = vmatpush1.bf16.xpose.msra.mxu0 0
        %6575 = vmatprep.mubr.bf16.mxu0 0
        %6576 = vmatmul.mubr.bf16.gmra.mrb[0].mxu0 %v6538
        %v6577 = vpop.f32.mrb[0].mxu0
        %v6578 = vadd.f32 0.0, %v6577
        %v6579 = vpop.f32.mrb[0].mxu0
        %v6580 = vpop.f32.mrb[0].mxu0
        %v6581 = vpop.f32.mrb[0].mxu0
        %6582 = vdwg.mxu0
        %v6583 = vmul.f32 %v6578, 0.125
        %v6584 = vsel %vm5132, -1e+09, %v6583
        %v6585 = vsel %vm5134, %v6584, -inf
        %6586 = vmax.xlane.f32.xlu0 %v6585
        %v6587 = vpop.xlane.xlu0 %6586
        %v6588 = vsub.f32 %v6584, %v6587
        %v6589 = vmul.f32 %v6588, 1.442695
        %v6590 = vpow.pop %v6589
        %v6591 = vsel %vm5134, %v6590, 0.0
        %6592 = vadd.xlane.f32.xlu0 %v6591
        %v6593 = vpop.xlane.xlu0 %6592
        %v6594 = vrcp.pop %v6593
        %v6595 = vmul.f32 %v6590, %v6594
        %s6596 = scalar_lea.vmem %s604, 32 [#allocation17]
        %6597 = vst.msk [vmem:[%s6596] sm:$0xff] %vm5134, %v6595
        %v6598 = vpack.c.bf16 %v6595, %v6595
        %v6600 = vsel %vm5134, %v6598, 0
        %v6603 = vsel %vm5151, %v5080, 0
        %6605 = vmatprep.subr.bf16.mxu0 0
        %6606 = vmatpush1.bf16.msra.mxu0 %v6603
        %6607 = vmatprep.subr.bf16.mxu0 0
        %6608 = vmatpush1.bf16.msra.mxu0 0
        %6609 = vmatprep.subr.bf16.mxu0 0
        %6610 = vmatpush1.bf16.msra.mxu0 0
        %6611 = vmatprep.subr.bf16.mxu0 0
        %6612 = vmatpush1.bf16.msra.mxu0 0
        %6613 = vmatprep.subr.bf16.mxu0 0
        %6614 = vmatpush1.bf16.msra.mxu0 0
        %6615 = vmatprep.subr.bf16.mxu0 0
        %6616 = vmatpush1.bf16.msra.mxu0 0
        %6617 = vmatprep.subr.bf16.mxu0 0
        %6618 = vmatpush1.bf16.msra.mxu0 0
        %6619 = vmatprep.subr.bf16.mxu0 0
        %6620 = vmatpush1.bf16.msra.mxu0 0
        %6621 = vmatprep.subr.bf16.mxu0 0
        %6622 = vmatpush1.bf16.msra.mxu0 0
        %6623 = vmatprep.subr.bf16.mxu0 0
        %6624 = vmatpush1.bf16.msra.mxu0 0
        %6625 = vmatprep.subr.bf16.mxu0 0
        %6626 = vmatpush1.bf16.msra.mxu0 0
        %6627 = vmatprep.subr.bf16.mxu0 0
        %6628 = vmatpush1.bf16.msra.mxu0 0
        %6629 = vmatprep.subr.bf16.mxu0 0
        %6630 = vmatpush1.bf16.msra.mxu0 0
        %6631 = vmatprep.subr.bf16.mxu0 0
        %6632 = vmatpush1.bf16.msra.mxu0 0
        %6633 = vmatprep.subr.bf16.mxu0 0
        %6634 = vmatpush1.bf16.msra.mxu0 0
        %6635 = vmatprep.subr.bf16.mxu0 0
        %6636 = vmatpush1.bf16.msra.mxu0 0
        %6637 = vmatprep.mubr.bf16.mxu0 0
        %6638 = vmatmul.mubr.bf16.gmra.mrb[0].mxu0 %v6600
        %v6639 = vpop.f32.mrb[0].mxu0
        %v6640 = vadd.f32 0.0, %v6639
        %v6641 = vpop.f32.mrb[0].mxu0
        %v6642 = vpop.f32.mrb[0].mxu0
        %v6643 = vpop.f32.mrb[0].mxu0
        %6644 = vdwg.mxu0
        %v6645 = vpack.c.bf16 %v6640, %v6640
        %v6670 = vunpack.c.l.b16 %v1291
        %v6671 = vunpack.c.h.b16 %v1291
        %v6672 = vunpack.c.l.b16 %v1292
        %v6673 = vunpack.c.h.b16 %v1292
        %v6674 = vunpack.c.l.b16 %v1293
        %v6675 = vunpack.c.h.b16 %v1293
        %v6676 = vunpack.c.l.b16 %v1294
        %v6677 = vunpack.c.h.b16 %v1294
        %v6678 = vunpack.c.l.b16 %v1295
        %v6679 = vunpack.c.h.b16 %v1295
        %v6680 = vunpack.c.l.b16 %v1296
        %v6681 = vunpack.c.h.b16 %v1296
        %v6682 = vunpack.c.l.b16 %v1297
        %v6683 = vunpack.c.h.b16 %v1297
        %v6684 = vunpack.c.l.b16 %v1298
        %v6685 = vunpack.c.h.b16 %v1298
        %v6686 = vunpack.c.l.b16 %v1299
        %v6687 = vunpack.c.h.b16 %v1299
        %v6688 = vunpack.c.l.b16 %v1300
        %v6689 = vunpack.c.h.b16 %v1300
        %v6690 = vunpack.c.l.b16 %v1301
        %v6691 = vunpack.c.h.b16 %v1301
        %v6692 = vunpack.c.l.b16 %v1302
        %v6693 = vunpack.c.h.b16 %v1302
        %v6694 = vunpack.c.l.b16 %v1303
        %v6695 = vunpack.c.h.b16 %v1303
        %v6696 = vunpack.c.l.b16 %v1304
        %v6697 = vunpack.c.h.b16 %v1304
        %v6698 = vunpack.c.l.b16 %v1305
        %v6699 = vunpack.c.h.b16 %v1305
        %v6700 = vunpack.c.l.b16 %v1306
        %v6701 = vunpack.c.h.b16 %v1306
        %v6702 = vunpack.c.l.b16 %v1307
        %v6703 = vunpack.c.h.b16 %v1307
        %v6704 = vunpack.c.l.b16 %v1308
        %v6705 = vunpack.c.h.b16 %v1308
        %v6706 = vunpack.c.l.b16 %v1309
        %v6707 = vunpack.c.h.b16 %v1309
        %v6708 = vunpack.c.l.b16 %v1310
        %v6709 = vunpack.c.h.b16 %v1310
        %v6710 = vunpack.c.l.b16 %v1311
        %v6711 = vunpack.c.h.b16 %v1311
        %v6712 = vunpack.c.l.b16 %v1312
        %v6713 = vunpack.c.h.b16 %v1312
        %v6714 = vunpack.c.l.b16 %v1313
        %v6715 = vunpack.c.h.b16 %v1313
        %v6716 = vunpack.c.l.b16 %v1314
        %v6717 = vunpack.c.h.b16 %v1314
        %v6718 = vpack.c.b16 %v6676, %v6670
        %v6719 = vpack.c.b16 %v6677, %v6671
        %v6720 = vpack.c.b16 %v6678, %v6672
        %v6721 = vpack.c.b16 %v6679, %v6673
        %v6722 = vpack.c.b16 %v6680, %v6674
        %v6723 = vpack.c.b16 %v6681, %v6675
        %v6724 = vpack.c.b16 %v6688, %v6682
        %v6725 = vpack.c.b16 %v6689, %v6683
        %v6726 = vpack.c.b16 %v6690, %v6684
        %v6727 = vpack.c.b16 %v6691, %v6685
        %v6728 = vpack.c.b16 %v6692, %v6686
        %v6729 = vpack.c.b16 %v6693, %v6687
        %v6730 = vpack.c.b16 %v6700, %v6694
        %v6731 = vpack.c.b16 %v6701, %v6695
        %v6732 = vpack.c.b16 %v6702, %v6696
        %v6733 = vpack.c.b16 %v6703, %v6697
        %v6734 = vpack.c.b16 %v6704, %v6698
        %v6735 = vpack.c.b16 %v6705, %v6699
        %v6736 = vpack.c.b16 %v6712, %v6706
        %v6737 = vpack.c.b16 %v6713, %v6707
        %v6738 = vpack.c.b16 %v6714, %v6708
        %v6739 = vpack.c.b16 %v6715, %v6709
        %v6740 = vpack.c.b16 %v6716, %v6710
        %v6741 = vpack.c.b16 %v6717, %v6711
        %v6767 = vsel %vm5082, %v6645, 0
        %6769 = vmatprep.subr.bf16.mxu0 %v6719
        %6770 = vmatpush1.bf16.msra.mxu0 %v6718
        %6771 = vmatprep.subr.bf16.mxu0 %v6725
        %6772 = vmatpush1.bf16.msra.mxu0 %v6724
        %6773 = vmatprep.subr.bf16.mxu0 %v6731
        %6774 = vmatpush1.bf16.msra.mxu0 %v6730
        %6775 = vmatprep.subr.bf16.mxu0 %v6737
        %6776 = vmatpush1.bf16.msra.mxu0 %v6736
        %6777 = vmatprep.subr.bf16.mxu0 0
        %6778 = vmatpush1.bf16.msra.mxu0 0
        %6779 = vmatprep.subr.bf16.mxu0 0
        %6780 = vmatpush1.bf16.msra.mxu0 0
        %6781 = vmatprep.subr.bf16.mxu0 0
        %6782 = vmatpush1.bf16.msra.mxu0 0
        %6783 = vmatprep.subr.bf16.mxu0 0
        %6784 = vmatpush1.bf16.msra.mxu0 0
        %6785 = vmatprep.subr.bf16.mxu0 0
        %6786 = vmatpush1.bf16.msra.mxu0 0
        %6787 = vmatprep.subr.bf16.mxu0 0
        %6788 = vmatpush1.bf16.msra.mxu0 0
        %6789 = vmatprep.subr.bf16.mxu0 0
        %6790 = vmatpush1.bf16.msra.mxu0 0
        %6791 = vmatprep.subr.bf16.mxu0 0
        %6792 = vmatpush1.bf16.msra.mxu0 0
        %6793 = vmatprep.subr.bf16.mxu0 0
        %6794 = vmatpush1.bf16.msra.mxu0 0
        %6795 = vmatprep.subr.bf16.mxu0 0
        %6796 = vmatpush1.bf16.msra.mxu0 0
        %6797 = vmatprep.subr.bf16.mxu0 0
        %6798 = vmatpush1.bf16.msra.mxu0 0
        %6799 = vmatprep.subr.bf16.mxu0 0
        %6800 = vmatpush1.bf16.msra.mxu0 0
        %6801 = vmatprep.mubr.bf16.mxu0 0
        %6802 = vmatmul.mubr.bf16.gmra.mrb[0].mxu0 %v6767
        %v6803 = vpop.f32.mrb[0].mxu0
        %v6804 = vadd.f32 0.0, %v6803
        %v6805 = vpop.f32.mrb[0].mxu0
        %v6806 = vadd.f32 0.0, %v6805
        %v6807 = vpop.f32.mrb[0].mxu0
        %v6808 = vpop.f32.mrb[0].mxu0
        %6809 = vdwg.mxu0
        %6810 = vmatprep.subr.bf16.mxu0 %v6721
        %6811 = vmatpush1.bf16.msra.mxu0 %v6720
        %6812 = vmatprep.subr.bf16.mxu0 %v6727
        %6813 = vmatpush1.bf16.msra.mxu0 %v6726
        %6814 = vmatprep.subr.bf16.mxu0 %v6733
        %6815 = vmatpush1.bf16.msra.mxu0 %v6732
        %6816 = vmatprep.subr.bf16.mxu0 %v6739
        %6817 = vmatpush1.bf16.msra.mxu0 %v6738
        %6818 = vmatprep.subr.bf16.mxu0 0
        %6819 = vmatpush1.bf16.msra.mxu0 0
        %6820 = vmatprep.subr.bf16.mxu0 0
        %6821 = vmatpush1.bf16.msra.mxu0 0
        %6822 = vmatprep.subr.bf16.mxu0 0
        %6823 = vmatpush1.bf16.msra.mxu0 0
        %6824 = vmatprep.subr.bf16.mxu0 0
        %6825 = vmatpush1.bf16.msra.mxu0 0
        %6826 = vmatprep.subr.bf16.mxu0 0
        %6827 = vmatpush1.bf16.msra.mxu0 0
        %6828 = vmatprep.subr.bf16.mxu0 0
        %6829 = vmatpush1.bf16.msra.mxu0 0
        %6830 = vmatprep.subr.bf16.mxu0 0
        %6831 = vmatpush1.bf16.msra.mxu0 0
        %6832 = vmatprep.subr.bf16.mxu0 0
        %6833 = vmatpush1.bf16.msra.mxu0 0
        %6834 = vmatprep.subr.bf16.mxu0 0
        %6835 = vmatpush1.bf16.msra.mxu0 0
        %6836 = vmatprep.subr.bf16.mxu0 0
        %6837 = vmatpush1.bf16.msra.mxu0 0
        %6838 = vmatprep.subr.bf16.mxu0 0
        %6839 = vmatpush1.bf16.msra.mxu0 0
        %6840 = vmatprep.subr.bf16.mxu0 0
        %6841 = vmatpush1.bf16.msra.mxu0 0
        %6842 = vmatprep.mubr.bf16.mxu0 0
        %6843 = vmatmul.mubr.bf16.gmra.mrb[0].mxu0 %v6767
        %v6844 = vpop.f32.mrb[0].mxu0
        %v6845 = vadd.f32 0.0, %v6844
        %v6846 = vpop.f32.mrb[0].mxu0
        %v6847 = vadd.f32 0.0, %v6846
        %v6848 = vpop.f32.mrb[0].mxu0
        %v6849 = vpop.f32.mrb[0].mxu0
        %6850 = vdwg.mxu0
        %6851 = vmatprep.subr.bf16.mxu0 %v6723
        %6852 = vmatpush1.bf16.msra.mxu0 %v6722
        %6853 = vmatprep.subr.bf16.mxu0 %v6729
        %6854 = vmatpush1.bf16.msra.mxu0 %v6728
        %6855 = vmatprep.subr.bf16.mxu0 %v6735
        %6856 = vmatpush1.bf16.msra.mxu0 %v6734
        %6857 = vmatprep.subr.bf16.mxu0 %v6741
        %6858 = vmatpush1.bf16.msra.mxu0 %v6740
        %6859 = vmatprep.subr.bf16.mxu0 0
        %6860 = vmatpush1.bf16.msra.mxu0 0
        %6861 = vmatprep.subr.bf16.mxu0 0
        %6862 = vmatpush1.bf16.msra.mxu0 0
        %6863 = vmatprep.subr.bf16.mxu0 0
        %6864 = vmatpush1.bf16.msra.mxu0 0
        %6865 = vmatprep.subr.bf16.mxu0 0
        %6866 = vmatpush1.bf16.msra.mxu0 0
        %6867 = vmatprep.subr.bf16.mxu0 0
        %6868 = vmatpush1.bf16.msra.mxu0 0
        %6869 = vmatprep.subr.bf16.mxu0 0
        %6870 = vmatpush1.bf16.msra.mxu0 0
        %6871 = vmatprep.subr.bf16.mxu0 0
        %6872 = vmatpush1.bf16.msra.mxu0 0
        %6873 = vmatprep.subr.bf16.mxu0 0
        %6874 = vmatpush1.bf16.msra.mxu0 0
        %6875 = vmatprep.subr.bf16.mxu0 0
        %6876 = vmatpush1.bf16.msra.mxu0 0
        %6877 = vmatprep.subr.bf16.mxu0 0
        %6878 = vmatpush1.bf16.msra.mxu0 0
        %6879 = vmatprep.subr.bf16.mxu0 0
        %6880 = vmatpush1.bf16.msra.mxu0 0
        %6881 = vmatprep.subr.bf16.mxu0 0
        %6882 = vmatpush1.bf16.msra.mxu0 0
        %6883 = vmatprep.mubr.bf16.mxu0 0
        %6884 = vmatmul.mubr.bf16.gmra.mrb[0].mxu0 %v6767
        %v6885 = vpop.f32.mrb[0].mxu0
        %v6886 = vadd.f32 0.0, %v6885
        %v6887 = vpop.f32.mrb[0].mxu0
        %v6888 = vadd.f32 0.0, %v6887
        %v6889 = vpop.f32.mrb[0].mxu0
        %v6890 = vpop.f32.mrb[0].mxu0
        %6891 = vdwg.mxu0
        %v6892 = vadd.f32 %v6531, %v6804
        %v6893 = vadd.f32 %v6532, %v6806
        %v6894 = vadd.f32 %v6533, %v6845
        %v6895 = vadd.f32 %v6534, %v6847
        %v6896 = vadd.f32 %v6535, %v6886
        %v6897 = vadd.f32 %v6536, %v6888
        %6899 = vrot.lane.b32.xlu0 %v5072, 64
        %v6900 = vpop.permute.xlu0 %6899
        %6902 = vrot.lane.b32.xlu0 %v5076, 64
        %v6903 = vpop.permute.xlu0 %6902
        %v6905 = vsel %vm5082, %v6900, 0
        %v6908 = vsel %vm5082, %v6903, 0
        %6910 = vmatprep.subr.bf16.mxu0 0
        %6911 = vmatpush1.bf16.xpose.msra.mxu0 %v6908
        %6912 = vmatprep.subr.bf16.mxu0 0
        %6913 = vmatpush1.bf16.xpose.msra.mxu0 0
        %6914 = vmatprep.subr.bf16.mxu0 0
        %6915 = vmatpush1.bf16.xpose.msra.mxu0 0
        %6916 = vmatprep.subr.bf16.mxu0 0
        %6917 = vmatpush1.bf16.xpose.msra.mxu0 0
        %6918 = vmatprep.subr.bf16.mxu0 0
        %6919 = vmatpush1.bf16.xpose.msra.mxu0 0
        %6920 = vmatprep.subr.bf16.mxu0 0
        %6921 = vmatpush1.bf16.xpose.msra.mxu0 0
        %6922 = vmatprep.subr.bf16.mxu0 0
        %6923 = vmatpush1.bf16.xpose.msra.mxu0 0
        %6924 = vmatprep.subr.bf16.mxu0 0
        %6925 = vmatpush1.bf16.xpose.msra.mxu0 0
        %6926 = vmatprep.subr.bf16.mxu0 0
        %6927 = vmatpush1.bf16.xpose.msra.mxu0 0
        %6928 = vmatprep.subr.bf16.mxu0 0
        %6929 = vmatpush1.bf16.xpose.msra.mxu0 0
        %6930 = vmatprep.subr.bf16.mxu0 0
        %6931 = vmatpush1.bf16.xpose.msra.mxu0 0
        %6932 = vmatprep.subr.bf16.mxu0 0
        %6933 = vmatpush1.bf16.xpose.msra.mxu0 0
        %6934 = vmatprep.subr.bf16.mxu0 0
        %6935 = vmatpush1.bf16.xpose.msra.mxu0 0
        %6936 = vmatprep.subr.bf16.mxu0 0
        %6937 = vmatpush1.bf16.xpose.msra.mxu0 0
        %6938 = vmatprep.subr.bf16.mxu0 0
        %6939 = vmatpush1.bf16.xpose.msra.mxu0 0
        %6940 = vmatprep.subr.bf16.mxu0 0
        %6941 = vmatpush1.bf16.xpose.msra.mxu0 0
        %6942 = vmatprep.mubr.bf16.mxu0 0
        %6943 = vmatmul.mubr.bf16.gmra.mrb[0].mxu0 %v6905
        %v6944 = vpop.f32.mrb[0].mxu0
        %v6945 = vadd.f32 0.0, %v6944
        %v6946 = vpop.f32.mrb[0].mxu0
        %v6947 = vpop.f32.mrb[0].mxu0
        %v6948 = vpop.f32.mrb[0].mxu0
        %6949 = vdwg.mxu0
        %v6950 = vmul.f32 %v6945, 0.125
        %v6951 = vsel %vm5132, -1e+09, %v6950
        %v6952 = vsel %vm5134, %v6951, -inf
        %6953 = vmax.xlane.f32.xlu0 %v6952
        %v6954 = vpop.xlane.xlu0 %6953
        %v6955 = vsub.f32 %v6951, %v6954
        %v6956 = vmul.f32 %v6955, 1.442695
        %v6957 = vpow.pop %v6956
        %v6958 = vsel %vm5134, %v6957, 0.0
        %6959 = vadd.xlane.f32.xlu0 %v6958
        %v6960 = vpop.xlane.xlu0 %6959
        %v6961 = vrcp.pop %v6960
        %v6962 = vmul.f32 %v6957, %v6961
        %s6963 = scalar_lea.vmem %s604, 40 [#allocation17]
        %6964 = vst.msk [vmem:[%s6963] sm:$0xff] %vm5134, %v6962
        %v6965 = vpack.c.bf16 %v6962, %v6962
        %6967 = vrot.lane.b32.xlu0 %v5080, 64
        %v6968 = vpop.permute.xlu0 %6967
        %v6970 = vsel %vm5134, %v6965, 0
        %v6973 = vsel %vm5151, %v6968, 0
        %6975 = vmatprep.subr.bf16.mxu0 0
        %6976 = vmatpush1.bf16.msra.mxu0 %v6973
        %6977 = vmatprep.subr.bf16.mxu0 0
        %6978 = vmatpush1.bf16.msra.mxu0 0
        %6979 = vmatprep.subr.bf16.mxu0 0
        %6980 = vmatpush1.bf16.msra.mxu0 0
        %6981 = vmatprep.subr.bf16.mxu0 0
        %6982 = vmatpush1.bf16.msra.mxu0 0
        %6983 = vmatprep.subr.bf16.mxu0 0
        %6984 = vmatpush1.bf16.msra.mxu0 0
        %6985 = vmatprep.subr.bf16.mxu0 0
        %6986 = vmatpush1.bf16.msra.mxu0 0
        %6987 = vmatprep.subr.bf16.mxu0 0
        %6988 = vmatpush1.bf16.msra.mxu0 0
        %6989 = vmatprep.subr.bf16.mxu0 0
        %6990 = vmatpush1.bf16.msra.mxu0 0
        %6991 = vmatprep.subr.bf16.mxu0 0
        %6992 = vmatpush1.bf16.msra.mxu0 0
        %6993 = vmatprep.subr.bf16.mxu0 0
        %6994 = vmatpush1.bf16.msra.mxu0 0
        %6995 = vmatprep.subr.bf16.mxu0 0
        %6996 = vmatpush1.bf16.msra.mxu0 0
        %6997 = vmatprep.subr.bf16.mxu0 0
        %6998 = vmatpush1.bf16.msra.mxu0 0
        %6999 = vmatprep.subr.bf16.mxu0 0
        %7000 = vmatpush1.bf16.msra.mxu0 0
        %7001 = vmatprep.subr.bf16.mxu0 0
        %7002 = vmatpush1.bf16.msra.mxu0 0
        %7003 = vmatprep.subr.bf16.mxu0 0
        %7004 = vmatpush1.bf16.msra.mxu0 0
        %7005 = vmatprep.subr.bf16.mxu0 0
        %7006 = vmatpush1.bf16.msra.mxu0 0
        %7007 = vmatprep.mubr.bf16.mxu0 0
        %7008 = vmatmul.mubr.bf16.gmra.mrb[0].mxu0 %v6970
        %v7009 = vpop.f32.mrb[0].mxu0
        %v7010 = vadd.f32 0.0, %v7009
        %v7011 = vpop.f32.mrb[0].mxu0
        %v7012 = vpop.f32.mrb[0].mxu0
        %v7013 = vpop.f32.mrb[0].mxu0
        %7014 = vdwg.mxu0
        %v7015 = vpack.c.bf16 %v7010, %v7010
        %v7040 = vunpack.c.l.b16 %v1315
        %v7041 = vunpack.c.h.b16 %v1315
        %v7042 = vunpack.c.l.b16 %v1316
        %v7043 = vunpack.c.h.b16 %v1316
        %v7044 = vunpack.c.l.b16 %v1317
        %v7045 = vunpack.c.h.b16 %v1317
        %v7046 = vunpack.c.l.b16 %v1318
        %v7047 = vunpack.c.h.b16 %v1318
        %v7048 = vunpack.c.l.b16 %v1319
        %v7049 = vunpack.c.h.b16 %v1319
        %v7050 = vunpack.c.l.b16 %v1320
        %v7051 = vunpack.c.h.b16 %v1320
        %v7052 = vunpack.c.l.b16 %v1321
        %v7053 = vunpack.c.h.b16 %v1321
        %v7054 = vunpack.c.l.b16 %v1322
        %v7055 = vunpack.c.h.b16 %v1322
        %v7056 = vunpack.c.l.b16 %v1323
        %v7057 = vunpack.c.h.b16 %v1323
        %v7058 = vunpack.c.l.b16 %v1324
        %v7059 = vunpack.c.h.b16 %v1324
        %v7060 = vunpack.c.l.b16 %v1325
        %v7061 = vunpack.c.h.b16 %v1325
        %v7062 = vunpack.c.l.b16 %v1326
        %v7063 = vunpack.c.h.b16 %v1326
        %v7064 = vunpack.c.l.b16 %v1327
        %v7065 = vunpack.c.h.b16 %v1327
        %v7066 = vunpack.c.l.b16 %v1328
        %v7067 = vunpack.c.h.b16 %v1328
        %v7068 = vunpack.c.l.b16 %v1329
        %v7069 = vunpack.c.h.b16 %v1329
        %v7070 = vunpack.c.l.b16 %v1330
        %v7071 = vunpack.c.h.b16 %v1330
        %v7072 = vunpack.c.l.b16 %v1331
        %v7073 = vunpack.c.h.b16 %v1331
        %v7074 = vunpack.c.l.b16 %v1332
        %v7075 = vunpack.c.h.b16 %v1332
        %v7076 = vunpack.c.l.b16 %v1333
        %v7077 = vunpack.c.h.b16 %v1333
        %v7078 = vunpack.c.l.b16 %v1334
        %v7079 = vunpack.c.h.b16 %v1334
        %v7080 = vunpack.c.l.b16 %v1335
        %v7081 = vunpack.c.h.b16 %v1335
        %v7082 = vunpack.c.l.b16 %v1336
        %v7083 = vunpack.c.h.b16 %v1336
        %v7084 = vunpack.c.l.b16 %v1337
        %v7085 = vunpack.c.h.b16 %v1337
        %v7086 = vunpack.c.l.b16 %v1338
        %v7087 = vunpack.c.h.b16 %v1338
        %v7088 = vpack.c.b16 %v7046, %v7040
        %v7089 = vpack.c.b16 %v7047, %v7041
        %v7090 = vpack.c.b16 %v7048, %v7042
        %v7091 = vpack.c.b16 %v7049, %v7043
        %v7092 = vpack.c.b16 %v7050, %v7044
        %v7093 = vpack.c.b16 %v7051, %v7045
        %v7094 = vpack.c.b16 %v7058, %v7052
        %v7095 = vpack.c.b16 %v7059, %v7053
        %v7096 = vpack.c.b16 %v7060, %v7054
        %v7097 = vpack.c.b16 %v7061, %v7055
        %v7098 = vpack.c.b16 %v7062, %v7056
        %v7099 = vpack.c.b16 %v7063, %v7057
        %v7100 = vpack.c.b16 %v7070, %v7064
        %v7101 = vpack.c.b16 %v7071, %v7065
        %v7102 = vpack.c.b16 %v7072, %v7066
        %v7103 = vpack.c.b16 %v7073, %v7067
        %v7104 = vpack.c.b16 %v7074, %v7068
        %v7105 = vpack.c.b16 %v7075, %v7069
        %v7106 = vpack.c.b16 %v7082, %v7076
        %v7107 = vpack.c.b16 %v7083, %v7077
        %v7108 = vpack.c.b16 %v7084, %v7078
        %v7109 = vpack.c.b16 %v7085, %v7079
        %v7110 = vpack.c.b16 %v7086, %v7080
        %v7111 = vpack.c.b16 %v7087, %v7081
        %v7137 = vsel %vm5082, %v7015, 0
        %7139 = vmatprep.subr.bf16.mxu0 %v7089
        %7140 = vmatpush1.bf16.msra.mxu0 %v7088
        %7141 = vmatprep.subr.bf16.mxu0 %v7095
        %7142 = vmatpush1.bf16.msra.mxu0 %v7094
        %7143 = vmatprep.subr.bf16.mxu0 %v7101
        %7144 = vmatpush1.bf16.msra.mxu0 %v7100
        %7145 = vmatprep.subr.bf16.mxu0 %v7107
        %7146 = vmatpush1.bf16.msra.mxu0 %v7106
        %7147 = vmatprep.subr.bf16.mxu0 0
        %7148 = vmatpush1.bf16.msra.mxu0 0
        %7149 = vmatprep.subr.bf16.mxu0 0
        %7150 = vmatpush1.bf16.msra.mxu0 0
        %7151 = vmatprep.subr.bf16.mxu0 0
        %7152 = vmatpush1.bf16.msra.mxu0 0
        %7153 = vmatprep.subr.bf16.mxu0 0
        %7154 = vmatpush1.bf16.msra.mxu0 0
        %7155 = vmatprep.subr.bf16.mxu0 0
        %7156 = vmatpush1.bf16.msra.mxu0 0
        %7157 = vmatprep.subr.bf16.mxu0 0
        %7158 = vmatpush1.bf16.msra.mxu0 0
        %7159 = vmatprep.subr.bf16.mxu0 0
        %7160 = vmatpush1.bf16.msra.mxu0 0
        %7161 = vmatprep.subr.bf16.mxu0 0
        %7162 = vmatpush1.bf16.msra.mxu0 0
        %7163 = vmatprep.subr.bf16.mxu0 0
        %7164 = vmatpush1.bf16.msra.mxu0 0
        %7165 = vmatprep.subr.bf16.mxu0 0
        %7166 = vmatpush1.bf16.msra.mxu0 0
        %7167 = vmatprep.subr.bf16.mxu0 0
        %7168 = vmatpush1.bf16.msra.mxu0 0
        %7169 = vmatprep.subr.bf16.mxu0 0
        %7170 = vmatpush1.bf16.msra.mxu0 0
        %7171 = vmatprep.mubr.bf16.mxu0 0
        %7172 = vmatmul.mubr.bf16.gmra.mrb[0].mxu0 %v7137
        %v7173 = vpop.f32.mrb[0].mxu0
        %v7174 = vadd.f32 0.0, %v7173
        %v7175 = vpop.f32.mrb[0].mxu0
        %v7176 = vadd.f32 0.0, %v7175
        %v7177 = vpop.f32.mrb[0].mxu0
        %v7178 = vpop.f32.mrb[0].mxu0
        %7179 = vdwg.mxu0
        %7180 = vmatprep.subr.bf16.mxu0 %v7091
        %7181 = vmatpush1.bf16.msra.mxu0 %v7090
        %7182 = vmatprep.subr.bf16.mxu0 %v7097
        %7183 = vmatpush1.bf16.msra.mxu0 %v7096
        %7184 = vmatprep.subr.bf16.mxu0 %v7103
        %7185 = vmatpush1.bf16.msra.mxu0 %v7102
        %7186 = vmatprep.subr.bf16.mxu0 %v7109
        %7187 = vmatpush1.bf16.msra.mxu0 %v7108
        %7188 = vmatprep.subr.bf16.mxu0 0
        %7189 = vmatpush1.bf16.msra.mxu0 0
        %7190 = vmatprep.subr.bf16.mxu0 0
        %7191 = vmatpush1.bf16.msra.mxu0 0
        %7192 = vmatprep.subr.bf16.mxu0 0
        %7193 = vmatpush1.bf16.msra.mxu0 0
        %7194 = vmatprep.subr.bf16.mxu0 0
        %7195 = vmatpush1.bf16.msra.mxu0 0
        %7196 = vmatprep.subr.bf16.mxu0 0
        %7197 = vmatpush1.bf16.msra.mxu0 0
        %7198 = vmatprep.subr.bf16.mxu0 0
        %7199 = vmatpush1.bf16.msra.mxu0 0
        %7200 = vmatprep.subr.bf16.mxu0 0
        %7201 = vmatpush1.bf16.msra.mxu0 0
        %7202 = vmatprep.subr.bf16.mxu0 0
        %7203 = vmatpush1.bf16.msra.mxu0 0
        %7204 = vmatprep.subr.bf16.mxu0 0
        %7205 = vmatpush1.bf16.msra.mxu0 0
        %7206 = vmatprep.subr.bf16.mxu0 0
        %7207 = vmatpush1.bf16.msra.mxu0 0
        %7208 = vmatprep.subr.bf16.mxu0 0
        %7209 = vmatpush1.bf16.msra.mxu0 0
        %7210 = vmatprep.subr.bf16.mxu0 0
        %7211 = vmatpush1.bf16.msra.mxu0 0
        %7212 = vmatprep.mubr.bf16.mxu0 0
        %7213 = vmatmul.mubr.bf16.gmra.mrb[0].mxu0 %v7137
        %v7214 = vpop.f32.mrb[0].mxu0
        %v7215 = vadd.f32 0.0, %v7214
        %v7216 = vpop.f32.mrb[0].mxu0
        %v7217 = vadd.f32 0.0, %v7216
        %v7218 = vpop.f32.mrb[0].mxu0
        %v7219 = vpop.f32.mrb[0].mxu0
        %7220 = vdwg.mxu0
        %7221 = vmatprep.subr.bf16.mxu0 %v7093
        %7222 = vmatpush1.bf16.msra.mxu0 %v7092
        %7223 = vmatprep.subr.bf16.mxu0 %v7099
        %7224 = vmatpush1.bf16.msra.mxu0 %v7098
        %7225 = vmatprep.subr.bf16.mxu0 %v7105
        %7226 = vmatpush1.bf16.msra.mxu0 %v7104
        %7227 = vmatprep.subr.bf16.mxu0 %v7111
        %7228 = vmatpush1.bf16.msra.mxu0 %v7110
        %7229 = vmatprep.subr.bf16.mxu0 0
        %7230 = vmatpush1.bf16.msra.mxu0 0
        %7231 = vmatprep.subr.bf16.mxu0 0
        %7232 = vmatpush1.bf16.msra.mxu0 0
        %7233 = vmatprep.subr.bf16.mxu0 0
        %7234 = vmatpush1.bf16.msra.mxu0 0
        %7235 = vmatprep.subr.bf16.mxu0 0
        %7236 = vmatpush1.bf16.msra.mxu0 0
        %7237 = vmatprep.subr.bf16.mxu0 0
        %7238 = vmatpush1.bf16.msra.mxu0 0
        %7239 = vmatprep.subr.bf16.mxu0 0
        %7240 = vmatpush1.bf16.msra.mxu0 0
        %7241 = vmatprep.subr.bf16.mxu0 0
        %7242 = vmatpush1.bf16.msra.mxu0 0
        %7243 = vmatprep.subr.bf16.mxu0 0
        %7244 = vmatpush1.bf16.msra.mxu0 0
        %7245 = vmatprep.subr.bf16.mxu0 0
        %7246 = vmatpush1.bf16.msra.mxu0 0
        %7247 = vmatprep.subr.bf16.mxu0 0
        %7248 = vmatpush1.bf16.msra.mxu0 0
        %7249 = vmatprep.subr.bf16.mxu0 0
        %7250 = vmatpush1.bf16.msra.mxu0 0
        %7251 = vmatprep.subr.bf16.mxu0 0
        %7252 = vmatpush1.bf16.msra.mxu0 0
        %7253 = vmatprep.mubr.bf16.mxu0 0
        %7254 = vmatmul.mubr.bf16.gmra.mrb[0].mxu0 %v7137
        %v7255 = vpop.f32.mrb[0].mxu0
        %v7256 = vadd.f32 0.0, %v7255
        %v7257 = vpop.f32.mrb[0].mxu0
        %v7258 = vadd.f32 0.0, %v7257
        %v7259 = vpop.f32.mrb[0].mxu0
        %v7260 = vpop.f32.mrb[0].mxu0
        %7261 = vdwg.mxu0
        %v7262 = vadd.f32 %v6892, %v7174
        %v7263 = vadd.f32 %v6893, %v7176
        %v7264 = vadd.f32 %v6894, %v7215
        %v7265 = vadd.f32 %v6895, %v7217
        %v7266 = vadd.f32 %v6896, %v7256
        %v7267 = vadd.f32 %v6897, %v7258
        %v7269 = vsel %vm5082, %v5073, 0
        %v7272 = vsel %vm5082, %v5077, 0
        %7274 = vmatprep.subr.bf16.mxu0 0
        %7275 = vmatpush1.bf16.xpose.msra.mxu0 %v7272
        %7276 = vmatprep.subr.bf16.mxu0 0
        %7277 = vmatpush1.bf16.xpose.msra.mxu0 0
        %7278 = vmatprep.subr.bf16.mxu0 0
        %7279 = vmatpush1.bf16.xpose.msra.mxu0 0
        %7280 = vmatprep.subr.bf16.mxu0 0
        %7281 = vmatpush1.bf16.xpose.msra.mxu0 0
        %7282 = vmatprep.subr.bf16.mxu0 0
        %7283 = vmatpush1.bf16.xpose.msra.mxu0 0
        %7284 = vmatprep.subr.bf16.mxu0 0
        %7285 = vmatpush1.bf16.xpose.msra.mxu0 0
        %7286 = vmatprep.subr.bf16.mxu0 0
        %7287 = vmatpush1.bf16.xpose.msra.mxu0 0
        %7288 = vmatprep.subr.bf16.mxu0 0
        %7289 = vmatpush1.bf16.xpose.msra.mxu0 0
        %7290 = vmatprep.subr.bf16.mxu0 0
        %7291 = vmatpush1.bf16.xpose.msra.mxu0 0
        %7292 = vmatprep.subr.bf16.mxu0 0
        %7293 = vmatpush1.bf16.xpose.msra.mxu0 0
        %7294 = vmatprep.subr.bf16.mxu0 0
        %7295 = vmatpush1.bf16.xpose.msra.mxu0 0
        %7296 = vmatprep.subr.bf16.mxu0 0
        %7297 = vmatpush1.bf16.xpose.msra.mxu0 0
        %7298 = vmatprep.subr.bf16.mxu0 0
        %7299 = vmatpush1.bf16.xpose.msra.mxu0 0
        %7300 = vmatprep.subr.bf16.mxu0 0
        %7301 = vmatpush1.bf16.xpose.msra.mxu0 0
        %7302 = vmatprep.subr.bf16.mxu0 0
        %7303 = vmatpush1.bf16.xpose.msra.mxu0 0
        %7304 = vmatprep.subr.bf16.mxu0 0
        %7305 = vmatpush1.bf16.xpose.msra.mxu0 0
        %7306 = vmatprep.mubr.bf16.mxu0 0
        %7307 = vmatmul.mubr.bf16.gmra.mrb[0].mxu0 %v7269
        %v7308 = vpop.f32.mrb[0].mxu0
        %v7309 = vadd.f32 0.0, %v7308
        %v7310 = vpop.f32.mrb[0].mxu0
        %v7311 = vpop.f32.mrb[0].mxu0
        %v7312 = vpop.f32.mrb[0].mxu0
        %7313 = vdwg.mxu0
        %v7314 = vmul.f32 %v7309, 0.125
        %v7315 = vsel %vm5132, -1e+09, %v7314
        %v7316 = vsel %vm5134, %v7315, -inf
        %7317 = vmax.xlane.f32.xlu0 %v7316
        %v7318 = vpop.xlane.xlu0 %7317
        %v7319 = vsub.f32 %v7315, %v7318
        %v7320 = vmul.f32 %v7319, 1.442695
        %v7321 = vpow.pop %v7320
        %v7322 = vsel %vm5134, %v7321, 0.0
        %7323 = vadd.xlane.f32.xlu0 %v7322
        %v7324 = vpop.xlane.xlu0 %7323
        %v7325 = vrcp.pop %v7324
        %v7326 = vmul.f32 %v7321, %v7325
        %s7327 = scalar_lea.vmem %s604, 48 [#allocation17]
        %7328 = vst.msk [vmem:[%s7327] sm:$0xff] %vm5134, %v7326
        %v7329 = vpack.c.bf16 %v7326, %v7326
        %v7331 = vsel %vm5134, %v7329, 0
        %v7334 = vsel %vm5151, %v5081, 0
        %7336 = vmatprep.subr.bf16.mxu0 0
        %7337 = vmatpush1.bf16.msra.mxu0 %v7334
        %7338 = vmatprep.subr.bf16.mxu0 0
        %7339 = vmatpush1.bf16.msra.mxu0 0
        %7340 = vmatprep.subr.bf16.mxu0 0
        %7341 = vmatpush1.bf16.msra.mxu0 0
        %7342 = vmatprep.subr.bf16.mxu0 0
        %7343 = vmatpush1.bf16.msra.mxu0 0
        %7344 = vmatprep.subr.bf16.mxu0 0
        %7345 = vmatpush1.bf16.msra.mxu0 0
        %7346 = vmatprep.subr.bf16.mxu0 0
        %7347 = vmatpush1.bf16.msra.mxu0 0
        %7348 = vmatprep.subr.bf16.mxu0 0
        %7349 = vmatpush1.bf16.msra.mxu0 0
        %7350 = vmatprep.subr.bf16.mxu0 0
        %7351 = vmatpush1.bf16.msra.mxu0 0
        %7352 = vmatprep.subr.bf16.mxu0 0
        %7353 = vmatpush1.bf16.msra.mxu0 0
        %7354 = vmatprep.subr.bf16.mxu0 0
        %7355 = vmatpush1.bf16.msra.mxu0 0
        %7356 = vmatprep.subr.bf16.mxu0 0
        %7357 = vmatpush1.bf16.msra.mxu0 0
        %7358 = vmatprep.subr.bf16.mxu0 0
        %7359 = vmatpush1.bf16.msra.mxu0 0
        %7360 = vmatprep.subr.bf16.mxu0 0
        %7361 = vmatpush1.bf16.msra.mxu0 0
        %7362 = vmatprep.subr.bf16.mxu0 0
        %7363 = vmatpush1.bf16.msra.mxu0 0
        %7364 = vmatprep.subr.bf16.mxu0 0
        %7365 = vmatpush1.bf16.msra.mxu0 0
        %7366 = vmatprep.subr.bf16.mxu0 0
        %7367 = vmatpush1.bf16.msra.mxu0 0
        %7368 = vmatprep.mubr.bf16.mxu0 0
        %7369 = vmatmul.mubr.bf16.gmra.mrb[0].mxu0 %v7331
        %v7370 = vpop.f32.mrb[0].mxu0
        %v7371 = vadd.f32 0.0, %v7370
        %v7372 = vpop.f32.mrb[0].mxu0
        %v7373 = vpop.f32.mrb[0].mxu0
        %v7374 = vpop.f32.mrb[0].mxu0
        %7375 = vdwg.mxu0
        %v7376 = vpack.c.bf16 %v7371, %v7371
        %v7401 = vunpack.c.l.b16 %v1339
        %v7402 = vunpack.c.h.b16 %v1339
        %v7403 = vunpack.c.l.b16 %v1340
        %v7404 = vunpack.c.h.b16 %v1340
        %v7405 = vunpack.c.l.b16 %v1341
        %v7406 = vunpack.c.h.b16 %v1341
        %v7407 = vunpack.c.l.b16 %v1342
        %v7408 = vunpack.c.h.b16 %v1342
        %v7409 = vunpack.c.l.b16 %v1343
        %v7410 = vunpack.c.h.b16 %v1343
        %v7411 = vunpack.c.l.b16 %v1344
        %v7412 = vunpack.c.h.b16 %v1344
        %v7413 = vunpack.c.l.b16 %v1345
        %v7414 = vunpack.c.h.b16 %v1345
        %v7415 = vunpack.c.l.b16 %v1346
        %v7416 = vunpack.c.h.b16 %v1346
        %v7417 = vunpack.c.l.b16 %v1347
        %v7418 = vunpack.c.h.b16 %v1347
        %v7419 = vunpack.c.l.b16 %v1348
        %v7420 = vunpack.c.h.b16 %v1348
        %v7421 = vunpack.c.l.b16 %v1349
        %v7422 = vunpack.c.h.b16 %v1349
        %v7423 = vunpack.c.l.b16 %v1350
        %v7424 = vunpack.c.h.b16 %v1350
        %v7425 = vunpack.c.l.b16 %v1351
        %v7426 = vunpack.c.h.b16 %v1351
        %v7427 = vunpack.c.l.b16 %v1352
        %v7428 = vunpack.c.h.b16 %v1352
        %v7429 = vunpack.c.l.b16 %v1353
        %v7430 = vunpack.c.h.b16 %v1353
        %v7431 = vunpack.c.l.b16 %v1354
        %v7432 = vunpack.c.h.b16 %v1354
        %v7433 = vunpack.c.l.b16 %v1355
        %v7434 = vunpack.c.h.b16 %v1355
        %v7435 = vunpack.c.l.b16 %v1356
        %v7436 = vunpack.c.h.b16 %v1356
        %v7437 = vunpack.c.l.b16 %v1357
        %v7438 = vunpack.c.h.b16 %v1357
        %v7439 = vunpack.c.l.b16 %v1358
        %v7440 = vunpack.c.h.b16 %v1358
        %v7441 = vunpack.c.l.b16 %v1359
        %v7442 = vunpack.c.h.b16 %v1359
        %v7443 = vunpack.c.l.b16 %v1360
        %v7444 = vunpack.c.h.b16 %v1360
        %v7445 = vunpack.c.l.b16 %v1361
        %v7446 = vunpack.c.h.b16 %v1361
        %v7447 = vunpack.c.l.b16 %v1362
        %v7448 = vunpack.c.h.b16 %v1362
        %v7449 = vpack.c.b16 %v7407, %v7401
        %v7450 = vpack.c.b16 %v7408, %v7402
        %v7451 = vpack.c.b16 %v7409, %v7403
        %v7452 = vpack.c.b16 %v7410, %v7404
        %v7453 = vpack.c.b16 %v7411, %v7405
        %v7454 = vpack.c.b16 %v7412, %v7406
        %v7455 = vpack.c.b16 %v7419, %v7413
        %v7456 = vpack.c.b16 %v7420, %v7414
        %v7457 = vpack.c.b16 %v7421, %v7415
        %v7458 = vpack.c.b16 %v7422, %v7416
        %v7459 = vpack.c.b16 %v7423, %v7417
        %v7460 = vpack.c.b16 %v7424, %v7418
        %v7461 = vpack.c.b16 %v7431, %v7425
        %v7462 = vpack.c.b16 %v7432, %v7426
        %v7463 = vpack.c.b16 %v7433, %v7427
        %v7464 = vpack.c.b16 %v7434, %v7428
        %v7465 = vpack.c.b16 %v7435, %v7429
        %v7466 = vpack.c.b16 %v7436, %v7430
        %v7467 = vpack.c.b16 %v7443, %v7437
        %v7468 = vpack.c.b16 %v7444, %v7438
        %v7469 = vpack.c.b16 %v7445, %v7439
        %v7470 = vpack.c.b16 %v7446, %v7440
        %v7471 = vpack.c.b16 %v7447, %v7441
        %v7472 = vpack.c.b16 %v7448, %v7442
        %v7498 = vsel %vm5082, %v7376, 0
        %7500 = vmatprep.subr.bf16.mxu0 %v7450
        %7501 = vmatpush1.bf16.msra.mxu0 %v7449
        %7502 = vmatprep.subr.bf16.mxu0 %v7456
        %7503 = vmatpush1.bf16.msra.mxu0 %v7455
        %7504 = vmatprep.subr.bf16.mxu0 %v7462
        %7505 = vmatpush1.bf16.msra.mxu0 %v7461
        %7506 = vmatprep.subr.bf16.mxu0 %v7468
        %7507 = vmatpush1.bf16.msra.mxu0 %v7467
        %7508 = vmatprep.subr.bf16.mxu0 0
        %7509 = vmatpush1.bf16.msra.mxu0 0
        %7510 = vmatprep.subr.bf16.mxu0 0
        %7511 = vmatpush1.bf16.msra.mxu0 0
        %7512 = vmatprep.subr.bf16.mxu0 0
        %7513 = vmatpush1.bf16.msra.mxu0 0
        %7514 = vmatprep.subr.bf16.mxu0 0
        %7515 = vmatpush1.bf16.msra.mxu0 0
        %7516 = vmatprep.subr.bf16.mxu0 0
        %7517 = vmatpush1.bf16.msra.mxu0 0
        %7518 = vmatprep.subr.bf16.mxu0 0
        %7519 = vmatpush1.bf16.msra.mxu0 0
        %7520 = vmatprep.subr.bf16.mxu0 0
        %7521 = vmatpush1.bf16.msra.mxu0 0
        %7522 = vmatprep.subr.bf16.mxu0 0
        %7523 = vmatpush1.bf16.msra.mxu0 0
        %7524 = vmatprep.subr.bf16.mxu0 0
        %7525 = vmatpush1.bf16.msra.mxu0 0
        %7526 = vmatprep.subr.bf16.mxu0 0
        %7527 = vmatpush1.bf16.msra.mxu0 0
        %7528 = vmatprep.subr.bf16.mxu0 0
        %7529 = vmatpush1.bf16.msra.mxu0 0
        %7530 = vmatprep.subr.bf16.mxu0 0
        %7531 = vmatpush1.bf16.msra.mxu0 0
        %7532 = vmatprep.mubr.bf16.mxu0 0
        %7533 = vmatmul.mubr.bf16.gmra.mrb[0].mxu0 %v7498
        %v7534 = vpop.f32.mrb[0].mxu0
        %v7535 = vadd.f32 0.0, %v7534
        %v7536 = vpop.f32.mrb[0].mxu0
        %v7537 = vadd.f32 0.0, %v7536
        %v7538 = vpop.f32.mrb[0].mxu0
        %v7539 = vpop.f32.mrb[0].mxu0
        %7540 = vdwg.mxu0
        %7541 = vmatprep.subr.bf16.mxu0 %v7452
        %7542 = vmatpush1.bf16.msra.mxu0 %v7451
        %7543 = vmatprep.subr.bf16.mxu0 %v7458
        %7544 = vmatpush1.bf16.msra.mxu0 %v7457
        %7545 = vmatprep.subr.bf16.mxu0 %v7464
        %7546 = vmatpush1.bf16.msra.mxu0 %v7463
        %7547 = vmatprep.subr.bf16.mxu0 %v7470
        %7548 = vmatpush1.bf16.msra.mxu0 %v7469
        %7549 = vmatprep.subr.bf16.mxu0 0
        %7550 = vmatpush1.bf16.msra.mxu0 0
        %7551 = vmatprep.subr.bf16.mxu0 0
        %7552 = vmatpush1.bf16.msra.mxu0 0
        %7553 = vmatprep.subr.bf16.mxu0 0
        %7554 = vmatpush1.bf16.msra.mxu0 0
        %7555 = vmatprep.subr.bf16.mxu0 0
        %7556 = vmatpush1.bf16.msra.mxu0 0
        %7557 = vmatprep.subr.bf16.mxu0 0
        %7558 = vmatpush1.bf16.msra.mxu0 0
        %7559 = vmatprep.subr.bf16.mxu0 0
        %7560 = vmatpush1.bf16.msra.mxu0 0
        %7561 = vmatprep.subr.bf16.mxu0 0
        %7562 = vmatpush1.bf16.msra.mxu0 0
        %7563 = vmatprep.subr.bf16.mxu0 0
        %7564 = vmatpush1.bf16.msra.mxu0 0
        %7565 = vmatprep.subr.bf16.mxu0 0
        %7566 = vmatpush1.bf16.msra.mxu0 0
        %7567 = vmatprep.subr.bf16.mxu0 0
        %7568 = vmatpush1.bf16.msra.mxu0 0
        %7569 = vmatprep.subr.bf16.mxu0 0
        %7570 = vmatpush1.bf16.msra.mxu0 0
        %7571 = vmatprep.subr.bf16.mxu0 0
        %7572 = vmatpush1.bf16.msra.mxu0 0
        %7573 = vmatprep.mubr.bf16.mxu0 0
        %7574 = vmatmul.mubr.bf16.gmra.mrb[0].mxu0 %v7498
        %v7575 = vpop.f32.mrb[0].mxu0
        %v7576 = vadd.f32 0.0, %v7575
        %v7577 = vpop.f32.mrb[0].mxu0
        %v7578 = vadd.f32 0.0, %v7577
        %v7579 = vpop.f32.mrb[0].mxu0
        %v7580 = vpop.f32.mrb[0].mxu0
        %7581 = vdwg.mxu0
        %7582 = vmatprep.subr.bf16.mxu0 %v7454
        %7583 = vmatpush1.bf16.msra.mxu0 %v7453
        %7584 = vmatprep.subr.bf16.mxu0 %v7460
        %7585 = vmatpush1.bf16.msra.mxu0 %v7459
        %7586 = vmatprep.subr.bf16.mxu0 %v7466
        %7587 = vmatpush1.bf16.msra.mxu0 %v7465
        %7588 = vmatprep.subr.bf16.mxu0 %v7472
        %7589 = vmatpush1.bf16.msra.mxu0 %v7471
        %7590 = vmatprep.subr.bf16.mxu0 0
        %7591 = vmatpush1.bf16.msra.mxu0 0
        %7592 = vmatprep.subr.bf16.mxu0 0
        %7593 = vmatpush1.bf16.msra.mxu0 0
        %7594 = vmatprep.subr.bf16.mxu0 0
        %7595 = vmatpush1.bf16.msra.mxu0 0
        %7596 = vmatprep.subr.bf16.mxu0 0
        %7597 = vmatpush1.bf16.msra.mxu0 0
        %7598 = vmatprep.subr.bf16.mxu0 0
        %7599 = vmatpush1.bf16.msra.mxu0 0
        %7600 = vmatprep.subr.bf16.mxu0 0
        %7601 = vmatpush1.bf16.msra.mxu0 0
        %7602 = vmatprep.subr.bf16.mxu0 0
        %7603 = vmatpush1.bf16.msra.mxu0 0
        %7604 = vmatprep.subr.bf16.mxu0 0
        %7605 = vmatpush1.bf16.msra.mxu0 0
        %7606 = vmatprep.subr.bf16.mxu0 0
        %7607 = vmatpush1.bf16.msra.mxu0 0
        %7608 = vmatprep.subr.bf16.mxu0 0
        %7609 = vmatpush1.bf16.msra.mxu0 0
        %7610 = vmatprep.subr.bf16.mxu0 0
        %7611 = vmatpush1.bf16.msra.mxu0 0
        %7612 = vmatprep.subr.bf16.mxu0 0
        %7613 = vmatpush1.bf16.msra.mxu0 0
        %7614 = vmatprep.mubr.bf16.mxu0 0
        %7615 = vmatmul.mubr.bf16.gmra.mrb[0].mxu0 %v7498
        %v7616 = vpop.f32.mrb[0].mxu0
        %v7617 = vadd.f32 0.0, %v7616
        %v7618 = vpop.f32.mrb[0].mxu0
        %v7619 = vadd.f32 0.0, %v7618
        %v7620 = vpop.f32.mrb[0].mxu0
        %v7621 = vpop.f32.mrb[0].mxu0
        %7622 = vdwg.mxu0
        %v7623 = vadd.f32 %v7262, %v7535
        %v7624 = vadd.f32 %v7263, %v7537
        %v7625 = vadd.f32 %v7264, %v7576
        %v7626 = vadd.f32 %v7265, %v7578
        %v7627 = vadd.f32 %v7266, %v7617
        %v7628 = vadd.f32 %v7267, %v7619
        %7630 = vrot.lane.b32.xlu0 %v5073, 64
        %v7631 = vpop.permute.xlu0 %7630
        %7633 = vrot.lane.b32.xlu0 %v5077, 64
        %v7634 = vpop.permute.xlu0 %7633
        %v7636 = vsel %vm5082, %v7631, 0
        %v7639 = vsel %vm5082, %v7634, 0
        %7641 = vmatprep.subr.bf16.mxu0 0
        %7642 = vmatpush1.bf16.xpose.msra.mxu0 %v7639
        %7643 = vmatprep.subr.bf16.mxu0 0
        %7644 = vmatpush1.bf16.xpose.msra.mxu0 0
        %7645 = vmatprep.subr.bf16.mxu0 0
        %7646 = vmatpush1.bf16.xpose.msra.mxu0 0
        %7647 = vmatprep.subr.bf16.mxu0 0
        %7648 = vmatpush1.bf16.xpose.msra.mxu0 0
        %7649 = vmatprep.subr.bf16.mxu0 0
        %7650 = vmatpush1.bf16.xpose.msra.mxu0 0
        %7651 = vmatprep.subr.bf16.mxu0 0
        %7652 = vmatpush1.bf16.xpose.msra.mxu0 0
        %7653 = vmatprep.subr.bf16.mxu0 0
        %7654 = vmatpush1.bf16.xpose.msra.mxu0 0
        %7655 = vmatprep.subr.bf16.mxu0 0
        %7656 = vmatpush1.bf16.xpose.msra.mxu0 0
        %7657 = vmatprep.subr.bf16.mxu0 0
        %7658 = vmatpush1.bf16.xpose.msra.mxu0 0
        %7659 = vmatprep.subr.bf16.mxu0 0
        %7660 = vmatpush1.bf16.xpose.msra.mxu0 0
        %7661 = vmatprep.subr.bf16.mxu0 0
        %7662 = vmatpush1.bf16.xpose.msra.mxu0 0
        %7663 = vmatprep.subr.bf16.mxu0 0
        %7664 = vmatpush1.bf16.xpose.msra.mxu0 0
        %7665 = vmatprep.subr.bf16.mxu0 0
        %7666 = vmatpush1.bf16.xpose.msra.mxu0 0
        %7667 = vmatprep.subr.bf16.mxu0 0
        %7668 = vmatpush1.bf16.xpose.msra.mxu0 0
        %7669 = vmatprep.subr.bf16.mxu0 0
        %7670 = vmatpush1.bf16.xpose.msra.mxu0 0
        %7671 = vmatprep.subr.bf16.mxu0 0
        %7672 = vmatpush1.bf16.xpose.msra.mxu0 0
        %7673 = vmatprep.mubr.bf16.mxu0 0
        %7674 = vmatmul.mubr.bf16.gmra.mrb[0].mxu0 %v7636
        %v7675 = vpop.f32.mrb[0].mxu0
        %v7676 = vadd.f32 0.0, %v7675
        %v7677 = vpop.f32.mrb[0].mxu0
        %v7678 = vpop.f32.mrb[0].mxu0
        %v7679 = vpop.f32.mrb[0].mxu0
        %7680 = vdwg.mxu0
        %v7681 = vmul.f32 %v7676, 0.125
        %v7682 = vsel %vm5132, -1e+09, %v7681
        %v7683 = vsel %vm5134, %v7682, -inf
        %7684 = vmax.xlane.f32.xlu0 %v7683
        %v7685 = vpop.xlane.xlu0 %7684
        %v7686 = vsub.f32 %v7682, %v7685
        %v7687 = vmul.f32 %v7686, 1.442695
        %v7688 = vpow.pop %v7687
        %v7689 = vsel %vm5134, %v7688, 0.0
        %7690 = vadd.xlane.f32.xlu0 %v7689
        %v7691 = vpop.xlane.xlu0 %7690
        %v7692 = vrcp.pop %v7691
        %v7693 = vmul.f32 %v7688, %v7692
        %s7694 = scalar_lea.vmem %s604, 56 [#allocation17]
        %7695 = vst.msk [vmem:[%s7694] sm:$0xff] %vm5134, %v7693
        %v7696 = vpack.c.bf16 %v7693, %v7693
        %7698 = vrot.lane.b32.xlu0 %v5081, 64
        %v7699 = vpop.permute.xlu0 %7698
        %v7701 = vsel %vm5134, %v7696, 0
        %v7704 = vsel %vm5151, %v7699, 0
        %7706 = vmatprep.subr.bf16.mxu0 0
        %7707 = vmatpush1.bf16.msra.mxu0 %v7704
        %7708 = vmatprep.subr.bf16.mxu0 0
        %7709 = vmatpush1.bf16.msra.mxu0 0
        %7710 = vmatprep.subr.bf16.mxu0 0
        %7711 = vmatpush1.bf16.msra.mxu0 0
        %7712 = vmatprep.subr.bf16.mxu0 0
        %7713 = vmatpush1.bf16.msra.mxu0 0
        %7714 = vmatprep.subr.bf16.mxu0 0
        %7715 = vmatpush1.bf16.msra.mxu0 0
        %7716 = vmatprep.subr.bf16.mxu0 0
        %7717 = vmatpush1.bf16.msra.mxu0 0
        %7718 = vmatprep.subr.bf16.mxu0 0
        %7719 = vmatpush1.bf16.msra.mxu0 0
        %7720 = vmatprep.subr.bf16.mxu0 0
        %7721 = vmatpush1.bf16.msra.mxu0 0
        %7722 = vmatprep.subr.bf16.mxu0 0
        %7723 = vmatpush1.bf16.msra.mxu0 0
        %7724 = vmatprep.subr.bf16.mxu0 0
        %7725 = vmatpush1.bf16.msra.mxu0 0
        %7726 = vmatprep.subr.bf16.mxu0 0
        %7727 = vmatpush1.bf16.msra.mxu0 0
        %7728 = vmatprep.subr.bf16.mxu0 0
        %7729 = vmatpush1.bf16.msra.mxu0 0
        %7730 = vmatprep.subr.bf16.mxu0 0
        %7731 = vmatpush1.bf16.msra.mxu0 0
        %7732 = vmatprep.subr.bf16.mxu0 0
        %7733 = vmatpush1.bf16.msra.mxu0 0
        %7734 = vmatprep.subr.bf16.mxu0 0
        %7735 = vmatpush1.bf16.msra.mxu0 0
        %7736 = vmatprep.subr.bf16.mxu0 0
        %7737 = vmatpush1.bf16.msra.mxu0 0
        %7738 = vmatprep.mubr.bf16.mxu0 0
        %7739 = vmatmul.mubr.bf16.gmra.mrb[0].mxu0 %v7701
        %v7740 = vpop.f32.mrb[0].mxu0
        %v7741 = vadd.f32 0.0, %v7740
        %v7742 = vpop.f32.mrb[0].mxu0
        %v7743 = vpop.f32.mrb[0].mxu0
        %v7744 = vpop.f32.mrb[0].mxu0
        %7745 = vdwg.mxu0
        %v7746 = vpack.c.bf16 %v7741, %v7741
        %v7771 = vunpack.c.l.b16 %v1363
        %v7772 = vunpack.c.h.b16 %v1363
        %v7773 = vunpack.c.l.b16 %v1364
        %v7774 = vunpack.c.h.b16 %v1364
        %v7775 = vunpack.c.l.b16 %v1365
        %v7776 = vunpack.c.h.b16 %v1365
        %v7777 = vunpack.c.l.b16 %v1366
        %v7778 = vunpack.c.h.b16 %v1366
        %v7779 = vunpack.c.l.b16 %v1367
        %v7780 = vunpack.c.h.b16 %v1367
        %v7781 = vunpack.c.l.b16 %v1368
        %v7782 = vunpack.c.h.b16 %v1368
        %v7783 = vunpack.c.l.b16 %v1369
        %v7784 = vunpack.c.h.b16 %v1369
        %v7785 = vunpack.c.l.b16 %v1370
        %v7786 = vunpack.c.h.b16 %v1370
        %v7787 = vunpack.c.l.b16 %v1371
        %v7788 = vunpack.c.h.b16 %v1371
        %v7789 = vunpack.c.l.b16 %v1372
        %v7790 = vunpack.c.h.b16 %v1372
        %v7791 = vunpack.c.l.b16 %v1373
        %v7792 = vunpack.c.h.b16 %v1373
        %v7793 = vunpack.c.l.b16 %v1374
        %v7794 = vunpack.c.h.b16 %v1374
        %v7795 = vunpack.c.l.b16 %v1375
        %v7796 = vunpack.c.h.b16 %v1375
        %v7797 = vunpack.c.l.b16 %v1376
        %v7798 = vunpack.c.h.b16 %v1376
        %v7799 = vunpack.c.l.b16 %v1377
        %v7800 = vunpack.c.h.b16 %v1377
        %v7801 = vunpack.c.l.b16 %v1378
        %v7802 = vunpack.c.h.b16 %v1378
        %v7803 = vunpack.c.l.b16 %v1379
        %v7804 = vunpack.c.h.b16 %v1379
        %v7805 = vunpack.c.l.b16 %v1380
        %v7806 = vunpack.c.h.b16 %v1380
        %v7807 = vunpack.c.l.b16 %v1381
        %v7808 = vunpack.c.h.b16 %v1381
        %v7809 = vunpack.c.l.b16 %v1382
        %v7810 = vunpack.c.h.b16 %v1382
        %v7811 = vunpack.c.l.b16 %v1383
        %v7812 = vunpack.c.h.b16 %v1383
        %v7813 = vunpack.c.l.b16 %v1384
        %v7814 = vunpack.c.h.b16 %v1384
        %v7815 = vunpack.c.l.b16 %v1385
        %v7816 = vunpack.c.h.b16 %v1385
        %v7817 = vunpack.c.l.b16 %v1386
        %v7818 = vunpack.c.h.b16 %v1386
        %v7819 = vpack.c.b16 %v7777, %v7771
        %v7820 = vpack.c.b16 %v7778, %v7772
        %v7821 = vpack.c.b16 %v7779, %v7773
        %v7822 = vpack.c.b16 %v7780, %v7774
        %v7823 = vpack.c.b16 %v7781, %v7775
        %v7824 = vpack.c.b16 %v7782, %v7776
        %v7825 = vpack.c.b16 %v7789, %v7783
        %v7826 = vpack.c.b16 %v7790, %v7784
        %v7827 = vpack.c.b16 %v7791, %v7785
        %v7828 = vpack.c.b16 %v7792, %v7786
        %v7829 = vpack.c.b16 %v7793, %v7787
        %v7830 = vpack.c.b16 %v7794, %v7788
        %v7831 = vpack.c.b16 %v7801, %v7795
        %v7832 = vpack.c.b16 %v7802, %v7796
        %v7833 = vpack.c.b16 %v7803, %v7797
        %v7834 = vpack.c.b16 %v7804, %v7798
        %v7835 = vpack.c.b16 %v7805, %v7799
        %v7836 = vpack.c.b16 %v7806, %v7800
        %v7837 = vpack.c.b16 %v7813, %v7807
        %v7838 = vpack.c.b16 %v7814, %v7808
        %v7839 = vpack.c.b16 %v7815, %v7809
        %v7840 = vpack.c.b16 %v7816, %v7810
        %v7841 = vpack.c.b16 %v7817, %v7811
        %v7842 = vpack.c.b16 %v7818, %v7812
        %v7868 = vsel %vm5082, %v7746, 0
        %7870 = vmatprep.subr.bf16.mxu0 %v7820
        %7871 = vmatpush1.bf16.msra.mxu0 %v7819
        %7872 = vmatprep.subr.bf16.mxu0 %v7826
        %7873 = vmatpush1.bf16.msra.mxu0 %v7825
        %7874 = vmatprep.subr.bf16.mxu0 %v7832
        %7875 = vmatpush1.bf16.msra.mxu0 %v7831
        %7876 = vmatprep.subr.bf16.mxu0 %v7838
        %7877 = vmatpush1.bf16.msra.mxu0 %v7837
        %7878 = vmatprep.subr.bf16.mxu0 0
        %7879 = vmatpush1.bf16.msra.mxu0 0
        %7880 = vmatprep.subr.bf16.mxu0 0
        %7881 = vmatpush1.bf16.msra.mxu0 0
        %7882 = vmatprep.subr.bf16.mxu0 0
        %7883 = vmatpush1.bf16.msra.mxu0 0
        %7884 = vmatprep.subr.bf16.mxu0 0
        %7885 = vmatpush1.bf16.msra.mxu0 0
        %7886 = vmatprep.subr.bf16.mxu0 0
        %7887 = vmatpush1.bf16.msra.mxu0 0
        %7888 = vmatprep.subr.bf16.mxu0 0
        %7889 = vmatpush1.bf16.msra.mxu0 0
        %7890 = vmatprep.subr.bf16.mxu0 0
        %7891 = vmatpush1.bf16.msra.mxu0 0
        %7892 = vmatprep.subr.bf16.mxu0 0
        %7893 = vmatpush1.bf16.msra.mxu0 0
        %7894 = vmatprep.subr.bf16.mxu0 0
        %7895 = vmatpush1.bf16.msra.mxu0 0
        %7896 = vmatprep.subr.bf16.mxu0 0
        %7897 = vmatpush1.bf16.msra.mxu0 0
        %7898 = vmatprep.subr.bf16.mxu0 0
        %7899 = vmatpush1.bf16.msra.mxu0 0
        %7900 = vmatprep.subr.bf16.mxu0 0
        %7901 = vmatpush1.bf16.msra.mxu0 0
        %7902 = vmatprep.mubr.bf16.mxu0 0
        %7903 = vmatmul.mubr.bf16.gmra.mrb[0].mxu0 %v7868
        %v7904 = vpop.f32.mrb[0].mxu0
        %v7905 = vadd.f32 0.0, %v7904
        %v7906 = vpop.f32.mrb[0].mxu0
        %v7907 = vadd.f32 0.0, %v7906
        %v7908 = vpop.f32.mrb[0].mxu0
        %v7909 = vpop.f32.mrb[0].mxu0
        %7910 = vdwg.mxu0
        %7911 = vmatprep.subr.bf16.mxu0 %v7822
        %7912 = vmatpush1.bf16.msra.mxu0 %v7821
        %7913 = vmatprep.subr.bf16.mxu0 %v7828
        %7914 = vmatpush1.bf16.msra.mxu0 %v7827
        %7915 = vmatprep.subr.bf16.mxu0 %v7834
        %7916 = vmatpush1.bf16.msra.mxu0 %v7833
        %7917 = vmatprep.subr.bf16.mxu0 %v7840
        %7918 = vmatpush1.bf16.msra.mxu0 %v7839
        %7919 = vmatprep.subr.bf16.mxu0 0
        %7920 = vmatpush1.bf16.msra.mxu0 0
        %7921 = vmatprep.subr.bf16.mxu0 0
        %7922 = vmatpush1.bf16.msra.mxu0 0
        %7923 = vmatprep.subr.bf16.mxu0 0
        %7924 = vmatpush1.bf16.msra.mxu0 0
        %7925 = vmatprep.subr.bf16.mxu0 0
        %7926 = vmatpush1.bf16.msra.mxu0 0
        %7927 = vmatprep.subr.bf16.mxu0 0
        %7928 = vmatpush1.bf16.msra.mxu0 0
        %7929 = vmatprep.subr.bf16.mxu0 0
        %7930 = vmatpush1.bf16.msra.mxu0 0
        %7931 = vmatprep.subr.bf16.mxu0 0
        %7932 = vmatpush1.bf16.msra.mxu0 0
        %7933 = vmatprep.subr.bf16.mxu0 0
        %7934 = vmatpush1.bf16.msra.mxu0 0
        %7935 = vmatprep.subr.bf16.mxu0 0
        %7936 = vmatpush1.bf16.msra.mxu0 0
        %7937 = vmatprep.subr.bf16.mxu0 0
        %7938 = vmatpush1.bf16.msra.mxu0 0
        %7939 = vmatprep.subr.bf16.mxu0 0
        %7940 = vmatpush1.bf16.msra.mxu0 0
        %7941 = vmatprep.subr.bf16.mxu0 0
        %7942 = vmatpush1.bf16.msra.mxu0 0
        %7943 = vmatprep.mubr.bf16.mxu0 0
        %7944 = vmatmul.mubr.bf16.gmra.mrb[0].mxu0 %v7868
        %v7945 = vpop.f32.mrb[0].mxu0
        %v7946 = vadd.f32 0.0, %v7945
        %v7947 = vpop.f32.mrb[0].mxu0
        %v7948 = vadd.f32 0.0, %v7947
        %v7949 = vpop.f32.mrb[0].mxu0
        %v7950 = vpop.f32.mrb[0].mxu0
        %7951 = vdwg.mxu0
        %7952 = vmatprep.subr.bf16.mxu0 %v7824
        %7953 = vmatpush1.bf16.msra.mxu0 %v7823
        %7954 = vmatprep.subr.bf16.mxu0 %v7830
        %7955 = vmatpush1.bf16.msra.mxu0 %v7829
        %7956 = vmatprep.subr.bf16.mxu0 %v7836
        %7957 = vmatpush1.bf16.msra.mxu0 %v7835
        %7958 = vmatprep.subr.bf16.mxu0 %v7842
        %7959 = vmatpush1.bf16.msra.mxu0 %v7841
        %7960 = vmatprep.subr.bf16.mxu0 0
        %7961 = vmatpush1.bf16.msra.mxu0 0
        %7962 = vmatprep.subr.bf16.mxu0 0
        %7963 = vmatpush1.bf16.msra.mxu0 0
        %7964 = vmatprep.subr.bf16.mxu0 0
        %7965 = vmatpush1.bf16.msra.mxu0 0
        %7966 = vmatprep.subr.bf16.mxu0 0
        %7967 = vmatpush1.bf16.msra.mxu0 0
        %7968 = vmatprep.subr.bf16.mxu0 0
        %7969 = vmatpush1.bf16.msra.mxu0 0
        %7970 = vmatprep.subr.bf16.mxu0 0
        %7971 = vmatpush1.bf16.msra.mxu0 0
        %7972 = vmatprep.subr.bf16.mxu0 0
        %7973 = vmatpush1.bf16.msra.mxu0 0
        %7974 = vmatprep.subr.bf16.mxu0 0
        %7975 = vmatpush1.bf16.msra.mxu0 0
        %7976 = vmatprep.subr.bf16.mxu0 0
        %7977 = vmatpush1.bf16.msra.mxu0 0
        %7978 = vmatprep.subr.bf16.mxu0 0
        %7979 = vmatpush1.bf16.msra.mxu0 0
        %7980 = vmatprep.subr.bf16.mxu0 0
        %7981 = vmatpush1.bf16.msra.mxu0 0
        %7982 = vmatprep.subr.bf16.mxu0 0
        %7983 = vmatpush1.bf16.msra.mxu0 0
        %7984 = vmatprep.mubr.bf16.mxu0 0
        %7985 = vmatmul.mubr.bf16.gmra.mrb[0].mxu0 %v7868
        %v7986 = vpop.f32.mrb[0].mxu0
        %v7987 = vadd.f32 0.0, %v7986
        %v7988 = vpop.f32.mrb[0].mxu0
        %v7989 = vadd.f32 0.0, %v7988
        %v7990 = vpop.f32.mrb[0].mxu0
        %v7991 = vpop.f32.mrb[0].mxu0
        %7992 = vdwg.mxu0
        %v7993 = vadd.f32 %v7623, %v7905
        %v7994 = vadd.f32 %v7624, %v7907
        %v7995 = vadd.f32 %v7625, %v7946
        %v7996 = vadd.f32 %v7626, %v7948
        %v7997 = vadd.f32 %v7627, %v7987
        %v7998 = vadd.f32 %v7628, %v7989
        %v7999 = vunpack.c.l.bf16 %v608
        %v8000 = vunpack.c.h.bf16 %v608
        %v8001 = vunpack.c.l.bf16 %v609
        %v8002 = vunpack.c.h.bf16 %v609
        %v8003 = vunpack.c.l.bf16 %v610
        %v8004 = vunpack.c.h.bf16 %v610
        %v8005 = vadd.f32 %v7993, %v7999
        %v8006 = vadd.f32 %v7994, %v8000
        %v8007 = vadd.f32 %v7995, %v8001
        %v8008 = vadd.f32 %v7996, %v8002
        %v8009 = vadd.f32 %v7997, %v8003
        %v8010 = vadd.f32 %v7998, %v8004
        %v8011 = vadd.f32 %v8005, %v8006
        %v8012 = vadd.f32 %v8011, %v8007
        %v8013 = vadd.f32 %v8012, %v8008
        %v8014 = vadd.f32 %v8013, %v8009
        %v8015 = vadd.f32 %v8014, %v8010
        %8016 = vadd.xlane.f32.xlu0 %v8015
        %v8017 = vpop.xlane.xlu0 %8016
        %v8018 = vrcp.pop 768.0
        %v8019 = vmul.f32 %v8017, %v8018
        %v8020 = vsub.f32 %v8005, %v8019
        %v8021 = vsub.f32 %v8006, %v8019
        %v8022 = vsub.f32 %v8007, %v8019
        %v8023 = vsub.f32 %v8008, %v8019
        %v8024 = vsub.f32 %v8009, %v8019
        %v8025 = vsub.f32 %v8010, %v8019
        %v8026 = vmul.f32 %v8020, %v8020
        %v8027 = vmul.f32 %v8021, %v8021
        %v8028 = vmul.f32 %v8022, %v8022
        %v8029 = vmul.f32 %v8023, %v8023
        %v8030 = vmul.f32 %v8024, %v8024
        %v8031 = vmul.f32 %v8025, %v8025
        %v8032 = vadd.f32 %v8026, %v8027
        %v8033 = vadd.f32 %v8032, %v8028
        %v8034 = vadd.f32 %v8033, %v8029
        %v8035 = vadd.f32 %v8034, %v8030
        %v8036 = vadd.f32 %v8035, %v8031
        %8037 = vadd.xlane.f32.xlu0 %v8036
        %v8038 = vpop.xlane.xlu0 %8037
        %v8039 = vmul.f32 %v8038, %v8018
        %v8040 = vadd.f32 %v8039, 1e-05
        %v8041 = vrsqrt.pop %v8040
        %v8042 = vmul.f32 %v8020, %v8041
        %v8043 = vmul.f32 %v8021, %v8041
        %v8044 = vmul.f32 %v8022, %v8041
        %v8045 = vmul.f32 %v8023, %v8041
        %v8046 = vmul.f32 %v8024, %v8041
        %v8047 = vmul.f32 %v8025, %v8041
        %v8049 = vlaneseq
        %v8050 = vshrl.u32 %v8049, 7
        %v8051 = vsub.s32 0, %v8050
        %v8052 = vrot.slane %v1387, %v8051
        %v8053 = vlaneseq
        %v8054 = vshrl.u32 %v8053, 7
        %v8055 = vsub.s32 1, %v8054
        %v8056 = vrot.slane %v1387, %v8055
        %v8057 = vlaneseq
        %v8058 = vshrl.u32 %v8057, 7
        %v8059 = vsub.s32 2, %v8058
        %v8060 = vrot.slane %v1387, %v8059
        %v8061 = vlaneseq
        %v8062 = vshrl.u32 %v8061, 7
        %v8063 = vsub.s32 3, %v8062
        %v8064 = vrot.slane %v1387, %v8063
        %v8065 = vlaneseq
        %v8066 = vshrl.u32 %v8065, 7
        %v8067 = vsub.s32 4, %v8066
        %v8068 = vrot.slane %v1387, %v8067
        %v8069 = vlaneseq
        %v8070 = vshrl.u32 %v8069, 7
        %v8071 = vsub.s32 5, %v8070
        %v8072 = vrot.slane %v1387, %v8071
        %v8079 = vmul.f32 %v8042, %v8052
        %v8080 = vmul.f32 %v8043, %v8056
        %v8081 = vmul.f32 %v8044, %v8060
        %v8082 = vmul.f32 %v8045, %v8064
        %v8083 = vmul.f32 %v8046, %v8068
        %v8084 = vmul.f32 %v8047, %v8072
        %v8086 = vlaneseq
        %v8087 = vshrl.u32 %v8086, 7
        %v8088 = vsub.s32 0, %v8087
        %v8089 = vrot.slane %v1388, %v8088
        %v8090 = vlaneseq
        %v8091 = vshrl.u32 %v8090, 7
        %v8092 = vsub.s32 1, %v8091
        %v8093 = vrot.slane %v1388, %v8092
        %v8094 = vlaneseq
        %v8095 = vshrl.u32 %v8094, 7
        %v8096 = vsub.s32 2, %v8095
        %v8097 = vrot.slane %v1388, %v8096
        %v8098 = vlaneseq
        %v8099 = vshrl.u32 %v8098, 7
        %v8100 = vsub.s32 3, %v8099
        %v8101 = vrot.slane %v1388, %v8100
        %v8102 = vlaneseq
        %v8103 = vshrl.u32 %v8102, 7
        %v8104 = vsub.s32 4, %v8103
        %v8105 = vrot.slane %v1388, %v8104
        %v8106 = vlaneseq
        %v8107 = vshrl.u32 %v8106, 7
        %v8108 = vsub.s32 5, %v8107
        %v8109 = vrot.slane %v1388, %v8108
        %v8116 = vadd.f32 %v8079, %v8089
        %v8117 = vadd.f32 %v8080, %v8093
        %v8118 = vadd.f32 %v8081, %v8097
        %v8119 = vadd.f32 %v8082, %v8101
        %v8120 = vadd.f32 %v8083, %v8105
        %v8121 = vadd.f32 %v8084, %v8109
        %8122 = vst [vmem:[%s597] sm:$0xff] %v8116
        %8123 = vst [vmem:[%s597 + $0x8] sm:$0xff] %v8117
        %8124 = vst [vmem:[%s597 + $0x10] sm:$0xff] %v8118
        %8125 = vst [vmem:[%s597 + $0x18] sm:$0xff] %v8119
        %8126 = vst [vmem:[%s597 + $0x20] sm:$0xff] %v8120
        %8127 = vst [vmem:[%s597 + $0x28] sm:$0xff] %v8121
        %s8128 = sand.u32 %s296, 1
        %s8129 = scalar_lea.sflag [#allocation4], %s8128
        %s8130 = sand.u32 %s296, 1
        %s8131 = smul.addr %s8130, 48
        %s8132 = scalar_lea.vmem [#allocation16], %s8131
        %s8133 = sand.u32 %s324, 1
        %s8134 = scalar_lea.sflag [#allocation18], %s8133
        %s8135 = sand.u32 %s324, 1
        %s8136 = smul.addr %s8135, 64
        %s8137 = scalar_lea.vmem [#allocation17], %s8136
        // Predicated region
        $region93: #{tpu_custom_call.1} parent=59 // pred_check
          %p8138 = pneg %p306
        $region94: #{tpu_custom_call.1} parent=59 // pred_check_branch
          %8140 = sbr.rel (%p8138) target = $region96
        $region95: #{tpu_custom_call.1} parent=59 // pred_region
          %s8142 = ssub.s32 768, 768
          %8143 = vsyncadd %s8129, %s8142
          %s8144 = smul.addr %s45, 6
          %s8145 = smul.addr %s44, 6
          %s8146 = sadd.s32 %s8144, %s8145
          %s8147 = smul.addr %s8146, 128
          %s8148 = scalar_lea.hbm %s10, %s8147
          %s8150 = sshll.u32 %s8132, 4
          %s8151 = int_to_ptr.vmem [resolvable:$true] %s8150
          %8153 = dma.vmem_to_hbm [thread:$0]  %s8151, 768, %s8148, %s8129
        $region96: #{tpu_custom_call.1} parent=59 // pred_fallthru
          _
        // Predicated region
        $region97: #{tpu_custom_call.1} parent=59 // pred_check
          %p8154 = pneg %p334
        $region98: #{tpu_custom_call.1} parent=59 // pred_check_branch
          %8156 = sbr.rel (%p8154) target = $region100
        $region99: #{tpu_custom_call.1} parent=59 // pred_region
          %s8158 = ssub.s32 1024, 1024
          %8159 = vsyncadd %s8134, %s8158
          %s8160 = smul.addr %s44, 8
          %s8161 = sadd.s32 %s45, %s8160
          %s8162 = smul.addr %s8161, 128
          %s8163 = scalar_lea.hbm %s11, %s8162
          %s8164 = sshll.u32 %s8137, 4
          %s8165 = int_to_ptr.vmem [resolvable:$true] %s8164
          %8170 = dma.vmem_to_hbm [thread:$0]  %s8165, 1024, %s8163, %s8134, 128, 128, 8
        $region100: #{tpu_custom_call.1} parent=59 // pred_fallthru
          _
      $region60: #{tpu_custom_call.1} parent=5 // pred_fallthru
        _
      %p8171 = scmp.le.s32.totalorder 2, %s35
      // Predicated region
      $region101: #{tpu_custom_call.1} parent=5 // pred_check
        %p8172 = pneg %p8171
      $region102: #{tpu_custom_call.1} parent=5 // pred_check_branch
        %8174 = sbr.rel (%p8172) target = $region104
      $region103: #{tpu_custom_call.1} parent=5 // pred_region
        %s8175 = ssub.s32 %s35, 2
        // Predicated region
        $region105: #{tpu_custom_call.1} parent=103 // pred_check
          %p8176 = pneg %p312
        $region106: #{tpu_custom_call.1} parent=103 // pred_check_branch
          %8178 = sbr.rel (%p8176) target = $region108
        $region107: #{tpu_custom_call.1} parent=103 // pred_region
          %s8179 = sand.u32 %s297, 1
          %s8180 = scalar_lea.sflag [#allocation4], %s8179
          %s8181 = sand.u32 %s297, 1
          %s8182 = smul.addr %s8181, 48
          %s8183 = scalar_lea.vmem [#allocation16], %s8182
          %8184 = dma.done %s8180, 768
        $region108: #{tpu_custom_call.1} parent=103 // pred_fallthru
          _
        // Predicated region
        $region109: #{tpu_custom_call.1} parent=103 // pred_check
          %p8185 = pneg %p340
        $region110: #{tpu_custom_call.1} parent=103 // pred_check_branch
          %8187 = sbr.rel (%p8185) target = $region112
        $region111: #{tpu_custom_call.1} parent=103 // pred_region
          %s8188 = sand.u32 %s325, 1
          %s8189 = scalar_lea.sflag [#allocation18], %s8188
          %s8190 = sand.u32 %s325, 1
          %s8191 = smul.addr %s8190, 64
          %s8192 = scalar_lea.vmem [#allocation17], %s8191
          %8193 = dma.done %s8189, 1024
        $region112: #{tpu_custom_call.1} parent=103 // pred_fallthru
          _
      $region104: #{tpu_custom_call.1} parent=5 // pred_fallthru
        _
    $region6: #{tpu_custom_call.1} parent=1 // loop_footer
      %s39 = sadd.s32 1, %s35
    $region7: #{tpu_custom_call.1} parent=1 // loop_footer_branch
      %34 = sbr.rel target = $region3
    $region8: #{tpu_custom_call.1} parent=1 // loop_exit
      _
    %8194 = vsyncpa [#allocation3], 1
    %s8195 = scalar_lea.sflag [#allocation3], 1
    %8196 = vsyncpa %s8195, 1
    %8197 = vsyncpa [#allocation6], 1
    %s8198 = scalar_lea.sflag [#allocation6], 1
    %8199 = vsyncpa %s8198, 1
    %8200 = vsyncpa [#allocation9], 1
    %s8201 = scalar_lea.sflag [#allocation9], 1
    %8202 = vsyncpa %s8201, 1
    %8203 = vsyncpa [#allocation12], 1
    %8204 = vsyncpa [#allocation15], 1
    %8205 = vsyncpa [#allocation4], 1
    %s8206 = scalar_lea.sflag [#allocation4], 1
    %8207 = vsyncpa %s8206, 1
    %8208 = vsyncpa [#allocation18], 1
    %s8209 = scalar_lea.sflag [#allocation18], 1
    %8210 = vsyncpa %s8209, 1

</llo_original>
